<compile_context>
chip_gen: v7x
topology: tpu7x:2x2x1
jax: 0.10.0
libtpu: 0.0.40
codegen_flags: <defaults>
</compile_context>

<pallas_src>
import functools

import jax
import jax.numpy as jnp
from jax import lax
from jax.experimental import pallas as pl
from jax.experimental.pallas import tpu as pltpu

# MXU operand dtype for the tiny recurrent dots.  f32 keeps the strict reference tolerance;
# jnp.bfloat16 is the v6e/v7x latency lever (relax the allclose tolerance if you enable it).
MXU_DTYPE = jnp.float32


def _sigmoid(x):
    # Explicit form (exp + div) for robust Mosaic lowering; EUP handles exp.
    return 1.0 / (1.0 + jnp.exp(-x))


def decoder_kernel(code_ref,
                   w1ir_ref, w1iz_ref, w1in_ref,
                   w1hr_ref, w1hz_ref, w1hn_ref,
                   b1r_ref, b1z_ref, b1n_ref, b1hn_ref,
                   w2ir_ref, w2iz_ref, w2in_ref,
                   w2hr_ref, w2hz_ref, w2hn_ref,
                   b2r_ref, b2z_ref, b2n_ref, b2hn_ref,
                   out_ref, *, T, mxu_dtype):
    B = code_ref.shape[0]
    H = b1hn_ref.shape[1]          # hidden_size
    C = b2hn_ref.shape[1]          # code_size
    dt = mxu_dtype

    # ---- Weights / biases: loaded once, live in vregs across the unrolled loops ----
    w1hr = w1hr_ref[...].astype(dt)
    w1hz = w1hz_ref[...].astype(dt)
    w1hn = w1hn_ref[...].astype(dt)
    w2ir = w2ir_ref[...].astype(dt)
    w2iz = w2iz_ref[...].astype(dt)
    w2in = w2in_ref[...].astype(dt)
    w2hr = w2hr_ref[...].astype(dt)
    w2hz = w2hz_ref[...].astype(dt)
    w2hn = w2hn_ref[...].astype(dt)
    b1hn = b1hn_ref[...]
    b2hn = b2hn_ref[...]
    b2r = b2r_ref[...]
    b2z = b2z_ref[...]
    b2n = b2n_ref[...]

    # ---- Loop-invariant layer-1 input projection, per gate (input is time-invariant).
    #      b1r/b1z already contain the folded r/z hidden biases; b1n is b1_ih_n only. ----
    code = code_ref[...].astype(dt)
    gx1r = jnp.dot(code, w1ir_ref[...].astype(dt), preferred_element_type=jnp.float32) + b1r_ref[...]
    gx1z = jnp.dot(code, w1iz_ref[...].astype(dt), preferred_element_type=jnp.float32) + b1z_ref[...]
    gx1n = jnp.dot(code, w1in_ref[...].astype(dt), preferred_element_type=jnp.float32) + b1n_ref[...]

    # Register-carried hidden states (h0 = 0 as in PyTorch).
    h1 = jnp.zeros((B, H), jnp.float32)
    h2 = jnp.zeros((B, C), jnp.float32)

    # ---- Phase 1: layer-1 recurrence (fully unrolled, T is a static Python int).
    #      The layer-2 input projection for step t is issued here, right after h1_t, so it
    #      overlaps layer-1 step t+1 and stays off layer-2's recurrent chain. ----
    gx2_steps = []
    for _ in range(T):
        h1c = h1.astype(dt)
        gr = jnp.dot(h1c, w1hr, preferred_element_type=jnp.float32)
        gz = jnp.dot(h1c, w1hz, preferred_element_type=jnp.float32)
        gn = jnp.dot(h1c, w1hn, preferred_element_type=jnp.float32)
        r1 = _sigmoid(gx1r + gr)
        z1 = _sigmoid(gx1z + gz)
        n1 = jnp.tanh(gx1n + r1 * (gn + b1hn))
        h1 = n1 + z1 * (h1 - n1)                      # == (1-z1)*n1 + z1*h1

        # Dropout between layers: identity at inference (eval mode).
        h1d = h1.astype(dt)
        gx2_steps.append((
            jnp.dot(h1d, w2ir, preferred_element_type=jnp.float32) + b2r,
            jnp.dot(h1d, w2iz, preferred_element_type=jnp.float32) + b2z,
            jnp.dot(h1d, w2in, preferred_element_type=jnp.float32) + b2n,
        ))

    # ---- Phase 2: layer-2 recurrence (un-fused from layer 1 -> chains overlap under LLO) ----
    outs = []
    for t in range(T):
        gx2r, gx2z, gx2n = gx2_steps[t]
        h2c = h2.astype(dt)
        gr = jnp.dot(h2c, w2hr, preferred_element_type=jnp.float32)
        gz = jnp.dot(h2c, w2hz, preferred_element_type=jnp.float32)
        gn = jnp.dot(h2c, w2hn, preferred_element_type=jnp.float32)
        r2 = _sigmoid(gx2r + gr)
        z2 = _sigmoid(gx2z + gz)
        n2 = jnp.tanh(gx2n + r2 * (gn + b2hn))
        h2 = n2 + z2 * (h2 - n2)
        outs.append(h2)

    # ---- Single lane-dense store of the whole output (padded to a 128-lane multiple) ----
    P = out_ref.shape[1]
    if P > T * C:
        outs.append(jnp.zeros((B, P - T * C), jnp.float32))
    out_ref[...] = jnp.concatenate(outs, axis=1).astype(out_ref.dtype)


# -------------------- one-time parameter packing (off the per-call path) --------------------
def pack_params(params):
    """Transpose / split-per-gate / fold biases once; returns a flat tuple of f32 arrays."""
    f32 = jnp.float32
    H = params["b1_ih"].shape[0] // 3
    C = params["b2_ih"].shape[0] // 3

    def split3(w, n):       # (3n, k) -> three (k, n) transposed per-gate weights [r, z, n]
        w = w.astype(f32)
        return w[:n].T, w[n:2 * n].T, w[2 * n:].T

    w1ir, w1iz, w1in = split3(params["w1_ih"], H)
    w1hr, w1hz, w1hn = split3(params["w1_hh"], H)
    w2ir, w2iz, w2in = split3(params["w2_ih"], C)
    w2hr, w2hz, w2hn = split3(params["w2_hh"], C)

    b1i, b1h = params["b1_ih"].astype(f32), params["b1_hh"].astype(f32)
    b2i, b2h = params["b2_ih"].astype(f32), params["b2_hh"].astype(f32)
    # Fold r/z hidden biases into the input-path biases (exact for PyTorch GRU);
    # keep only the n-gate hidden bias separate (it sits inside r * (...)).
    b1r = (b1i[:H] + b1h[:H])[None, :]
    b1z = (b1i[H:2 * H] + b1h[H:2 * H])[None, :]
    b1n = b1i[2 * H:][None, :]
    b1hn = b1h[2 * H:][None, :]
    b2r = (b2i[:C] + b2h[:C])[None, :]
    b2z = (b2i[C:2 * C] + b2h[C:2 * C])[None, :]
    b2n = b2i[2 * C:][None, :]
    b2hn = b2h[2 * C:][None, :]

    return (w1ir, w1iz, w1in, w1hr, w1hz, w1hn, b1r, b1z, b1n, b1hn,
            w2ir, w2iz, w2in, w2hr, w2hz, w2hn, b2r, b2z, b2n, b2hn)


@functools.partial(jax.jit, static_argnames=("sequence_length",))
def decoder_forward(x, packed, sequence_length):
    """x: (1, B, input_size) exactly like the PyTorch module. Returns (B, T, code_size)."""
    code = x[0].astype(jnp.float32)               # (B, I): vector replicated over time
    B = code.shape[0]
    C = packed[19].shape[1]                       # b2hn -> code_size
    T = int(sequence_length)
    P = max(128, ((T * C + 127) // 128) * 128)    # lane-dense padded output width

    kernel = functools.partial(decoder_kernel, T=T, mxu_dtype=MXU_DTYPE)
    args = (code,) + tuple(packed)

    # Whole-array VMEM residency (few tens of KB total) — no grid, no tiling needed.
    out_flat = pl.pallas_call(
        kernel,
        out_shape=jax.ShapeDtypeStruct((B, P), jnp.float32),
        in_specs=[pl.BlockSpec(memory_space=pltpu.MemorySpace.VMEM)] * len(args),
        out_specs=pl.BlockSpec(memory_space=pltpu.MemorySpace.VMEM),
    )(*args)

    # Row-major: out_flat[b, t*C + c] == h2_t[b, c]  ->  (B, T, C), batch_first like PyTorch.
    return out_flat[:, :T * C].reshape(B, T, C)


# -------------------- pure-JAX reference (for correctness check) --------------------
def _gru_ref(x_seq, w_ih, w_hh, b_ih, b_hh):
    """x_seq: (B, T, F_in). PyTorch nn.GRU single-layer, batch_first, h0=0."""
    B, T, _ = x_seq.shape
    H = b_ih.shape[0] // 3

    def cell(h, x_t):
        gx = x_t @ w_ih.T + b_ih
        gh = h @ w_hh.T + b_hh
        r = jax.nn.sigmoid(gx[:, :H] + gh[:, :H])
        z = jax.nn.sigmoid(gx[:, H:2 * H] + gh[:, H:2 * H])
        n = jnp.tanh(gx[:, 2 * H:] + r * gh[:, 2 * H:])
        h_new = (1.0 - z) * n + z * h
        return h_new, h_new

    h0 = jnp.zeros((B, H), jnp.float32)
    _, ys = lax.scan(cell, h0, jnp.transpose(x_seq, (1, 0, 2)))
    return jnp.transpose(ys, (1, 0, 2))


def decoder_ref(x, params, sequence_length):
    code = x[0]                                   # (B, I)
    x_seq = jnp.broadcast_to(code[:, None, :],
                             (code.shape[0], sequence_length, code.shape[1]))
    y1 = _gru_ref(x_seq, params["w1_ih"], params["w1_hh"], params["b1_ih"], params["b1_hh"])
    y2 = _gru_ref(y1, params["w2_ih"], params["w2_hh"], params["b2_ih"], params["b2_hh"])
    return y2


# -------------------- deterministic parameter init --------------------
def init_params(key, input_size, hidden_size, code_size):
    ks = jax.random.split(key, 8)
    s1 = 1.0 / jnp.sqrt(hidden_size)
    s2 = 1.0 / jnp.sqrt(code_size)
    u = lambda k, shape, s: jax.random.uniform(k, shape, jnp.float32, -s, s)
    return {
        # layer 1: input_size -> hidden_size
        "w1_ih": u(ks[0], (3 * hidden_size, input_size), s1),
        "w1_hh": u(ks[1], (3 * hidden_size, hidden_size), s1),
        "b1_ih": u(ks[2], (3 * hidden_size,), s1),
        "b1_hh": u(ks[3], (3 * hidden_size,), s1),
        # layer 2: hidden_size -> code_size
        "w2_ih": u(ks[4], (3 * code_size, hidden_size), s2),
        "w2_hh": u(ks[5], (3 * code_size, code_size), s2),
        "b2_ih": u(ks[6], (3 * code_size,), s2),
        "b2_hh": u(ks[7], (3 * code_size,), s2),
    }


if __name__ == "__main__":
    input_size, hidden_size, code_size = 16, 32, 8
    batch, seq_len = 2, 8

    key = jax.random.PRNGKey(0)
    kx, kp = jax.random.split(key)
    # Module input: (1, B, input_size) — matches torch.transpose(x, 0, 1) + expand semantics.
    x = jax.random.normal(kx, (1, batch, input_size), jnp.float32)
    params = init_params(kp, input_size, hidden_size, code_size)

    packed = pack_params(params)                  # one-time packing, reused across calls
    out = decoder_forward(x, packed, seq_len)
    out = jax.block_until_ready(out)

    ref = decoder_ref(x, params, seq_len)
    assert out.shape == (batch, seq_len, code_size)
    assert jnp.allclose(out, ref, atol=1e-5, rtol=1e-5), "mismatch vs reference"

    print("KERNEL_OK")
</pallas_src>

<mosaic_0001>
module attributes {stable_mosaic.version = 11 : i64} {
  func.func @decoder_kernel(%arg0: memref<2x16xf32, #tpu.memory_space<vmem>>, %arg1: memref<16x32xf32, #tpu.memory_space<vmem>>, %arg2: memref<16x32xf32, #tpu.memory_space<vmem>>, %arg3: memref<16x32xf32, #tpu.memory_space<vmem>>, %arg4: memref<32x32xf32, #tpu.memory_space<vmem>>, %arg5: memref<32x32xf32, #tpu.memory_space<vmem>>, %arg6: memref<32x32xf32, #tpu.memory_space<vmem>>, %arg7: memref<1x32xf32, #tpu.memory_space<vmem>>, %arg8: memref<1x32xf32, #tpu.memory_space<vmem>>, %arg9: memref<1x32xf32, #tpu.memory_space<vmem>>, %arg10: memref<1x32xf32, #tpu.memory_space<vmem>>, %arg11: memref<32x8xf32, #tpu.memory_space<vmem>>, %arg12: memref<32x8xf32, #tpu.memory_space<vmem>>, %arg13: memref<32x8xf32, #tpu.memory_space<vmem>>, %arg14: memref<8x8xf32, #tpu.memory_space<vmem>>, %arg15: memref<8x8xf32, #tpu.memory_space<vmem>>, %arg16: memref<8x8xf32, #tpu.memory_space<vmem>>, %arg17: memref<1x8xf32, #tpu.memory_space<vmem>>, %arg18: memref<1x8xf32, #tpu.memory_space<vmem>>, %arg19: memref<1x8xf32, #tpu.memory_space<vmem>>, %arg20: memref<1x8xf32, #tpu.memory_space<vmem>>, %arg21: memref<2x128xf32, #tpu.memory_space<vmem>>) attributes {dimension_semantics = [], scalar_prefetch = 0 : i64, scratch_operands = 0 : i64, tpu.core_type = #tpu.core_type<tc>} {
    %c0 = arith.constant 0 : index
    %c0_0 = arith.constant 0 : index
    %0 = vector.load %arg4[%c0, %c0_0] : memref<32x32xf32, #tpu.memory_space<vmem>>, vector<32x32xf32>
    %c0_1 = arith.constant 0 : index
    %c0_2 = arith.constant 0 : index
    %1 = vector.load %arg5[%c0_1, %c0_2] : memref<32x32xf32, #tpu.memory_space<vmem>>, vector<32x32xf32>
    %c0_3 = arith.constant 0 : index
    %c0_4 = arith.constant 0 : index
    %2 = vector.load %arg6[%c0_3, %c0_4] : memref<32x32xf32, #tpu.memory_space<vmem>>, vector<32x32xf32>
    %c0_5 = arith.constant 0 : index
    %c0_6 = arith.constant 0 : index
    %3 = vector.load %arg11[%c0_5, %c0_6] : memref<32x8xf32, #tpu.memory_space<vmem>>, vector<32x8xf32>
    %c0_7 = arith.constant 0 : index
    %c0_8 = arith.constant 0 : index
    %4 = vector.load %arg12[%c0_7, %c0_8] : memref<32x8xf32, #tpu.memory_space<vmem>>, vector<32x8xf32>
    %c0_9 = arith.constant 0 : index
    %c0_10 = arith.constant 0 : index
    %5 = vector.load %arg13[%c0_9, %c0_10] : memref<32x8xf32, #tpu.memory_space<vmem>>, vector<32x8xf32>
    %c0_11 = arith.constant 0 : index
    %c0_12 = arith.constant 0 : index
    %6 = vector.load %arg14[%c0_11, %c0_12] : memref<8x8xf32, #tpu.memory_space<vmem>>, vector<8x8xf32>
    %c0_13 = arith.constant 0 : index
    %c0_14 = arith.constant 0 : index
    %7 = vector.load %arg15[%c0_13, %c0_14] : memref<8x8xf32, #tpu.memory_space<vmem>>, vector<8x8xf32>
    %c0_15 = arith.constant 0 : index
    %c0_16 = arith.constant 0 : index
    %8 = vector.load %arg16[%c0_15, %c0_16] : memref<8x8xf32, #tpu.memory_space<vmem>>, vector<8x8xf32>
    %c0_17 = arith.constant 0 : index
    %c0_18 = arith.constant 0 : index
    %9 = vector.load %arg10[%c0_17, %c0_18] : memref<1x32xf32, #tpu.memory_space<vmem>>, vector<1x32xf32>
    %c0_19 = arith.constant 0 : index
    %c0_20 = arith.constant 0 : index
    %10 = vector.load %arg20[%c0_19, %c0_20] : memref<1x8xf32, #tpu.memory_space<vmem>>, vector<1x8xf32>
    %c0_21 = arith.constant 0 : index
    %c0_22 = arith.constant 0 : index
    %11 = vector.load %arg17[%c0_21, %c0_22] : memref<1x8xf32, #tpu.memory_space<vmem>>, vector<1x8xf32>
    %c0_23 = arith.constant 0 : index
    %c0_24 = arith.constant 0 : index
    %12 = vector.load %arg18[%c0_23, %c0_24] : memref<1x8xf32, #tpu.memory_space<vmem>>, vector<1x8xf32>
    %c0_25 = arith.constant 0 : index
    %c0_26 = arith.constant 0 : index
    %13 = vector.load %arg19[%c0_25, %c0_26] : memref<1x8xf32, #tpu.memory_space<vmem>>, vector<1x8xf32>
    %c0_27 = arith.constant 0 : index
    %c0_28 = arith.constant 0 : index
    %14 = vector.load %arg0[%c0_27, %c0_28] : memref<2x16xf32, #tpu.memory_space<vmem>>, vector<2x16xf32>
    %c0_29 = arith.constant 0 : index
    %c0_30 = arith.constant 0 : index
    %15 = vector.load %arg1[%c0_29, %c0_30] : memref<16x32xf32, #tpu.memory_space<vmem>>, vector<16x32xf32>
    %cst = arith.constant dense<0.000000e+00> : vector<2x32xf32>
    %16 = tpu.matmul %14, %15, %cst {dimension_numbers = #tpu.dot_dimension_numbers<[1], [0], [0], [1], [0, 0, 1, 1], [], []>} : vector<2x16xf32>, vector<16x32xf32>, vector<2x32xf32> -> vector<2x32xf32>
    %c0_31 = arith.constant 0 : index
    %c0_32 = arith.constant 0 : index
    %17 = vector.load %arg7[%c0_31, %c0_32] : memref<1x32xf32, #tpu.memory_space<vmem>>, vector<1x32xf32>
    %18 = vector.broadcast %17 : vector<1x32xf32> to vector<2x32xf32>
    %19 = arith.addf %16, %18 : vector<2x32xf32>
    %c0_33 = arith.constant 0 : index
    %c0_34 = arith.constant 0 : index
    %20 = vector.load %arg2[%c0_33, %c0_34] : memref<16x32xf32, #tpu.memory_space<vmem>>, vector<16x32xf32>
    %cst_35 = arith.constant dense<0.000000e+00> : vector<2x32xf32>
    %21 = tpu.matmul %14, %20, %cst_35 {dimension_numbers = #tpu.dot_dimension_numbers<[1], [0], [0], [1], [0, 0, 1, 1], [], []>} : vector<2x16xf32>, vector<16x32xf32>, vector<2x32xf32> -> vector<2x32xf32>
    %c0_36 = arith.constant 0 : index
    %c0_37 = arith.constant 0 : index
    %22 = vector.load %arg8[%c0_36, %c0_37] : memref<1x32xf32, #tpu.memory_space<vmem>>, vector<1x32xf32>
    %23 = vector.broadcast %22 : vector<1x32xf32> to vector<2x32xf32>
    %24 = arith.addf %21, %23 : vector<2x32xf32>
    %c0_38 = arith.constant 0 : index
    %c0_39 = arith.constant 0 : index
    %25 = vector.load %arg3[%c0_38, %c0_39] : memref<16x32xf32, #tpu.memory_space<vmem>>, vector<16x32xf32>
    %cst_40 = arith.constant dense<0.000000e+00> : vector<2x32xf32>
    %26 = tpu.matmul %14, %25, %cst_40 {dimension_numbers = #tpu.dot_dimension_numbers<[1], [0], [0], [1], [0, 0, 1, 1], [], []>} : vector<2x16xf32>, vector<16x32xf32>, vector<2x32xf32> -> vector<2x32xf32>
    %c0_41 = arith.constant 0 : index
    %c0_42 = arith.constant 0 : index
    %27 = vector.load %arg9[%c0_41, %c0_42] : memref<1x32xf32, #tpu.memory_space<vmem>>, vector<1x32xf32>
    %28 = vector.broadcast %27 : vector<1x32xf32> to vector<2x32xf32>
    %29 = arith.addf %26, %28 : vector<2x32xf32>
    %cst_43 = arith.constant 0.000000e+00 : f32
    %30 = vector.broadcast %cst_43 : f32 to vector<2x32xf32>
    %cst_44 = arith.constant 0.000000e+00 : f32
    %31 = vector.broadcast %cst_44 : f32 to vector<2x8xf32>
    %cst_45 = arith.constant dense<0.000000e+00> : vector<2x32xf32>
    %32 = tpu.matmul %30, %0, %cst_45 {dimension_numbers = #tpu.dot_dimension_numbers<[1], [0], [0], [1], [0, 0, 1, 1], [], []>} : vector<2x32xf32>, vector<32x32xf32>, vector<2x32xf32> -> vector<2x32xf32>
    %cst_46 = arith.constant dense<0.000000e+00> : vector<2x32xf32>
    %33 = tpu.matmul %30, %1, %cst_46 {dimension_numbers = #tpu.dot_dimension_numbers<[1], [0], [0], [1], [0, 0, 1, 1], [], []>} : vector<2x32xf32>, vector<32x32xf32>, vector<2x32xf32> -> vector<2x32xf32>
    %cst_47 = arith.constant dense<0.000000e+00> : vector<2x32xf32>
    %34 = tpu.matmul %30, %2, %cst_47 {dimension_numbers = #tpu.dot_dimension_numbers<[1], [0], [0], [1], [0, 0, 1, 1], [], []>} : vector<2x32xf32>, vector<32x32xf32>, vector<2x32xf32> -> vector<2x32xf32>
    %35 = arith.addf %19, %32 : vector<2x32xf32>
    %cst_48 = arith.constant 0.000000e+00 : f32
    %36 = vector.broadcast %cst_48 : f32 to vector<2x32xf32>
    %37 = arith.subf %36, %35 : vector<2x32xf32>
    %38 = math.exp %37 : vector<2x32xf32>
    %cst_49 = arith.constant 1.000000e+00 : f32
    %39 = vector.broadcast %cst_49 : f32 to vector<2x32xf32>
    %40 = arith.addf %39, %38 : vector<2x32xf32>
    %cst_50 = arith.constant 1.000000e+00 : f32
    %41 = vector.broadcast %cst_50 : f32 to vector<2x32xf32>
    %42 = arith.divf %41, %40 : vector<2x32xf32>
    %43 = arith.addf %24, %33 : vector<2x32xf32>
    %cst_51 = arith.constant 0.000000e+00 : f32
    %44 = vector.broadcast %cst_51 : f32 to vector<2x32xf32>
    %45 = arith.subf %44, %43 : vector<2x32xf32>
    %46 = math.exp %45 : vector<2x32xf32>
    %cst_52 = arith.constant 1.000000e+00 : f32
    %47 = vector.broadcast %cst_52 : f32 to vector<2x32xf32>
    %48 = arith.addf %47, %46 : vector<2x32xf32>
    %cst_53 = arith.constant 1.000000e+00 : f32
    %49 = vector.broadcast %cst_53 : f32 to vector<2x32xf32>
    %50 = arith.divf %49, %48 : vector<2x32xf32>
    %51 = vector.broadcast %9 : vector<1x32xf32> to vector<2x32xf32>
    %52 = arith.addf %34, %51 : vector<2x32xf32>
    %53 = arith.mulf %42, %52 : vector<2x32xf32>
    %54 = arith.addf %29, %53 : vector<2x32xf32>
    %55 = math.tanh %54 : vector<2x32xf32>
    %56 = arith.subf %30, %55 : vector<2x32xf32>
    %57 = arith.mulf %50, %56 : vector<2x32xf32>
    %58 = arith.addf %55, %57 : vector<2x32xf32>
    %cst_54 = arith.constant dense<0.000000e+00> : vector<2x8xf32>
    %59 = tpu.matmul %58, %3, %cst_54 {dimension_numbers = #tpu.dot_dimension_numbers<[1], [0], [0], [1], [0, 0, 1, 1], [], []>} : vector<2x32xf32>, vector<32x8xf32>, vector<2x8xf32> -> vector<2x8xf32>
    %60 = vector.broadcast %11 : vector<1x8xf32> to vector<2x8xf32>
    %61 = arith.addf %59, %60 : vector<2x8xf32>
    %cst_55 = arith.constant dense<0.000000e+00> : vector<2x8xf32>
    %62 = tpu.matmul %58, %4, %cst_55 {dimension_numbers = #tpu.dot_dimension_numbers<[1], [0], [0], [1], [0, 0, 1, 1], [], []>} : vector<2x32xf32>, vector<32x8xf32>, vector<2x8xf32> -> vector<2x8xf32>
    %63 = vector.broadcast %12 : vector<1x8xf32> to vector<2x8xf32>
    %64 = arith.addf %62, %63 : vector<2x8xf32>
    %cst_56 = arith.constant dense<0.000000e+00> : vector<2x8xf32>
    %65 = tpu.matmul %58, %5, %cst_56 {dimension_numbers = #tpu.dot_dimension_numbers<[1], [0], [0], [1], [0, 0, 1, 1], [], []>} : vector<2x32xf32>, vector<32x8xf32>, vector<2x8xf32> -> vector<2x8xf32>
    %66 = vector.broadcast %13 : vector<1x8xf32> to vector<2x8xf32>
    %67 = arith.addf %65, %66 : vector<2x8xf32>
    %cst_57 = arith.constant dense<0.000000e+00> : vector<2x32xf32>
    %68 = tpu.matmul %58, %0, %cst_57 {dimension_numbers = #tpu.dot_dimension_numbers<[1], [0], [0], [1], [0, 0, 1, 1], [], []>} : vector<2x32xf32>, vector<32x32xf32>, vector<2x32xf32> -> vector<2x32xf32>
    %cst_58 = arith.constant dense<0.000000e+00> : vector<2x32xf32>
    %69 = tpu.matmul %58, %1, %cst_58 {dimension_numbers = #tpu.dot_dimension_numbers<[1], [0], [0], [1], [0, 0, 1, 1], [], []>} : vector<2x32xf32>, vector<32x32xf32>, vector<2x32xf32> -> vector<2x32xf32>
    %cst_59 = arith.constant dense<0.000000e+00> : vector<2x32xf32>
    %70 = tpu.matmul %58, %2, %cst_59 {dimension_numbers = #tpu.dot_dimension_numbers<[1], [0], [0], [1], [0, 0, 1, 1], [], []>} : vector<2x32xf32>, vector<32x32xf32>, vector<2x32xf32> -> vector<2x32xf32>
    %71 = arith.addf %19, %68 : vector<2x32xf32>
    %cst_60 = arith.constant 0.000000e+00 : f32
    %72 = vector.broadcast %cst_60 : f32 to vector<2x32xf32>
    %73 = arith.subf %72, %71 : vector<2x32xf32>
    %74 = math.exp %73 : vector<2x32xf32>
    %cst_61 = arith.constant 1.000000e+00 : f32
    %75 = vector.broadcast %cst_61 : f32 to vector<2x32xf32>
    %76 = arith.addf %75, %74 : vector<2x32xf32>
    %cst_62 = arith.constant 1.000000e+00 : f32
    %77 = vector.broadcast %cst_62 : f32 to vector<2x32xf32>
    %78 = arith.divf %77, %76 : vector<2x32xf32>
    %79 = arith.addf %24, %69 : vector<2x32xf32>
    %cst_63 = arith.constant 0.000000e+00 : f32
    %80 = vector.broadcast %cst_63 : f32 to vector<2x32xf32>
    %81 = arith.subf %80, %79 : vector<2x32xf32>
    %82 = math.exp %81 : vector<2x32xf32>
    %cst_64 = arith.constant 1.000000e+00 : f32
    %83 = vector.broadcast %cst_64 : f32 to vector<2x32xf32>
    %84 = arith.addf %83, %82 : vector<2x32xf32>
    %cst_65 = arith.constant 1.000000e+00 : f32
    %85 = vector.broadcast %cst_65 : f32 to vector<2x32xf32>
    %86 = arith.divf %85, %84 : vector<2x32xf32>
    %87 = vector.broadcast %9 : vector<1x32xf32> to vector<2x32xf32>
    %88 = arith.addf %70, %87 : vector<2x32xf32>
    %89 = arith.mulf %78, %88 : vector<2x32xf32>
    %90 = arith.addf %29, %89 : vector<2x32xf32>
    %91 = math.tanh %90 : vector<2x32xf32>
    %92 = arith.subf %58, %91 : vector<2x32xf32>
    %93 = arith.mulf %86, %92 : vector<2x32xf32>
    %94 = arith.addf %91, %93 : vector<2x32xf32>
    %cst_66 = arith.constant dense<0.000000e+00> : vector<2x8xf32>
    %95 = tpu.matmul %94, %3, %cst_66 {dimension_numbers = #tpu.dot_dimension_numbers<[1], [0], [0], [1], [0, 0, 1, 1], [], []>} : vector<2x32xf32>, vector<32x8xf32>, vector<2x8xf32> -> vector<2x8xf32>
    %96 = vector.broadcast %11 : vector<1x8xf32> to vector<2x8xf32>
    %97 = arith.addf %95, %96 : vector<2x8xf32>
    %cst_67 = arith.constant dense<0.000000e+00> : vector<2x8xf32>
    %98 = tpu.matmul %94, %4, %cst_67 {dimension_numbers = #tpu.dot_dimension_numbers<[1], [0], [0], [1], [0, 0, 1, 1], [], []>} : vector<2x32xf32>, vector<32x8xf32>, vector<2x8xf32> -> vector<2x8xf32>
    %99 = vector.broadcast %12 : vector<1x8xf32> to vector<2x8xf32>
    %100 = arith.addf %98, %99 : vector<2x8xf32>
    %cst_68 = arith.constant dense<0.000000e+00> : vector<2x8xf32>
    %101 = tpu.matmul %94, %5, %cst_68 {dimension_numbers = #tpu.dot_dimension_numbers<[1], [0], [0], [1], [0, 0, 1, 1], [], []>} : vector<2x32xf32>, vector<32x8xf32>, vector<2x8xf32> -> vector<2x8xf32>
    %102 = vector.broadcast %13 : vector<1x8xf32> to vector<2x8xf32>
    %103 = arith.addf %101, %102 : vector<2x8xf32>
    %cst_69 = arith.constant dense<0.000000e+00> : vector<2x32xf32>
    %104 = tpu.matmul %94, %0, %cst_69 {dimension_numbers = #tpu.dot_dimension_numbers<[1], [0], [0], [1], [0, 0, 1, 1], [], []>} : vector<2x32xf32>, vector<32x32xf32>, vector<2x32xf32> -> vector<2x32xf32>
    %cst_70 = arith.constant dense<0.000000e+00> : vector<2x32xf32>
    %105 = tpu.matmul %94, %1, %cst_70 {dimension_numbers = #tpu.dot_dimension_numbers<[1], [0], [0], [1], [0, 0, 1, 1], [], []>} : vector<2x32xf32>, vector<32x32xf32>, vector<2x32xf32> -> vector<2x32xf32>
    %cst_71 = arith.constant dense<0.000000e+00> : vector<2x32xf32>
    %106 = tpu.matmul %94, %2, %cst_71 {dimension_numbers = #tpu.dot_dimension_numbers<[1], [0], [0], [1], [0, 0, 1, 1], [], []>} : vector<2x32xf32>, vector<32x32xf32>, vector<2x32xf32> -> vector<2x32xf32>
    %107 = arith.addf %19, %104 : vector<2x32xf32>
    %cst_72 = arith.constant 0.000000e+00 : f32
    %108 = vector.broadcast %cst_72 : f32 to vector<2x32xf32>
    %109 = arith.subf %108, %107 : vector<2x32xf32>
    %110 = math.exp %109 : vector<2x32xf32>
    %cst_73 = arith.constant 1.000000e+00 : f32
    %111 = vector.broadcast %cst_73 : f32 to vector<2x32xf32>
    %112 = arith.addf %111, %110 : vector<2x32xf32>
    %cst_74 = arith.constant 1.000000e+00 : f32
    %113 = vector.broadcast %cst_74 : f32 to vector<2x32xf32>
    %114 = arith.divf %113, %112 : vector<2x32xf32>
    %115 = arith.addf %24, %105 : vector<2x32xf32>
    %cst_75 = arith.constant 0.000000e+00 : f32
    %116 = vector.broadcast %cst_75 : f32 to vector<2x32xf32>
    %117 = arith.subf %116, %115 : vector<2x32xf32>
    %118 = math.exp %117 : vector<2x32xf32>
    %cst_76 = arith.constant 1.000000e+00 : f32
    %119 = vector.broadcast %cst_76 : f32 to vector<2x32xf32>
    %120 = arith.addf %119, %118 : vector<2x32xf32>
    %cst_77 = arith.constant 1.000000e+00 : f32
    %121 = vector.broadcast %cst_77 : f32 to vector<2x32xf32>
    %122 = arith.divf %121, %120 : vector<2x32xf32>
    %123 = vector.broadcast %9 : vector<1x32xf32> to vector<2x32xf32>
    %124 = arith.addf %106, %123 : vector<2x32xf32>
    %125 = arith.mulf %114, %124 : vector<2x32xf32>
    %126 = arith.addf %29, %125 : vector<2x32xf32>
    %127 = math.tanh %126 : vector<2x32xf32>
    %128 = arith.subf %94, %127 : vector<2x32xf32>
    %129 = arith.mulf %122, %128 : vector<2x32xf32>
    %130 = arith.addf %127, %129 : vector<2x32xf32>
    %cst_78 = arith.constant dense<0.000000e+00> : vector<2x8xf32>
    %131 = tpu.matmul %130, %3, %cst_78 {dimension_numbers = #tpu.dot_dimension_numbers<[1], [0], [0], [1], [0, 0, 1, 1], [], []>} : vector<2x32xf32>, vector<32x8xf32>, vector<2x8xf32> -> vector<2x8xf32>
    %132 = vector.broadcast %11 : vector<1x8xf32> to vector<2x8xf32>
    %133 = arith.addf %131, %132 : vector<2x8xf32>
    %cst_79 = arith.constant dense<0.000000e+00> : vector<2x8xf32>
    %134 = tpu.matmul %130, %4, %cst_79 {dimension_numbers = #tpu.dot_dimension_numbers<[1], [0], [0], [1], [0, 0, 1, 1], [], []>} : vector<2x32xf32>, vector<32x8xf32>, vector<2x8xf32> -> vector<2x8xf32>
    %135 = vector.broadcast %12 : vector<1x8xf32> to vector<2x8xf32>
    %136 = arith.addf %134, %135 : vector<2x8xf32>
    %cst_80 = arith.constant dense<0.000000e+00> : vector<2x8xf32>
    %137 = tpu.matmul %130, %5, %cst_80 {dimension_numbers = #tpu.dot_dimension_numbers<[1], [0], [0], [1], [0, 0, 1, 1], [], []>} : vector<2x32xf32>, vector<32x8xf32>, vector<2x8xf32> -> vector<2x8xf32>
    %138 = vector.broadcast %13 : vector<1x8xf32> to vector<2x8xf32>
    %139 = arith.addf %137, %138 : vector<2x8xf32>
    %cst_81 = arith.constant dense<0.000000e+00> : vector<2x32xf32>
    %140 = tpu.matmul %130, %0, %cst_81 {dimension_numbers = #tpu.dot_dimension_numbers<[1], [0], [0], [1], [0, 0, 1, 1], [], []>} : vector<2x32xf32>, vector<32x32xf32>, vector<2x32xf32> -> vector<2x32xf32>
    %cst_82 = arith.constant dense<0.000000e+00> : vector<2x32xf32>
    %141 = tpu.matmul %130, %1, %cst_82 {dimension_numbers = #tpu.dot_dimension_numbers<[1], [0], [0], [1], [0, 0, 1, 1], [], []>} : vector<2x32xf32>, vector<32x32xf32>, vector<2x32xf32> -> vector<2x32xf32>
    %cst_83 = arith.constant dense<0.000000e+00> : vector<2x32xf32>
    %142 = tpu.matmul %130, %2, %cst_83 {dimension_numbers = #tpu.dot_dimension_numbers<[1], [0], [0], [1], [0, 0, 1, 1], [], []>} : vector<2x32xf32>, vector<32x32xf32>, vector<2x32xf32> -> vector<2x32xf32>
    %143 = arith.addf %19, %140 : vector<2x32xf32>
    %cst_84 = arith.constant 0.000000e+00 : f32
    %144 = vector.broadcast %cst_84 : f32 to vector<2x32xf32>
    %145 = arith.subf %144, %143 : vector<2x32xf32>
    %146 = math.exp %145 : vector<2x32xf32>
    %cst_85 = arith.constant 1.000000e+00 : f32
    %147 = vector.broadcast %cst_85 : f32 to vector<2x32xf32>
    %148 = arith.addf %147, %146 : vector<2x32xf32>
    %cst_86 = arith.constant 1.000000e+00 : f32
    %149 = vector.broadcast %cst_86 : f32 to vector<2x32xf32>
    %150 = arith.divf %149, %148 : vector<2x32xf32>
    %151 = arith.addf %24, %141 : vector<2x32xf32>
    %cst_87 = arith.constant 0.000000e+00 : f32
    %152 = vector.broadcast %cst_87 : f32 to vector<2x32xf32>
    %153 = arith.subf %152, %151 : vector<2x32xf32>
    %154 = math.exp %153 : vector<2x32xf32>
    %cst_88 = arith.constant 1.000000e+00 : f32
    %155 = vector.broadcast %cst_88 : f32 to vector<2x32xf32>
    %156 = arith.addf %155, %154 : vector<2x32xf32>
    %cst_89 = arith.constant 1.000000e+00 : f32
    %157 = vector.broadcast %cst_89 : f32 to vector<2x32xf32>
    %158 = arith.divf %157, %156 : vector<2x32xf32>
    %159 = vector.broadcast %9 : vector<1x32xf32> to vector<2x32xf32>
    %160 = arith.addf %142, %159 : vector<2x32xf32>
    %161 = arith.mulf %150, %160 : vector<2x32xf32>
    %162 = arith.addf %29, %161 : vector<2x32xf32>
    %163 = math.tanh %162 : vector<2x32xf32>
    %164 = arith.subf %130, %163 : vector<2x32xf32>
    %165 = arith.mulf %158, %164 : vector<2x32xf32>
    %166 = arith.addf %163, %165 : vector<2x32xf32>
    %cst_90 = arith.constant dense<0.000000e+00> : vector<2x8xf32>
    %167 = tpu.matmul %166, %3, %cst_90 {dimension_numbers = #tpu.dot_dimension_numbers<[1], [0], [0], [1], [0, 0, 1, 1], [], []>} : vector<2x32xf32>, vector<32x8xf32>, vector<2x8xf32> -> vector<2x8xf32>
    %168 = vector.broadcast %11 : vector<1x8xf32> to vector<2x8xf32>
    %169 = arith.addf %167, %168 : vector<2x8xf32>
    %cst_91 = arith.constant dense<0.000000e+00> : vector<2x8xf32>
    %170 = tpu.matmul %166, %4, %cst_91 {dimension_numbers = #tpu.dot_dimension_numbers<[1], [0], [0], [1], [0, 0, 1, 1], [], []>} : vector<2x32xf32>, vector<32x8xf32>, vector<2x8xf32> -> vector<2x8xf32>
    %171 = vector.broadcast %12 : vector<1x8xf32> to vector<2x8xf32>
    %172 = arith.addf %170, %171 : vector<2x8xf32>
    %cst_92 = arith.constant dense<0.000000e+00> : vector<2x8xf32>
    %173 = tpu.matmul %166, %5, %cst_92 {dimension_numbers = #tpu.dot_dimension_numbers<[1], [0], [0], [1], [0, 0, 1, 1], [], []>} : vector<2x32xf32>, vector<32x8xf32>, vector<2x8xf32> -> vector<2x8xf32>
    %174 = vector.broadcast %13 : vector<1x8xf32> to vector<2x8xf32>
    %175 = arith.addf %173, %174 : vector<2x8xf32>
    %cst_93 = arith.constant dense<0.000000e+00> : vector<2x32xf32>
    %176 = tpu.matmul %166, %0, %cst_93 {dimension_numbers = #tpu.dot_dimension_numbers<[1], [0], [0], [1], [0, 0, 1, 1], [], []>} : vector<2x32xf32>, vector<32x32xf32>, vector<2x32xf32> -> vector<2x32xf32>
    %cst_94 = arith.constant dense<0.000000e+00> : vector<2x32xf32>
    %177 = tpu.matmul %166, %1, %cst_94 {dimension_numbers = #tpu.dot_dimension_numbers<[1], [0], [0], [1], [0, 0, 1, 1], [], []>} : vector<2x32xf32>, vector<32x32xf32>, vector<2x32xf32> -> vector<2x32xf32>
    %cst_95 = arith.constant dense<0.000000e+00> : vector<2x32xf32>
    %178 = tpu.matmul %166, %2, %cst_95 {dimension_numbers = #tpu.dot_dimension_numbers<[1], [0], [0], [1], [0, 0, 1, 1], [], []>} : vector<2x32xf32>, vector<32x32xf32>, vector<2x32xf32> -> vector<2x32xf32>
    %179 = arith.addf %19, %176 : vector<2x32xf32>
    %cst_96 = arith.constant 0.000000e+00 : f32
    %180 = vector.broadcast %cst_96 : f32 to vector<2x32xf32>
    %181 = arith.subf %180, %179 : vector<2x32xf32>
    %182 = math.exp %181 : vector<2x32xf32>
    %cst_97 = arith.constant 1.000000e+00 : f32
    %183 = vector.broadcast %cst_97 : f32 to vector<2x32xf32>
    %184 = arith.addf %183, %182 : vector<2x32xf32>
    %cst_98 = arith.constant 1.000000e+00 : f32
    %185 = vector.broadcast %cst_98 : f32 to vector<2x32xf32>
    %186 = arith.divf %185, %184 : vector<2x32xf32>
    %187 = arith.addf %24, %177 : vector<2x32xf32>
    %cst_99 = arith.constant 0.000000e+00 : f32
    %188 = vector.broadcast %cst_99 : f32 to vector<2x32xf32>
    %189 = arith.subf %188, %187 : vector<2x32xf32>
    %190 = math.exp %189 : vector<2x32xf32>
    %cst_100 = arith.constant 1.000000e+00 : f32
    %191 = vector.broadcast %cst_100 : f32 to vector<2x32xf32>
    %192 = arith.addf %191, %190 : vector<2x32xf32>
    %cst_101 = arith.constant 1.000000e+00 : f32
    %193 = vector.broadcast %cst_101 : f32 to vector<2x32xf32>
    %194 = arith.divf %193, %192 : vector<2x32xf32>
    %195 = vector.broadcast %9 : vector<1x32xf32> to vector<2x32xf32>
    %196 = arith.addf %178, %195 : vector<2x32xf32>
    %197 = arith.mulf %186, %196 : vector<2x32xf32>
    %198 = arith.addf %29, %197 : vector<2x32xf32>
    %199 = math.tanh %198 : vector<2x32xf32>
    %200 = arith.subf %166, %199 : vector<2x32xf32>
    %201 = arith.mulf %194, %200 : vector<2x32xf32>
    %202 = arith.addf %199, %201 : vector<2x32xf32>
    %cst_102 = arith.constant dense<0.000000e+00> : vector<2x8xf32>
    %203 = tpu.matmul %202, %3, %cst_102 {dimension_numbers = #tpu.dot_dimension_numbers<[1], [0], [0], [1], [0, 0, 1, 1], [], []>} : vector<2x32xf32>, vector<32x8xf32>, vector<2x8xf32> -> vector<2x8xf32>
    %204 = vector.broadcast %11 : vector<1x8xf32> to vector<2x8xf32>
    %205 = arith.addf %203, %204 : vector<2x8xf32>
    %cst_103 = arith.constant dense<0.000000e+00> : vector<2x8xf32>
    %206 = tpu.matmul %202, %4, %cst_103 {dimension_numbers = #tpu.dot_dimension_numbers<[1], [0], [0], [1], [0, 0, 1, 1], [], []>} : vector<2x32xf32>, vector<32x8xf32>, vector<2x8xf32> -> vector<2x8xf32>
    %207 = vector.broadcast %12 : vector<1x8xf32> to vector<2x8xf32>
    %208 = arith.addf %206, %207 : vector<2x8xf32>
    %cst_104 = arith.constant dense<0.000000e+00> : vector<2x8xf32>
    %209 = tpu.matmul %202, %5, %cst_104 {dimension_numbers = #tpu.dot_dimension_numbers<[1], [0], [0], [1], [0, 0, 1, 1], [], []>} : vector<2x32xf32>, vector<32x8xf32>, vector<2x8xf32> -> vector<2x8xf32>
    %210 = vector.broadcast %13 : vector<1x8xf32> to vector<2x8xf32>
    %211 = arith.addf %209, %210 : vector<2x8xf32>
    %cst_105 = arith.constant dense<0.000000e+00> : vector<2x32xf32>
    %212 = tpu.matmul %202, %0, %cst_105 {dimension_numbers = #tpu.dot_dimension_numbers<[1], [0], [0], [1], [0, 0, 1, 1], [], []>} : vector<2x32xf32>, vector<32x32xf32>, vector<2x32xf32> -> vector<2x32xf32>
    %cst_106 = arith.constant dense<0.000000e+00> : vector<2x32xf32>
    %213 = tpu.matmul %202, %1, %cst_106 {dimension_numbers = #tpu.dot_dimension_numbers<[1], [0], [0], [1], [0, 0, 1, 1], [], []>} : vector<2x32xf32>, vector<32x32xf32>, vector<2x32xf32> -> vector<2x32xf32>
    %cst_107 = arith.constant dense<0.000000e+00> : vector<2x32xf32>
    %214 = tpu.matmul %202, %2, %cst_107 {dimension_numbers = #tpu.dot_dimension_numbers<[1], [0], [0], [1], [0, 0, 1, 1], [], []>} : vector<2x32xf32>, vector<32x32xf32>, vector<2x32xf32> -> vector<2x32xf32>
    %215 = arith.addf %19, %212 : vector<2x32xf32>
    %cst_108 = arith.constant 0.000000e+00 : f32
    %216 = vector.broadcast %cst_108 : f32 to vector<2x32xf32>
    %217 = arith.subf %216, %215 : vector<2x32xf32>
    %218 = math.exp %217 : vector<2x32xf32>
    %cst_109 = arith.constant 1.000000e+00 : f32
    %219 = vector.broadcast %cst_109 : f32 to vector<2x32xf32>
    %220 = arith.addf %219, %218 : vector<2x32xf32>
    %cst_110 = arith.constant 1.000000e+00 : f32
    %221 = vector.broadcast %cst_110 : f32 to vector<2x32xf32>
    %222 = arith.divf %221, %220 : vector<2x32xf32>
    %223 = arith.addf %24, %213 : vector<2x32xf32>
    %cst_111 = arith.constant 0.000000e+00 : f32
    %224 = vector.broadcast %cst_111 : f32 to vector<2x32xf32>
    %225 = arith.subf %224, %223 : vector<2x32xf32>
    %226 = math.exp %225 : vector<2x32xf32>
    %cst_112 = arith.constant 1.000000e+00 : f32
    %227 = vector.broadcast %cst_112 : f32 to vector<2x32xf32>
    %228 = arith.addf %227, %226 : vector<2x32xf32>
    %cst_113 = arith.constant 1.000000e+00 : f32
    %229 = vector.broadcast %cst_113 : f32 to vector<2x32xf32>
    %230 = arith.divf %229, %228 : vector<2x32xf32>
    %231 = vector.broadcast %9 : vector<1x32xf32> to vector<2x32xf32>
    %232 = arith.addf %214, %231 : vector<2x32xf32>
    %233 = arith.mulf %222, %232 : vector<2x32xf32>
    %234 = arith.addf %29, %233 : vector<2x32xf32>
    %235 = math.tanh %234 : vector<2x32xf32>
    %236 = arith.subf %202, %235 : vector<2x32xf32>
    %237 = arith.mulf %230, %236 : vector<2x32xf32>
    %238 = arith.addf %235, %237 : vector<2x32xf32>
    %cst_114 = arith.constant dense<0.000000e+00> : vector<2x8xf32>
    %239 = tpu.matmul %238, %3, %cst_114 {dimension_numbers = #tpu.dot_dimension_numbers<[1], [0], [0], [1], [0, 0, 1, 1], [], []>} : vector<2x32xf32>, vector<32x8xf32>, vector<2x8xf32> -> vector<2x8xf32>
    %240 = vector.broadcast %11 : vector<1x8xf32> to vector<2x8xf32>
    %241 = arith.addf %239, %240 : vector<2x8xf32>
    %cst_115 = arith.constant dense<0.000000e+00> : vector<2x8xf32>
    %242 = tpu.matmul %238, %4, %cst_115 {dimension_numbers = #tpu.dot_dimension_numbers<[1], [0], [0], [1], [0, 0, 1, 1], [], []>} : vector<2x32xf32>, vector<32x8xf32>, vector<2x8xf32> -> vector<2x8xf32>
    %243 = vector.broadcast %12 : vector<1x8xf32> to vector<2x8xf32>
    %244 = arith.addf %242, %243 : vector<2x8xf32>
    %cst_116 = arith.constant dense<0.000000e+00> : vector<2x8xf32>
    %245 = tpu.matmul %238, %5, %cst_116 {dimension_numbers = #tpu.dot_dimension_numbers<[1], [0], [0], [1], [0, 0, 1, 1], [], []>} : vector<2x32xf32>, vector<32x8xf32>, vector<2x8xf32> -> vector<2x8xf32>
    %246 = vector.broadcast %13 : vector<1x8xf32> to vector<2x8xf32>
    %247 = arith.addf %245, %246 : vector<2x8xf32>
    %cst_117 = arith.constant dense<0.000000e+00> : vector<2x32xf32>
    %248 = tpu.matmul %238, %0, %cst_117 {dimension_numbers = #tpu.dot_dimension_numbers<[1], [0], [0], [1], [0, 0, 1, 1], [], []>} : vector<2x32xf32>, vector<32x32xf32>, vector<2x32xf32> -> vector<2x32xf32>
    %cst_118 = arith.constant dense<0.000000e+00> : vector<2x32xf32>
    %249 = tpu.matmul %238, %1, %cst_118 {dimension_numbers = #tpu.dot_dimension_numbers<[1], [0], [0], [1], [0, 0, 1, 1], [], []>} : vector<2x32xf32>, vector<32x32xf32>, vector<2x32xf32> -> vector<2x32xf32>
    %cst_119 = arith.constant dense<0.000000e+00> : vector<2x32xf32>
    %250 = tpu.matmul %238, %2, %cst_119 {dimension_numbers = #tpu.dot_dimension_numbers<[1], [0], [0], [1], [0, 0, 1, 1], [], []>} : vector<2x32xf32>, vector<32x32xf32>, vector<2x32xf32> -> vector<2x32xf32>
    %251 = arith.addf %19, %248 : vector<2x32xf32>
    %cst_120 = arith.constant 0.000000e+00 : f32
    %252 = vector.broadcast %cst_120 : f32 to vector<2x32xf32>
    %253 = arith.subf %252, %251 : vector<2x32xf32>
    %254 = math.exp %253 : vector<2x32xf32>
    %cst_121 = arith.constant 1.000000e+00 : f32
    %255 = vector.broadcast %cst_121 : f32 to vector<2x32xf32>
    %256 = arith.addf %255, %254 : vector<2x32xf32>
    %cst_122 = arith.constant 1.000000e+00 : f32
    %257 = vector.broadcast %cst_122 : f32 to vector<2x32xf32>
    %258 = arith.divf %257, %256 : vector<2x32xf32>
    %259 = arith.addf %24, %249 : vector<2x32xf32>
    %cst_123 = arith.constant 0.000000e+00 : f32
    %260 = vector.broadcast %cst_123 : f32 to vector<2x32xf32>
    %261 = arith.subf %260, %259 : vector<2x32xf32>
    %262 = math.exp %261 : vector<2x32xf32>
    %cst_124 = arith.constant 1.000000e+00 : f32
    %263 = vector.broadcast %cst_124 : f32 to vector<2x32xf32>
    %264 = arith.addf %263, %262 : vector<2x32xf32>
    %cst_125 = arith.constant 1.000000e+00 : f32
    %265 = vector.broadcast %cst_125 : f32 to vector<2x32xf32>
    %266 = arith.divf %265, %264 : vector<2x32xf32>
    %267 = vector.broadcast %9 : vector<1x32xf32> to vector<2x32xf32>
    %268 = arith.addf %250, %267 : vector<2x32xf32>
    %269 = arith.mulf %258, %268 : vector<2x32xf32>
    %270 = arith.addf %29, %269 : vector<2x32xf32>
    %271 = math.tanh %270 : vector<2x32xf32>
    %272 = arith.subf %238, %271 : vector<2x32xf32>
    %273 = arith.mulf %266, %272 : vector<2x32xf32>
    %274 = arith.addf %271, %273 : vector<2x32xf32>
    %cst_126 = arith.constant dense<0.000000e+00> : vector<2x8xf32>
    %275 = tpu.matmul %274, %3, %cst_126 {dimension_numbers = #tpu.dot_dimension_numbers<[1], [0], [0], [1], [0, 0, 1, 1], [], []>} : vector<2x32xf32>, vector<32x8xf32>, vector<2x8xf32> -> vector<2x8xf32>
    %276 = vector.broadcast %11 : vector<1x8xf32> to vector<2x8xf32>
    %277 = arith.addf %275, %276 : vector<2x8xf32>
    %cst_127 = arith.constant dense<0.000000e+00> : vector<2x8xf32>
    %278 = tpu.matmul %274, %4, %cst_127 {dimension_numbers = #tpu.dot_dimension_numbers<[1], [0], [0], [1], [0, 0, 1, 1], [], []>} : vector<2x32xf32>, vector<32x8xf32>, vector<2x8xf32> -> vector<2x8xf32>
    %279 = vector.broadcast %12 : vector<1x8xf32> to vector<2x8xf32>
    %280 = arith.addf %278, %279 : vector<2x8xf32>
    %cst_128 = arith.constant dense<0.000000e+00> : vector<2x8xf32>
    %281 = tpu.matmul %274, %5, %cst_128 {dimension_numbers = #tpu.dot_dimension_numbers<[1], [0], [0], [1], [0, 0, 1, 1], [], []>} : vector<2x32xf32>, vector<32x8xf32>, vector<2x8xf32> -> vector<2x8xf32>
    %282 = vector.broadcast %13 : vector<1x8xf32> to vector<2x8xf32>
    %283 = arith.addf %281, %282 : vector<2x8xf32>
    %cst_129 = arith.constant dense<0.000000e+00> : vector<2x32xf32>
    %284 = tpu.matmul %274, %0, %cst_129 {dimension_numbers = #tpu.dot_dimension_numbers<[1], [0], [0], [1], [0, 0, 1, 1], [], []>} : vector<2x32xf32>, vector<32x32xf32>, vector<2x32xf32> -> vector<2x32xf32>
    %cst_130 = arith.constant dense<0.000000e+00> : vector<2x32xf32>
    %285 = tpu.matmul %274, %1, %cst_130 {dimension_numbers = #tpu.dot_dimension_numbers<[1], [0], [0], [1], [0, 0, 1, 1], [], []>} : vector<2x32xf32>, vector<32x32xf32>, vector<2x32xf32> -> vector<2x32xf32>
    %cst_131 = arith.constant dense<0.000000e+00> : vector<2x32xf32>
    %286 = tpu.matmul %274, %2, %cst_131 {dimension_numbers = #tpu.dot_dimension_numbers<[1], [0], [0], [1], [0, 0, 1, 1], [], []>} : vector<2x32xf32>, vector<32x32xf32>, vector<2x32xf32> -> vector<2x32xf32>
    %287 = arith.addf %19, %284 : vector<2x32xf32>
    %cst_132 = arith.constant 0.000000e+00 : f32
    %288 = vector.broadcast %cst_132 : f32 to vector<2x32xf32>
    %289 = arith.subf %288, %287 : vector<2x32xf32>
    %290 = math.exp %289 : vector<2x32xf32>
    %cst_133 = arith.constant 1.000000e+00 : f32
    %291 = vector.broadcast %cst_133 : f32 to vector<2x32xf32>
    %292 = arith.addf %291, %290 : vector<2x32xf32>
    %cst_134 = arith.constant 1.000000e+00 : f32
    %293 = vector.broadcast %cst_134 : f32 to vector<2x32xf32>
    %294 = arith.divf %293, %292 : vector<2x32xf32>
    %295 = arith.addf %24, %285 : vector<2x32xf32>
    %cst_135 = arith.constant 0.000000e+00 : f32
    %296 = vector.broadcast %cst_135 : f32 to vector<2x32xf32>
    %297 = arith.subf %296, %295 : vector<2x32xf32>
    %298 = math.exp %297 : vector<2x32xf32>
    %cst_136 = arith.constant 1.000000e+00 : f32
    %299 = vector.broadcast %cst_136 : f32 to vector<2x32xf32>
    %300 = arith.addf %299, %298 : vector<2x32xf32>
    %cst_137 = arith.constant 1.000000e+00 : f32
    %301 = vector.broadcast %cst_137 : f32 to vector<2x32xf32>
    %302 = arith.divf %301, %300 : vector<2x32xf32>
    %303 = vector.broadcast %9 : vector<1x32xf32> to vector<2x32xf32>
    %304 = arith.addf %286, %303 : vector<2x32xf32>
    %305 = arith.mulf %294, %304 : vector<2x32xf32>
    %306 = arith.addf %29, %305 : vector<2x32xf32>
    %307 = math.tanh %306 : vector<2x32xf32>
    %308 = arith.subf %274, %307 : vector<2x32xf32>
    %309 = arith.mulf %302, %308 : vector<2x32xf32>
    %310 = arith.addf %307, %309 : vector<2x32xf32>
    %cst_138 = arith.constant dense<0.000000e+00> : vector<2x8xf32>
    %311 = tpu.matmul %310, %3, %cst_138 {dimension_numbers = #tpu.dot_dimension_numbers<[1], [0], [0], [1], [0, 0, 1, 1], [], []>} : vector<2x32xf32>, vector<32x8xf32>, vector<2x8xf32> -> vector<2x8xf32>
    %312 = vector.broadcast %11 : vector<1x8xf32> to vector<2x8xf32>
    %313 = arith.addf %311, %312 : vector<2x8xf32>
    %cst_139 = arith.constant dense<0.000000e+00> : vector<2x8xf32>
    %314 = tpu.matmul %310, %4, %cst_139 {dimension_numbers = #tpu.dot_dimension_numbers<[1], [0], [0], [1], [0, 0, 1, 1], [], []>} : vector<2x32xf32>, vector<32x8xf32>, vector<2x8xf32> -> vector<2x8xf32>
    %315 = vector.broadcast %12 : vector<1x8xf32> to vector<2x8xf32>
    %316 = arith.addf %314, %315 : vector<2x8xf32>
    %cst_140 = arith.constant dense<0.000000e+00> : vector<2x8xf32>
    %317 = tpu.matmul %310, %5, %cst_140 {dimension_numbers = #tpu.dot_dimension_numbers<[1], [0], [0], [1], [0, 0, 1, 1], [], []>} : vector<2x32xf32>, vector<32x8xf32>, vector<2x8xf32> -> vector<2x8xf32>
    %318 = vector.broadcast %13 : vector<1x8xf32> to vector<2x8xf32>
    %319 = arith.addf %317, %318 : vector<2x8xf32>
    %cst_141 = arith.constant dense<0.000000e+00> : vector<2x8xf32>
    %320 = tpu.matmul %31, %6, %cst_141 {dimension_numbers = #tpu.dot_dimension_numbers<[1], [0], [0], [1], [0, 0, 1, 1], [], []>} : vector<2x8xf32>, vector<8x8xf32>, vector<2x8xf32> -> vector<2x8xf32>
    %cst_142 = arith.constant dense<0.000000e+00> : vector<2x8xf32>
    %321 = tpu.matmul %31, %7, %cst_142 {dimension_numbers = #tpu.dot_dimension_numbers<[1], [0], [0], [1], [0, 0, 1, 1], [], []>} : vector<2x8xf32>, vector<8x8xf32>, vector<2x8xf32> -> vector<2x8xf32>
    %cst_143 = arith.constant dense<0.000000e+00> : vector<2x8xf32>
    %322 = tpu.matmul %31, %8, %cst_143 {dimension_numbers = #tpu.dot_dimension_numbers<[1], [0], [0], [1], [0, 0, 1, 1], [], []>} : vector<2x8xf32>, vector<8x8xf32>, vector<2x8xf32> -> vector<2x8xf32>
    %323 = arith.addf %61, %320 : vector<2x8xf32>
    %cst_144 = arith.constant 0.000000e+00 : f32
    %324 = vector.broadcast %cst_144 : f32 to vector<2x8xf32>
    %325 = arith.subf %324, %323 : vector<2x8xf32>
    %326 = math.exp %325 : vector<2x8xf32>
    %cst_145 = arith.constant 1.000000e+00 : f32
    %327 = vector.broadcast %cst_145 : f32 to vector<2x8xf32>
    %328 = arith.addf %327, %326 : vector<2x8xf32>
    %cst_146 = arith.constant 1.000000e+00 : f32
    %329 = vector.broadcast %cst_146 : f32 to vector<2x8xf32>
    %330 = arith.divf %329, %328 : vector<2x8xf32>
    %331 = arith.addf %64, %321 : vector<2x8xf32>
    %cst_147 = arith.constant 0.000000e+00 : f32
    %332 = vector.broadcast %cst_147 : f32 to vector<2x8xf32>
    %333 = arith.subf %332, %331 : vector<2x8xf32>
    %334 = math.exp %333 : vector<2x8xf32>
    %cst_148 = arith.constant 1.000000e+00 : f32
    %335 = vector.broadcast %cst_148 : f32 to vector<2x8xf32>
    %336 = arith.addf %335, %334 : vector<2x8xf32>
    %cst_149 = arith.constant 1.000000e+00 : f32
    %337 = vector.broadcast %cst_149 : f32 to vector<2x8xf32>
    %338 = arith.divf %337, %336 : vector<2x8xf32>
    %339 = vector.broadcast %10 : vector<1x8xf32> to vector<2x8xf32>
    %340 = arith.addf %322, %339 : vector<2x8xf32>
    %341 = arith.mulf %330, %340 : vector<2x8xf32>
    %342 = arith.addf %67, %341 : vector<2x8xf32>
    %343 = math.tanh %342 : vector<2x8xf32>
    %344 = arith.subf %31, %343 : vector<2x8xf32>
    %345 = arith.mulf %338, %344 : vector<2x8xf32>
    %346 = arith.addf %343, %345 : vector<2x8xf32>
    %cst_150 = arith.constant dense<0.000000e+00> : vector<2x8xf32>
    %347 = tpu.matmul %346, %6, %cst_150 {dimension_numbers = #tpu.dot_dimension_numbers<[1], [0], [0], [1], [0, 0, 1, 1], [], []>} : vector<2x8xf32>, vector<8x8xf32>, vector<2x8xf32> -> vector<2x8xf32>
    %cst_151 = arith.constant dense<0.000000e+00> : vector<2x8xf32>
    %348 = tpu.matmul %346, %7, %cst_151 {dimension_numbers = #tpu.dot_dimension_numbers<[1], [0], [0], [1], [0, 0, 1, 1], [], []>} : vector<2x8xf32>, vector<8x8xf32>, vector<2x8xf32> -> vector<2x8xf32>
    %cst_152 = arith.constant dense<0.000000e+00> : vector<2x8xf32>
    %349 = tpu.matmul %346, %8, %cst_152 {dimension_numbers = #tpu.dot_dimension_numbers<[1], [0], [0], [1], [0, 0, 1, 1], [], []>} : vector<2x8xf32>, vector<8x8xf32>, vector<2x8xf32> -> vector<2x8xf32>
    %350 = arith.addf %97, %347 : vector<2x8xf32>
    %cst_153 = arith.constant 0.000000e+00 : f32
    %351 = vector.broadcast %cst_153 : f32 to vector<2x8xf32>
    %352 = arith.subf %351, %350 : vector<2x8xf32>
    %353 = math.exp %352 : vector<2x8xf32>
    %cst_154 = arith.constant 1.000000e+00 : f32
    %354 = vector.broadcast %cst_154 : f32 to vector<2x8xf32>
    %355 = arith.addf %354, %353 : vector<2x8xf32>
    %cst_155 = arith.constant 1.000000e+00 : f32
    %356 = vector.broadcast %cst_155 : f32 to vector<2x8xf32>
    %357 = arith.divf %356, %355 : vector<2x8xf32>
    %358 = arith.addf %100, %348 : vector<2x8xf32>
    %cst_156 = arith.constant 0.000000e+00 : f32
    %359 = vector.broadcast %cst_156 : f32 to vector<2x8xf32>
    %360 = arith.subf %359, %358 : vector<2x8xf32>
    %361 = math.exp %360 : vector<2x8xf32>
    %cst_157 = arith.constant 1.000000e+00 : f32
    %362 = vector.broadcast %cst_157 : f32 to vector<2x8xf32>
    %363 = arith.addf %362, %361 : vector<2x8xf32>
    %cst_158 = arith.constant 1.000000e+00 : f32
    %364 = vector.broadcast %cst_158 : f32 to vector<2x8xf32>
    %365 = arith.divf %364, %363 : vector<2x8xf32>
    %366 = vector.broadcast %10 : vector<1x8xf32> to vector<2x8xf32>
    %367 = arith.addf %349, %366 : vector<2x8xf32>
    %368 = arith.mulf %357, %367 : vector<2x8xf32>
    %369 = arith.addf %103, %368 : vector<2x8xf32>
    %370 = math.tanh %369 : vector<2x8xf32>
    %371 = arith.subf %346, %370 : vector<2x8xf32>
    %372 = arith.mulf %365, %371 : vector<2x8xf32>
    %373 = arith.addf %370, %372 : vector<2x8xf32>
    %cst_159 = arith.constant dense<0.000000e+00> : vector<2x8xf32>
    %374 = tpu.matmul %373, %6, %cst_159 {dimension_numbers = #tpu.dot_dimension_numbers<[1], [0], [0], [1], [0, 0, 1, 1], [], []>} : vector<2x8xf32>, vector<8x8xf32>, vector<2x8xf32> -> vector<2x8xf32>
    %cst_160 = arith.constant dense<0.000000e+00> : vector<2x8xf32>
    %375 = tpu.matmul %373, %7, %cst_160 {dimension_numbers = #tpu.dot_dimension_numbers<[1], [0], [0], [1], [0, 0, 1, 1], [], []>} : vector<2x8xf32>, vector<8x8xf32>, vector<2x8xf32> -> vector<2x8xf32>
    %cst_161 = arith.constant dense<0.000000e+00> : vector<2x8xf32>
    %376 = tpu.matmul %373, %8, %cst_161 {dimension_numbers = #tpu.dot_dimension_numbers<[1], [0], [0], [1], [0, 0, 1, 1], [], []>} : vector<2x8xf32>, vector<8x8xf32>, vector<2x8xf32> -> vector<2x8xf32>
    %377 = arith.addf %133, %374 : vector<2x8xf32>
    %cst_162 = arith.constant 0.000000e+00 : f32
    %378 = vector.broadcast %cst_162 : f32 to vector<2x8xf32>
    %379 = arith.subf %378, %377 : vector<2x8xf32>
    %380 = math.exp %379 : vector<2x8xf32>
    %cst_163 = arith.constant 1.000000e+00 : f32
    %381 = vector.broadcast %cst_163 : f32 to vector<2x8xf32>
    %382 = arith.addf %381, %380 : vector<2x8xf32>
    %cst_164 = arith.constant 1.000000e+00 : f32
    %383 = vector.broadcast %cst_164 : f32 to vector<2x8xf32>
    %384 = arith.divf %383, %382 : vector<2x8xf32>
    %385 = arith.addf %136, %375 : vector<2x8xf32>
    %cst_165 = arith.constant 0.000000e+00 : f32
    %386 = vector.broadcast %cst_165 : f32 to vector<2x8xf32>
    %387 = arith.subf %386, %385 : vector<2x8xf32>
    %388 = math.exp %387 : vector<2x8xf32>
    %cst_166 = arith.constant 1.000000e+00 : f32
    %389 = vector.broadcast %cst_166 : f32 to vector<2x8xf32>
    %390 = arith.addf %389, %388 : vector<2x8xf32>
    %cst_167 = arith.constant 1.000000e+00 : f32
    %391 = vector.broadcast %cst_167 : f32 to vector<2x8xf32>
    %392 = arith.divf %391, %390 : vector<2x8xf32>
    %393 = vector.broadcast %10 : vector<1x8xf32> to vector<2x8xf32>
    %394 = arith.addf %376, %393 : vector<2x8xf32>
    %395 = arith.mulf %384, %394 : vector<2x8xf32>
    %396 = arith.addf %139, %395 : vector<2x8xf32>
    %397 = math.tanh %396 : vector<2x8xf32>
    %398 = arith.subf %373, %397 : vector<2x8xf32>
    %399 = arith.mulf %392, %398 : vector<2x8xf32>
    %400 = arith.addf %397, %399 : vector<2x8xf32>
    %cst_168 = arith.constant dense<0.000000e+00> : vector<2x8xf32>
    %401 = tpu.matmul %400, %6, %cst_168 {dimension_numbers = #tpu.dot_dimension_numbers<[1], [0], [0], [1], [0, 0, 1, 1], [], []>} : vector<2x8xf32>, vector<8x8xf32>, vector<2x8xf32> -> vector<2x8xf32>
    %cst_169 = arith.constant dense<0.000000e+00> : vector<2x8xf32>
    %402 = tpu.matmul %400, %7, %cst_169 {dimension_numbers = #tpu.dot_dimension_numbers<[1], [0], [0], [1], [0, 0, 1, 1], [], []>} : vector<2x8xf32>, vector<8x8xf32>, vector<2x8xf32> -> vector<2x8xf32>
    %cst_170 = arith.constant dense<0.000000e+00> : vector<2x8xf32>
    %403 = tpu.matmul %400, %8, %cst_170 {dimension_numbers = #tpu.dot_dimension_numbers<[1], [0], [0], [1], [0, 0, 1, 1], [], []>} : vector<2x8xf32>, vector<8x8xf32>, vector<2x8xf32> -> vector<2x8xf32>
    %404 = arith.addf %169, %401 : vector<2x8xf32>
    %cst_171 = arith.constant 0.000000e+00 : f32
    %405 = vector.broadcast %cst_171 : f32 to vector<2x8xf32>
    %406 = arith.subf %405, %404 : vector<2x8xf32>
    %407 = math.exp %406 : vector<2x8xf32>
    %cst_172 = arith.constant 1.000000e+00 : f32
    %408 = vector.broadcast %cst_172 : f32 to vector<2x8xf32>
    %409 = arith.addf %408, %407 : vector<2x8xf32>
    %cst_173 = arith.constant 1.000000e+00 : f32
    %410 = vector.broadcast %cst_173 : f32 to vector<2x8xf32>
    %411 = arith.divf %410, %409 : vector<2x8xf32>
    %412 = arith.addf %172, %402 : vector<2x8xf32>
    %cst_174 = arith.constant 0.000000e+00 : f32
    %413 = vector.broadcast %cst_174 : f32 to vector<2x8xf32>
    %414 = arith.subf %413, %412 : vector<2x8xf32>
    %415 = math.exp %414 : vector<2x8xf32>
    %cst_175 = arith.constant 1.000000e+00 : f32
    %416 = vector.broadcast %cst_175 : f32 to vector<2x8xf32>
    %417 = arith.addf %416, %415 : vector<2x8xf32>
    %cst_176 = arith.constant 1.000000e+00 : f32
    %418 = vector.broadcast %cst_176 : f32 to vector<2x8xf32>
    %419 = arith.divf %418, %417 : vector<2x8xf32>
    %420 = vector.broadcast %10 : vector<1x8xf32> to vector<2x8xf32>
    %421 = arith.addf %403, %420 : vector<2x8xf32>
    %422 = arith.mulf %411, %421 : vector<2x8xf32>
    %423 = arith.addf %175, %422 : vector<2x8xf32>
    %424 = math.tanh %423 : vector<2x8xf32>
    %425 = arith.subf %400, %424 : vector<2x8xf32>
    %426 = arith.mulf %419, %425 : vector<2x8xf32>
    %427 = arith.addf %424, %426 : vector<2x8xf32>
    %cst_177 = arith.constant dense<0.000000e+00> : vector<2x8xf32>
    %428 = tpu.matmul %427, %6, %cst_177 {dimension_numbers = #tpu.dot_dimension_numbers<[1], [0], [0], [1], [0, 0, 1, 1], [], []>} : vector<2x8xf32>, vector<8x8xf32>, vector<2x8xf32> -> vector<2x8xf32>
    %cst_178 = arith.constant dense<0.000000e+00> : vector<2x8xf32>
    %429 = tpu.matmul %427, %7, %cst_178 {dimension_numbers = #tpu.dot_dimension_numbers<[1], [0], [0], [1], [0, 0, 1, 1], [], []>} : vector<2x8xf32>, vector<8x8xf32>, vector<2x8xf32> -> vector<2x8xf32>
    %cst_179 = arith.constant dense<0.000000e+00> : vector<2x8xf32>
    %430 = tpu.matmul %427, %8, %cst_179 {dimension_numbers = #tpu.dot_dimension_numbers<[1], [0], [0], [1], [0, 0, 1, 1], [], []>} : vector<2x8xf32>, vector<8x8xf32>, vector<2x8xf32> -> vector<2x8xf32>
    %431 = arith.addf %205, %428 : vector<2x8xf32>
    %cst_180 = arith.constant 0.000000e+00 : f32
    %432 = vector.broadcast %cst_180 : f32 to vector<2x8xf32>
    %433 = arith.subf %432, %431 : vector<2x8xf32>
    %434 = math.exp %433 : vector<2x8xf32>
    %cst_181 = arith.constant 1.000000e+00 : f32
    %435 = vector.broadcast %cst_181 : f32 to vector<2x8xf32>
    %436 = arith.addf %435, %434 : vector<2x8xf32>
    %cst_182 = arith.constant 1.000000e+00 : f32
    %437 = vector.broadcast %cst_182 : f32 to vector<2x8xf32>
    %438 = arith.divf %437, %436 : vector<2x8xf32>
    %439 = arith.addf %208, %429 : vector<2x8xf32>
    %cst_183 = arith.constant 0.000000e+00 : f32
    %440 = vector.broadcast %cst_183 : f32 to vector<2x8xf32>
    %441 = arith.subf %440, %439 : vector<2x8xf32>
    %442 = math.exp %441 : vector<2x8xf32>
    %cst_184 = arith.constant 1.000000e+00 : f32
    %443 = vector.broadcast %cst_184 : f32 to vector<2x8xf32>
    %444 = arith.addf %443, %442 : vector<2x8xf32>
    %cst_185 = arith.constant 1.000000e+00 : f32
    %445 = vector.broadcast %cst_185 : f32 to vector<2x8xf32>
    %446 = arith.divf %445, %444 : vector<2x8xf32>
    %447 = vector.broadcast %10 : vector<1x8xf32> to vector<2x8xf32>
    %448 = arith.addf %430, %447 : vector<2x8xf32>
    %449 = arith.mulf %438, %448 : vector<2x8xf32>
    %450 = arith.addf %211, %449 : vector<2x8xf32>
    %451 = math.tanh %450 : vector<2x8xf32>
    %452 = arith.subf %427, %451 : vector<2x8xf32>
    %453 = arith.mulf %446, %452 : vector<2x8xf32>
    %454 = arith.addf %451, %453 : vector<2x8xf32>
    %cst_186 = arith.constant dense<0.000000e+00> : vector<2x8xf32>
    %455 = tpu.matmul %454, %6, %cst_186 {dimension_numbers = #tpu.dot_dimension_numbers<[1], [0], [0], [1], [0, 0, 1, 1], [], []>} : vector<2x8xf32>, vector<8x8xf32>, vector<2x8xf32> -> vector<2x8xf32>
    %cst_187 = arith.constant dense<0.000000e+00> : vector<2x8xf32>
    %456 = tpu.matmul %454, %7, %cst_187 {dimension_numbers = #tpu.dot_dimension_numbers<[1], [0], [0], [1], [0, 0, 1, 1], [], []>} : vector<2x8xf32>, vector<8x8xf32>, vector<2x8xf32> -> vector<2x8xf32>
    %cst_188 = arith.constant dense<0.000000e+00> : vector<2x8xf32>
    %457 = tpu.matmul %454, %8, %cst_188 {dimension_numbers = #tpu.dot_dimension_numbers<[1], [0], [0], [1], [0, 0, 1, 1], [], []>} : vector<2x8xf32>, vector<8x8xf32>, vector<2x8xf32> -> vector<2x8xf32>
    %458 = arith.addf %241, %455 : vector<2x8xf32>
    %cst_189 = arith.constant 0.000000e+00 : f32
    %459 = vector.broadcast %cst_189 : f32 to vector<2x8xf32>
    %460 = arith.subf %459, %458 : vector<2x8xf32>
    %461 = math.exp %460 : vector<2x8xf32>
    %cst_190 = arith.constant 1.000000e+00 : f32
    %462 = vector.broadcast %cst_190 : f32 to vector<2x8xf32>
    %463 = arith.addf %462, %461 : vector<2x8xf32>
    %cst_191 = arith.constant 1.000000e+00 : f32
    %464 = vector.broadcast %cst_191 : f32 to vector<2x8xf32>
    %465 = arith.divf %464, %463 : vector<2x8xf32>
    %466 = arith.addf %244, %456 : vector<2x8xf32>
    %cst_192 = arith.constant 0.000000e+00 : f32
    %467 = vector.broadcast %cst_192 : f32 to vector<2x8xf32>
    %468 = arith.subf %467, %466 : vector<2x8xf32>
    %469 = math.exp %468 : vector<2x8xf32>
    %cst_193 = arith.constant 1.000000e+00 : f32
    %470 = vector.broadcast %cst_193 : f32 to vector<2x8xf32>
    %471 = arith.addf %470, %469 : vector<2x8xf32>
    %cst_194 = arith.constant 1.000000e+00 : f32
    %472 = vector.broadcast %cst_194 : f32 to vector<2x8xf32>
    %473 = arith.divf %472, %471 : vector<2x8xf32>
    %474 = vector.broadcast %10 : vector<1x8xf32> to vector<2x8xf32>
    %475 = arith.addf %457, %474 : vector<2x8xf32>
    %476 = arith.mulf %465, %475 : vector<2x8xf32>
    %477 = arith.addf %247, %476 : vector<2x8xf32>
    %478 = math.tanh %477 : vector<2x8xf32>
    %479 = arith.subf %454, %478 : vector<2x8xf32>
    %480 = arith.mulf %473, %479 : vector<2x8xf32>
    %481 = arith.addf %478, %480 : vector<2x8xf32>
    %cst_195 = arith.constant dense<0.000000e+00> : vector<2x8xf32>
    %482 = tpu.matmul %481, %6, %cst_195 {dimension_numbers = #tpu.dot_dimension_numbers<[1], [0], [0], [1], [0, 0, 1, 1], [], []>} : vector<2x8xf32>, vector<8x8xf32>, vector<2x8xf32> -> vector<2x8xf32>
    %cst_196 = arith.constant dense<0.000000e+00> : vector<2x8xf32>
    %483 = tpu.matmul %481, %7, %cst_196 {dimension_numbers = #tpu.dot_dimension_numbers<[1], [0], [0], [1], [0, 0, 1, 1], [], []>} : vector<2x8xf32>, vector<8x8xf32>, vector<2x8xf32> -> vector<2x8xf32>
    %cst_197 = arith.constant dense<0.000000e+00> : vector<2x8xf32>
    %484 = tpu.matmul %481, %8, %cst_197 {dimension_numbers = #tpu.dot_dimension_numbers<[1], [0], [0], [1], [0, 0, 1, 1], [], []>} : vector<2x8xf32>, vector<8x8xf32>, vector<2x8xf32> -> vector<2x8xf32>
    %485 = arith.addf %277, %482 : vector<2x8xf32>
    %cst_198 = arith.constant 0.000000e+00 : f32
    %486 = vector.broadcast %cst_198 : f32 to vector<2x8xf32>
    %487 = arith.subf %486, %485 : vector<2x8xf32>
    %488 = math.exp %487 : vector<2x8xf32>
    %cst_199 = arith.constant 1.000000e+00 : f32
    %489 = vector.broadcast %cst_199 : f32 to vector<2x8xf32>
    %490 = arith.addf %489, %488 : vector<2x8xf32>
    %cst_200 = arith.constant 1.000000e+00 : f32
    %491 = vector.broadcast %cst_200 : f32 to vector<2x8xf32>
    %492 = arith.divf %491, %490 : vector<2x8xf32>
    %493 = arith.addf %280, %483 : vector<2x8xf32>
    %cst_201 = arith.constant 0.000000e+00 : f32
    %494 = vector.broadcast %cst_201 : f32 to vector<2x8xf32>
    %495 = arith.subf %494, %493 : vector<2x8xf32>
    %496 = math.exp %495 : vector<2x8xf32>
    %cst_202 = arith.constant 1.000000e+00 : f32
    %497 = vector.broadcast %cst_202 : f32 to vector<2x8xf32>
    %498 = arith.addf %497, %496 : vector<2x8xf32>
    %cst_203 = arith.constant 1.000000e+00 : f32
    %499 = vector.broadcast %cst_203 : f32 to vector<2x8xf32>
    %500 = arith.divf %499, %498 : vector<2x8xf32>
    %501 = vector.broadcast %10 : vector<1x8xf32> to vector<2x8xf32>
    %502 = arith.addf %484, %501 : vector<2x8xf32>
    %503 = arith.mulf %492, %502 : vector<2x8xf32>
    %504 = arith.addf %283, %503 : vector<2x8xf32>
    %505 = math.tanh %504 : vector<2x8xf32>
    %506 = arith.subf %481, %505 : vector<2x8xf32>
    %507 = arith.mulf %500, %506 : vector<2x8xf32>
    %508 = arith.addf %505, %507 : vector<2x8xf32>
    %cst_204 = arith.constant dense<0.000000e+00> : vector<2x8xf32>
    %509 = tpu.matmul %508, %6, %cst_204 {dimension_numbers = #tpu.dot_dimension_numbers<[1], [0], [0], [1], [0, 0, 1, 1], [], []>} : vector<2x8xf32>, vector<8x8xf32>, vector<2x8xf32> -> vector<2x8xf32>
    %cst_205 = arith.constant dense<0.000000e+00> : vector<2x8xf32>
    %510 = tpu.matmul %508, %7, %cst_205 {dimension_numbers = #tpu.dot_dimension_numbers<[1], [0], [0], [1], [0, 0, 1, 1], [], []>} : vector<2x8xf32>, vector<8x8xf32>, vector<2x8xf32> -> vector<2x8xf32>
    %cst_206 = arith.constant dense<0.000000e+00> : vector<2x8xf32>
    %511 = tpu.matmul %508, %8, %cst_206 {dimension_numbers = #tpu.dot_dimension_numbers<[1], [0], [0], [1], [0, 0, 1, 1], [], []>} : vector<2x8xf32>, vector<8x8xf32>, vector<2x8xf32> -> vector<2x8xf32>
    %512 = arith.addf %313, %509 : vector<2x8xf32>
    %cst_207 = arith.constant 0.000000e+00 : f32
    %513 = vector.broadcast %cst_207 : f32 to vector<2x8xf32>
    %514 = arith.subf %513, %512 : vector<2x8xf32>
    %515 = math.exp %514 : vector<2x8xf32>
    %cst_208 = arith.constant 1.000000e+00 : f32
    %516 = vector.broadcast %cst_208 : f32 to vector<2x8xf32>
    %517 = arith.addf %516, %515 : vector<2x8xf32>
    %cst_209 = arith.constant 1.000000e+00 : f32
    %518 = vector.broadcast %cst_209 : f32 to vector<2x8xf32>
    %519 = arith.divf %518, %517 : vector<2x8xf32>
    %520 = arith.addf %316, %510 : vector<2x8xf32>
    %cst_210 = arith.constant 0.000000e+00 : f32
    %521 = vector.broadcast %cst_210 : f32 to vector<2x8xf32>
    %522 = arith.subf %521, %520 : vector<2x8xf32>
    %523 = math.exp %522 : vector<2x8xf32>
    %cst_211 = arith.constant 1.000000e+00 : f32
    %524 = vector.broadcast %cst_211 : f32 to vector<2x8xf32>
    %525 = arith.addf %524, %523 : vector<2x8xf32>
    %cst_212 = arith.constant 1.000000e+00 : f32
    %526 = vector.broadcast %cst_212 : f32 to vector<2x8xf32>
    %527 = arith.divf %526, %525 : vector<2x8xf32>
    %528 = vector.broadcast %10 : vector<1x8xf32> to vector<2x8xf32>
    %529 = arith.addf %511, %528 : vector<2x8xf32>
    %530 = arith.mulf %519, %529 : vector<2x8xf32>
    %531 = arith.addf %319, %530 : vector<2x8xf32>
    %532 = math.tanh %531 : vector<2x8xf32>
    %533 = arith.subf %508, %532 : vector<2x8xf32>
    %534 = arith.mulf %527, %533 : vector<2x8xf32>
    %535 = arith.addf %532, %534 : vector<2x8xf32>
    %cst_213 = arith.constant 0.000000e+00 : f32
    %536 = vector.broadcast %cst_213 : f32 to vector<2x64xf32>
    %537 = tpu.concatenate %346, %373, %400, %427, %454, %481, %508, %535, %536 in 1 : vector<2x8xf32>, vector<2x8xf32>, vector<2x8xf32>, vector<2x8xf32>, vector<2x8xf32>, vector<2x8xf32>, vector<2x8xf32>, vector<2x8xf32>, vector<2x64xf32> -> vector<2x128xf32>
    %c0_214 = arith.constant 0 : index
    %c0_215 = arith.constant 0 : index
    %538 = vector.load %arg21[%c0_214, %c0_215] : memref<2x128xf32, #tpu.memory_space<vmem>>, vector<2x128xf32>
    tpu.vector_store %arg21[%c0_214, %c0_215], %537 {strides = array<i32>} : memref<2x128xf32, #tpu.memory_space<vmem>>, vector<2x128xf32>,
    return
  }
}

</mosaic_0001>

<llo_original>
// kernel: decoder_forward.1
$region0: #{decoder_forward.1}
  #allocation0 [shape = 'u32[]', space=smem, size = 0x4, offset = 0x4, fixed_abs, tag = 'smem constant byte address 0x4 - core index']
  #allocation1 [shape = 'u32[144,128]{1,0:T(1,128)}', space=vmem, size = 0x12000, scoped, tag = 'internal scratch']
  %s0 = inlined_call_operand.hbm [shape: f32[2,16], index: 0, kind: input, shape index: {}]
  %s1 = inlined_call_operand.vmem [shape: f32[16,32], index: 1, kind: input, shape index: {}]
  %s2 = inlined_call_operand.vmem [shape: f32[16,32], index: 2, kind: input, shape index: {}]
  %s3 = inlined_call_operand.hbm [shape: f32[16,32], index: 3, kind: input, shape index: {}]
  %s4 = inlined_call_operand.vmem [shape: f32[32,32], index: 4, kind: input, shape index: {}]
  %s5 = inlined_call_operand.vmem [shape: f32[32,32], index: 5, kind: input, shape index: {}]
  %s6 = inlined_call_operand.vmem [shape: f32[32,32], index: 6, kind: input, shape index: {}]
  %s7 = inlined_call_operand.hbm [shape: f32[1,32], index: 7, kind: input, shape index: {}]
  %s8 = inlined_call_operand.hbm [shape: f32[1,32], index: 8, kind: input, shape index: {}]
  %s9 = inlined_call_operand.hbm [shape: f32[1,32], index: 9, kind: input, shape index: {}]
  %s10 = inlined_call_operand.hbm [shape: f32[1,32], index: 10, kind: input, shape index: {}]
  %s11 = inlined_call_operand.vmem [shape: f32[32,8], index: 11, kind: input, shape index: {}]
  %s12 = inlined_call_operand.vmem [shape: f32[32,8], index: 12, kind: input, shape index: {}]
  %s13 = inlined_call_operand.vmem [shape: f32[32,8], index: 13, kind: input, shape index: {}]
  %s14 = inlined_call_operand.vmem [shape: f32[8,8], index: 14, kind: input, shape index: {}]
  %s15 = inlined_call_operand.vmem [shape: f32[8,8], index: 15, kind: input, shape index: {}]
  %s16 = inlined_call_operand.vmem [shape: f32[8,8], index: 16, kind: input, shape index: {}]
  %s17 = inlined_call_operand.vmem [shape: f32[1,8], index: 17, kind: input, shape index: {}]
  %s18 = inlined_call_operand.vmem [shape: f32[1,8], index: 18, kind: input, shape index: {}]
  %s19 = inlined_call_operand.vmem [shape: f32[1,8], index: 19, kind: input, shape index: {}]
  %s20 = inlined_call_operand.vmem [shape: f32[1,8], index: 20, kind: input, shape index: {}]
  %s21 = inlined_call_operand.vmem [shape: f32[2,128], index: 21, kind: output, shape index: {}]
  %s22 = sld [smem:[#allocation0]]
  $region118: #{decoder_forward.1} parent=0
    _
  %s24 = ssub.s32 1, %s22
  %s25 = scalar_select 0, %s24, %s22
  $region1: #{decoder_forward.1} parent=0
    #allocation2 [shape = 'u8[1024]{0}', space=vmem, size = 0x400, scoped, tag = 'input window, operand 0, single buffered']
    #allocation3 [shape = 's32[1]{0}', space=sflag, size = 0x4, scoped, tag = 'scoped memory for decoder_forward.1']
    #allocation4 [shape = 'u8[8192]{0}', space=vmem, size = 0x2000, scoped, tag = 'input window, operand 3, single buffered']
    #allocation5 [shape = 's32[1]{0}', space=sflag, size = 0x4, scoped, tag = 'scoped memory for decoder_forward.1']
    #allocation6 [shape = 'u8[512]{0}', space=vmem, size = 0x400, scoped, tag = 'input window, operand 7, single buffered']
    #allocation7 [shape = 'u8[512]{0}', space=vmem, size = 0x400, scoped, tag = 'input window, operand 8, single buffered']
    #allocation8 [shape = 's32[1]{0}', space=sflag, size = 0x4, scoped, tag = 'scoped memory for decoder_forward.1']
    #allocation9 [shape = 'u8[512]{0}', space=vmem, size = 0x400, scoped, tag = 'input window, operand 9, single buffered']
    #allocation10 [shape = 'u8[512]{0}', space=vmem, size = 0x400, scoped, tag = 'input window, operand 10, single buffered']
    #allocation11 [shape = 's32[1]{0}', space=sflag, size = 0x4, scoped, tag = 'scoped memory for decoder_forward.1']
    %26 = vsyncpa [#allocation3], 0
    %27 = vsyncpa [#allocation5], 0
    %28 = vsyncpa [#allocation8], 0
    %29 = vsyncpa [#allocation11], 0
    // Predicated region
    $region2: #{decoder_forward.1} parent=1 // pred_check
      _
    $region3: #{decoder_forward.1} parent=1 // pred_check_branch
      %31 = sbr.rel (0) target = $region5
    $region4: #{decoder_forward.1} parent=1 // pred_region
      %s33 = ssub.s32 32, 32
      %34 = vsyncadd [#allocation3], %s33
      %s36 = sshll.u32 [#allocation2], 4
      %s37 = int_to_ptr.vmem [resolvable:$true] %s36
      %39 = dma.hbm_to_vmem [thread:$0]  %s0, 32, %s37, [#allocation3]
    $region5: #{decoder_forward.1} parent=1 // pred_fallthru
      _
    // Predicated region
    $region6: #{decoder_forward.1} parent=1 // pred_check
      _
    $region7: #{decoder_forward.1} parent=1 // pred_check_branch
      %41 = sbr.rel (0) target = $region9
    $region8: #{decoder_forward.1} parent=1 // pred_region
      _
    $region9: #{decoder_forward.1} parent=1 // pred_fallthru
      _
    // Predicated region
    $region10: #{decoder_forward.1} parent=1 // pred_check
      _
    $region11: #{decoder_forward.1} parent=1 // pred_check_branch
      %43 = sbr.rel (0) target = $region13
    $region12: #{decoder_forward.1} parent=1 // pred_region
      _
    $region13: #{decoder_forward.1} parent=1 // pred_fallthru
      _
    // Predicated region
    $region14: #{decoder_forward.1} parent=1 // pred_check
      _
    $region15: #{decoder_forward.1} parent=1 // pred_check_branch
      %45 = sbr.rel (0) target = $region17
    $region16: #{decoder_forward.1} parent=1 // pred_region
      %s47 = ssub.s32 256, 256
      %48 = vsyncadd [#allocation5], %s47
      %s49 = sshll.u32 [#allocation4], 4
      %s50 = int_to_ptr.vmem [resolvable:$true] %s49
      %55 = dma.hbm_to_vmem [thread:$0]  %s3, 256, %s50, [#allocation5], 128, 128, 8
    $region17: #{decoder_forward.1} parent=1 // pred_fallthru
      _
    // Predicated region
    $region18: #{decoder_forward.1} parent=1 // pred_check
      _
    $region19: #{decoder_forward.1} parent=1 // pred_check_branch
      %57 = sbr.rel (0) target = $region21
    $region20: #{decoder_forward.1} parent=1 // pred_region
      _
    $region21: #{decoder_forward.1} parent=1 // pred_fallthru
      _
    // Predicated region
    $region22: #{decoder_forward.1} parent=1 // pred_check
      _
    $region23: #{decoder_forward.1} parent=1 // pred_check_branch
      %59 = sbr.rel (0) target = $region25
    $region24: #{decoder_forward.1} parent=1 // pred_region
      _
    $region25: #{decoder_forward.1} parent=1 // pred_fallthru
      _
    // Predicated region
    $region26: #{decoder_forward.1} parent=1 // pred_check
      _
    $region27: #{decoder_forward.1} parent=1 // pred_check_branch
      %61 = sbr.rel (0) target = $region29
    $region28: #{decoder_forward.1} parent=1 // pred_region
      _
    $region29: #{decoder_forward.1} parent=1 // pred_fallthru
      _
    // Predicated region
    $region30: #{decoder_forward.1} parent=1 // pred_check
      _
    $region31: #{decoder_forward.1} parent=1 // pred_check_branch
      %63 = sbr.rel (0) target = $region33
    $region32: #{decoder_forward.1} parent=1 // pred_region
      %s65 = ssub.s32 16, 16
      %66 = vsyncadd [#allocation5], %s65
      %s68 = sshll.u32 [#allocation6], 4
      %s69 = int_to_ptr.vmem [resolvable:$true] %s68
      %71 = dma.hbm_to_vmem [thread:$0]  %s7, 16, %s69, [#allocation5]
    $region33: #{decoder_forward.1} parent=1 // pred_fallthru
      _
    // Predicated region
    $region34: #{decoder_forward.1} parent=1 // pred_check
      _
    $region35: #{decoder_forward.1} parent=1 // pred_check_branch
      %73 = sbr.rel (0) target = $region37
    $region36: #{decoder_forward.1} parent=1 // pred_region
      %s75 = ssub.s32 16, 16
      %76 = vsyncadd [#allocation8], %s75
      %s78 = sshll.u32 [#allocation7], 4
      %s79 = int_to_ptr.vmem [resolvable:$true] %s78
      %81 = dma.hbm_to_vmem [thread:$0]  %s8, 16, %s79, [#allocation8]
    $region37: #{decoder_forward.1} parent=1 // pred_fallthru
      _
    // Predicated region
    $region38: #{decoder_forward.1} parent=1 // pred_check
      _
    $region39: #{decoder_forward.1} parent=1 // pred_check_branch
      %83 = sbr.rel (0) target = $region41
    $region40: #{decoder_forward.1} parent=1 // pred_region
      %s85 = ssub.s32 16, 16
      %86 = vsyncadd [#allocation8], %s85
      %s88 = sshll.u32 [#allocation9], 4
      %s89 = int_to_ptr.vmem [resolvable:$true] %s88
      %91 = dma.hbm_to_vmem [thread:$0]  %s9, 16, %s89, [#allocation8]
    $region41: #{decoder_forward.1} parent=1 // pred_fallthru
      _
    // Predicated region
    $region42: #{decoder_forward.1} parent=1 // pred_check
      _
    $region43: #{decoder_forward.1} parent=1 // pred_check_branch
      %93 = sbr.rel (0) target = $region45
    $region44: #{decoder_forward.1} parent=1 // pred_region
      %s95 = ssub.s32 16, 16
      %96 = vsyncadd [#allocation11], %s95
      %s98 = sshll.u32 [#allocation10], 4
      %s99 = int_to_ptr.vmem [resolvable:$true] %s98
      %101 = dma.hbm_to_vmem [thread:$0]  %s10, 16, %s99, [#allocation11]
    $region45: #{decoder_forward.1} parent=1 // pred_fallthru
      _
    // Predicated region
    $region46: #{decoder_forward.1} parent=1 // pred_check
      _
    $region47: #{decoder_forward.1} parent=1 // pred_check_branch
      %103 = sbr.rel (0) target = $region49
    $region48: #{decoder_forward.1} parent=1 // pred_region
      _
    $region49: #{decoder_forward.1} parent=1 // pred_fallthru
      _
    // Predicated region
    $region50: #{decoder_forward.1} parent=1 // pred_check
      _
    $region51: #{decoder_forward.1} parent=1 // pred_check_branch
      %105 = sbr.rel (0) target = $region53
    $region52: #{decoder_forward.1} parent=1 // pred_region
      _
    $region53: #{decoder_forward.1} parent=1 // pred_fallthru
      _
    // Predicated region
    $region54: #{decoder_forward.1} parent=1 // pred_check
      _
    $region55: #{decoder_forward.1} parent=1 // pred_check_branch
      %107 = sbr.rel (0) target = $region57
    $region56: #{decoder_forward.1} parent=1 // pred_region
      _
    $region57: #{decoder_forward.1} parent=1 // pred_fallthru
      _
    // Predicated region
    $region58: #{decoder_forward.1} parent=1 // pred_check
      _
    $region59: #{decoder_forward.1} parent=1 // pred_check_branch
      %109 = sbr.rel (0) target = $region61
    $region60: #{decoder_forward.1} parent=1 // pred_region
      _
    $region61: #{decoder_forward.1} parent=1 // pred_fallthru
      _
    // Predicated region
    $region62: #{decoder_forward.1} parent=1 // pred_check
      _
    $region63: #{decoder_forward.1} parent=1 // pred_check_branch
      %111 = sbr.rel (0) target = $region65
    $region64: #{decoder_forward.1} parent=1 // pred_region
      _
    $region65: #{decoder_forward.1} parent=1 // pred_fallthru
      _
    // Predicated region
    $region66: #{decoder_forward.1} parent=1 // pred_check
      _
    $region67: #{decoder_forward.1} parent=1 // pred_check_branch
      %113 = sbr.rel (0) target = $region69
    $region68: #{decoder_forward.1} parent=1 // pred_region
      _
    $region69: #{decoder_forward.1} parent=1 // pred_fallthru
      _
    // Predicated region
    $region70: #{decoder_forward.1} parent=1 // pred_check
      _
    $region71: #{decoder_forward.1} parent=1 // pred_check_branch
      %115 = sbr.rel (0) target = $region73
    $region72: #{decoder_forward.1} parent=1 // pred_region
      _
    $region73: #{decoder_forward.1} parent=1 // pred_fallthru
      _
    // Predicated region
    $region74: #{decoder_forward.1} parent=1 // pred_check
      _
    $region75: #{decoder_forward.1} parent=1 // pred_check_branch
      %117 = sbr.rel (0) target = $region77
    $region76: #{decoder_forward.1} parent=1 // pred_region
      _
    $region77: #{decoder_forward.1} parent=1 // pred_fallthru
      _
    // Predicated region
    $region78: #{decoder_forward.1} parent=1 // pred_check
      _
    $region79: #{decoder_forward.1} parent=1 // pred_check_branch
      %119 = sbr.rel (0) target = $region81
    $region80: #{decoder_forward.1} parent=1 // pred_region
      _
    $region81: #{decoder_forward.1} parent=1 // pred_fallthru
      _
    // Predicated region
    $region82: #{decoder_forward.1} parent=1 // pred_check
      _
    $region83: #{decoder_forward.1} parent=1 // pred_check_branch
      %121 = sbr.rel (0) target = $region85
    $region84: #{decoder_forward.1} parent=1 // pred_region
      _
    $region85: #{decoder_forward.1} parent=1 // pred_fallthru
      _
    // Predicated region
    $region86: #{decoder_forward.1} parent=1 // pred_check
      _
    $region87: #{decoder_forward.1} parent=1 // pred_check_branch
      %123 = sbr.rel (0) target = $region89
    $region88: #{decoder_forward.1} parent=1 // pred_region
      %124 = dma.done [#allocation3], 32
    $region89: #{decoder_forward.1} parent=1 // pred_fallthru
      _
    // Predicated region
    $region90: #{decoder_forward.1} parent=1 // pred_check
      _
    $region91: #{decoder_forward.1} parent=1 // pred_check_branch
      %126 = sbr.rel (0) target = $region93
    $region92: #{decoder_forward.1} parent=1 // pred_region
      %127 = dma.done [#allocation5], 256
    $region93: #{decoder_forward.1} parent=1 // pred_fallthru
      _
    // Predicated region
    $region94: #{decoder_forward.1} parent=1 // pred_check
      _
    $region95: #{decoder_forward.1} parent=1 // pred_check_branch
      %129 = sbr.rel (0) target = $region97
    $region96: #{decoder_forward.1} parent=1 // pred_region
      %130 = dma.done [#allocation5], 16
    $region97: #{decoder_forward.1} parent=1 // pred_fallthru
      _
    // Predicated region
    $region98: #{decoder_forward.1} parent=1 // pred_check
      _
    $region99: #{decoder_forward.1} parent=1 // pred_check_branch
      %132 = sbr.rel (0) target = $region101
    $region100: #{decoder_forward.1} parent=1 // pred_region
      %133 = dma.done [#allocation8], 16
    $region101: #{decoder_forward.1} parent=1 // pred_fallthru
      _
    // Predicated region
    $region102: #{decoder_forward.1} parent=1 // pred_check
      _
    $region103: #{decoder_forward.1} parent=1 // pred_check_branch
      %135 = sbr.rel (0) target = $region105
    $region104: #{decoder_forward.1} parent=1 // pred_region
      %136 = dma.done [#allocation8], 16
    $region105: #{decoder_forward.1} parent=1 // pred_fallthru
      _
    // Predicated region
    $region106: #{decoder_forward.1} parent=1 // pred_check
      _
    $region107: #{decoder_forward.1} parent=1 // pred_check_branch
      %138 = sbr.rel (0) target = $region109
    $region108: #{decoder_forward.1} parent=1 // pred_region
      %139 = dma.done [#allocation11], 16
    $region109: #{decoder_forward.1} parent=1 // pred_fallthru
      _
    %v140 = vld [vmem:[%s4] sm:$0xff]
    %v141 = vld [vmem:[%s4 + $0x8] sm:$0xff]
    %v142 = vld [vmem:[%s4 + $0x10] sm:$0xff]
    %v143 = vld [vmem:[%s4 + $0x18] sm:$0xff]
    %v144 = vld [vmem:[%s5] sm:$0xff]
    %v145 = vld [vmem:[%s5 + $0x8] sm:$0xff]
    %v146 = vld [vmem:[%s5 + $0x10] sm:$0xff]
    %v147 = vld [vmem:[%s5 + $0x18] sm:$0xff]
    %v148 = vld [vmem:[%s6] sm:$0xff]
    %v149 = vld [vmem:[%s6 + $0x8] sm:$0xff]
    %v150 = vld [vmem:[%s6 + $0x10] sm:$0xff]
    %v151 = vld [vmem:[%s6 + $0x18] sm:$0xff]
    %v152 = vld [vmem:[%s11] sm:$0xff]
    %v153 = vld [vmem:[%s11 + $0x8] sm:$0xff]
    %v154 = vld [vmem:[%s11 + $0x10] sm:$0xff]
    %v155 = vld [vmem:[%s11 + $0x18] sm:$0xff]
    %v156 = vld [vmem:[%s12] sm:$0xff]
    %v157 = vld [vmem:[%s12 + $0x8] sm:$0xff]
    %v158 = vld [vmem:[%s12 + $0x10] sm:$0xff]
    %v159 = vld [vmem:[%s12 + $0x18] sm:$0xff]
    %v160 = vld [vmem:[%s13] sm:$0xff]
    %v161 = vld [vmem:[%s13 + $0x8] sm:$0xff]
    %v162 = vld [vmem:[%s13 + $0x10] sm:$0xff]
    %v163 = vld [vmem:[%s13 + $0x18] sm:$0xff]
    %v164 = vld [vmem:[%s14] sm:$0xff]
    %v165 = vld [vmem:[%s15] sm:$0xff]
    %v166 = vld [vmem:[%s16] sm:$0xff]
    %v167 = vld [vmem:[#allocation10] sm:$0x1]
    %v168 = vld [vmem:[%s20] sm:$0x1]
    %v169 = vld [vmem:[%s17] sm:$0x1]
    %v170 = vld [vmem:[%s18] sm:$0x1]
    %v171 = vld [vmem:[%s19] sm:$0x1]
    %v172 = vld [vmem:[#allocation2] sm:$0x3]
    %v173 = vld [vmem:[%s1] sm:$0xff]
    %v174 = vld [vmem:[%s1 + $0x8] sm:$0xff]
    %v175 = vld [vmem:[#allocation6] sm:$0x1]
    %v177 = vlaneseq
    %v178 = vshrl.u32 %v177, 7
    %v179 = vsub.s32 0, %v178
    %v180 = vrot.slane %v175, %v179
    %vm182 = vcmask 130048
    %v184 = vsel %vm182, %v172, 0
    %186 = vmatprep.subr.mxu0 0.0
    %187 = vmatpush1.msra.mxu0 %v173
    %188 = vmatprep.subr.mxu0 0.0
    %189 = vmatpush1.msra.mxu0 %v174
    %190 = vmatprep.subr.mxu0 0.0
    %191 = vmatpush1.msra.mxu0 0.0
    %192 = vmatprep.subr.mxu0 0.0
    %193 = vmatpush1.msra.mxu0 0.0
    %194 = vmatprep.subr.mxu0 0.0
    %195 = vmatpush1.msra.mxu0 0.0
    %196 = vmatprep.subr.mxu0 0.0
    %197 = vmatpush1.msra.mxu0 0.0
    %198 = vmatprep.subr.mxu0 0.0
    %199 = vmatpush1.msra.mxu0 0.0
    %200 = vmatprep.subr.mxu0 0.0
    %201 = vmatpush1.msra.mxu0 0.0
    %202 = vmatprep.subr.mxu0 0.0
    %203 = vmatpush1.msra.mxu0 0.0
    %204 = vmatprep.subr.mxu0 0.0
    %205 = vmatpush1.msra.mxu0 0.0
    %206 = vmatprep.subr.mxu0 0.0
    %207 = vmatpush1.msra.mxu0 0.0
    %208 = vmatprep.subr.mxu0 0.0
    %209 = vmatpush1.msra.mxu0 0.0
    %210 = vmatprep.subr.mxu0 0.0
    %211 = vmatpush1.msra.mxu0 0.0
    %212 = vmatprep.subr.mxu0 0.0
    %213 = vmatpush1.msra.mxu0 0.0
    %214 = vmatprep.subr.mxu0 0.0
    %215 = vmatpush1.msra.mxu0 0.0
    %216 = vmatprep.subr.mxu0 0.0
    %217 = vmatpush1.msra.mxu0 0.0
    %218 = vmatprep.subr.mxu0 0.0
    %219 = vmatpush1.msra.mxu0 0.0
    %220 = vmatprep.subr.mxu0 0.0
    %221 = vmatpush1.msra.mxu0 0.0
    %222 = vmatprep.subr.mxu0 0.0
    %223 = vmatpush1.msra.mxu0 0.0
    %224 = vmatprep.subr.mxu0 0.0
    %225 = vmatpush1.msra.mxu0 0.0
    %226 = vmatprep.subr.mxu0 0.0
    %227 = vmatpush1.msra.mxu0 0.0
    %228 = vmatprep.subr.mxu0 0.0
    %229 = vmatpush1.msra.mxu0 0.0
    %230 = vmatprep.subr.mxu0 0.0
    %231 = vmatpush1.msra.mxu0 0.0
    %232 = vmatprep.subr.mxu0 0.0
    %233 = vmatpush1.msra.mxu0 0.0
    %234 = vmatprep.subr.mxu0 0.0
    %235 = vmatpush1.msra.mxu0 0.0
    %236 = vmatprep.subr.mxu0 0.0
    %237 = vmatpush1.msra.mxu0 0.0
    %238 = vmatprep.subr.mxu0 0.0
    %239 = vmatpush1.msra.mxu0 0.0
    %240 = vmatprep.subr.mxu0 0.0
    %241 = vmatpush1.msra.mxu0 0.0
    %242 = vmatprep.subr.mxu0 0.0
    %243 = vmatpush1.msra.mxu0 0.0
    %244 = vmatprep.subr.mxu0 0.0
    %245 = vmatpush1.msra.mxu0 0.0
    %246 = vmatprep.subr.mxu0 0.0
    %247 = vmatpush1.msra.mxu0 0.0
    %248 = vmatprep.subr.mxu0 0.0
    %249 = vmatpush1.msra.mxu0 0.0
    %250 = vmatprep.mubr.f32.mxu0 0.0
    %251 = vmatmul.mubr.f32.gmra.mrb[0].mxu0 %v184
    %v252 = vpop.f32.mrb[0].mxu0
    %v253 = vadd.f32 %v180, %v252
    %v254 = vpop.f32.mrb[0].mxu0
    %255 = vdwg.mxu0
    %v256 = vld [vmem:[%s2] sm:$0xff]
    %v257 = vld [vmem:[%s2 + $0x8] sm:$0xff]
    %v258 = vld [vmem:[#allocation7] sm:$0x1]
    %v260 = vlaneseq
    %v261 = vshrl.u32 %v260, 7
    %v262 = vsub.s32 0, %v261
    %v263 = vrot.slane %v258, %v262
    %265 = vmatprep.subr.mxu0 0.0
    %266 = vmatpush1.msra.mxu0 %v256
    %267 = vmatprep.subr.mxu0 0.0
    %268 = vmatpush1.msra.mxu0 %v257
    %269 = vmatprep.subr.mxu0 0.0
    %270 = vmatpush1.msra.mxu0 0.0
    %271 = vmatprep.subr.mxu0 0.0
    %272 = vmatpush1.msra.mxu0 0.0
    %273 = vmatprep.subr.mxu0 0.0
    %274 = vmatpush1.msra.mxu0 0.0
    %275 = vmatprep.subr.mxu0 0.0
    %276 = vmatpush1.msra.mxu0 0.0
    %277 = vmatprep.subr.mxu0 0.0
    %278 = vmatpush1.msra.mxu0 0.0
    %279 = vmatprep.subr.mxu0 0.0
    %280 = vmatpush1.msra.mxu0 0.0
    %281 = vmatprep.subr.mxu0 0.0
    %282 = vmatpush1.msra.mxu0 0.0
    %283 = vmatprep.subr.mxu0 0.0
    %284 = vmatpush1.msra.mxu0 0.0
    %285 = vmatprep.subr.mxu0 0.0
    %286 = vmatpush1.msra.mxu0 0.0
    %287 = vmatprep.subr.mxu0 0.0
    %288 = vmatpush1.msra.mxu0 0.0
    %289 = vmatprep.subr.mxu0 0.0
    %290 = vmatpush1.msra.mxu0 0.0
    %291 = vmatprep.subr.mxu0 0.0
    %292 = vmatpush1.msra.mxu0 0.0
    %293 = vmatprep.subr.mxu0 0.0
    %294 = vmatpush1.msra.mxu0 0.0
    %295 = vmatprep.subr.mxu0 0.0
    %296 = vmatpush1.msra.mxu0 0.0
    %297 = vmatprep.subr.mxu0 0.0
    %298 = vmatpush1.msra.mxu0 0.0
    %299 = vmatprep.subr.mxu0 0.0
    %300 = vmatpush1.msra.mxu0 0.0
    %301 = vmatprep.subr.mxu0 0.0
    %302 = vmatpush1.msra.mxu0 0.0
    %303 = vmatprep.subr.mxu0 0.0
    %304 = vmatpush1.msra.mxu0 0.0
    %305 = vmatprep.subr.mxu0 0.0
    %306 = vmatpush1.msra.mxu0 0.0
    %307 = vmatprep.subr.mxu0 0.0
    %308 = vmatpush1.msra.mxu0 0.0
    %309 = vmatprep.subr.mxu0 0.0
    %310 = vmatpush1.msra.mxu0 0.0
    %311 = vmatprep.subr.mxu0 0.0
    %312 = vmatpush1.msra.mxu0 0.0
    %313 = vmatprep.subr.mxu0 0.0
    %314 = vmatpush1.msra.mxu0 0.0
    %315 = vmatprep.subr.mxu0 0.0
    %316 = vmatpush1.msra.mxu0 0.0
    %317 = vmatprep.subr.mxu0 0.0
    %318 = vmatpush1.msra.mxu0 0.0
    %319 = vmatprep.subr.mxu0 0.0
    %320 = vmatpush1.msra.mxu0 0.0
    %321 = vmatprep.subr.mxu0 0.0
    %322 = vmatpush1.msra.mxu0 0.0
    %323 = vmatprep.subr.mxu0 0.0
    %324 = vmatpush1.msra.mxu0 0.0
    %325 = vmatprep.subr.mxu0 0.0
    %326 = vmatpush1.msra.mxu0 0.0
    %327 = vmatprep.subr.mxu0 0.0
    %328 = vmatpush1.msra.mxu0 0.0
    %329 = vmatprep.mubr.f32.mxu0 0.0
    %330 = vmatmul.mubr.f32.gmra.mrb[0].mxu0 %v184
    %v331 = vpop.f32.mrb[0].mxu0
    %v332 = vadd.f32 %v263, %v331
    %v333 = vpop.f32.mrb[0].mxu0
    %334 = vdwg.mxu0
    %v335 = vld [vmem:[#allocation4] sm:$0xff]
    %v336 = vld [vmem:[#allocation4 + $0x8] sm:$0xff]
    %v337 = vld [vmem:[#allocation9] sm:$0x1]
    %v339 = vlaneseq
    %v340 = vshrl.u32 %v339, 7
    %v341 = vsub.s32 0, %v340
    %v342 = vrot.slane %v337, %v341
    %344 = vmatprep.subr.mxu0 0.0
    %345 = vmatpush1.msra.mxu0 %v335
    %346 = vmatprep.subr.mxu0 0.0
    %347 = vmatpush1.msra.mxu0 %v336
    %348 = vmatprep.subr.mxu0 0.0
    %349 = vmatpush1.msra.mxu0 0.0
    %350 = vmatprep.subr.mxu0 0.0
    %351 = vmatpush1.msra.mxu0 0.0
    %352 = vmatprep.subr.mxu0 0.0
    %353 = vmatpush1.msra.mxu0 0.0
    %354 = vmatprep.subr.mxu0 0.0
    %355 = vmatpush1.msra.mxu0 0.0
    %356 = vmatprep.subr.mxu0 0.0
    %357 = vmatpush1.msra.mxu0 0.0
    %358 = vmatprep.subr.mxu0 0.0
    %359 = vmatpush1.msra.mxu0 0.0
    %360 = vmatprep.subr.mxu0 0.0
    %361 = vmatpush1.msra.mxu0 0.0
    %362 = vmatprep.subr.mxu0 0.0
    %363 = vmatpush1.msra.mxu0 0.0
    %364 = vmatprep.subr.mxu0 0.0
    %365 = vmatpush1.msra.mxu0 0.0
    %366 = vmatprep.subr.mxu0 0.0
    %367 = vmatpush1.msra.mxu0 0.0
    %368 = vmatprep.subr.mxu0 0.0
    %369 = vmatpush1.msra.mxu0 0.0
    %370 = vmatprep.subr.mxu0 0.0
    %371 = vmatpush1.msra.mxu0 0.0
    %372 = vmatprep.subr.mxu0 0.0
    %373 = vmatpush1.msra.mxu0 0.0
    %374 = vmatprep.subr.mxu0 0.0
    %375 = vmatpush1.msra.mxu0 0.0
    %376 = vmatprep.subr.mxu0 0.0
    %377 = vmatpush1.msra.mxu0 0.0
    %378 = vmatprep.subr.mxu0 0.0
    %379 = vmatpush1.msra.mxu0 0.0
    %380 = vmatprep.subr.mxu0 0.0
    %381 = vmatpush1.msra.mxu0 0.0
    %382 = vmatprep.subr.mxu0 0.0
    %383 = vmatpush1.msra.mxu0 0.0
    %384 = vmatprep.subr.mxu0 0.0
    %385 = vmatpush1.msra.mxu0 0.0
    %386 = vmatprep.subr.mxu0 0.0
    %387 = vmatpush1.msra.mxu0 0.0
    %388 = vmatprep.subr.mxu0 0.0
    %389 = vmatpush1.msra.mxu0 0.0
    %390 = vmatprep.subr.mxu0 0.0
    %391 = vmatpush1.msra.mxu0 0.0
    %392 = vmatprep.subr.mxu0 0.0
    %393 = vmatpush1.msra.mxu0 0.0
    %394 = vmatprep.subr.mxu0 0.0
    %395 = vmatpush1.msra.mxu0 0.0
    %396 = vmatprep.subr.mxu0 0.0
    %397 = vmatpush1.msra.mxu0 0.0
    %398 = vmatprep.subr.mxu0 0.0
    %399 = vmatpush1.msra.mxu0 0.0
    %400 = vmatprep.subr.mxu0 0.0
    %401 = vmatpush1.msra.mxu0 0.0
    %402 = vmatprep.subr.mxu0 0.0
    %403 = vmatpush1.msra.mxu0 0.0
    %404 = vmatprep.subr.mxu0 0.0
    %405 = vmatpush1.msra.mxu0 0.0
    %406 = vmatprep.subr.mxu0 0.0
    %407 = vmatpush1.msra.mxu0 0.0
    %408 = vmatprep.mubr.f32.mxu0 0.0
    %409 = vmatmul.mubr.f32.gmra.mrb[0].mxu0 %v184
    %v410 = vpop.f32.mrb[0].mxu0
    %v411 = vadd.f32 %v342, %v410
    %v412 = vpop.f32.mrb[0].mxu0
    %413 = vdwg.mxu0
    %vm414 = vcmask 261120
    %v416 = vsel %vm414, 0.0, 0
    %418 = vmatprep.subr.mxu0 0.0
    %419 = vmatpush1.msra.mxu0 %v140
    %420 = vmatprep.subr.mxu0 0.0
    %421 = vmatpush1.msra.mxu0 %v141
    %422 = vmatprep.subr.mxu0 0.0
    %423 = vmatpush1.msra.mxu0 %v142
    %424 = vmatprep.subr.mxu0 0.0
    %425 = vmatpush1.msra.mxu0 %v143
    %426 = vmatprep.subr.mxu0 0.0
    %427 = vmatpush1.msra.mxu0 0.0
    %428 = vmatprep.subr.mxu0 0.0
    %429 = vmatpush1.msra.mxu0 0.0
    %430 = vmatprep.subr.mxu0 0.0
    %431 = vmatpush1.msra.mxu0 0.0
    %432 = vmatprep.subr.mxu0 0.0
    %433 = vmatpush1.msra.mxu0 0.0
    %434 = vmatprep.subr.mxu0 0.0
    %435 = vmatpush1.msra.mxu0 0.0
    %436 = vmatprep.subr.mxu0 0.0
    %437 = vmatpush1.msra.mxu0 0.0
    %438 = vmatprep.subr.mxu0 0.0
    %439 = vmatpush1.msra.mxu0 0.0
    %440 = vmatprep.subr.mxu0 0.0
    %441 = vmatpush1.msra.mxu0 0.0
    %442 = vmatprep.subr.mxu0 0.0
    %443 = vmatpush1.msra.mxu0 0.0
    %444 = vmatprep.subr.mxu0 0.0
    %445 = vmatpush1.msra.mxu0 0.0
    %446 = vmatprep.subr.mxu0 0.0
    %447 = vmatpush1.msra.mxu0 0.0
    %448 = vmatprep.subr.mxu0 0.0
    %449 = vmatpush1.msra.mxu0 0.0
    %450 = vmatprep.subr.mxu0 0.0
    %451 = vmatpush1.msra.mxu0 0.0
    %452 = vmatprep.subr.mxu0 0.0
    %453 = vmatpush1.msra.mxu0 0.0
    %454 = vmatprep.subr.mxu0 0.0
    %455 = vmatpush1.msra.mxu0 0.0
    %456 = vmatprep.subr.mxu0 0.0
    %457 = vmatpush1.msra.mxu0 0.0
    %458 = vmatprep.subr.mxu0 0.0
    %459 = vmatpush1.msra.mxu0 0.0
    %460 = vmatprep.subr.mxu0 0.0
    %461 = vmatpush1.msra.mxu0 0.0
    %462 = vmatprep.subr.mxu0 0.0
    %463 = vmatpush1.msra.mxu0 0.0
    %464 = vmatprep.subr.mxu0 0.0
    %465 = vmatpush1.msra.mxu0 0.0
    %466 = vmatprep.subr.mxu0 0.0
    %467 = vmatpush1.msra.mxu0 0.0
    %468 = vmatprep.subr.mxu0 0.0
    %469 = vmatpush1.msra.mxu0 0.0
    %470 = vmatprep.subr.mxu0 0.0
    %471 = vmatpush1.msra.mxu0 0.0
    %472 = vmatprep.subr.mxu0 0.0
    %473 = vmatpush1.msra.mxu0 0.0
    %474 = vmatprep.subr.mxu0 0.0
    %475 = vmatpush1.msra.mxu0 0.0
    %476 = vmatprep.subr.mxu0 0.0
    %477 = vmatpush1.msra.mxu0 0.0
    %478 = vmatprep.subr.mxu0 0.0
    %479 = vmatpush1.msra.mxu0 0.0
    %480 = vmatprep.subr.mxu0 0.0
    %481 = vmatpush1.msra.mxu0 0.0
    %482 = vmatprep.mubr.f32.mxu0 0.0
    %483 = vmatmul.mubr.f32.gmra.mrb[0].mxu0 %v416
    %v484 = vpop.f32.mrb[0].mxu0
    %v485 = vadd.f32 0.0, %v484
    %v486 = vpop.f32.mrb[0].mxu0
    %487 = vdwg.mxu0
    %488 = vmatprep.subr.mxu0 0.0
    %489 = vmatpush1.msra.mxu0 %v144
    %490 = vmatprep.subr.mxu0 0.0
    %491 = vmatpush1.msra.mxu0 %v145
    %492 = vmatprep.subr.mxu0 0.0
    %493 = vmatpush1.msra.mxu0 %v146
    %494 = vmatprep.subr.mxu0 0.0
    %495 = vmatpush1.msra.mxu0 %v147
    %496 = vmatprep.subr.mxu0 0.0
    %497 = vmatpush1.msra.mxu0 0.0
    %498 = vmatprep.subr.mxu0 0.0
    %499 = vmatpush1.msra.mxu0 0.0
    %500 = vmatprep.subr.mxu0 0.0
    %501 = vmatpush1.msra.mxu0 0.0
    %502 = vmatprep.subr.mxu0 0.0
    %503 = vmatpush1.msra.mxu0 0.0
    %504 = vmatprep.subr.mxu0 0.0
    %505 = vmatpush1.msra.mxu0 0.0
    %506 = vmatprep.subr.mxu0 0.0
    %507 = vmatpush1.msra.mxu0 0.0
    %508 = vmatprep.subr.mxu0 0.0
    %509 = vmatpush1.msra.mxu0 0.0
    %510 = vmatprep.subr.mxu0 0.0
    %511 = vmatpush1.msra.mxu0 0.0
    %512 = vmatprep.subr.mxu0 0.0
    %513 = vmatpush1.msra.mxu0 0.0
    %514 = vmatprep.subr.mxu0 0.0
    %515 = vmatpush1.msra.mxu0 0.0
    %516 = vmatprep.subr.mxu0 0.0
    %517 = vmatpush1.msra.mxu0 0.0
    %518 = vmatprep.subr.mxu0 0.0
    %519 = vmatpush1.msra.mxu0 0.0
    %520 = vmatprep.subr.mxu0 0.0
    %521 = vmatpush1.msra.mxu0 0.0
    %522 = vmatprep.subr.mxu0 0.0
    %523 = vmatpush1.msra.mxu0 0.0
    %524 = vmatprep.subr.mxu0 0.0
    %525 = vmatpush1.msra.mxu0 0.0
    %526 = vmatprep.subr.mxu0 0.0
    %527 = vmatpush1.msra.mxu0 0.0
    %528 = vmatprep.subr.mxu0 0.0
    %529 = vmatpush1.msra.mxu0 0.0
    %530 = vmatprep.subr.mxu0 0.0
    %531 = vmatpush1.msra.mxu0 0.0
    %532 = vmatprep.subr.mxu0 0.0
    %533 = vmatpush1.msra.mxu0 0.0
    %534 = vmatprep.subr.mxu0 0.0
    %535 = vmatpush1.msra.mxu0 0.0
    %536 = vmatprep.subr.mxu0 0.0
    %537 = vmatpush1.msra.mxu0 0.0
    %538 = vmatprep.subr.mxu0 0.0
    %539 = vmatpush1.msra.mxu0 0.0
    %540 = vmatprep.subr.mxu0 0.0
    %541 = vmatpush1.msra.mxu0 0.0
    %542 = vmatprep.subr.mxu0 0.0
    %543 = vmatpush1.msra.mxu0 0.0
    %544 = vmatprep.subr.mxu0 0.0
    %545 = vmatpush1.msra.mxu0 0.0
    %546 = vmatprep.subr.mxu0 0.0
    %547 = vmatpush1.msra.mxu0 0.0
    %548 = vmatprep.subr.mxu0 0.0
    %549 = vmatpush1.msra.mxu0 0.0
    %550 = vmatprep.subr.mxu0 0.0
    %551 = vmatpush1.msra.mxu0 0.0
    %552 = vmatprep.mubr.f32.mxu0 0.0
    %553 = vmatmul.mubr.f32.gmra.mrb[0].mxu0 %v416
    %v554 = vpop.f32.mrb[0].mxu0
    %v555 = vadd.f32 0.0, %v554
    %v556 = vpop.f32.mrb[0].mxu0
    %557 = vdwg.mxu0
    %v558 = vadd.f32 %v253, %v485
    %v559 = vsub.f32 0.0, %v558
    %v560 = vmul.f32 %v559, 1.442695
    %v561 = vpow.pop %v560
    %v562 = vadd.f32 %v561, 1.0
    %v563 = vrcp.pop %v562
    %v564 = vmul.f32 1.0, %v563
    %v565 = vadd.f32 %v332, %v555
    %v566 = vsub.f32 0.0, %v565
    %v567 = vmul.f32 %v566, 1.442695
    %v568 = vpow.pop %v567
    %v569 = vadd.f32 %v568, 1.0
    %v570 = vrcp.pop %v569
    %v571 = vmul.f32 1.0, %v570
    %v573 = vlaneseq
    %v574 = vshrl.u32 %v573, 7
    %v575 = vsub.s32 0, %v574
    %v576 = vrot.slane %v167, %v575
    %578 = vmatprep.subr.mxu0 0.0
    %579 = vmatpush1.msra.mxu0 %v148
    %580 = vmatprep.subr.mxu0 0.0
    %581 = vmatpush1.msra.mxu0 %v149
    %582 = vmatprep.subr.mxu0 0.0
    %583 = vmatpush1.msra.mxu0 %v150
    %584 = vmatprep.subr.mxu0 0.0
    %585 = vmatpush1.msra.mxu0 %v151
    %586 = vmatprep.subr.mxu0 0.0
    %587 = vmatpush1.msra.mxu0 0.0
    %588 = vmatprep.subr.mxu0 0.0
    %589 = vmatpush1.msra.mxu0 0.0
    %590 = vmatprep.subr.mxu0 0.0
    %591 = vmatpush1.msra.mxu0 0.0
    %592 = vmatprep.subr.mxu0 0.0
    %593 = vmatpush1.msra.mxu0 0.0
    %594 = vmatprep.subr.mxu0 0.0
    %595 = vmatpush1.msra.mxu0 0.0
    %596 = vmatprep.subr.mxu0 0.0
    %597 = vmatpush1.msra.mxu0 0.0
    %598 = vmatprep.subr.mxu0 0.0
    %599 = vmatpush1.msra.mxu0 0.0
    %600 = vmatprep.subr.mxu0 0.0
    %601 = vmatpush1.msra.mxu0 0.0
    %602 = vmatprep.subr.mxu0 0.0
    %603 = vmatpush1.msra.mxu0 0.0
    %604 = vmatprep.subr.mxu0 0.0
    %605 = vmatpush1.msra.mxu0 0.0
    %606 = vmatprep.subr.mxu0 0.0
    %607 = vmatpush1.msra.mxu0 0.0
    %608 = vmatprep.subr.mxu0 0.0
    %609 = vmatpush1.msra.mxu0 0.0
    %610 = vmatprep.subr.mxu0 0.0
    %611 = vmatpush1.msra.mxu0 0.0
    %612 = vmatprep.subr.mxu0 0.0
    %613 = vmatpush1.msra.mxu0 0.0
    %614 = vmatprep.subr.mxu0 0.0
    %615 = vmatpush1.msra.mxu0 0.0
    %616 = vmatprep.subr.mxu0 0.0
    %617 = vmatpush1.msra.mxu0 0.0
    %618 = vmatprep.subr.mxu0 0.0
    %619 = vmatpush1.msra.mxu0 0.0
    %620 = vmatprep.subr.mxu0 0.0
    %621 = vmatpush1.msra.mxu0 0.0
    %622 = vmatprep.subr.mxu0 0.0
    %623 = vmatpush1.msra.mxu0 0.0
    %624 = vmatprep.subr.mxu0 0.0
    %625 = vmatpush1.msra.mxu0 0.0
    %626 = vmatprep.subr.mxu0 0.0
    %627 = vmatpush1.msra.mxu0 0.0
    %628 = vmatprep.subr.mxu0 0.0
    %629 = vmatpush1.msra.mxu0 0.0
    %630 = vmatprep.subr.mxu0 0.0
    %631 = vmatpush1.msra.mxu0 0.0
    %632 = vmatprep.subr.mxu0 0.0
    %633 = vmatpush1.msra.mxu0 0.0
    %634 = vmatprep.subr.mxu0 0.0
    %635 = vmatpush1.msra.mxu0 0.0
    %636 = vmatprep.subr.mxu0 0.0
    %637 = vmatpush1.msra.mxu0 0.0
    %638 = vmatprep.subr.mxu0 0.0
    %639 = vmatpush1.msra.mxu0 0.0
    %640 = vmatprep.subr.mxu0 0.0
    %641 = vmatpush1.msra.mxu0 0.0
    %642 = vmatprep.mubr.f32.mxu0 0.0
    %643 = vmatmul.mubr.f32.gmra.mrb[0].mxu0 %v416
    %v644 = vpop.f32.mrb[0].mxu0
    %v645 = vadd.f32 %v576, %v644
    %v646 = vpop.f32.mrb[0].mxu0
    %647 = vdwg.mxu0
    %v648 = vmul.f32 %v564, %v645
    %v649 = vadd.f32 %v411, %v648
    %v650 = vtanh.pop %v649
    %v651 = vsub.f32 0.0, %v650
    %v652 = vmul.f32 %v571, %v651
    %v653 = vadd.f32 %v650, %v652
    %v655 = vlaneseq
    %v656 = vshrl.u32 %v655, 7
    %v657 = vsub.s32 0, %v656
    %v658 = vrot.slane %v169, %v657
    %v661 = vsel %vm414, %v653, 0
    %663 = vmatprep.subr.mxu0 0.0
    %664 = vmatpush1.msra.mxu0 %v152
    %665 = vmatprep.subr.mxu0 0.0
    %666 = vmatpush1.msra.mxu0 %v153
    %667 = vmatprep.subr.mxu0 0.0
    %668 = vmatpush1.msra.mxu0 %v154
    %669 = vmatprep.subr.mxu0 0.0
    %670 = vmatpush1.msra.mxu0 %v155
    %671 = vmatprep.subr.mxu0 0.0
    %672 = vmatpush1.msra.mxu0 0.0
    %673 = vmatprep.subr.mxu0 0.0
    %674 = vmatpush1.msra.mxu0 0.0
    %675 = vmatprep.subr.mxu0 0.0
    %676 = vmatpush1.msra.mxu0 0.0
    %677 = vmatprep.subr.mxu0 0.0
    %678 = vmatpush1.msra.mxu0 0.0
    %679 = vmatprep.subr.mxu0 0.0
    %680 = vmatpush1.msra.mxu0 0.0
    %681 = vmatprep.subr.mxu0 0.0
    %682 = vmatpush1.msra.mxu0 0.0
    %683 = vmatprep.subr.mxu0 0.0
    %684 = vmatpush1.msra.mxu0 0.0
    %685 = vmatprep.subr.mxu0 0.0
    %686 = vmatpush1.msra.mxu0 0.0
    %687 = vmatprep.subr.mxu0 0.0
    %688 = vmatpush1.msra.mxu0 0.0
    %689 = vmatprep.subr.mxu0 0.0
    %690 = vmatpush1.msra.mxu0 0.0
    %691 = vmatprep.subr.mxu0 0.0
    %692 = vmatpush1.msra.mxu0 0.0
    %693 = vmatprep.subr.mxu0 0.0
    %694 = vmatpush1.msra.mxu0 0.0
    %695 = vmatprep.subr.mxu0 0.0
    %696 = vmatpush1.msra.mxu0 0.0
    %697 = vmatprep.subr.mxu0 0.0
    %698 = vmatpush1.msra.mxu0 0.0
    %699 = vmatprep.subr.mxu0 0.0
    %700 = vmatpush1.msra.mxu0 0.0
    %701 = vmatprep.subr.mxu0 0.0
    %702 = vmatpush1.msra.mxu0 0.0
    %703 = vmatprep.subr.mxu0 0.0
    %704 = vmatpush1.msra.mxu0 0.0
    %705 = vmatprep.subr.mxu0 0.0
    %706 = vmatpush1.msra.mxu0 0.0
    %707 = vmatprep.subr.mxu0 0.0
    %708 = vmatpush1.msra.mxu0 0.0
    %709 = vmatprep.subr.mxu0 0.0
    %710 = vmatpush1.msra.mxu0 0.0
    %711 = vmatprep.subr.mxu0 0.0
    %712 = vmatpush1.msra.mxu0 0.0
    %713 = vmatprep.subr.mxu0 0.0
    %714 = vmatpush1.msra.mxu0 0.0
    %715 = vmatprep.subr.mxu0 0.0
    %716 = vmatpush1.msra.mxu0 0.0
    %717 = vmatprep.subr.mxu0 0.0
    %718 = vmatpush1.msra.mxu0 0.0
    %719 = vmatprep.subr.mxu0 0.0
    %720 = vmatpush1.msra.mxu0 0.0
    %721 = vmatprep.subr.mxu0 0.0
    %722 = vmatpush1.msra.mxu0 0.0
    %723 = vmatprep.subr.mxu0 0.0
    %724 = vmatpush1.msra.mxu0 0.0
    %725 = vmatprep.subr.mxu0 0.0
    %726 = vmatpush1.msra.mxu0 0.0
    %727 = vmatprep.mubr.f32.mxu0 0.0
    %728 = vmatmul.mubr.f32.gmra.mrb[0].mxu0 %v661
    %v729 = vpop.f32.mrb[0].mxu0
    %v730 = vadd.f32 %v658, %v729
    %v731 = vpop.f32.mrb[0].mxu0
    %732 = vdwg.mxu0
    %v734 = vlaneseq
    %v735 = vshrl.u32 %v734, 7
    %v736 = vsub.s32 0, %v735
    %v737 = vrot.slane %v170, %v736
    %739 = vmatprep.subr.mxu0 0.0
    %740 = vmatpush1.msra.mxu0 %v156
    %741 = vmatprep.subr.mxu0 0.0
    %742 = vmatpush1.msra.mxu0 %v157
    %743 = vmatprep.subr.mxu0 0.0
    %744 = vmatpush1.msra.mxu0 %v158
    %745 = vmatprep.subr.mxu0 0.0
    %746 = vmatpush1.msra.mxu0 %v159
    %747 = vmatprep.subr.mxu0 0.0
    %748 = vmatpush1.msra.mxu0 0.0
    %749 = vmatprep.subr.mxu0 0.0
    %750 = vmatpush1.msra.mxu0 0.0
    %751 = vmatprep.subr.mxu0 0.0
    %752 = vmatpush1.msra.mxu0 0.0
    %753 = vmatprep.subr.mxu0 0.0
    %754 = vmatpush1.msra.mxu0 0.0
    %755 = vmatprep.subr.mxu0 0.0
    %756 = vmatpush1.msra.mxu0 0.0
    %757 = vmatprep.subr.mxu0 0.0
    %758 = vmatpush1.msra.mxu0 0.0
    %759 = vmatprep.subr.mxu0 0.0
    %760 = vmatpush1.msra.mxu0 0.0
    %761 = vmatprep.subr.mxu0 0.0
    %762 = vmatpush1.msra.mxu0 0.0
    %763 = vmatprep.subr.mxu0 0.0
    %764 = vmatpush1.msra.mxu0 0.0
    %765 = vmatprep.subr.mxu0 0.0
    %766 = vmatpush1.msra.mxu0 0.0
    %767 = vmatprep.subr.mxu0 0.0
    %768 = vmatpush1.msra.mxu0 0.0
    %769 = vmatprep.subr.mxu0 0.0
    %770 = vmatpush1.msra.mxu0 0.0
    %771 = vmatprep.subr.mxu0 0.0
    %772 = vmatpush1.msra.mxu0 0.0
    %773 = vmatprep.subr.mxu0 0.0
    %774 = vmatpush1.msra.mxu0 0.0
    %775 = vmatprep.subr.mxu0 0.0
    %776 = vmatpush1.msra.mxu0 0.0
    %777 = vmatprep.subr.mxu0 0.0
    %778 = vmatpush1.msra.mxu0 0.0
    %779 = vmatprep.subr.mxu0 0.0
    %780 = vmatpush1.msra.mxu0 0.0
    %781 = vmatprep.subr.mxu0 0.0
    %782 = vmatpush1.msra.mxu0 0.0
    %783 = vmatprep.subr.mxu0 0.0
    %784 = vmatpush1.msra.mxu0 0.0
    %785 = vmatprep.subr.mxu0 0.0
    %786 = vmatpush1.msra.mxu0 0.0
    %787 = vmatprep.subr.mxu0 0.0
    %788 = vmatpush1.msra.mxu0 0.0
    %789 = vmatprep.subr.mxu0 0.0
    %790 = vmatpush1.msra.mxu0 0.0
    %791 = vmatprep.subr.mxu0 0.0
    %792 = vmatpush1.msra.mxu0 0.0
    %793 = vmatprep.subr.mxu0 0.0
    %794 = vmatpush1.msra.mxu0 0.0
    %795 = vmatprep.subr.mxu0 0.0
    %796 = vmatpush1.msra.mxu0 0.0
    %797 = vmatprep.subr.mxu0 0.0
    %798 = vmatpush1.msra.mxu0 0.0
    %799 = vmatprep.subr.mxu0 0.0
    %800 = vmatpush1.msra.mxu0 0.0
    %801 = vmatprep.subr.mxu0 0.0
    %802 = vmatpush1.msra.mxu0 0.0
    %803 = vmatprep.mubr.f32.mxu0 0.0
    %804 = vmatmul.mubr.f32.gmra.mrb[0].mxu0 %v661
    %v805 = vpop.f32.mrb[0].mxu0
    %v806 = vadd.f32 %v737, %v805
    %v807 = vpop.f32.mrb[0].mxu0
    %808 = vdwg.mxu0
    %v810 = vlaneseq
    %v811 = vshrl.u32 %v810, 7
    %v812 = vsub.s32 0, %v811
    %v813 = vrot.slane %v171, %v812
    %815 = vmatprep.subr.mxu0 0.0
    %816 = vmatpush1.msra.mxu0 %v160
    %817 = vmatprep.subr.mxu0 0.0
    %818 = vmatpush1.msra.mxu0 %v161
    %819 = vmatprep.subr.mxu0 0.0
    %820 = vmatpush1.msra.mxu0 %v162
    %821 = vmatprep.subr.mxu0 0.0
    %822 = vmatpush1.msra.mxu0 %v163
    %823 = vmatprep.subr.mxu0 0.0
    %824 = vmatpush1.msra.mxu0 0.0
    %825 = vmatprep.subr.mxu0 0.0
    %826 = vmatpush1.msra.mxu0 0.0
    %827 = vmatprep.subr.mxu0 0.0
    %828 = vmatpush1.msra.mxu0 0.0
    %829 = vmatprep.subr.mxu0 0.0
    %830 = vmatpush1.msra.mxu0 0.0
    %831 = vmatprep.subr.mxu0 0.0
    %832 = vmatpush1.msra.mxu0 0.0
    %833 = vmatprep.subr.mxu0 0.0
    %834 = vmatpush1.msra.mxu0 0.0
    %835 = vmatprep.subr.mxu0 0.0
    %836 = vmatpush1.msra.mxu0 0.0
    %837 = vmatprep.subr.mxu0 0.0
    %838 = vmatpush1.msra.mxu0 0.0
    %839 = vmatprep.subr.mxu0 0.0
    %840 = vmatpush1.msra.mxu0 0.0
    %841 = vmatprep.subr.mxu0 0.0
    %842 = vmatpush1.msra.mxu0 0.0
    %843 = vmatprep.subr.mxu0 0.0
    %844 = vmatpush1.msra.mxu0 0.0
    %845 = vmatprep.subr.mxu0 0.0
    %846 = vmatpush1.msra.mxu0 0.0
    %847 = vmatprep.subr.mxu0 0.0
    %848 = vmatpush1.msra.mxu0 0.0
    %849 = vmatprep.subr.mxu0 0.0
    %850 = vmatpush1.msra.mxu0 0.0
    %851 = vmatprep.subr.mxu0 0.0
    %852 = vmatpush1.msra.mxu0 0.0
    %853 = vmatprep.subr.mxu0 0.0
    %854 = vmatpush1.msra.mxu0 0.0
    %855 = vmatprep.subr.mxu0 0.0
    %856 = vmatpush1.msra.mxu0 0.0
    %857 = vmatprep.subr.mxu0 0.0
    %858 = vmatpush1.msra.mxu0 0.0
    %859 = vmatprep.subr.mxu0 0.0
    %860 = vmatpush1.msra.mxu0 0.0
    %861 = vmatprep.subr.mxu0 0.0
    %862 = vmatpush1.msra.mxu0 0.0
    %863 = vmatprep.subr.mxu0 0.0
    %864 = vmatpush1.msra.mxu0 0.0
    %865 = vmatprep.subr.mxu0 0.0
    %866 = vmatpush1.msra.mxu0 0.0
    %867 = vmatprep.subr.mxu0 0.0
    %868 = vmatpush1.msra.mxu0 0.0
    %869 = vmatprep.subr.mxu0 0.0
    %870 = vmatpush1.msra.mxu0 0.0
    %871 = vmatprep.subr.mxu0 0.0
    %872 = vmatpush1.msra.mxu0 0.0
    %873 = vmatprep.subr.mxu0 0.0
    %874 = vmatpush1.msra.mxu0 0.0
    %875 = vmatprep.subr.mxu0 0.0
    %876 = vmatpush1.msra.mxu0 0.0
    %877 = vmatprep.subr.mxu0 0.0
    %878 = vmatpush1.msra.mxu0 0.0
    %879 = vmatprep.mubr.f32.mxu0 0.0
    %880 = vmatmul.mubr.f32.gmra.mrb[0].mxu0 %v661
    %v881 = vpop.f32.mrb[0].mxu0
    %v882 = vadd.f32 %v813, %v881
    %v883 = vpop.f32.mrb[0].mxu0
    %884 = vdwg.mxu0
    %885 = vmatprep.subr.mxu0 0.0
    %886 = vmatpush1.msra.mxu0 %v140
    %887 = vmatprep.subr.mxu0 0.0
    %888 = vmatpush1.msra.mxu0 %v141
    %889 = vmatprep.subr.mxu0 0.0
    %890 = vmatpush1.msra.mxu0 %v142
    %891 = vmatprep.subr.mxu0 0.0
    %892 = vmatpush1.msra.mxu0 %v143
    %893 = vmatprep.subr.mxu0 0.0
    %894 = vmatpush1.msra.mxu0 0.0
    %895 = vmatprep.subr.mxu0 0.0
    %896 = vmatpush1.msra.mxu0 0.0
    %897 = vmatprep.subr.mxu0 0.0
    %898 = vmatpush1.msra.mxu0 0.0
    %899 = vmatprep.subr.mxu0 0.0
    %900 = vmatpush1.msra.mxu0 0.0
    %901 = vmatprep.subr.mxu0 0.0
    %902 = vmatpush1.msra.mxu0 0.0
    %903 = vmatprep.subr.mxu0 0.0
    %904 = vmatpush1.msra.mxu0 0.0
    %905 = vmatprep.subr.mxu0 0.0
    %906 = vmatpush1.msra.mxu0 0.0
    %907 = vmatprep.subr.mxu0 0.0
    %908 = vmatpush1.msra.mxu0 0.0
    %909 = vmatprep.subr.mxu0 0.0
    %910 = vmatpush1.msra.mxu0 0.0
    %911 = vmatprep.subr.mxu0 0.0
    %912 = vmatpush1.msra.mxu0 0.0
    %913 = vmatprep.subr.mxu0 0.0
    %914 = vmatpush1.msra.mxu0 0.0
    %915 = vmatprep.subr.mxu0 0.0
    %916 = vmatpush1.msra.mxu0 0.0
    %917 = vmatprep.subr.mxu0 0.0
    %918 = vmatpush1.msra.mxu0 0.0
    %919 = vmatprep.subr.mxu0 0.0
    %920 = vmatpush1.msra.mxu0 0.0
    %921 = vmatprep.subr.mxu0 0.0
    %922 = vmatpush1.msra.mxu0 0.0
    %923 = vmatprep.subr.mxu0 0.0
    %924 = vmatpush1.msra.mxu0 0.0
    %925 = vmatprep.subr.mxu0 0.0
    %926 = vmatpush1.msra.mxu0 0.0
    %927 = vmatprep.subr.mxu0 0.0
    %928 = vmatpush1.msra.mxu0 0.0
    %929 = vmatprep.subr.mxu0 0.0
    %930 = vmatpush1.msra.mxu0 0.0
    %931 = vmatprep.subr.mxu0 0.0
    %932 = vmatpush1.msra.mxu0 0.0
    %933 = vmatprep.subr.mxu0 0.0
    %934 = vmatpush1.msra.mxu0 0.0
    %935 = vmatprep.subr.mxu0 0.0
    %936 = vmatpush1.msra.mxu0 0.0
    %937 = vmatprep.subr.mxu0 0.0
    %938 = vmatpush1.msra.mxu0 0.0
    %939 = vmatprep.subr.mxu0 0.0
    %940 = vmatpush1.msra.mxu0 0.0
    %941 = vmatprep.subr.mxu0 0.0
    %942 = vmatpush1.msra.mxu0 0.0
    %943 = vmatprep.subr.mxu0 0.0
    %944 = vmatpush1.msra.mxu0 0.0
    %945 = vmatprep.subr.mxu0 0.0
    %946 = vmatpush1.msra.mxu0 0.0
    %947 = vmatprep.subr.mxu0 0.0
    %948 = vmatpush1.msra.mxu0 0.0
    %949 = vmatprep.mubr.f32.mxu0 0.0
    %950 = vmatmul.mubr.f32.gmra.mrb[0].mxu0 %v661
    %v951 = vpop.f32.mrb[0].mxu0
    %v952 = vadd.f32 0.0, %v951
    %v953 = vpop.f32.mrb[0].mxu0
    %954 = vdwg.mxu0
    %955 = vmatprep.subr.mxu0 0.0
    %956 = vmatpush1.msra.mxu0 %v144
    %957 = vmatprep.subr.mxu0 0.0
    %958 = vmatpush1.msra.mxu0 %v145
    %959 = vmatprep.subr.mxu0 0.0
    %960 = vmatpush1.msra.mxu0 %v146
    %961 = vmatprep.subr.mxu0 0.0
    %962 = vmatpush1.msra.mxu0 %v147
    %963 = vmatprep.subr.mxu0 0.0
    %964 = vmatpush1.msra.mxu0 0.0
    %965 = vmatprep.subr.mxu0 0.0
    %966 = vmatpush1.msra.mxu0 0.0
    %967 = vmatprep.subr.mxu0 0.0
    %968 = vmatpush1.msra.mxu0 0.0
    %969 = vmatprep.subr.mxu0 0.0
    %970 = vmatpush1.msra.mxu0 0.0
    %971 = vmatprep.subr.mxu0 0.0
    %972 = vmatpush1.msra.mxu0 0.0
    %973 = vmatprep.subr.mxu0 0.0
    %974 = vmatpush1.msra.mxu0 0.0
    %975 = vmatprep.subr.mxu0 0.0
    %976 = vmatpush1.msra.mxu0 0.0
    %977 = vmatprep.subr.mxu0 0.0
    %978 = vmatpush1.msra.mxu0 0.0
    %979 = vmatprep.subr.mxu0 0.0
    %980 = vmatpush1.msra.mxu0 0.0
    %981 = vmatprep.subr.mxu0 0.0
    %982 = vmatpush1.msra.mxu0 0.0
    %983 = vmatprep.subr.mxu0 0.0
    %984 = vmatpush1.msra.mxu0 0.0
    %985 = vmatprep.subr.mxu0 0.0
    %986 = vmatpush1.msra.mxu0 0.0
    %987 = vmatprep.subr.mxu0 0.0
    %988 = vmatpush1.msra.mxu0 0.0
    %989 = vmatprep.subr.mxu0 0.0
    %990 = vmatpush1.msra.mxu0 0.0
    %991 = vmatprep.subr.mxu0 0.0
    %992 = vmatpush1.msra.mxu0 0.0
    %993 = vmatprep.subr.mxu0 0.0
    %994 = vmatpush1.msra.mxu0 0.0
    %995 = vmatprep.subr.mxu0 0.0
    %996 = vmatpush1.msra.mxu0 0.0
    %997 = vmatprep.subr.mxu0 0.0
    %998 = vmatpush1.msra.mxu0 0.0
    %999 = vmatprep.subr.mxu0 0.0
    %1000 = vmatpush1.msra.mxu0 0.0
    %1001 = vmatprep.subr.mxu0 0.0
    %1002 = vmatpush1.msra.mxu0 0.0
    %1003 = vmatprep.subr.mxu0 0.0
    %1004 = vmatpush1.msra.mxu0 0.0
    %1005 = vmatprep.subr.mxu0 0.0
    %1006 = vmatpush1.msra.mxu0 0.0
    %1007 = vmatprep.subr.mxu0 0.0
    %1008 = vmatpush1.msra.mxu0 0.0
    %1009 = vmatprep.subr.mxu0 0.0
    %1010 = vmatpush1.msra.mxu0 0.0
    %1011 = vmatprep.subr.mxu0 0.0
    %1012 = vmatpush1.msra.mxu0 0.0
    %1013 = vmatprep.subr.mxu0 0.0
    %1014 = vmatpush1.msra.mxu0 0.0
    %1015 = vmatprep.subr.mxu0 0.0
    %1016 = vmatpush1.msra.mxu0 0.0
    %1017 = vmatprep.subr.mxu0 0.0
    %1018 = vmatpush1.msra.mxu0 0.0
    %1019 = vmatprep.mubr.f32.mxu0 0.0
    %1020 = vmatmul.mubr.f32.gmra.mrb[0].mxu0 %v661
    %v1021 = vpop.f32.mrb[0].mxu0
    %v1022 = vadd.f32 0.0, %v1021
    %v1023 = vpop.f32.mrb[0].mxu0
    %1024 = vdwg.mxu0
    %v1025 = vadd.f32 %v253, %v952
    %v1026 = vsub.f32 0.0, %v1025
    %v1027 = vmul.f32 %v1026, 1.442695
    %v1028 = vpow.pop %v1027
    %v1029 = vadd.f32 %v1028, 1.0
    %v1030 = vrcp.pop %v1029
    %v1031 = vmul.f32 1.0, %v1030
    %v1032 = vadd.f32 %v332, %v1022
    %v1033 = vsub.f32 0.0, %v1032
    %v1034 = vmul.f32 %v1033, 1.442695
    %v1035 = vpow.pop %v1034
    %v1036 = vadd.f32 %v1035, 1.0
    %v1037 = vrcp.pop %v1036
    %v1038 = vmul.f32 1.0, %v1037
    %1039 = vmatprep.subr.mxu0 0.0
    %1040 = vmatpush1.msra.mxu0 %v148
    %1041 = vmatprep.subr.mxu0 0.0
    %1042 = vmatpush1.msra.mxu0 %v149
    %1043 = vmatprep.subr.mxu0 0.0
    %1044 = vmatpush1.msra.mxu0 %v150
    %1045 = vmatprep.subr.mxu0 0.0
    %1046 = vmatpush1.msra.mxu0 %v151
    %1047 = vmatprep.subr.mxu0 0.0
    %1048 = vmatpush1.msra.mxu0 0.0
    %1049 = vmatprep.subr.mxu0 0.0
    %1050 = vmatpush1.msra.mxu0 0.0
    %1051 = vmatprep.subr.mxu0 0.0
    %1052 = vmatpush1.msra.mxu0 0.0
    %1053 = vmatprep.subr.mxu0 0.0
    %1054 = vmatpush1.msra.mxu0 0.0
    %1055 = vmatprep.subr.mxu0 0.0
    %1056 = vmatpush1.msra.mxu0 0.0
    %1057 = vmatprep.subr.mxu0 0.0
    %1058 = vmatpush1.msra.mxu0 0.0
    %1059 = vmatprep.subr.mxu0 0.0
    %1060 = vmatpush1.msra.mxu0 0.0
    %1061 = vmatprep.subr.mxu0 0.0
    %1062 = vmatpush1.msra.mxu0 0.0
    %1063 = vmatprep.subr.mxu0 0.0
    %1064 = vmatpush1.msra.mxu0 0.0
    %1065 = vmatprep.subr.mxu0 0.0
    %1066 = vmatpush1.msra.mxu0 0.0
    %1067 = vmatprep.subr.mxu0 0.0
    %1068 = vmatpush1.msra.mxu0 0.0
    %1069 = vmatprep.subr.mxu0 0.0
    %1070 = vmatpush1.msra.mxu0 0.0
    %1071 = vmatprep.subr.mxu0 0.0
    %1072 = vmatpush1.msra.mxu0 0.0
    %1073 = vmatprep.subr.mxu0 0.0
    %1074 = vmatpush1.msra.mxu0 0.0
    %1075 = vmatprep.subr.mxu0 0.0
    %1076 = vmatpush1.msra.mxu0 0.0
    %1077 = vmatprep.subr.mxu0 0.0
    %1078 = vmatpush1.msra.mxu0 0.0
    %1079 = vmatprep.subr.mxu0 0.0
    %1080 = vmatpush1.msra.mxu0 0.0
    %1081 = vmatprep.subr.mxu0 0.0
    %1082 = vmatpush1.msra.mxu0 0.0
    %1083 = vmatprep.subr.mxu0 0.0
    %1084 = vmatpush1.msra.mxu0 0.0
    %1085 = vmatprep.subr.mxu0 0.0
    %1086 = vmatpush1.msra.mxu0 0.0
    %1087 = vmatprep.subr.mxu0 0.0
    %1088 = vmatpush1.msra.mxu0 0.0
    %1089 = vmatprep.subr.mxu0 0.0
    %1090 = vmatpush1.msra.mxu0 0.0
    %1091 = vmatprep.subr.mxu0 0.0
    %1092 = vmatpush1.msra.mxu0 0.0
    %1093 = vmatprep.subr.mxu0 0.0
    %1094 = vmatpush1.msra.mxu0 0.0
    %1095 = vmatprep.subr.mxu0 0.0
    %1096 = vmatpush1.msra.mxu0 0.0
    %1097 = vmatprep.subr.mxu0 0.0
    %1098 = vmatpush1.msra.mxu0 0.0
    %1099 = vmatprep.subr.mxu0 0.0
    %1100 = vmatpush1.msra.mxu0 0.0
    %1101 = vmatprep.subr.mxu0 0.0
    %1102 = vmatpush1.msra.mxu0 0.0
    %1103 = vmatprep.mubr.f32.mxu0 0.0
    %1104 = vmatmul.mubr.f32.gmra.mrb[0].mxu0 %v661
    %v1105 = vpop.f32.mrb[0].mxu0
    %v1106 = vadd.f32 %v576, %v1105
    %v1107 = vpop.f32.mrb[0].mxu0
    %1108 = vdwg.mxu0
    %v1109 = vmul.f32 %v1031, %v1106
    %v1110 = vadd.f32 %v411, %v1109
    %v1111 = vtanh.pop %v1110
    %v1112 = vsub.f32 %v653, %v1111
    %v1113 = vmul.f32 %v1038, %v1112
    %v1114 = vadd.f32 %v1111, %v1113
    %v1116 = vsel %vm414, %v1114, 0
    %1118 = vmatprep.subr.mxu0 0.0
    %1119 = vmatpush1.msra.mxu0 %v152
    %1120 = vmatprep.subr.mxu0 0.0
    %1121 = vmatpush1.msra.mxu0 %v153
    %1122 = vmatprep.subr.mxu0 0.0
    %1123 = vmatpush1.msra.mxu0 %v154
    %1124 = vmatprep.subr.mxu0 0.0
    %1125 = vmatpush1.msra.mxu0 %v155
    %1126 = vmatprep.subr.mxu0 0.0
    %1127 = vmatpush1.msra.mxu0 0.0
    %1128 = vmatprep.subr.mxu0 0.0
    %1129 = vmatpush1.msra.mxu0 0.0
    %1130 = vmatprep.subr.mxu0 0.0
    %1131 = vmatpush1.msra.mxu0 0.0
    %1132 = vmatprep.subr.mxu0 0.0
    %1133 = vmatpush1.msra.mxu0 0.0
    %1134 = vmatprep.subr.mxu0 0.0
    %1135 = vmatpush1.msra.mxu0 0.0
    %1136 = vmatprep.subr.mxu0 0.0
    %1137 = vmatpush1.msra.mxu0 0.0
    %1138 = vmatprep.subr.mxu0 0.0
    %1139 = vmatpush1.msra.mxu0 0.0
    %1140 = vmatprep.subr.mxu0 0.0
    %1141 = vmatpush1.msra.mxu0 0.0
    %1142 = vmatprep.subr.mxu0 0.0
    %1143 = vmatpush1.msra.mxu0 0.0
    %1144 = vmatprep.subr.mxu0 0.0
    %1145 = vmatpush1.msra.mxu0 0.0
    %1146 = vmatprep.subr.mxu0 0.0
    %1147 = vmatpush1.msra.mxu0 0.0
    %1148 = vmatprep.subr.mxu0 0.0
    %1149 = vmatpush1.msra.mxu0 0.0
    %1150 = vmatprep.subr.mxu0 0.0
    %1151 = vmatpush1.msra.mxu0 0.0
    %1152 = vmatprep.subr.mxu0 0.0
    %1153 = vmatpush1.msra.mxu0 0.0
    %1154 = vmatprep.subr.mxu0 0.0
    %1155 = vmatpush1.msra.mxu0 0.0
    %1156 = vmatprep.subr.mxu0 0.0
    %1157 = vmatpush1.msra.mxu0 0.0
    %1158 = vmatprep.subr.mxu0 0.0
    %1159 = vmatpush1.msra.mxu0 0.0
    %1160 = vmatprep.subr.mxu0 0.0
    %1161 = vmatpush1.msra.mxu0 0.0
    %1162 = vmatprep.subr.mxu0 0.0
    %1163 = vmatpush1.msra.mxu0 0.0
    %1164 = vmatprep.subr.mxu0 0.0
    %1165 = vmatpush1.msra.mxu0 0.0
    %1166 = vmatprep.subr.mxu0 0.0
    %1167 = vmatpush1.msra.mxu0 0.0
    %1168 = vmatprep.subr.mxu0 0.0
    %1169 = vmatpush1.msra.mxu0 0.0
    %1170 = vmatprep.subr.mxu0 0.0
    %1171 = vmatpush1.msra.mxu0 0.0
    %1172 = vmatprep.subr.mxu0 0.0
    %1173 = vmatpush1.msra.mxu0 0.0
    %1174 = vmatprep.subr.mxu0 0.0
    %1175 = vmatpush1.msra.mxu0 0.0
    %1176 = vmatprep.subr.mxu0 0.0
    %1177 = vmatpush1.msra.mxu0 0.0
    %1178 = vmatprep.subr.mxu0 0.0
    %1179 = vmatpush1.msra.mxu0 0.0
    %1180 = vmatprep.subr.mxu0 0.0
    %1181 = vmatpush1.msra.mxu0 0.0
    %1182 = vmatprep.mubr.f32.mxu0 0.0
    %1183 = vmatmul.mubr.f32.gmra.mrb[0].mxu0 %v1116
    %v1184 = vpop.f32.mrb[0].mxu0
    %v1185 = vadd.f32 %v658, %v1184
    %v1186 = vpop.f32.mrb[0].mxu0
    %1187 = vdwg.mxu0
    %1188 = vmatprep.subr.mxu0 0.0
    %1189 = vmatpush1.msra.mxu0 %v156
    %1190 = vmatprep.subr.mxu0 0.0
    %1191 = vmatpush1.msra.mxu0 %v157
    %1192 = vmatprep.subr.mxu0 0.0
    %1193 = vmatpush1.msra.mxu0 %v158
    %1194 = vmatprep.subr.mxu0 0.0
    %1195 = vmatpush1.msra.mxu0 %v159
    %1196 = vmatprep.subr.mxu0 0.0
    %1197 = vmatpush1.msra.mxu0 0.0
    %1198 = vmatprep.subr.mxu0 0.0
    %1199 = vmatpush1.msra.mxu0 0.0
    %1200 = vmatprep.subr.mxu0 0.0
    %1201 = vmatpush1.msra.mxu0 0.0
    %1202 = vmatprep.subr.mxu0 0.0
    %1203 = vmatpush1.msra.mxu0 0.0
    %1204 = vmatprep.subr.mxu0 0.0
    %1205 = vmatpush1.msra.mxu0 0.0
    %1206 = vmatprep.subr.mxu0 0.0
    %1207 = vmatpush1.msra.mxu0 0.0
    %1208 = vmatprep.subr.mxu0 0.0
    %1209 = vmatpush1.msra.mxu0 0.0
    %1210 = vmatprep.subr.mxu0 0.0
    %1211 = vmatpush1.msra.mxu0 0.0
    %1212 = vmatprep.subr.mxu0 0.0
    %1213 = vmatpush1.msra.mxu0 0.0
    %1214 = vmatprep.subr.mxu0 0.0
    %1215 = vmatpush1.msra.mxu0 0.0
    %1216 = vmatprep.subr.mxu0 0.0
    %1217 = vmatpush1.msra.mxu0 0.0
    %1218 = vmatprep.subr.mxu0 0.0
    %1219 = vmatpush1.msra.mxu0 0.0
    %1220 = vmatprep.subr.mxu0 0.0
    %1221 = vmatpush1.msra.mxu0 0.0
    %1222 = vmatprep.subr.mxu0 0.0
    %1223 = vmatpush1.msra.mxu0 0.0
    %1224 = vmatprep.subr.mxu0 0.0
    %1225 = vmatpush1.msra.mxu0 0.0
    %1226 = vmatprep.subr.mxu0 0.0
    %1227 = vmatpush1.msra.mxu0 0.0
    %1228 = vmatprep.subr.mxu0 0.0
    %1229 = vmatpush1.msra.mxu0 0.0
    %1230 = vmatprep.subr.mxu0 0.0
    %1231 = vmatpush1.msra.mxu0 0.0
    %1232 = vmatprep.subr.mxu0 0.0
    %1233 = vmatpush1.msra.mxu0 0.0
    %1234 = vmatprep.subr.mxu0 0.0
    %1235 = vmatpush1.msra.mxu0 0.0
    %1236 = vmatprep.subr.mxu0 0.0
    %1237 = vmatpush1.msra.mxu0 0.0
    %1238 = vmatprep.subr.mxu0 0.0
    %1239 = vmatpush1.msra.mxu0 0.0
    %1240 = vmatprep.subr.mxu0 0.0
    %1241 = vmatpush1.msra.mxu0 0.0
    %1242 = vmatprep.subr.mxu0 0.0
    %1243 = vmatpush1.msra.mxu0 0.0
    %1244 = vmatprep.subr.mxu0 0.0
    %1245 = vmatpush1.msra.mxu0 0.0
    %1246 = vmatprep.subr.mxu0 0.0
    %1247 = vmatpush1.msra.mxu0 0.0
    %1248 = vmatprep.subr.mxu0 0.0
    %1249 = vmatpush1.msra.mxu0 0.0
    %1250 = vmatprep.subr.mxu0 0.0
    %1251 = vmatpush1.msra.mxu0 0.0
    %1252 = vmatprep.mubr.f32.mxu0 0.0
    %1253 = vmatmul.mubr.f32.gmra.mrb[0].mxu0 %v1116
    %v1254 = vpop.f32.mrb[0].mxu0
    %v1255 = vadd.f32 %v737, %v1254
    %v1256 = vpop.f32.mrb[0].mxu0
    %1257 = vdwg.mxu0
    %1258 = vmatprep.subr.mxu0 0.0
    %1259 = vmatpush1.msra.mxu0 %v160
    %1260 = vmatprep.subr.mxu0 0.0
    %1261 = vmatpush1.msra.mxu0 %v161
    %1262 = vmatprep.subr.mxu0 0.0
    %1263 = vmatpush1.msra.mxu0 %v162
    %1264 = vmatprep.subr.mxu0 0.0
    %1265 = vmatpush1.msra.mxu0 %v163
    %1266 = vmatprep.subr.mxu0 0.0
    %1267 = vmatpush1.msra.mxu0 0.0
    %1268 = vmatprep.subr.mxu0 0.0
    %1269 = vmatpush1.msra.mxu0 0.0
    %1270 = vmatprep.subr.mxu0 0.0
    %1271 = vmatpush1.msra.mxu0 0.0
    %1272 = vmatprep.subr.mxu0 0.0
    %1273 = vmatpush1.msra.mxu0 0.0
    %1274 = vmatprep.subr.mxu0 0.0
    %1275 = vmatpush1.msra.mxu0 0.0
    %1276 = vmatprep.subr.mxu0 0.0
    %1277 = vmatpush1.msra.mxu0 0.0
    %1278 = vmatprep.subr.mxu0 0.0
    %1279 = vmatpush1.msra.mxu0 0.0
    %1280 = vmatprep.subr.mxu0 0.0
    %1281 = vmatpush1.msra.mxu0 0.0
    %1282 = vmatprep.subr.mxu0 0.0
    %1283 = vmatpush1.msra.mxu0 0.0
    %1284 = vmatprep.subr.mxu0 0.0
    %1285 = vmatpush1.msra.mxu0 0.0
    %1286 = vmatprep.subr.mxu0 0.0
    %1287 = vmatpush1.msra.mxu0 0.0
    %1288 = vmatprep.subr.mxu0 0.0
    %1289 = vmatpush1.msra.mxu0 0.0
    %1290 = vmatprep.subr.mxu0 0.0
    %1291 = vmatpush1.msra.mxu0 0.0
    %1292 = vmatprep.subr.mxu0 0.0
    %1293 = vmatpush1.msra.mxu0 0.0
    %1294 = vmatprep.subr.mxu0 0.0
    %1295 = vmatpush1.msra.mxu0 0.0
    %1296 = vmatprep.subr.mxu0 0.0
    %1297 = vmatpush1.msra.mxu0 0.0
    %1298 = vmatprep.subr.mxu0 0.0
    %1299 = vmatpush1.msra.mxu0 0.0
    %1300 = vmatprep.subr.mxu0 0.0
    %1301 = vmatpush1.msra.mxu0 0.0
    %1302 = vmatprep.subr.mxu0 0.0
    %1303 = vmatpush1.msra.mxu0 0.0
    %1304 = vmatprep.subr.mxu0 0.0
    %1305 = vmatpush1.msra.mxu0 0.0
    %1306 = vmatprep.subr.mxu0 0.0
    %1307 = vmatpush1.msra.mxu0 0.0
    %1308 = vmatprep.subr.mxu0 0.0
    %1309 = vmatpush1.msra.mxu0 0.0
    %1310 = vmatprep.subr.mxu0 0.0
    %1311 = vmatpush1.msra.mxu0 0.0
    %1312 = vmatprep.subr.mxu0 0.0
    %1313 = vmatpush1.msra.mxu0 0.0
    %1314 = vmatprep.subr.mxu0 0.0
    %1315 = vmatpush1.msra.mxu0 0.0
    %1316 = vmatprep.subr.mxu0 0.0
    %1317 = vmatpush1.msra.mxu0 0.0
    %1318 = vmatprep.subr.mxu0 0.0
    %1319 = vmatpush1.msra.mxu0 0.0
    %1320 = vmatprep.subr.mxu0 0.0
    %1321 = vmatpush1.msra.mxu0 0.0
    %1322 = vmatprep.mubr.f32.mxu0 0.0
    %1323 = vmatmul.mubr.f32.gmra.mrb[0].mxu0 %v1116
    %v1324 = vpop.f32.mrb[0].mxu0
    %v1325 = vadd.f32 %v813, %v1324
    %v1326 = vpop.f32.mrb[0].mxu0
    %1327 = vdwg.mxu0
    %1328 = vmatprep.subr.mxu0 0.0
    %1329 = vmatpush1.msra.mxu0 %v140
    %1330 = vmatprep.subr.mxu0 0.0
    %1331 = vmatpush1.msra.mxu0 %v141
    %1332 = vmatprep.subr.mxu0 0.0
    %1333 = vmatpush1.msra.mxu0 %v142
    %1334 = vmatprep.subr.mxu0 0.0
    %1335 = vmatpush1.msra.mxu0 %v143
    %1336 = vmatprep.subr.mxu0 0.0
    %1337 = vmatpush1.msra.mxu0 0.0
    %1338 = vmatprep.subr.mxu0 0.0
    %1339 = vmatpush1.msra.mxu0 0.0
    %1340 = vmatprep.subr.mxu0 0.0
    %1341 = vmatpush1.msra.mxu0 0.0
    %1342 = vmatprep.subr.mxu0 0.0
    %1343 = vmatpush1.msra.mxu0 0.0
    %1344 = vmatprep.subr.mxu0 0.0
    %1345 = vmatpush1.msra.mxu0 0.0
    %1346 = vmatprep.subr.mxu0 0.0
    %1347 = vmatpush1.msra.mxu0 0.0
    %1348 = vmatprep.subr.mxu0 0.0
    %1349 = vmatpush1.msra.mxu0 0.0
    %1350 = vmatprep.subr.mxu0 0.0
    %1351 = vmatpush1.msra.mxu0 0.0
    %1352 = vmatprep.subr.mxu0 0.0
    %1353 = vmatpush1.msra.mxu0 0.0
    %1354 = vmatprep.subr.mxu0 0.0
    %1355 = vmatpush1.msra.mxu0 0.0
    %1356 = vmatprep.subr.mxu0 0.0
    %1357 = vmatpush1.msra.mxu0 0.0
    %1358 = vmatprep.subr.mxu0 0.0
    %1359 = vmatpush1.msra.mxu0 0.0
    %1360 = vmatprep.subr.mxu0 0.0
    %1361 = vmatpush1.msra.mxu0 0.0
    %1362 = vmatprep.subr.mxu0 0.0
    %1363 = vmatpush1.msra.mxu0 0.0
    %1364 = vmatprep.subr.mxu0 0.0
    %1365 = vmatpush1.msra.mxu0 0.0
    %1366 = vmatprep.subr.mxu0 0.0
    %1367 = vmatpush1.msra.mxu0 0.0
    %1368 = vmatprep.subr.mxu0 0.0
    %1369 = vmatpush1.msra.mxu0 0.0
    %1370 = vmatprep.subr.mxu0 0.0
    %1371 = vmatpush1.msra.mxu0 0.0
    %1372 = vmatprep.subr.mxu0 0.0
    %1373 = vmatpush1.msra.mxu0 0.0
    %1374 = vmatprep.subr.mxu0 0.0
    %1375 = vmatpush1.msra.mxu0 0.0
    %1376 = vmatprep.subr.mxu0 0.0
    %1377 = vmatpush1.msra.mxu0 0.0
    %1378 = vmatprep.subr.mxu0 0.0
    %1379 = vmatpush1.msra.mxu0 0.0
    %1380 = vmatprep.subr.mxu0 0.0
    %1381 = vmatpush1.msra.mxu0 0.0
    %1382 = vmatprep.subr.mxu0 0.0
    %1383 = vmatpush1.msra.mxu0 0.0
    %1384 = vmatprep.subr.mxu0 0.0
    %1385 = vmatpush1.msra.mxu0 0.0
    %1386 = vmatprep.subr.mxu0 0.0
    %1387 = vmatpush1.msra.mxu0 0.0
    %1388 = vmatprep.subr.mxu0 0.0
    %1389 = vmatpush1.msra.mxu0 0.0
    %1390 = vmatprep.subr.mxu0 0.0
    %1391 = vmatpush1.msra.mxu0 0.0
    %1392 = vmatprep.mubr.f32.mxu0 0.0
    %1393 = vmatmul.mubr.f32.gmra.mrb[0].mxu0 %v1116
    %v1394 = vpop.f32.mrb[0].mxu0
    %v1395 = vadd.f32 0.0, %v1394
    %v1396 = vpop.f32.mrb[0].mxu0
    %1397 = vdwg.mxu0
    %1398 = vmatprep.subr.mxu0 0.0
    %1399 = vmatpush1.msra.mxu0 %v144
    %1400 = vmatprep.subr.mxu0 0.0
    %1401 = vmatpush1.msra.mxu0 %v145
    %1402 = vmatprep.subr.mxu0 0.0
    %1403 = vmatpush1.msra.mxu0 %v146
    %1404 = vmatprep.subr.mxu0 0.0
    %1405 = vmatpush1.msra.mxu0 %v147
    %1406 = vmatprep.subr.mxu0 0.0
    %1407 = vmatpush1.msra.mxu0 0.0
    %1408 = vmatprep.subr.mxu0 0.0
    %1409 = vmatpush1.msra.mxu0 0.0
    %1410 = vmatprep.subr.mxu0 0.0
    %1411 = vmatpush1.msra.mxu0 0.0
    %1412 = vmatprep.subr.mxu0 0.0
    %1413 = vmatpush1.msra.mxu0 0.0
    %1414 = vmatprep.subr.mxu0 0.0
    %1415 = vmatpush1.msra.mxu0 0.0
    %1416 = vmatprep.subr.mxu0 0.0
    %1417 = vmatpush1.msra.mxu0 0.0
    %1418 = vmatprep.subr.mxu0 0.0
    %1419 = vmatpush1.msra.mxu0 0.0
    %1420 = vmatprep.subr.mxu0 0.0
    %1421 = vmatpush1.msra.mxu0 0.0
    %1422 = vmatprep.subr.mxu0 0.0
    %1423 = vmatpush1.msra.mxu0 0.0
    %1424 = vmatprep.subr.mxu0 0.0
    %1425 = vmatpush1.msra.mxu0 0.0
    %1426 = vmatprep.subr.mxu0 0.0
    %1427 = vmatpush1.msra.mxu0 0.0
    %1428 = vmatprep.subr.mxu0 0.0
    %1429 = vmatpush1.msra.mxu0 0.0
    %1430 = vmatprep.subr.mxu0 0.0
    %1431 = vmatpush1.msra.mxu0 0.0
    %1432 = vmatprep.subr.mxu0 0.0
    %1433 = vmatpush1.msra.mxu0 0.0
    %1434 = vmatprep.subr.mxu0 0.0
    %1435 = vmatpush1.msra.mxu0 0.0
    %1436 = vmatprep.subr.mxu0 0.0
    %1437 = vmatpush1.msra.mxu0 0.0
    %1438 = vmatprep.subr.mxu0 0.0
    %1439 = vmatpush1.msra.mxu0 0.0
    %1440 = vmatprep.subr.mxu0 0.0
    %1441 = vmatpush1.msra.mxu0 0.0
    %1442 = vmatprep.subr.mxu0 0.0
    %1443 = vmatpush1.msra.mxu0 0.0
    %1444 = vmatprep.subr.mxu0 0.0
    %1445 = vmatpush1.msra.mxu0 0.0
    %1446 = vmatprep.subr.mxu0 0.0
    %1447 = vmatpush1.msra.mxu0 0.0
    %1448 = vmatprep.subr.mxu0 0.0
    %1449 = vmatpush1.msra.mxu0 0.0
    %1450 = vmatprep.subr.mxu0 0.0
    %1451 = vmatpush1.msra.mxu0 0.0
    %1452 = vmatprep.subr.mxu0 0.0
    %1453 = vmatpush1.msra.mxu0 0.0
    %1454 = vmatprep.subr.mxu0 0.0
    %1455 = vmatpush1.msra.mxu0 0.0
    %1456 = vmatprep.subr.mxu0 0.0
    %1457 = vmatpush1.msra.mxu0 0.0
    %1458 = vmatprep.subr.mxu0 0.0
    %1459 = vmatpush1.msra.mxu0 0.0
    %1460 = vmatprep.subr.mxu0 0.0
    %1461 = vmatpush1.msra.mxu0 0.0
    %1462 = vmatprep.mubr.f32.mxu0 0.0
    %1463 = vmatmul.mubr.f32.gmra.mrb[0].mxu0 %v1116
    %v1464 = vpop.f32.mrb[0].mxu0
    %v1465 = vadd.f32 0.0, %v1464
    %v1466 = vpop.f32.mrb[0].mxu0
    %1467 = vdwg.mxu0
    %v1468 = vadd.f32 %v253, %v1395
    %v1469 = vsub.f32 0.0, %v1468
    %v1470 = vmul.f32 %v1469, 1.442695
    %v1471 = vpow.pop %v1470
    %v1472 = vadd.f32 %v1471, 1.0
    %v1473 = vrcp.pop %v1472
    %v1474 = vmul.f32 1.0, %v1473
    %v1475 = vadd.f32 %v332, %v1465
    %v1476 = vsub.f32 0.0, %v1475
    %v1477 = vmul.f32 %v1476, 1.442695
    %v1478 = vpow.pop %v1477
    %v1479 = vadd.f32 %v1478, 1.0
    %v1480 = vrcp.pop %v1479
    %v1481 = vmul.f32 1.0, %v1480
    %1482 = vmatprep.subr.mxu0 0.0
    %1483 = vmatpush1.msra.mxu0 %v148
    %1484 = vmatprep.subr.mxu0 0.0
    %1485 = vmatpush1.msra.mxu0 %v149
    %1486 = vmatprep.subr.mxu0 0.0
    %1487 = vmatpush1.msra.mxu0 %v150
    %1488 = vmatprep.subr.mxu0 0.0
    %1489 = vmatpush1.msra.mxu0 %v151
    %1490 = vmatprep.subr.mxu0 0.0
    %1491 = vmatpush1.msra.mxu0 0.0
    %1492 = vmatprep.subr.mxu0 0.0
    %1493 = vmatpush1.msra.mxu0 0.0
    %1494 = vmatprep.subr.mxu0 0.0
    %1495 = vmatpush1.msra.mxu0 0.0
    %1496 = vmatprep.subr.mxu0 0.0
    %1497 = vmatpush1.msra.mxu0 0.0
    %1498 = vmatprep.subr.mxu0 0.0
    %1499 = vmatpush1.msra.mxu0 0.0
    %1500 = vmatprep.subr.mxu0 0.0
    %1501 = vmatpush1.msra.mxu0 0.0
    %1502 = vmatprep.subr.mxu0 0.0
    %1503 = vmatpush1.msra.mxu0 0.0
    %1504 = vmatprep.subr.mxu0 0.0
    %1505 = vmatpush1.msra.mxu0 0.0
    %1506 = vmatprep.subr.mxu0 0.0
    %1507 = vmatpush1.msra.mxu0 0.0
    %1508 = vmatprep.subr.mxu0 0.0
    %1509 = vmatpush1.msra.mxu0 0.0
    %1510 = vmatprep.subr.mxu0 0.0
    %1511 = vmatpush1.msra.mxu0 0.0
    %1512 = vmatprep.subr.mxu0 0.0
    %1513 = vmatpush1.msra.mxu0 0.0
    %1514 = vmatprep.subr.mxu0 0.0
    %1515 = vmatpush1.msra.mxu0 0.0
    %1516 = vmatprep.subr.mxu0 0.0
    %1517 = vmatpush1.msra.mxu0 0.0
    %1518 = vmatprep.subr.mxu0 0.0
    %1519 = vmatpush1.msra.mxu0 0.0
    %1520 = vmatprep.subr.mxu0 0.0
    %1521 = vmatpush1.msra.mxu0 0.0
    %1522 = vmatprep.subr.mxu0 0.0
    %1523 = vmatpush1.msra.mxu0 0.0
    %1524 = vmatprep.subr.mxu0 0.0
    %1525 = vmatpush1.msra.mxu0 0.0
    %1526 = vmatprep.subr.mxu0 0.0
    %1527 = vmatpush1.msra.mxu0 0.0
    %1528 = vmatprep.subr.mxu0 0.0
    %1529 = vmatpush1.msra.mxu0 0.0
    %1530 = vmatprep.subr.mxu0 0.0
    %1531 = vmatpush1.msra.mxu0 0.0
    %1532 = vmatprep.subr.mxu0 0.0
    %1533 = vmatpush1.msra.mxu0 0.0
    %1534 = vmatprep.subr.mxu0 0.0
    %1535 = vmatpush1.msra.mxu0 0.0
    %1536 = vmatprep.subr.mxu0 0.0
    %1537 = vmatpush1.msra.mxu0 0.0
    %1538 = vmatprep.subr.mxu0 0.0
    %1539 = vmatpush1.msra.mxu0 0.0
    %1540 = vmatprep.subr.mxu0 0.0
    %1541 = vmatpush1.msra.mxu0 0.0
    %1542 = vmatprep.subr.mxu0 0.0
    %1543 = vmatpush1.msra.mxu0 0.0
    %1544 = vmatprep.subr.mxu0 0.0
    %1545 = vmatpush1.msra.mxu0 0.0
    %1546 = vmatprep.mubr.f32.mxu0 0.0
    %1547 = vmatmul.mubr.f32.gmra.mrb[0].mxu0 %v1116
    %v1548 = vpop.f32.mrb[0].mxu0
    %v1549 = vadd.f32 %v576, %v1548
    %v1550 = vpop.f32.mrb[0].mxu0
    %1551 = vdwg.mxu0
    %v1552 = vmul.f32 %v1474, %v1549
    %v1553 = vadd.f32 %v411, %v1552
    %v1554 = vtanh.pop %v1553
    %v1555 = vsub.f32 %v1114, %v1554
    %v1556 = vmul.f32 %v1481, %v1555
    %v1557 = vadd.f32 %v1554, %v1556
    %v1559 = vsel %vm414, %v1557, 0
    %1561 = vmatprep.subr.mxu0 0.0
    %1562 = vmatpush1.msra.mxu0 %v152
    %1563 = vmatprep.subr.mxu0 0.0
    %1564 = vmatpush1.msra.mxu0 %v153
    %1565 = vmatprep.subr.mxu0 0.0
    %1566 = vmatpush1.msra.mxu0 %v154
    %1567 = vmatprep.subr.mxu0 0.0
    %1568 = vmatpush1.msra.mxu0 %v155
    %1569 = vmatprep.subr.mxu0 0.0
    %1570 = vmatpush1.msra.mxu0 0.0
    %1571 = vmatprep.subr.mxu0 0.0
    %1572 = vmatpush1.msra.mxu0 0.0
    %1573 = vmatprep.subr.mxu0 0.0
    %1574 = vmatpush1.msra.mxu0 0.0
    %1575 = vmatprep.subr.mxu0 0.0
    %1576 = vmatpush1.msra.mxu0 0.0
    %1577 = vmatprep.subr.mxu0 0.0
    %1578 = vmatpush1.msra.mxu0 0.0
    %1579 = vmatprep.subr.mxu0 0.0
    %1580 = vmatpush1.msra.mxu0 0.0
    %1581 = vmatprep.subr.mxu0 0.0
    %1582 = vmatpush1.msra.mxu0 0.0
    %1583 = vmatprep.subr.mxu0 0.0
    %1584 = vmatpush1.msra.mxu0 0.0
    %1585 = vmatprep.subr.mxu0 0.0
    %1586 = vmatpush1.msra.mxu0 0.0
    %1587 = vmatprep.subr.mxu0 0.0
    %1588 = vmatpush1.msra.mxu0 0.0
    %1589 = vmatprep.subr.mxu0 0.0
    %1590 = vmatpush1.msra.mxu0 0.0
    %1591 = vmatprep.subr.mxu0 0.0
    %1592 = vmatpush1.msra.mxu0 0.0
    %1593 = vmatprep.subr.mxu0 0.0
    %1594 = vmatpush1.msra.mxu0 0.0
    %1595 = vmatprep.subr.mxu0 0.0
    %1596 = vmatpush1.msra.mxu0 0.0
    %1597 = vmatprep.subr.mxu0 0.0
    %1598 = vmatpush1.msra.mxu0 0.0
    %1599 = vmatprep.subr.mxu0 0.0
    %1600 = vmatpush1.msra.mxu0 0.0
    %1601 = vmatprep.subr.mxu0 0.0
    %1602 = vmatpush1.msra.mxu0 0.0
    %1603 = vmatprep.subr.mxu0 0.0
    %1604 = vmatpush1.msra.mxu0 0.0
    %1605 = vmatprep.subr.mxu0 0.0
    %1606 = vmatpush1.msra.mxu0 0.0
    %1607 = vmatprep.subr.mxu0 0.0
    %1608 = vmatpush1.msra.mxu0 0.0
    %1609 = vmatprep.subr.mxu0 0.0
    %1610 = vmatpush1.msra.mxu0 0.0
    %1611 = vmatprep.subr.mxu0 0.0
    %1612 = vmatpush1.msra.mxu0 0.0
    %1613 = vmatprep.subr.mxu0 0.0
    %1614 = vmatpush1.msra.mxu0 0.0
    %1615 = vmatprep.subr.mxu0 0.0
    %1616 = vmatpush1.msra.mxu0 0.0
    %1617 = vmatprep.subr.mxu0 0.0
    %1618 = vmatpush1.msra.mxu0 0.0
    %1619 = vmatprep.subr.mxu0 0.0
    %1620 = vmatpush1.msra.mxu0 0.0
    %1621 = vmatprep.subr.mxu0 0.0
    %1622 = vmatpush1.msra.mxu0 0.0
    %1623 = vmatprep.subr.mxu0 0.0
    %1624 = vmatpush1.msra.mxu0 0.0
    %1625 = vmatprep.mubr.f32.mxu0 0.0
    %1626 = vmatmul.mubr.f32.gmra.mrb[0].mxu0 %v1559
    %v1627 = vpop.f32.mrb[0].mxu0
    %v1628 = vadd.f32 %v658, %v1627
    %v1629 = vpop.f32.mrb[0].mxu0
    %1630 = vdwg.mxu0
    %1631 = vmatprep.subr.mxu0 0.0
    %1632 = vmatpush1.msra.mxu0 %v156
    %1633 = vmatprep.subr.mxu0 0.0
    %1634 = vmatpush1.msra.mxu0 %v157
    %1635 = vmatprep.subr.mxu0 0.0
    %1636 = vmatpush1.msra.mxu0 %v158
    %1637 = vmatprep.subr.mxu0 0.0
    %1638 = vmatpush1.msra.mxu0 %v159
    %1639 = vmatprep.subr.mxu0 0.0
    %1640 = vmatpush1.msra.mxu0 0.0
    %1641 = vmatprep.subr.mxu0 0.0
    %1642 = vmatpush1.msra.mxu0 0.0
    %1643 = vmatprep.subr.mxu0 0.0
    %1644 = vmatpush1.msra.mxu0 0.0
    %1645 = vmatprep.subr.mxu0 0.0
    %1646 = vmatpush1.msra.mxu0 0.0
    %1647 = vmatprep.subr.mxu0 0.0
    %1648 = vmatpush1.msra.mxu0 0.0
    %1649 = vmatprep.subr.mxu0 0.0
    %1650 = vmatpush1.msra.mxu0 0.0
    %1651 = vmatprep.subr.mxu0 0.0
    %1652 = vmatpush1.msra.mxu0 0.0
    %1653 = vmatprep.subr.mxu0 0.0
    %1654 = vmatpush1.msra.mxu0 0.0
    %1655 = vmatprep.subr.mxu0 0.0
    %1656 = vmatpush1.msra.mxu0 0.0
    %1657 = vmatprep.subr.mxu0 0.0
    %1658 = vmatpush1.msra.mxu0 0.0
    %1659 = vmatprep.subr.mxu0 0.0
    %1660 = vmatpush1.msra.mxu0 0.0
    %1661 = vmatprep.subr.mxu0 0.0
    %1662 = vmatpush1.msra.mxu0 0.0
    %1663 = vmatprep.subr.mxu0 0.0
    %1664 = vmatpush1.msra.mxu0 0.0
    %1665 = vmatprep.subr.mxu0 0.0
    %1666 = vmatpush1.msra.mxu0 0.0
    %1667 = vmatprep.subr.mxu0 0.0
    %1668 = vmatpush1.msra.mxu0 0.0
    %1669 = vmatprep.subr.mxu0 0.0
    %1670 = vmatpush1.msra.mxu0 0.0
    %1671 = vmatprep.subr.mxu0 0.0
    %1672 = vmatpush1.msra.mxu0 0.0
    %1673 = vmatprep.subr.mxu0 0.0
    %1674 = vmatpush1.msra.mxu0 0.0
    %1675 = vmatprep.subr.mxu0 0.0
    %1676 = vmatpush1.msra.mxu0 0.0
    %1677 = vmatprep.subr.mxu0 0.0
    %1678 = vmatpush1.msra.mxu0 0.0
    %1679 = vmatprep.subr.mxu0 0.0
    %1680 = vmatpush1.msra.mxu0 0.0
    %1681 = vmatprep.subr.mxu0 0.0
    %1682 = vmatpush1.msra.mxu0 0.0
    %1683 = vmatprep.subr.mxu0 0.0
    %1684 = vmatpush1.msra.mxu0 0.0
    %1685 = vmatprep.subr.mxu0 0.0
    %1686 = vmatpush1.msra.mxu0 0.0
    %1687 = vmatprep.subr.mxu0 0.0
    %1688 = vmatpush1.msra.mxu0 0.0
    %1689 = vmatprep.subr.mxu0 0.0
    %1690 = vmatpush1.msra.mxu0 0.0
    %1691 = vmatprep.subr.mxu0 0.0
    %1692 = vmatpush1.msra.mxu0 0.0
    %1693 = vmatprep.subr.mxu0 0.0
    %1694 = vmatpush1.msra.mxu0 0.0
    %1695 = vmatprep.mubr.f32.mxu0 0.0
    %1696 = vmatmul.mubr.f32.gmra.mrb[0].mxu0 %v1559
    %v1697 = vpop.f32.mrb[0].mxu0
    %v1698 = vadd.f32 %v737, %v1697
    %v1699 = vpop.f32.mrb[0].mxu0
    %1700 = vdwg.mxu0
    %1701 = vmatprep.subr.mxu0 0.0
    %1702 = vmatpush1.msra.mxu0 %v160
    %1703 = vmatprep.subr.mxu0 0.0
    %1704 = vmatpush1.msra.mxu0 %v161
    %1705 = vmatprep.subr.mxu0 0.0
    %1706 = vmatpush1.msra.mxu0 %v162
    %1707 = vmatprep.subr.mxu0 0.0
    %1708 = vmatpush1.msra.mxu0 %v163
    %1709 = vmatprep.subr.mxu0 0.0
    %1710 = vmatpush1.msra.mxu0 0.0
    %1711 = vmatprep.subr.mxu0 0.0
    %1712 = vmatpush1.msra.mxu0 0.0
    %1713 = vmatprep.subr.mxu0 0.0
    %1714 = vmatpush1.msra.mxu0 0.0
    %1715 = vmatprep.subr.mxu0 0.0
    %1716 = vmatpush1.msra.mxu0 0.0
    %1717 = vmatprep.subr.mxu0 0.0
    %1718 = vmatpush1.msra.mxu0 0.0
    %1719 = vmatprep.subr.mxu0 0.0
    %1720 = vmatpush1.msra.mxu0 0.0
    %1721 = vmatprep.subr.mxu0 0.0
    %1722 = vmatpush1.msra.mxu0 0.0
    %1723 = vmatprep.subr.mxu0 0.0
    %1724 = vmatpush1.msra.mxu0 0.0
    %1725 = vmatprep.subr.mxu0 0.0
    %1726 = vmatpush1.msra.mxu0 0.0
    %1727 = vmatprep.subr.mxu0 0.0
    %1728 = vmatpush1.msra.mxu0 0.0
    %1729 = vmatprep.subr.mxu0 0.0
    %1730 = vmatpush1.msra.mxu0 0.0
    %1731 = vmatprep.subr.mxu0 0.0
    %1732 = vmatpush1.msra.mxu0 0.0
    %1733 = vmatprep.subr.mxu0 0.0
    %1734 = vmatpush1.msra.mxu0 0.0
    %1735 = vmatprep.subr.mxu0 0.0
    %1736 = vmatpush1.msra.mxu0 0.0
    %1737 = vmatprep.subr.mxu0 0.0
    %1738 = vmatpush1.msra.mxu0 0.0
    %1739 = vmatprep.subr.mxu0 0.0
    %1740 = vmatpush1.msra.mxu0 0.0
    %1741 = vmatprep.subr.mxu0 0.0
    %1742 = vmatpush1.msra.mxu0 0.0
    %1743 = vmatprep.subr.mxu0 0.0
    %1744 = vmatpush1.msra.mxu0 0.0
    %1745 = vmatprep.subr.mxu0 0.0
    %1746 = vmatpush1.msra.mxu0 0.0
    %1747 = vmatprep.subr.mxu0 0.0
    %1748 = vmatpush1.msra.mxu0 0.0
    %1749 = vmatprep.subr.mxu0 0.0
    %1750 = vmatpush1.msra.mxu0 0.0
    %1751 = vmatprep.subr.mxu0 0.0
    %1752 = vmatpush1.msra.mxu0 0.0
    %1753 = vmatprep.subr.mxu0 0.0
    %1754 = vmatpush1.msra.mxu0 0.0
    %1755 = vmatprep.subr.mxu0 0.0
    %1756 = vmatpush1.msra.mxu0 0.0
    %1757 = vmatprep.subr.mxu0 0.0
    %1758 = vmatpush1.msra.mxu0 0.0
    %1759 = vmatprep.subr.mxu0 0.0
    %1760 = vmatpush1.msra.mxu0 0.0
    %1761 = vmatprep.subr.mxu0 0.0
    %1762 = vmatpush1.msra.mxu0 0.0
    %1763 = vmatprep.subr.mxu0 0.0
    %1764 = vmatpush1.msra.mxu0 0.0
    %1765 = vmatprep.mubr.f32.mxu0 0.0
    %1766 = vmatmul.mubr.f32.gmra.mrb[0].mxu0 %v1559
    %v1767 = vpop.f32.mrb[0].mxu0
    %v1768 = vadd.f32 %v813, %v1767
    %v1769 = vpop.f32.mrb[0].mxu0
    %1770 = vdwg.mxu0
    %1771 = vmatprep.subr.mxu0 0.0
    %1772 = vmatpush1.msra.mxu0 %v140
    %1773 = vmatprep.subr.mxu0 0.0
    %1774 = vmatpush1.msra.mxu0 %v141
    %1775 = vmatprep.subr.mxu0 0.0
    %1776 = vmatpush1.msra.mxu0 %v142
    %1777 = vmatprep.subr.mxu0 0.0
    %1778 = vmatpush1.msra.mxu0 %v143
    %1779 = vmatprep.subr.mxu0 0.0
    %1780 = vmatpush1.msra.mxu0 0.0
    %1781 = vmatprep.subr.mxu0 0.0
    %1782 = vmatpush1.msra.mxu0 0.0
    %1783 = vmatprep.subr.mxu0 0.0
    %1784 = vmatpush1.msra.mxu0 0.0
    %1785 = vmatprep.subr.mxu0 0.0
    %1786 = vmatpush1.msra.mxu0 0.0
    %1787 = vmatprep.subr.mxu0 0.0
    %1788 = vmatpush1.msra.mxu0 0.0
    %1789 = vmatprep.subr.mxu0 0.0
    %1790 = vmatpush1.msra.mxu0 0.0
    %1791 = vmatprep.subr.mxu0 0.0
    %1792 = vmatpush1.msra.mxu0 0.0
    %1793 = vmatprep.subr.mxu0 0.0
    %1794 = vmatpush1.msra.mxu0 0.0
    %1795 = vmatprep.subr.mxu0 0.0
    %1796 = vmatpush1.msra.mxu0 0.0
    %1797 = vmatprep.subr.mxu0 0.0
    %1798 = vmatpush1.msra.mxu0 0.0
    %1799 = vmatprep.subr.mxu0 0.0
    %1800 = vmatpush1.msra.mxu0 0.0
    %1801 = vmatprep.subr.mxu0 0.0
    %1802 = vmatpush1.msra.mxu0 0.0
    %1803 = vmatprep.subr.mxu0 0.0
    %1804 = vmatpush1.msra.mxu0 0.0
    %1805 = vmatprep.subr.mxu0 0.0
    %1806 = vmatpush1.msra.mxu0 0.0
    %1807 = vmatprep.subr.mxu0 0.0
    %1808 = vmatpush1.msra.mxu0 0.0
    %1809 = vmatprep.subr.mxu0 0.0
    %1810 = vmatpush1.msra.mxu0 0.0
    %1811 = vmatprep.subr.mxu0 0.0
    %1812 = vmatpush1.msra.mxu0 0.0
    %1813 = vmatprep.subr.mxu0 0.0
    %1814 = vmatpush1.msra.mxu0 0.0
    %1815 = vmatprep.subr.mxu0 0.0
    %1816 = vmatpush1.msra.mxu0 0.0
    %1817 = vmatprep.subr.mxu0 0.0
    %1818 = vmatpush1.msra.mxu0 0.0
    %1819 = vmatprep.subr.mxu0 0.0
    %1820 = vmatpush1.msra.mxu0 0.0
    %1821 = vmatprep.subr.mxu0 0.0
    %1822 = vmatpush1.msra.mxu0 0.0
    %1823 = vmatprep.subr.mxu0 0.0
    %1824 = vmatpush1.msra.mxu0 0.0
    %1825 = vmatprep.subr.mxu0 0.0
    %1826 = vmatpush1.msra.mxu0 0.0
    %1827 = vmatprep.subr.mxu0 0.0
    %1828 = vmatpush1.msra.mxu0 0.0
    %1829 = vmatprep.subr.mxu0 0.0
    %1830 = vmatpush1.msra.mxu0 0.0
    %1831 = vmatprep.subr.mxu0 0.0
    %1832 = vmatpush1.msra.mxu0 0.0
    %1833 = vmatprep.subr.mxu0 0.0
    %1834 = vmatpush1.msra.mxu0 0.0
    %1835 = vmatprep.mubr.f32.mxu0 0.0
    %1836 = vmatmul.mubr.f32.gmra.mrb[0].mxu0 %v1559
    %v1837 = vpop.f32.mrb[0].mxu0
    %v1838 = vadd.f32 0.0, %v1837
    %v1839 = vpop.f32.mrb[0].mxu0
    %1840 = vdwg.mxu0
    %1841 = vmatprep.subr.mxu0 0.0
    %1842 = vmatpush1.msra.mxu0 %v144
    %1843 = vmatprep.subr.mxu0 0.0
    %1844 = vmatpush1.msra.mxu0 %v145
    %1845 = vmatprep.subr.mxu0 0.0
    %1846 = vmatpush1.msra.mxu0 %v146
    %1847 = vmatprep.subr.mxu0 0.0
    %1848 = vmatpush1.msra.mxu0 %v147
    %1849 = vmatprep.subr.mxu0 0.0
    %1850 = vmatpush1.msra.mxu0 0.0
    %1851 = vmatprep.subr.mxu0 0.0
    %1852 = vmatpush1.msra.mxu0 0.0
    %1853 = vmatprep.subr.mxu0 0.0
    %1854 = vmatpush1.msra.mxu0 0.0
    %1855 = vmatprep.subr.mxu0 0.0
    %1856 = vmatpush1.msra.mxu0 0.0
    %1857 = vmatprep.subr.mxu0 0.0
    %1858 = vmatpush1.msra.mxu0 0.0
    %1859 = vmatprep.subr.mxu0 0.0
    %1860 = vmatpush1.msra.mxu0 0.0
    %1861 = vmatprep.subr.mxu0 0.0
    %1862 = vmatpush1.msra.mxu0 0.0
    %1863 = vmatprep.subr.mxu0 0.0
    %1864 = vmatpush1.msra.mxu0 0.0
    %1865 = vmatprep.subr.mxu0 0.0
    %1866 = vmatpush1.msra.mxu0 0.0
    %1867 = vmatprep.subr.mxu0 0.0
    %1868 = vmatpush1.msra.mxu0 0.0
    %1869 = vmatprep.subr.mxu0 0.0
    %1870 = vmatpush1.msra.mxu0 0.0
    %1871 = vmatprep.subr.mxu0 0.0
    %1872 = vmatpush1.msra.mxu0 0.0
    %1873 = vmatprep.subr.mxu0 0.0
    %1874 = vmatpush1.msra.mxu0 0.0
    %1875 = vmatprep.subr.mxu0 0.0
    %1876 = vmatpush1.msra.mxu0 0.0
    %1877 = vmatprep.subr.mxu0 0.0
    %1878 = vmatpush1.msra.mxu0 0.0
    %1879 = vmatprep.subr.mxu0 0.0
    %1880 = vmatpush1.msra.mxu0 0.0
    %1881 = vmatprep.subr.mxu0 0.0
    %1882 = vmatpush1.msra.mxu0 0.0
    %1883 = vmatprep.subr.mxu0 0.0
    %1884 = vmatpush1.msra.mxu0 0.0
    %1885 = vmatprep.subr.mxu0 0.0
    %1886 = vmatpush1.msra.mxu0 0.0
    %1887 = vmatprep.subr.mxu0 0.0
    %1888 = vmatpush1.msra.mxu0 0.0
    %1889 = vmatprep.subr.mxu0 0.0
    %1890 = vmatpush1.msra.mxu0 0.0
    %1891 = vmatprep.subr.mxu0 0.0
    %1892 = vmatpush1.msra.mxu0 0.0
    %1893 = vmatprep.subr.mxu0 0.0
    %1894 = vmatpush1.msra.mxu0 0.0
    %1895 = vmatprep.subr.mxu0 0.0
    %1896 = vmatpush1.msra.mxu0 0.0
    %1897 = vmatprep.subr.mxu0 0.0
    %1898 = vmatpush1.msra.mxu0 0.0
    %1899 = vmatprep.subr.mxu0 0.0
    %1900 = vmatpush1.msra.mxu0 0.0
    %1901 = vmatprep.subr.mxu0 0.0
    %1902 = vmatpush1.msra.mxu0 0.0
    %1903 = vmatprep.subr.mxu0 0.0
    %1904 = vmatpush1.msra.mxu0 0.0
    %1905 = vmatprep.mubr.f32.mxu0 0.0
    %1906 = vmatmul.mubr.f32.gmra.mrb[0].mxu0 %v1559
    %v1907 = vpop.f32.mrb[0].mxu0
    %v1908 = vadd.f32 0.0, %v1907
    %v1909 = vpop.f32.mrb[0].mxu0
    %1910 = vdwg.mxu0
    %v1911 = vadd.f32 %v253, %v1838
    %v1912 = vsub.f32 0.0, %v1911
    %v1913 = vmul.f32 %v1912, 1.442695
    %v1914 = vpow.pop %v1913
    %v1915 = vadd.f32 %v1914, 1.0
    %v1916 = vrcp.pop %v1915
    %v1917 = vmul.f32 1.0, %v1916
    %v1918 = vadd.f32 %v332, %v1908
    %v1919 = vsub.f32 0.0, %v1918
    %v1920 = vmul.f32 %v1919, 1.442695
    %v1921 = vpow.pop %v1920
    %v1922 = vadd.f32 %v1921, 1.0
    %v1923 = vrcp.pop %v1922
    %v1924 = vmul.f32 1.0, %v1923
    %1925 = vmatprep.subr.mxu0 0.0
    %1926 = vmatpush1.msra.mxu0 %v148
    %1927 = vmatprep.subr.mxu0 0.0
    %1928 = vmatpush1.msra.mxu0 %v149
    %1929 = vmatprep.subr.mxu0 0.0
    %1930 = vmatpush1.msra.mxu0 %v150
    %1931 = vmatprep.subr.mxu0 0.0
    %1932 = vmatpush1.msra.mxu0 %v151
    %1933 = vmatprep.subr.mxu0 0.0
    %1934 = vmatpush1.msra.mxu0 0.0
    %1935 = vmatprep.subr.mxu0 0.0
    %1936 = vmatpush1.msra.mxu0 0.0
    %1937 = vmatprep.subr.mxu0 0.0
    %1938 = vmatpush1.msra.mxu0 0.0
    %1939 = vmatprep.subr.mxu0 0.0
    %1940 = vmatpush1.msra.mxu0 0.0
    %1941 = vmatprep.subr.mxu0 0.0
    %1942 = vmatpush1.msra.mxu0 0.0
    %1943 = vmatprep.subr.mxu0 0.0
    %1944 = vmatpush1.msra.mxu0 0.0
    %1945 = vmatprep.subr.mxu0 0.0
    %1946 = vmatpush1.msra.mxu0 0.0
    %1947 = vmatprep.subr.mxu0 0.0
    %1948 = vmatpush1.msra.mxu0 0.0
    %1949 = vmatprep.subr.mxu0 0.0
    %1950 = vmatpush1.msra.mxu0 0.0
    %1951 = vmatprep.subr.mxu0 0.0
    %1952 = vmatpush1.msra.mxu0 0.0
    %1953 = vmatprep.subr.mxu0 0.0
    %1954 = vmatpush1.msra.mxu0 0.0
    %1955 = vmatprep.subr.mxu0 0.0
    %1956 = vmatpush1.msra.mxu0 0.0
    %1957 = vmatprep.subr.mxu0 0.0
    %1958 = vmatpush1.msra.mxu0 0.0
    %1959 = vmatprep.subr.mxu0 0.0
    %1960 = vmatpush1.msra.mxu0 0.0
    %1961 = vmatprep.subr.mxu0 0.0
    %1962 = vmatpush1.msra.mxu0 0.0
    %1963 = vmatprep.subr.mxu0 0.0
    %1964 = vmatpush1.msra.mxu0 0.0
    %1965 = vmatprep.subr.mxu0 0.0
    %1966 = vmatpush1.msra.mxu0 0.0
    %1967 = vmatprep.subr.mxu0 0.0
    %1968 = vmatpush1.msra.mxu0 0.0
    %1969 = vmatprep.subr.mxu0 0.0
    %1970 = vmatpush1.msra.mxu0 0.0
    %1971 = vmatprep.subr.mxu0 0.0
    %1972 = vmatpush1.msra.mxu0 0.0
    %1973 = vmatprep.subr.mxu0 0.0
    %1974 = vmatpush1.msra.mxu0 0.0
    %1975 = vmatprep.subr.mxu0 0.0
    %1976 = vmatpush1.msra.mxu0 0.0
    %1977 = vmatprep.subr.mxu0 0.0
    %1978 = vmatpush1.msra.mxu0 0.0
    %1979 = vmatprep.subr.mxu0 0.0
    %1980 = vmatpush1.msra.mxu0 0.0
    %1981 = vmatprep.subr.mxu0 0.0
    %1982 = vmatpush1.msra.mxu0 0.0
    %1983 = vmatprep.subr.mxu0 0.0
    %1984 = vmatpush1.msra.mxu0 0.0
    %1985 = vmatprep.subr.mxu0 0.0
    %1986 = vmatpush1.msra.mxu0 0.0
    %1987 = vmatprep.subr.mxu0 0.0
    %1988 = vmatpush1.msra.mxu0 0.0
    %1989 = vmatprep.mubr.f32.mxu0 0.0
    %1990 = vmatmul.mubr.f32.gmra.mrb[0].mxu0 %v1559
    %v1991 = vpop.f32.mrb[0].mxu0
    %v1992 = vadd.f32 %v576, %v1991
    %v1993 = vpop.f32.mrb[0].mxu0
    %1994 = vdwg.mxu0
    %v1995 = vmul.f32 %v1917, %v1992
    %v1996 = vadd.f32 %v411, %v1995
    %v1997 = vtanh.pop %v1996
    %v1998 = vsub.f32 %v1557, %v1997
    %v1999 = vmul.f32 %v1924, %v1998
    %v2000 = vadd.f32 %v1997, %v1999
    %v2002 = vsel %vm414, %v2000, 0
    %2004 = vmatprep.subr.mxu0 0.0
    %2005 = vmatpush1.msra.mxu0 %v152
    %2006 = vmatprep.subr.mxu0 0.0
    %2007 = vmatpush1.msra.mxu0 %v153
    %2008 = vmatprep.subr.mxu0 0.0
    %2009 = vmatpush1.msra.mxu0 %v154
    %2010 = vmatprep.subr.mxu0 0.0
    %2011 = vmatpush1.msra.mxu0 %v155
    %2012 = vmatprep.subr.mxu0 0.0
    %2013 = vmatpush1.msra.mxu0 0.0
    %2014 = vmatprep.subr.mxu0 0.0
    %2015 = vmatpush1.msra.mxu0 0.0
    %2016 = vmatprep.subr.mxu0 0.0
    %2017 = vmatpush1.msra.mxu0 0.0
    %2018 = vmatprep.subr.mxu0 0.0
    %2019 = vmatpush1.msra.mxu0 0.0
    %2020 = vmatprep.subr.mxu0 0.0
    %2021 = vmatpush1.msra.mxu0 0.0
    %2022 = vmatprep.subr.mxu0 0.0
    %2023 = vmatpush1.msra.mxu0 0.0
    %2024 = vmatprep.subr.mxu0 0.0
    %2025 = vmatpush1.msra.mxu0 0.0
    %2026 = vmatprep.subr.mxu0 0.0
    %2027 = vmatpush1.msra.mxu0 0.0
    %2028 = vmatprep.subr.mxu0 0.0
    %2029 = vmatpush1.msra.mxu0 0.0
    %2030 = vmatprep.subr.mxu0 0.0
    %2031 = vmatpush1.msra.mxu0 0.0
    %2032 = vmatprep.subr.mxu0 0.0
    %2033 = vmatpush1.msra.mxu0 0.0
    %2034 = vmatprep.subr.mxu0 0.0
    %2035 = vmatpush1.msra.mxu0 0.0
    %2036 = vmatprep.subr.mxu0 0.0
    %2037 = vmatpush1.msra.mxu0 0.0
    %2038 = vmatprep.subr.mxu0 0.0
    %2039 = vmatpush1.msra.mxu0 0.0
    %2040 = vmatprep.subr.mxu0 0.0
    %2041 = vmatpush1.msra.mxu0 0.0
    %2042 = vmatprep.subr.mxu0 0.0
    %2043 = vmatpush1.msra.mxu0 0.0
    %2044 = vmatprep.subr.mxu0 0.0
    %2045 = vmatpush1.msra.mxu0 0.0
    %2046 = vmatprep.subr.mxu0 0.0
    %2047 = vmatpush1.msra.mxu0 0.0
    %2048 = vmatprep.subr.mxu0 0.0
    %2049 = vmatpush1.msra.mxu0 0.0
    %2050 = vmatprep.subr.mxu0 0.0
    %2051 = vmatpush1.msra.mxu0 0.0
    %2052 = vmatprep.subr.mxu0 0.0
    %2053 = vmatpush1.msra.mxu0 0.0
    %2054 = vmatprep.subr.mxu0 0.0
    %2055 = vmatpush1.msra.mxu0 0.0
    %2056 = vmatprep.subr.mxu0 0.0
    %2057 = vmatpush1.msra.mxu0 0.0
    %2058 = vmatprep.subr.mxu0 0.0
    %2059 = vmatpush1.msra.mxu0 0.0
    %2060 = vmatprep.subr.mxu0 0.0
    %2061 = vmatpush1.msra.mxu0 0.0
    %2062 = vmatprep.subr.mxu0 0.0
    %2063 = vmatpush1.msra.mxu0 0.0
    %2064 = vmatprep.subr.mxu0 0.0
    %2065 = vmatpush1.msra.mxu0 0.0
    %2066 = vmatprep.subr.mxu0 0.0
    %2067 = vmatpush1.msra.mxu0 0.0
    %2068 = vmatprep.mubr.f32.mxu0 0.0
    %2069 = vmatmul.mubr.f32.gmra.mrb[0].mxu0 %v2002
    %v2070 = vpop.f32.mrb[0].mxu0
    %v2071 = vadd.f32 %v658, %v2070
    %v2072 = vpop.f32.mrb[0].mxu0
    %2073 = vdwg.mxu0
    %2074 = vmatprep.subr.mxu0 0.0
    %2075 = vmatpush1.msra.mxu0 %v156
    %2076 = vmatprep.subr.mxu0 0.0
    %2077 = vmatpush1.msra.mxu0 %v157
    %2078 = vmatprep.subr.mxu0 0.0
    %2079 = vmatpush1.msra.mxu0 %v158
    %2080 = vmatprep.subr.mxu0 0.0
    %2081 = vmatpush1.msra.mxu0 %v159
    %2082 = vmatprep.subr.mxu0 0.0
    %2083 = vmatpush1.msra.mxu0 0.0
    %2084 = vmatprep.subr.mxu0 0.0
    %2085 = vmatpush1.msra.mxu0 0.0
    %2086 = vmatprep.subr.mxu0 0.0
    %2087 = vmatpush1.msra.mxu0 0.0
    %2088 = vmatprep.subr.mxu0 0.0
    %2089 = vmatpush1.msra.mxu0 0.0
    %2090 = vmatprep.subr.mxu0 0.0
    %2091 = vmatpush1.msra.mxu0 0.0
    %2092 = vmatprep.subr.mxu0 0.0
    %2093 = vmatpush1.msra.mxu0 0.0
    %2094 = vmatprep.subr.mxu0 0.0
    %2095 = vmatpush1.msra.mxu0 0.0
    %2096 = vmatprep.subr.mxu0 0.0
    %2097 = vmatpush1.msra.mxu0 0.0
    %2098 = vmatprep.subr.mxu0 0.0
    %2099 = vmatpush1.msra.mxu0 0.0
    %2100 = vmatprep.subr.mxu0 0.0
    %2101 = vmatpush1.msra.mxu0 0.0
    %2102 = vmatprep.subr.mxu0 0.0
    %2103 = vmatpush1.msra.mxu0 0.0
    %2104 = vmatprep.subr.mxu0 0.0
    %2105 = vmatpush1.msra.mxu0 0.0
    %2106 = vmatprep.subr.mxu0 0.0
    %2107 = vmatpush1.msra.mxu0 0.0
    %2108 = vmatprep.subr.mxu0 0.0
    %2109 = vmatpush1.msra.mxu0 0.0
    %2110 = vmatprep.subr.mxu0 0.0
    %2111 = vmatpush1.msra.mxu0 0.0
    %2112 = vmatprep.subr.mxu0 0.0
    %2113 = vmatpush1.msra.mxu0 0.0
    %2114 = vmatprep.subr.mxu0 0.0
    %2115 = vmatpush1.msra.mxu0 0.0
    %2116 = vmatprep.subr.mxu0 0.0
    %2117 = vmatpush1.msra.mxu0 0.0
    %2118 = vmatprep.subr.mxu0 0.0
    %2119 = vmatpush1.msra.mxu0 0.0
    %2120 = vmatprep.subr.mxu0 0.0
    %2121 = vmatpush1.msra.mxu0 0.0
    %2122 = vmatprep.subr.mxu0 0.0
    %2123 = vmatpush1.msra.mxu0 0.0
    %2124 = vmatprep.subr.mxu0 0.0
    %2125 = vmatpush1.msra.mxu0 0.0
    %2126 = vmatprep.subr.mxu0 0.0
    %2127 = vmatpush1.msra.mxu0 0.0
    %2128 = vmatprep.subr.mxu0 0.0
    %2129 = vmatpush1.msra.mxu0 0.0
    %2130 = vmatprep.subr.mxu0 0.0
    %2131 = vmatpush1.msra.mxu0 0.0
    %2132 = vmatprep.subr.mxu0 0.0
    %2133 = vmatpush1.msra.mxu0 0.0
    %2134 = vmatprep.subr.mxu0 0.0
    %2135 = vmatpush1.msra.mxu0 0.0
    %2136 = vmatprep.subr.mxu0 0.0
    %2137 = vmatpush1.msra.mxu0 0.0
    %2138 = vmatprep.mubr.f32.mxu0 0.0
    %2139 = vmatmul.mubr.f32.gmra.mrb[0].mxu0 %v2002
    %v2140 = vpop.f32.mrb[0].mxu0
    %v2141 = vadd.f32 %v737, %v2140
    %v2142 = vpop.f32.mrb[0].mxu0
    %2143 = vdwg.mxu0
    %2144 = vmatprep.subr.mxu0 0.0
    %2145 = vmatpush1.msra.mxu0 %v160
    %2146 = vmatprep.subr.mxu0 0.0
    %2147 = vmatpush1.msra.mxu0 %v161
    %2148 = vmatprep.subr.mxu0 0.0
    %2149 = vmatpush1.msra.mxu0 %v162
    %2150 = vmatprep.subr.mxu0 0.0
    %2151 = vmatpush1.msra.mxu0 %v163
    %2152 = vmatprep.subr.mxu0 0.0
    %2153 = vmatpush1.msra.mxu0 0.0
    %2154 = vmatprep.subr.mxu0 0.0
    %2155 = vmatpush1.msra.mxu0 0.0
    %2156 = vmatprep.subr.mxu0 0.0
    %2157 = vmatpush1.msra.mxu0 0.0
    %2158 = vmatprep.subr.mxu0 0.0
    %2159 = vmatpush1.msra.mxu0 0.0
    %2160 = vmatprep.subr.mxu0 0.0
    %2161 = vmatpush1.msra.mxu0 0.0
    %2162 = vmatprep.subr.mxu0 0.0
    %2163 = vmatpush1.msra.mxu0 0.0
    %2164 = vmatprep.subr.mxu0 0.0
    %2165 = vmatpush1.msra.mxu0 0.0
    %2166 = vmatprep.subr.mxu0 0.0
    %2167 = vmatpush1.msra.mxu0 0.0
    %2168 = vmatprep.subr.mxu0 0.0
    %2169 = vmatpush1.msra.mxu0 0.0
    %2170 = vmatprep.subr.mxu0 0.0
    %2171 = vmatpush1.msra.mxu0 0.0
    %2172 = vmatprep.subr.mxu0 0.0
    %2173 = vmatpush1.msra.mxu0 0.0
    %2174 = vmatprep.subr.mxu0 0.0
    %2175 = vmatpush1.msra.mxu0 0.0
    %2176 = vmatprep.subr.mxu0 0.0
    %2177 = vmatpush1.msra.mxu0 0.0
    %2178 = vmatprep.subr.mxu0 0.0
    %2179 = vmatpush1.msra.mxu0 0.0
    %2180 = vmatprep.subr.mxu0 0.0
    %2181 = vmatpush1.msra.mxu0 0.0
    %2182 = vmatprep.subr.mxu0 0.0
    %2183 = vmatpush1.msra.mxu0 0.0
    %2184 = vmatprep.subr.mxu0 0.0
    %2185 = vmatpush1.msra.mxu0 0.0
    %2186 = vmatprep.subr.mxu0 0.0
    %2187 = vmatpush1.msra.mxu0 0.0
    %2188 = vmatprep.subr.mxu0 0.0
    %2189 = vmatpush1.msra.mxu0 0.0
    %2190 = vmatprep.subr.mxu0 0.0
    %2191 = vmatpush1.msra.mxu0 0.0
    %2192 = vmatprep.subr.mxu0 0.0
    %2193 = vmatpush1.msra.mxu0 0.0
    %2194 = vmatprep.subr.mxu0 0.0
    %2195 = vmatpush1.msra.mxu0 0.0
    %2196 = vmatprep.subr.mxu0 0.0
    %2197 = vmatpush1.msra.mxu0 0.0
    %2198 = vmatprep.subr.mxu0 0.0
    %2199 = vmatpush1.msra.mxu0 0.0
    %2200 = vmatprep.subr.mxu0 0.0
    %2201 = vmatpush1.msra.mxu0 0.0
    %2202 = vmatprep.subr.mxu0 0.0
    %2203 = vmatpush1.msra.mxu0 0.0
    %2204 = vmatprep.subr.mxu0 0.0
    %2205 = vmatpush1.msra.mxu0 0.0
    %2206 = vmatprep.subr.mxu0 0.0
    %2207 = vmatpush1.msra.mxu0 0.0
    %2208 = vmatprep.mubr.f32.mxu0 0.0
    %2209 = vmatmul.mubr.f32.gmra.mrb[0].mxu0 %v2002
    %v2210 = vpop.f32.mrb[0].mxu0
    %v2211 = vadd.f32 %v813, %v2210
    %v2212 = vpop.f32.mrb[0].mxu0
    %2213 = vdwg.mxu0
    %2214 = vmatprep.subr.mxu0 0.0
    %2215 = vmatpush1.msra.mxu0 %v140
    %2216 = vmatprep.subr.mxu0 0.0
    %2217 = vmatpush1.msra.mxu0 %v141
    %2218 = vmatprep.subr.mxu0 0.0
    %2219 = vmatpush1.msra.mxu0 %v142
    %2220 = vmatprep.subr.mxu0 0.0
    %2221 = vmatpush1.msra.mxu0 %v143
    %2222 = vmatprep.subr.mxu0 0.0
    %2223 = vmatpush1.msra.mxu0 0.0
    %2224 = vmatprep.subr.mxu0 0.0
    %2225 = vmatpush1.msra.mxu0 0.0
    %2226 = vmatprep.subr.mxu0 0.0
    %2227 = vmatpush1.msra.mxu0 0.0
    %2228 = vmatprep.subr.mxu0 0.0
    %2229 = vmatpush1.msra.mxu0 0.0
    %2230 = vmatprep.subr.mxu0 0.0
    %2231 = vmatpush1.msra.mxu0 0.0
    %2232 = vmatprep.subr.mxu0 0.0
    %2233 = vmatpush1.msra.mxu0 0.0
    %2234 = vmatprep.subr.mxu0 0.0
    %2235 = vmatpush1.msra.mxu0 0.0
    %2236 = vmatprep.subr.mxu0 0.0
    %2237 = vmatpush1.msra.mxu0 0.0
    %2238 = vmatprep.subr.mxu0 0.0
    %2239 = vmatpush1.msra.mxu0 0.0
    %2240 = vmatprep.subr.mxu0 0.0
    %2241 = vmatpush1.msra.mxu0 0.0
    %2242 = vmatprep.subr.mxu0 0.0
    %2243 = vmatpush1.msra.mxu0 0.0
    %2244 = vmatprep.subr.mxu0 0.0
    %2245 = vmatpush1.msra.mxu0 0.0
    %2246 = vmatprep.subr.mxu0 0.0
    %2247 = vmatpush1.msra.mxu0 0.0
    %2248 = vmatprep.subr.mxu0 0.0
    %2249 = vmatpush1.msra.mxu0 0.0
    %2250 = vmatprep.subr.mxu0 0.0
    %2251 = vmatpush1.msra.mxu0 0.0
    %2252 = vmatprep.subr.mxu0 0.0
    %2253 = vmatpush1.msra.mxu0 0.0
    %2254 = vmatprep.subr.mxu0 0.0
    %2255 = vmatpush1.msra.mxu0 0.0
    %2256 = vmatprep.subr.mxu0 0.0
    %2257 = vmatpush1.msra.mxu0 0.0
    %2258 = vmatprep.subr.mxu0 0.0
    %2259 = vmatpush1.msra.mxu0 0.0
    %2260 = vmatprep.subr.mxu0 0.0
    %2261 = vmatpush1.msra.mxu0 0.0
    %2262 = vmatprep.subr.mxu0 0.0
    %2263 = vmatpush1.msra.mxu0 0.0
    %2264 = vmatprep.subr.mxu0 0.0
    %2265 = vmatpush1.msra.mxu0 0.0
    %2266 = vmatprep.subr.mxu0 0.0
    %2267 = vmatpush1.msra.mxu0 0.0
    %2268 = vmatprep.subr.mxu0 0.0
    %2269 = vmatpush1.msra.mxu0 0.0
    %2270 = vmatprep.subr.mxu0 0.0
    %2271 = vmatpush1.msra.mxu0 0.0
    %2272 = vmatprep.subr.mxu0 0.0
    %2273 = vmatpush1.msra.mxu0 0.0
    %2274 = vmatprep.subr.mxu0 0.0
    %2275 = vmatpush1.msra.mxu0 0.0
    %2276 = vmatprep.subr.mxu0 0.0
    %2277 = vmatpush1.msra.mxu0 0.0
    %2278 = vmatprep.mubr.f32.mxu0 0.0
    %2279 = vmatmul.mubr.f32.gmra.mrb[0].mxu0 %v2002
    %v2280 = vpop.f32.mrb[0].mxu0
    %v2281 = vadd.f32 0.0, %v2280
    %v2282 = vpop.f32.mrb[0].mxu0
    %2283 = vdwg.mxu0
    %2284 = vmatprep.subr.mxu0 0.0
    %2285 = vmatpush1.msra.mxu0 %v144
    %2286 = vmatprep.subr.mxu0 0.0
    %2287 = vmatpush1.msra.mxu0 %v145
    %2288 = vmatprep.subr.mxu0 0.0
    %2289 = vmatpush1.msra.mxu0 %v146
    %2290 = vmatprep.subr.mxu0 0.0
    %2291 = vmatpush1.msra.mxu0 %v147
    %2292 = vmatprep.subr.mxu0 0.0
    %2293 = vmatpush1.msra.mxu0 0.0
    %2294 = vmatprep.subr.mxu0 0.0
    %2295 = vmatpush1.msra.mxu0 0.0
    %2296 = vmatprep.subr.mxu0 0.0
    %2297 = vmatpush1.msra.mxu0 0.0
    %2298 = vmatprep.subr.mxu0 0.0
    %2299 = vmatpush1.msra.mxu0 0.0
    %2300 = vmatprep.subr.mxu0 0.0
    %2301 = vmatpush1.msra.mxu0 0.0
    %2302 = vmatprep.subr.mxu0 0.0
    %2303 = vmatpush1.msra.mxu0 0.0
    %2304 = vmatprep.subr.mxu0 0.0
    %2305 = vmatpush1.msra.mxu0 0.0
    %2306 = vmatprep.subr.mxu0 0.0
    %2307 = vmatpush1.msra.mxu0 0.0
    %2308 = vmatprep.subr.mxu0 0.0
    %2309 = vmatpush1.msra.mxu0 0.0
    %2310 = vmatprep.subr.mxu0 0.0
    %2311 = vmatpush1.msra.mxu0 0.0
    %2312 = vmatprep.subr.mxu0 0.0
    %2313 = vmatpush1.msra.mxu0 0.0
    %2314 = vmatprep.subr.mxu0 0.0
    %2315 = vmatpush1.msra.mxu0 0.0
    %2316 = vmatprep.subr.mxu0 0.0
    %2317 = vmatpush1.msra.mxu0 0.0
    %2318 = vmatprep.subr.mxu0 0.0
    %2319 = vmatpush1.msra.mxu0 0.0
    %2320 = vmatprep.subr.mxu0 0.0
    %2321 = vmatpush1.msra.mxu0 0.0
    %2322 = vmatprep.subr.mxu0 0.0
    %2323 = vmatpush1.msra.mxu0 0.0
    %2324 = vmatprep.subr.mxu0 0.0
    %2325 = vmatpush1.msra.mxu0 0.0
    %2326 = vmatprep.subr.mxu0 0.0
    %2327 = vmatpush1.msra.mxu0 0.0
    %2328 = vmatprep.subr.mxu0 0.0
    %2329 = vmatpush1.msra.mxu0 0.0
    %2330 = vmatprep.subr.mxu0 0.0
    %2331 = vmatpush1.msra.mxu0 0.0
    %2332 = vmatprep.subr.mxu0 0.0
    %2333 = vmatpush1.msra.mxu0 0.0
    %2334 = vmatprep.subr.mxu0 0.0
    %2335 = vmatpush1.msra.mxu0 0.0
    %2336 = vmatprep.subr.mxu0 0.0
    %2337 = vmatpush1.msra.mxu0 0.0
    %2338 = vmatprep.subr.mxu0 0.0
    %2339 = vmatpush1.msra.mxu0 0.0
    %2340 = vmatprep.subr.mxu0 0.0
    %2341 = vmatpush1.msra.mxu0 0.0
    %2342 = vmatprep.subr.mxu0 0.0
    %2343 = vmatpush1.msra.mxu0 0.0
    %2344 = vmatprep.subr.mxu0 0.0
    %2345 = vmatpush1.msra.mxu0 0.0
    %2346 = vmatprep.subr.mxu0 0.0
    %2347 = vmatpush1.msra.mxu0 0.0
    %2348 = vmatprep.mubr.f32.mxu0 0.0
    %2349 = vmatmul.mubr.f32.gmra.mrb[0].mxu0 %v2002
    %v2350 = vpop.f32.mrb[0].mxu0
    %v2351 = vadd.f32 0.0, %v2350
    %v2352 = vpop.f32.mrb[0].mxu0
    %2353 = vdwg.mxu0
    %v2354 = vadd.f32 %v253, %v2281
    %v2355 = vsub.f32 0.0, %v2354
    %v2356 = vmul.f32 %v2355, 1.442695
    %v2357 = vpow.pop %v2356
    %v2358 = vadd.f32 %v2357, 1.0
    %v2359 = vrcp.pop %v2358
    %v2360 = vmul.f32 1.0, %v2359
    %v2361 = vadd.f32 %v332, %v2351
    %v2362 = vsub.f32 0.0, %v2361
    %v2363 = vmul.f32 %v2362, 1.442695
    %v2364 = vpow.pop %v2363
    %v2365 = vadd.f32 %v2364, 1.0
    %v2366 = vrcp.pop %v2365
    %v2367 = vmul.f32 1.0, %v2366
    %2368 = vmatprep.subr.mxu0 0.0
    %2369 = vmatpush1.msra.mxu0 %v148
    %2370 = vmatprep.subr.mxu0 0.0
    %2371 = vmatpush1.msra.mxu0 %v149
    %2372 = vmatprep.subr.mxu0 0.0
    %2373 = vmatpush1.msra.mxu0 %v150
    %2374 = vmatprep.subr.mxu0 0.0
    %2375 = vmatpush1.msra.mxu0 %v151
    %2376 = vmatprep.subr.mxu0 0.0
    %2377 = vmatpush1.msra.mxu0 0.0
    %2378 = vmatprep.subr.mxu0 0.0
    %2379 = vmatpush1.msra.mxu0 0.0
    %2380 = vmatprep.subr.mxu0 0.0
    %2381 = vmatpush1.msra.mxu0 0.0
    %2382 = vmatprep.subr.mxu0 0.0
    %2383 = vmatpush1.msra.mxu0 0.0
    %2384 = vmatprep.subr.mxu0 0.0
    %2385 = vmatpush1.msra.mxu0 0.0
    %2386 = vmatprep.subr.mxu0 0.0
    %2387 = vmatpush1.msra.mxu0 0.0
    %2388 = vmatprep.subr.mxu0 0.0
    %2389 = vmatpush1.msra.mxu0 0.0
    %2390 = vmatprep.subr.mxu0 0.0
    %2391 = vmatpush1.msra.mxu0 0.0
    %2392 = vmatprep.subr.mxu0 0.0
    %2393 = vmatpush1.msra.mxu0 0.0
    %2394 = vmatprep.subr.mxu0 0.0
    %2395 = vmatpush1.msra.mxu0 0.0
    %2396 = vmatprep.subr.mxu0 0.0
    %2397 = vmatpush1.msra.mxu0 0.0
    %2398 = vmatprep.subr.mxu0 0.0
    %2399 = vmatpush1.msra.mxu0 0.0
    %2400 = vmatprep.subr.mxu0 0.0
    %2401 = vmatpush1.msra.mxu0 0.0
    %2402 = vmatprep.subr.mxu0 0.0
    %2403 = vmatpush1.msra.mxu0 0.0
    %2404 = vmatprep.subr.mxu0 0.0
    %2405 = vmatpush1.msra.mxu0 0.0
    %2406 = vmatprep.subr.mxu0 0.0
    %2407 = vmatpush1.msra.mxu0 0.0
    %2408 = vmatprep.subr.mxu0 0.0
    %2409 = vmatpush1.msra.mxu0 0.0
    %2410 = vmatprep.subr.mxu0 0.0
    %2411 = vmatpush1.msra.mxu0 0.0
    %2412 = vmatprep.subr.mxu0 0.0
    %2413 = vmatpush1.msra.mxu0 0.0
    %2414 = vmatprep.subr.mxu0 0.0
    %2415 = vmatpush1.msra.mxu0 0.0
    %2416 = vmatprep.subr.mxu0 0.0
    %2417 = vmatpush1.msra.mxu0 0.0
    %2418 = vmatprep.subr.mxu0 0.0
    %2419 = vmatpush1.msra.mxu0 0.0
    %2420 = vmatprep.subr.mxu0 0.0
    %2421 = vmatpush1.msra.mxu0 0.0
    %2422 = vmatprep.subr.mxu0 0.0
    %2423 = vmatpush1.msra.mxu0 0.0
    %2424 = vmatprep.subr.mxu0 0.0
    %2425 = vmatpush1.msra.mxu0 0.0
    %2426 = vmatprep.subr.mxu0 0.0
    %2427 = vmatpush1.msra.mxu0 0.0
    %2428 = vmatprep.subr.mxu0 0.0
    %2429 = vmatpush1.msra.mxu0 0.0
    %2430 = vmatprep.subr.mxu0 0.0
    %2431 = vmatpush1.msra.mxu0 0.0
    %2432 = vmatprep.mubr.f32.mxu0 0.0
    %2433 = vmatmul.mubr.f32.gmra.mrb[0].mxu0 %v2002
    %v2434 = vpop.f32.mrb[0].mxu0
    %v2435 = vadd.f32 %v576, %v2434
    %v2436 = vpop.f32.mrb[0].mxu0
    %2437 = vdwg.mxu0
    %v2438 = vmul.f32 %v2360, %v2435
    %v2439 = vadd.f32 %v411, %v2438
    %v2440 = vtanh.pop %v2439
    %v2441 = vsub.f32 %v2000, %v2440
    %v2442 = vmul.f32 %v2367, %v2441
    %v2443 = vadd.f32 %v2440, %v2442
    %v2445 = vsel %vm414, %v2443, 0
    %2447 = vmatprep.subr.mxu0 0.0
    %2448 = vmatpush1.msra.mxu0 %v152
    %2449 = vmatprep.subr.mxu0 0.0
    %2450 = vmatpush1.msra.mxu0 %v153
    %2451 = vmatprep.subr.mxu0 0.0
    %2452 = vmatpush1.msra.mxu0 %v154
    %2453 = vmatprep.subr.mxu0 0.0
    %2454 = vmatpush1.msra.mxu0 %v155
    %2455 = vmatprep.subr.mxu0 0.0
    %2456 = vmatpush1.msra.mxu0 0.0
    %2457 = vmatprep.subr.mxu0 0.0
    %2458 = vmatpush1.msra.mxu0 0.0
    %2459 = vmatprep.subr.mxu0 0.0
    %2460 = vmatpush1.msra.mxu0 0.0
    %2461 = vmatprep.subr.mxu0 0.0
    %2462 = vmatpush1.msra.mxu0 0.0
    %2463 = vmatprep.subr.mxu0 0.0
    %2464 = vmatpush1.msra.mxu0 0.0
    %2465 = vmatprep.subr.mxu0 0.0
    %2466 = vmatpush1.msra.mxu0 0.0
    %2467 = vmatprep.subr.mxu0 0.0
    %2468 = vmatpush1.msra.mxu0 0.0
    %2469 = vmatprep.subr.mxu0 0.0
    %2470 = vmatpush1.msra.mxu0 0.0
    %2471 = vmatprep.subr.mxu0 0.0
    %2472 = vmatpush1.msra.mxu0 0.0
    %2473 = vmatprep.subr.mxu0 0.0
    %2474 = vmatpush1.msra.mxu0 0.0
    %2475 = vmatprep.subr.mxu0 0.0
    %2476 = vmatpush1.msra.mxu0 0.0
    %2477 = vmatprep.subr.mxu0 0.0
    %2478 = vmatpush1.msra.mxu0 0.0
    %2479 = vmatprep.subr.mxu0 0.0
    %2480 = vmatpush1.msra.mxu0 0.0
    %2481 = vmatprep.subr.mxu0 0.0
    %2482 = vmatpush1.msra.mxu0 0.0
    %2483 = vmatprep.subr.mxu0 0.0
    %2484 = vmatpush1.msra.mxu0 0.0
    %2485 = vmatprep.subr.mxu0 0.0
    %2486 = vmatpush1.msra.mxu0 0.0
    %2487 = vmatprep.subr.mxu0 0.0
    %2488 = vmatpush1.msra.mxu0 0.0
    %2489 = vmatprep.subr.mxu0 0.0
    %2490 = vmatpush1.msra.mxu0 0.0
    %2491 = vmatprep.subr.mxu0 0.0
    %2492 = vmatpush1.msra.mxu0 0.0
    %2493 = vmatprep.subr.mxu0 0.0
    %2494 = vmatpush1.msra.mxu0 0.0
    %2495 = vmatprep.subr.mxu0 0.0
    %2496 = vmatpush1.msra.mxu0 0.0
    %2497 = vmatprep.subr.mxu0 0.0
    %2498 = vmatpush1.msra.mxu0 0.0
    %2499 = vmatprep.subr.mxu0 0.0
    %2500 = vmatpush1.msra.mxu0 0.0
    %2501 = vmatprep.subr.mxu0 0.0
    %2502 = vmatpush1.msra.mxu0 0.0
    %2503 = vmatprep.subr.mxu0 0.0
    %2504 = vmatpush1.msra.mxu0 0.0
    %2505 = vmatprep.subr.mxu0 0.0
    %2506 = vmatpush1.msra.mxu0 0.0
    %2507 = vmatprep.subr.mxu0 0.0
    %2508 = vmatpush1.msra.mxu0 0.0
    %2509 = vmatprep.subr.mxu0 0.0
    %2510 = vmatpush1.msra.mxu0 0.0
    %2511 = vmatprep.mubr.f32.mxu0 0.0
    %2512 = vmatmul.mubr.f32.gmra.mrb[0].mxu0 %v2445
    %v2513 = vpop.f32.mrb[0].mxu0
    %v2514 = vadd.f32 %v658, %v2513
    %v2515 = vpop.f32.mrb[0].mxu0
    %2516 = vdwg.mxu0
    %2517 = vmatprep.subr.mxu0 0.0
    %2518 = vmatpush1.msra.mxu0 %v156
    %2519 = vmatprep.subr.mxu0 0.0
    %2520 = vmatpush1.msra.mxu0 %v157
    %2521 = vmatprep.subr.mxu0 0.0
    %2522 = vmatpush1.msra.mxu0 %v158
    %2523 = vmatprep.subr.mxu0 0.0
    %2524 = vmatpush1.msra.mxu0 %v159
    %2525 = vmatprep.subr.mxu0 0.0
    %2526 = vmatpush1.msra.mxu0 0.0
    %2527 = vmatprep.subr.mxu0 0.0
    %2528 = vmatpush1.msra.mxu0 0.0
    %2529 = vmatprep.subr.mxu0 0.0
    %2530 = vmatpush1.msra.mxu0 0.0
    %2531 = vmatprep.subr.mxu0 0.0
    %2532 = vmatpush1.msra.mxu0 0.0
    %2533 = vmatprep.subr.mxu0 0.0
    %2534 = vmatpush1.msra.mxu0 0.0
    %2535 = vmatprep.subr.mxu0 0.0
    %2536 = vmatpush1.msra.mxu0 0.0
    %2537 = vmatprep.subr.mxu0 0.0
    %2538 = vmatpush1.msra.mxu0 0.0
    %2539 = vmatprep.subr.mxu0 0.0
    %2540 = vmatpush1.msra.mxu0 0.0
    %2541 = vmatprep.subr.mxu0 0.0
    %2542 = vmatpush1.msra.mxu0 0.0
    %2543 = vmatprep.subr.mxu0 0.0
    %2544 = vmatpush1.msra.mxu0 0.0
    %2545 = vmatprep.subr.mxu0 0.0
    %2546 = vmatpush1.msra.mxu0 0.0
    %2547 = vmatprep.subr.mxu0 0.0
    %2548 = vmatpush1.msra.mxu0 0.0
    %2549 = vmatprep.subr.mxu0 0.0
    %2550 = vmatpush1.msra.mxu0 0.0
    %2551 = vmatprep.subr.mxu0 0.0
    %2552 = vmatpush1.msra.mxu0 0.0
    %2553 = vmatprep.subr.mxu0 0.0
    %2554 = vmatpush1.msra.mxu0 0.0
    %2555 = vmatprep.subr.mxu0 0.0
    %2556 = vmatpush1.msra.mxu0 0.0
    %2557 = vmatprep.subr.mxu0 0.0
    %2558 = vmatpush1.msra.mxu0 0.0
    %2559 = vmatprep.subr.mxu0 0.0
    %2560 = vmatpush1.msra.mxu0 0.0
    %2561 = vmatprep.subr.mxu0 0.0
    %2562 = vmatpush1.msra.mxu0 0.0
    %2563 = vmatprep.subr.mxu0 0.0
    %2564 = vmatpush1.msra.mxu0 0.0
    %2565 = vmatprep.subr.mxu0 0.0
    %2566 = vmatpush1.msra.mxu0 0.0
    %2567 = vmatprep.subr.mxu0 0.0
    %2568 = vmatpush1.msra.mxu0 0.0
    %2569 = vmatprep.subr.mxu0 0.0
    %2570 = vmatpush1.msra.mxu0 0.0
    %2571 = vmatprep.subr.mxu0 0.0
    %2572 = vmatpush1.msra.mxu0 0.0
    %2573 = vmatprep.subr.mxu0 0.0
    %2574 = vmatpush1.msra.mxu0 0.0
    %2575 = vmatprep.subr.mxu0 0.0
    %2576 = vmatpush1.msra.mxu0 0.0
    %2577 = vmatprep.subr.mxu0 0.0
    %2578 = vmatpush1.msra.mxu0 0.0
    %2579 = vmatprep.subr.mxu0 0.0
    %2580 = vmatpush1.msra.mxu0 0.0
    %2581 = vmatprep.mubr.f32.mxu0 0.0
    %2582 = vmatmul.mubr.f32.gmra.mrb[0].mxu0 %v2445
    %v2583 = vpop.f32.mrb[0].mxu0
    %v2584 = vadd.f32 %v737, %v2583
    %v2585 = vpop.f32.mrb[0].mxu0
    %2586 = vdwg.mxu0
    %2587 = vmatprep.subr.mxu0 0.0
    %2588 = vmatpush1.msra.mxu0 %v160
    %2589 = vmatprep.subr.mxu0 0.0
    %2590 = vmatpush1.msra.mxu0 %v161
    %2591 = vmatprep.subr.mxu0 0.0
    %2592 = vmatpush1.msra.mxu0 %v162
    %2593 = vmatprep.subr.mxu0 0.0
    %2594 = vmatpush1.msra.mxu0 %v163
    %2595 = vmatprep.subr.mxu0 0.0
    %2596 = vmatpush1.msra.mxu0 0.0
    %2597 = vmatprep.subr.mxu0 0.0
    %2598 = vmatpush1.msra.mxu0 0.0
    %2599 = vmatprep.subr.mxu0 0.0
    %2600 = vmatpush1.msra.mxu0 0.0
    %2601 = vmatprep.subr.mxu0 0.0
    %2602 = vmatpush1.msra.mxu0 0.0
    %2603 = vmatprep.subr.mxu0 0.0
    %2604 = vmatpush1.msra.mxu0 0.0
    %2605 = vmatprep.subr.mxu0 0.0
    %2606 = vmatpush1.msra.mxu0 0.0
    %2607 = vmatprep.subr.mxu0 0.0
    %2608 = vmatpush1.msra.mxu0 0.0
    %2609 = vmatprep.subr.mxu0 0.0
    %2610 = vmatpush1.msra.mxu0 0.0
    %2611 = vmatprep.subr.mxu0 0.0
    %2612 = vmatpush1.msra.mxu0 0.0
    %2613 = vmatprep.subr.mxu0 0.0
    %2614 = vmatpush1.msra.mxu0 0.0
    %2615 = vmatprep.subr.mxu0 0.0
    %2616 = vmatpush1.msra.mxu0 0.0
    %2617 = vmatprep.subr.mxu0 0.0
    %2618 = vmatpush1.msra.mxu0 0.0
    %2619 = vmatprep.subr.mxu0 0.0
    %2620 = vmatpush1.msra.mxu0 0.0
    %2621 = vmatprep.subr.mxu0 0.0
    %2622 = vmatpush1.msra.mxu0 0.0
    %2623 = vmatprep.subr.mxu0 0.0
    %2624 = vmatpush1.msra.mxu0 0.0
    %2625 = vmatprep.subr.mxu0 0.0
    %2626 = vmatpush1.msra.mxu0 0.0
    %2627 = vmatprep.subr.mxu0 0.0
    %2628 = vmatpush1.msra.mxu0 0.0
    %2629 = vmatprep.subr.mxu0 0.0
    %2630 = vmatpush1.msra.mxu0 0.0
    %2631 = vmatprep.subr.mxu0 0.0
    %2632 = vmatpush1.msra.mxu0 0.0
    %2633 = vmatprep.subr.mxu0 0.0
    %2634 = vmatpush1.msra.mxu0 0.0
    %2635 = vmatprep.subr.mxu0 0.0
    %2636 = vmatpush1.msra.mxu0 0.0
    %2637 = vmatprep.subr.mxu0 0.0
    %2638 = vmatpush1.msra.mxu0 0.0
    %2639 = vmatprep.subr.mxu0 0.0
    %2640 = vmatpush1.msra.mxu0 0.0
    %2641 = vmatprep.subr.mxu0 0.0
    %2642 = vmatpush1.msra.mxu0 0.0
    %2643 = vmatprep.subr.mxu0 0.0
    %2644 = vmatpush1.msra.mxu0 0.0
    %2645 = vmatprep.subr.mxu0 0.0
    %2646 = vmatpush1.msra.mxu0 0.0
    %2647 = vmatprep.subr.mxu0 0.0
    %2648 = vmatpush1.msra.mxu0 0.0
    %2649 = vmatprep.subr.mxu0 0.0
    %2650 = vmatpush1.msra.mxu0 0.0
    %2651 = vmatprep.mubr.f32.mxu0 0.0
    %2652 = vmatmul.mubr.f32.gmra.mrb[0].mxu0 %v2445
    %v2653 = vpop.f32.mrb[0].mxu0
    %v2654 = vadd.f32 %v813, %v2653
    %v2655 = vpop.f32.mrb[0].mxu0
    %2656 = vdwg.mxu0
    %2657 = vmatprep.subr.mxu0 0.0
    %2658 = vmatpush1.msra.mxu0 %v140
    %2659 = vmatprep.subr.mxu0 0.0
    %2660 = vmatpush1.msra.mxu0 %v141
    %2661 = vmatprep.subr.mxu0 0.0
    %2662 = vmatpush1.msra.mxu0 %v142
    %2663 = vmatprep.subr.mxu0 0.0
    %2664 = vmatpush1.msra.mxu0 %v143
    %2665 = vmatprep.subr.mxu0 0.0
    %2666 = vmatpush1.msra.mxu0 0.0
    %2667 = vmatprep.subr.mxu0 0.0
    %2668 = vmatpush1.msra.mxu0 0.0
    %2669 = vmatprep.subr.mxu0 0.0
    %2670 = vmatpush1.msra.mxu0 0.0
    %2671 = vmatprep.subr.mxu0 0.0
    %2672 = vmatpush1.msra.mxu0 0.0
    %2673 = vmatprep.subr.mxu0 0.0
    %2674 = vmatpush1.msra.mxu0 0.0
    %2675 = vmatprep.subr.mxu0 0.0
    %2676 = vmatpush1.msra.mxu0 0.0
    %2677 = vmatprep.subr.mxu0 0.0
    %2678 = vmatpush1.msra.mxu0 0.0
    %2679 = vmatprep.subr.mxu0 0.0
    %2680 = vmatpush1.msra.mxu0 0.0
    %2681 = vmatprep.subr.mxu0 0.0
    %2682 = vmatpush1.msra.mxu0 0.0
    %2683 = vmatprep.subr.mxu0 0.0
    %2684 = vmatpush1.msra.mxu0 0.0
    %2685 = vmatprep.subr.mxu0 0.0
    %2686 = vmatpush1.msra.mxu0 0.0
    %2687 = vmatprep.subr.mxu0 0.0
    %2688 = vmatpush1.msra.mxu0 0.0
    %2689 = vmatprep.subr.mxu0 0.0
    %2690 = vmatpush1.msra.mxu0 0.0
    %2691 = vmatprep.subr.mxu0 0.0
    %2692 = vmatpush1.msra.mxu0 0.0
    %2693 = vmatprep.subr.mxu0 0.0
    %2694 = vmatpush1.msra.mxu0 0.0
    %2695 = vmatprep.subr.mxu0 0.0
    %2696 = vmatpush1.msra.mxu0 0.0
    %2697 = vmatprep.subr.mxu0 0.0
    %2698 = vmatpush1.msra.mxu0 0.0
    %2699 = vmatprep.subr.mxu0 0.0
    %2700 = vmatpush1.msra.mxu0 0.0
    %2701 = vmatprep.subr.mxu0 0.0
    %2702 = vmatpush1.msra.mxu0 0.0
    %2703 = vmatprep.subr.mxu0 0.0
    %2704 = vmatpush1.msra.mxu0 0.0
    %2705 = vmatprep.subr.mxu0 0.0
    %2706 = vmatpush1.msra.mxu0 0.0
    %2707 = vmatprep.subr.mxu0 0.0
    %2708 = vmatpush1.msra.mxu0 0.0
    %2709 = vmatprep.subr.mxu0 0.0
    %2710 = vmatpush1.msra.mxu0 0.0
    %2711 = vmatprep.subr.mxu0 0.0
    %2712 = vmatpush1.msra.mxu0 0.0
    %2713 = vmatprep.subr.mxu0 0.0
    %2714 = vmatpush1.msra.mxu0 0.0
    %2715 = vmatprep.subr.mxu0 0.0
    %2716 = vmatpush1.msra.mxu0 0.0
    %2717 = vmatprep.subr.mxu0 0.0
    %2718 = vmatpush1.msra.mxu0 0.0
    %2719 = vmatprep.subr.mxu0 0.0
    %2720 = vmatpush1.msra.mxu0 0.0
    %2721 = vmatprep.mubr.f32.mxu0 0.0
    %2722 = vmatmul.mubr.f32.gmra.mrb[0].mxu0 %v2445
    %v2723 = vpop.f32.mrb[0].mxu0
    %v2724 = vadd.f32 0.0, %v2723
    %v2725 = vpop.f32.mrb[0].mxu0
    %2726 = vdwg.mxu0
    %2727 = vmatprep.subr.mxu0 0.0
    %2728 = vmatpush1.msra.mxu0 %v144
    %2729 = vmatprep.subr.mxu0 0.0
    %2730 = vmatpush1.msra.mxu0 %v145
    %2731 = vmatprep.subr.mxu0 0.0
    %2732 = vmatpush1.msra.mxu0 %v146
    %2733 = vmatprep.subr.mxu0 0.0
    %2734 = vmatpush1.msra.mxu0 %v147
    %2735 = vmatprep.subr.mxu0 0.0
    %2736 = vmatpush1.msra.mxu0 0.0
    %2737 = vmatprep.subr.mxu0 0.0
    %2738 = vmatpush1.msra.mxu0 0.0
    %2739 = vmatprep.subr.mxu0 0.0
    %2740 = vmatpush1.msra.mxu0 0.0
    %2741 = vmatprep.subr.mxu0 0.0
    %2742 = vmatpush1.msra.mxu0 0.0
    %2743 = vmatprep.subr.mxu0 0.0
    %2744 = vmatpush1.msra.mxu0 0.0
    %2745 = vmatprep.subr.mxu0 0.0
    %2746 = vmatpush1.msra.mxu0 0.0
    %2747 = vmatprep.subr.mxu0 0.0
    %2748 = vmatpush1.msra.mxu0 0.0
    %2749 = vmatprep.subr.mxu0 0.0
    %2750 = vmatpush1.msra.mxu0 0.0
    %2751 = vmatprep.subr.mxu0 0.0
    %2752 = vmatpush1.msra.mxu0 0.0
    %2753 = vmatprep.subr.mxu0 0.0
    %2754 = vmatpush1.msra.mxu0 0.0
    %2755 = vmatprep.subr.mxu0 0.0
    %2756 = vmatpush1.msra.mxu0 0.0
    %2757 = vmatprep.subr.mxu0 0.0
    %2758 = vmatpush1.msra.mxu0 0.0
    %2759 = vmatprep.subr.mxu0 0.0
    %2760 = vmatpush1.msra.mxu0 0.0
    %2761 = vmatprep.subr.mxu0 0.0
    %2762 = vmatpush1.msra.mxu0 0.0
    %2763 = vmatprep.subr.mxu0 0.0
    %2764 = vmatpush1.msra.mxu0 0.0
    %2765 = vmatprep.subr.mxu0 0.0
    %2766 = vmatpush1.msra.mxu0 0.0
    %2767 = vmatprep.subr.mxu0 0.0
    %2768 = vmatpush1.msra.mxu0 0.0
    %2769 = vmatprep.subr.mxu0 0.0
    %2770 = vmatpush1.msra.mxu0 0.0
    %2771 = vmatprep.subr.mxu0 0.0
    %2772 = vmatpush1.msra.mxu0 0.0
    %2773 = vmatprep.subr.mxu0 0.0
    %2774 = vmatpush1.msra.mxu0 0.0
    %2775 = vmatprep.subr.mxu0 0.0
    %2776 = vmatpush1.msra.mxu0 0.0
    %2777 = vmatprep.subr.mxu0 0.0
    %2778 = vmatpush1.msra.mxu0 0.0
    %2779 = vmatprep.subr.mxu0 0.0
    %2780 = vmatpush1.msra.mxu0 0.0
    %2781 = vmatprep.subr.mxu0 0.0
    %2782 = vmatpush1.msra.mxu0 0.0
    %2783 = vmatprep.subr.mxu0 0.0
    %2784 = vmatpush1.msra.mxu0 0.0
    %2785 = vmatprep.subr.mxu0 0.0
    %2786 = vmatpush1.msra.mxu0 0.0
    %2787 = vmatprep.subr.mxu0 0.0
    %2788 = vmatpush1.msra.mxu0 0.0
    %2789 = vmatprep.subr.mxu0 0.0
    %2790 = vmatpush1.msra.mxu0 0.0
    %2791 = vmatprep.mubr.f32.mxu0 0.0
    %2792 = vmatmul.mubr.f32.gmra.mrb[0].mxu0 %v2445
    %v2793 = vpop.f32.mrb[0].mxu0
    %v2794 = vadd.f32 0.0, %v2793
    %v2795 = vpop.f32.mrb[0].mxu0
    %2796 = vdwg.mxu0
    %v2797 = vadd.f32 %v253, %v2724
    %v2798 = vsub.f32 0.0, %v2797
    %v2799 = vmul.f32 %v2798, 1.442695
    %v2800 = vpow.pop %v2799
    %v2801 = vadd.f32 %v2800, 1.0
    %v2802 = vrcp.pop %v2801
    %v2803 = vmul.f32 1.0, %v2802
    %v2804 = vadd.f32 %v332, %v2794
    %v2805 = vsub.f32 0.0, %v2804
    %v2806 = vmul.f32 %v2805, 1.442695
    %v2807 = vpow.pop %v2806
    %v2808 = vadd.f32 %v2807, 1.0
    %v2809 = vrcp.pop %v2808
    %v2810 = vmul.f32 1.0, %v2809
    %2811 = vmatprep.subr.mxu0 0.0
    %2812 = vmatpush1.msra.mxu0 %v148
    %2813 = vmatprep.subr.mxu0 0.0
    %2814 = vmatpush1.msra.mxu0 %v149
    %2815 = vmatprep.subr.mxu0 0.0
    %2816 = vmatpush1.msra.mxu0 %v150
    %2817 = vmatprep.subr.mxu0 0.0
    %2818 = vmatpush1.msra.mxu0 %v151
    %2819 = vmatprep.subr.mxu0 0.0
    %2820 = vmatpush1.msra.mxu0 0.0
    %2821 = vmatprep.subr.mxu0 0.0
    %2822 = vmatpush1.msra.mxu0 0.0
    %2823 = vmatprep.subr.mxu0 0.0
    %2824 = vmatpush1.msra.mxu0 0.0
    %2825 = vmatprep.subr.mxu0 0.0
    %2826 = vmatpush1.msra.mxu0 0.0
    %2827 = vmatprep.subr.mxu0 0.0
    %2828 = vmatpush1.msra.mxu0 0.0
    %2829 = vmatprep.subr.mxu0 0.0
    %2830 = vmatpush1.msra.mxu0 0.0
    %2831 = vmatprep.subr.mxu0 0.0
    %2832 = vmatpush1.msra.mxu0 0.0
    %2833 = vmatprep.subr.mxu0 0.0
    %2834 = vmatpush1.msra.mxu0 0.0
    %2835 = vmatprep.subr.mxu0 0.0
    %2836 = vmatpush1.msra.mxu0 0.0
    %2837 = vmatprep.subr.mxu0 0.0
    %2838 = vmatpush1.msra.mxu0 0.0
    %2839 = vmatprep.subr.mxu0 0.0
    %2840 = vmatpush1.msra.mxu0 0.0
    %2841 = vmatprep.subr.mxu0 0.0
    %2842 = vmatpush1.msra.mxu0 0.0
    %2843 = vmatprep.subr.mxu0 0.0
    %2844 = vmatpush1.msra.mxu0 0.0
    %2845 = vmatprep.subr.mxu0 0.0
    %2846 = vmatpush1.msra.mxu0 0.0
    %2847 = vmatprep.subr.mxu0 0.0
    %2848 = vmatpush1.msra.mxu0 0.0
    %2849 = vmatprep.subr.mxu0 0.0
    %2850 = vmatpush1.msra.mxu0 0.0
    %2851 = vmatprep.subr.mxu0 0.0
    %2852 = vmatpush1.msra.mxu0 0.0
    %2853 = vmatprep.subr.mxu0 0.0
    %2854 = vmatpush1.msra.mxu0 0.0
    %2855 = vmatprep.subr.mxu0 0.0
    %2856 = vmatpush1.msra.mxu0 0.0
    %2857 = vmatprep.subr.mxu0 0.0
    %2858 = vmatpush1.msra.mxu0 0.0
    %2859 = vmatprep.subr.mxu0 0.0
    %2860 = vmatpush1.msra.mxu0 0.0
    %2861 = vmatprep.subr.mxu0 0.0
    %2862 = vmatpush1.msra.mxu0 0.0
    %2863 = vmatprep.subr.mxu0 0.0
    %2864 = vmatpush1.msra.mxu0 0.0
    %2865 = vmatprep.subr.mxu0 0.0
    %2866 = vmatpush1.msra.mxu0 0.0
    %2867 = vmatprep.subr.mxu0 0.0
    %2868 = vmatpush1.msra.mxu0 0.0
    %2869 = vmatprep.subr.mxu0 0.0
    %2870 = vmatpush1.msra.mxu0 0.0
    %2871 = vmatprep.subr.mxu0 0.0
    %2872 = vmatpush1.msra.mxu0 0.0
    %2873 = vmatprep.subr.mxu0 0.0
    %2874 = vmatpush1.msra.mxu0 0.0
    %2875 = vmatprep.mubr.f32.mxu0 0.0
    %2876 = vmatmul.mubr.f32.gmra.mrb[0].mxu0 %v2445
    %v2877 = vpop.f32.mrb[0].mxu0
    %v2878 = vadd.f32 %v576, %v2877
    %v2879 = vpop.f32.mrb[0].mxu0
    %2880 = vdwg.mxu0
    %v2881 = vmul.f32 %v2803, %v2878
    %v2882 = vadd.f32 %v411, %v2881
    %v2883 = vtanh.pop %v2882
    %v2884 = vsub.f32 %v2443, %v2883
    %v2885 = vmul.f32 %v2810, %v2884
    %v2886 = vadd.f32 %v2883, %v2885
    %v2888 = vsel %vm414, %v2886, 0
    %2890 = vmatprep.subr.mxu0 0.0
    %2891 = vmatpush1.msra.mxu0 %v152
    %2892 = vmatprep.subr.mxu0 0.0
    %2893 = vmatpush1.msra.mxu0 %v153
    %2894 = vmatprep.subr.mxu0 0.0
    %2895 = vmatpush1.msra.mxu0 %v154
    %2896 = vmatprep.subr.mxu0 0.0
    %2897 = vmatpush1.msra.mxu0 %v155
    %2898 = vmatprep.subr.mxu0 0.0
    %2899 = vmatpush1.msra.mxu0 0.0
    %2900 = vmatprep.subr.mxu0 0.0
    %2901 = vmatpush1.msra.mxu0 0.0
    %2902 = vmatprep.subr.mxu0 0.0
    %2903 = vmatpush1.msra.mxu0 0.0
    %2904 = vmatprep.subr.mxu0 0.0
    %2905 = vmatpush1.msra.mxu0 0.0
    %2906 = vmatprep.subr.mxu0 0.0
    %2907 = vmatpush1.msra.mxu0 0.0
    %2908 = vmatprep.subr.mxu0 0.0
    %2909 = vmatpush1.msra.mxu0 0.0
    %2910 = vmatprep.subr.mxu0 0.0
    %2911 = vmatpush1.msra.mxu0 0.0
    %2912 = vmatprep.subr.mxu0 0.0
    %2913 = vmatpush1.msra.mxu0 0.0
    %2914 = vmatprep.subr.mxu0 0.0
    %2915 = vmatpush1.msra.mxu0 0.0
    %2916 = vmatprep.subr.mxu0 0.0
    %2917 = vmatpush1.msra.mxu0 0.0
    %2918 = vmatprep.subr.mxu0 0.0
    %2919 = vmatpush1.msra.mxu0 0.0
    %2920 = vmatprep.subr.mxu0 0.0
    %2921 = vmatpush1.msra.mxu0 0.0
    %2922 = vmatprep.subr.mxu0 0.0
    %2923 = vmatpush1.msra.mxu0 0.0
    %2924 = vmatprep.subr.mxu0 0.0
    %2925 = vmatpush1.msra.mxu0 0.0
    %2926 = vmatprep.subr.mxu0 0.0
    %2927 = vmatpush1.msra.mxu0 0.0
    %2928 = vmatprep.subr.mxu0 0.0
    %2929 = vmatpush1.msra.mxu0 0.0
    %2930 = vmatprep.subr.mxu0 0.0
    %2931 = vmatpush1.msra.mxu0 0.0
    %2932 = vmatprep.subr.mxu0 0.0
    %2933 = vmatpush1.msra.mxu0 0.0
    %2934 = vmatprep.subr.mxu0 0.0
    %2935 = vmatpush1.msra.mxu0 0.0
    %2936 = vmatprep.subr.mxu0 0.0
    %2937 = vmatpush1.msra.mxu0 0.0
    %2938 = vmatprep.subr.mxu0 0.0
    %2939 = vmatpush1.msra.mxu0 0.0
    %2940 = vmatprep.subr.mxu0 0.0
    %2941 = vmatpush1.msra.mxu0 0.0
    %2942 = vmatprep.subr.mxu0 0.0
    %2943 = vmatpush1.msra.mxu0 0.0
    %2944 = vmatprep.subr.mxu0 0.0
    %2945 = vmatpush1.msra.mxu0 0.0
    %2946 = vmatprep.subr.mxu0 0.0
    %2947 = vmatpush1.msra.mxu0 0.0
    %2948 = vmatprep.subr.mxu0 0.0
    %2949 = vmatpush1.msra.mxu0 0.0
    %2950 = vmatprep.subr.mxu0 0.0
    %2951 = vmatpush1.msra.mxu0 0.0
    %2952 = vmatprep.subr.mxu0 0.0
    %2953 = vmatpush1.msra.mxu0 0.0
    %2954 = vmatprep.mubr.f32.mxu0 0.0
    %2955 = vmatmul.mubr.f32.gmra.mrb[0].mxu0 %v2888
    %v2956 = vpop.f32.mrb[0].mxu0
    %v2957 = vadd.f32 %v658, %v2956
    %v2958 = vpop.f32.mrb[0].mxu0
    %2959 = vdwg.mxu0
    %2960 = vmatprep.subr.mxu0 0.0
    %2961 = vmatpush1.msra.mxu0 %v156
    %2962 = vmatprep.subr.mxu0 0.0
    %2963 = vmatpush1.msra.mxu0 %v157
    %2964 = vmatprep.subr.mxu0 0.0
    %2965 = vmatpush1.msra.mxu0 %v158
    %2966 = vmatprep.subr.mxu0 0.0
    %2967 = vmatpush1.msra.mxu0 %v159
    %2968 = vmatprep.subr.mxu0 0.0
    %2969 = vmatpush1.msra.mxu0 0.0
    %2970 = vmatprep.subr.mxu0 0.0
    %2971 = vmatpush1.msra.mxu0 0.0
    %2972 = vmatprep.subr.mxu0 0.0
    %2973 = vmatpush1.msra.mxu0 0.0
    %2974 = vmatprep.subr.mxu0 0.0
    %2975 = vmatpush1.msra.mxu0 0.0
    %2976 = vmatprep.subr.mxu0 0.0
    %2977 = vmatpush1.msra.mxu0 0.0
    %2978 = vmatprep.subr.mxu0 0.0
    %2979 = vmatpush1.msra.mxu0 0.0
    %2980 = vmatprep.subr.mxu0 0.0
    %2981 = vmatpush1.msra.mxu0 0.0
    %2982 = vmatprep.subr.mxu0 0.0
    %2983 = vmatpush1.msra.mxu0 0.0
    %2984 = vmatprep.subr.mxu0 0.0
    %2985 = vmatpush1.msra.mxu0 0.0
    %2986 = vmatprep.subr.mxu0 0.0
    %2987 = vmatpush1.msra.mxu0 0.0
    %2988 = vmatprep.subr.mxu0 0.0
    %2989 = vmatpush1.msra.mxu0 0.0
    %2990 = vmatprep.subr.mxu0 0.0
    %2991 = vmatpush1.msra.mxu0 0.0
    %2992 = vmatprep.subr.mxu0 0.0
    %2993 = vmatpush1.msra.mxu0 0.0
    %2994 = vmatprep.subr.mxu0 0.0
    %2995 = vmatpush1.msra.mxu0 0.0
    %2996 = vmatprep.subr.mxu0 0.0
    %2997 = vmatpush1.msra.mxu0 0.0
    %2998 = vmatprep.subr.mxu0 0.0
    %2999 = vmatpush1.msra.mxu0 0.0
    %3000 = vmatprep.subr.mxu0 0.0
    %3001 = vmatpush1.msra.mxu0 0.0
    %3002 = vmatprep.subr.mxu0 0.0
    %3003 = vmatpush1.msra.mxu0 0.0
    %3004 = vmatprep.subr.mxu0 0.0
    %3005 = vmatpush1.msra.mxu0 0.0
    %3006 = vmatprep.subr.mxu0 0.0
    %3007 = vmatpush1.msra.mxu0 0.0
    %3008 = vmatprep.subr.mxu0 0.0
    %3009 = vmatpush1.msra.mxu0 0.0
    %3010 = vmatprep.subr.mxu0 0.0
    %3011 = vmatpush1.msra.mxu0 0.0
    %3012 = vmatprep.subr.mxu0 0.0
    %3013 = vmatpush1.msra.mxu0 0.0
    %3014 = vmatprep.subr.mxu0 0.0
    %3015 = vmatpush1.msra.mxu0 0.0
    %3016 = vmatprep.subr.mxu0 0.0
    %3017 = vmatpush1.msra.mxu0 0.0
    %3018 = vmatprep.subr.mxu0 0.0
    %3019 = vmatpush1.msra.mxu0 0.0
    %3020 = vmatprep.subr.mxu0 0.0
    %3021 = vmatpush1.msra.mxu0 0.0
    %3022 = vmatprep.subr.mxu0 0.0
    %3023 = vmatpush1.msra.mxu0 0.0
    %3024 = vmatprep.mubr.f32.mxu0 0.0
    %3025 = vmatmul.mubr.f32.gmra.mrb[0].mxu0 %v2888
    %v3026 = vpop.f32.mrb[0].mxu0
    %v3027 = vadd.f32 %v737, %v3026
    %v3028 = vpop.f32.mrb[0].mxu0
    %3029 = vdwg.mxu0
    %3030 = vmatprep.subr.mxu0 0.0
    %3031 = vmatpush1.msra.mxu0 %v160
    %3032 = vmatprep.subr.mxu0 0.0
    %3033 = vmatpush1.msra.mxu0 %v161
    %3034 = vmatprep.subr.mxu0 0.0
    %3035 = vmatpush1.msra.mxu0 %v162
    %3036 = vmatprep.subr.mxu0 0.0
    %3037 = vmatpush1.msra.mxu0 %v163
    %3038 = vmatprep.subr.mxu0 0.0
    %3039 = vmatpush1.msra.mxu0 0.0
    %3040 = vmatprep.subr.mxu0 0.0
    %3041 = vmatpush1.msra.mxu0 0.0
    %3042 = vmatprep.subr.mxu0 0.0
    %3043 = vmatpush1.msra.mxu0 0.0
    %3044 = vmatprep.subr.mxu0 0.0
    %3045 = vmatpush1.msra.mxu0 0.0
    %3046 = vmatprep.subr.mxu0 0.0
    %3047 = vmatpush1.msra.mxu0 0.0
    %3048 = vmatprep.subr.mxu0 0.0
    %3049 = vmatpush1.msra.mxu0 0.0
    %3050 = vmatprep.subr.mxu0 0.0
    %3051 = vmatpush1.msra.mxu0 0.0
    %3052 = vmatprep.subr.mxu0 0.0
    %3053 = vmatpush1.msra.mxu0 0.0
    %3054 = vmatprep.subr.mxu0 0.0
    %3055 = vmatpush1.msra.mxu0 0.0
    %3056 = vmatprep.subr.mxu0 0.0
    %3057 = vmatpush1.msra.mxu0 0.0
    %3058 = vmatprep.subr.mxu0 0.0
    %3059 = vmatpush1.msra.mxu0 0.0
    %3060 = vmatprep.subr.mxu0 0.0
    %3061 = vmatpush1.msra.mxu0 0.0
    %3062 = vmatprep.subr.mxu0 0.0
    %3063 = vmatpush1.msra.mxu0 0.0
    %3064 = vmatprep.subr.mxu0 0.0
    %3065 = vmatpush1.msra.mxu0 0.0
    %3066 = vmatprep.subr.mxu0 0.0
    %3067 = vmatpush1.msra.mxu0 0.0
    %3068 = vmatprep.subr.mxu0 0.0
    %3069 = vmatpush1.msra.mxu0 0.0
    %3070 = vmatprep.subr.mxu0 0.0
    %3071 = vmatpush1.msra.mxu0 0.0
    %3072 = vmatprep.subr.mxu0 0.0
    %3073 = vmatpush1.msra.mxu0 0.0
    %3074 = vmatprep.subr.mxu0 0.0
    %3075 = vmatpush1.msra.mxu0 0.0
    %3076 = vmatprep.subr.mxu0 0.0
    %3077 = vmatpush1.msra.mxu0 0.0
    %3078 = vmatprep.subr.mxu0 0.0
    %3079 = vmatpush1.msra.mxu0 0.0
    %3080 = vmatprep.subr.mxu0 0.0
    %3081 = vmatpush1.msra.mxu0 0.0
    %3082 = vmatprep.subr.mxu0 0.0
    %3083 = vmatpush1.msra.mxu0 0.0
    %3084 = vmatprep.subr.mxu0 0.0
    %3085 = vmatpush1.msra.mxu0 0.0
    %3086 = vmatprep.subr.mxu0 0.0
    %3087 = vmatpush1.msra.mxu0 0.0
    %3088 = vmatprep.subr.mxu0 0.0
    %3089 = vmatpush1.msra.mxu0 0.0
    %3090 = vmatprep.subr.mxu0 0.0
    %3091 = vmatpush1.msra.mxu0 0.0
    %3092 = vmatprep.subr.mxu0 0.0
    %3093 = vmatpush1.msra.mxu0 0.0
    %3094 = vmatprep.mubr.f32.mxu0 0.0
    %3095 = vmatmul.mubr.f32.gmra.mrb[0].mxu0 %v2888
    %v3096 = vpop.f32.mrb[0].mxu0
    %v3097 = vadd.f32 %v813, %v3096
    %v3098 = vpop.f32.mrb[0].mxu0
    %3099 = vdwg.mxu0
    %3100 = vmatprep.subr.mxu0 0.0
    %3101 = vmatpush1.msra.mxu0 %v140
    %3102 = vmatprep.subr.mxu0 0.0
    %3103 = vmatpush1.msra.mxu0 %v141
    %3104 = vmatprep.subr.mxu0 0.0
    %3105 = vmatpush1.msra.mxu0 %v142
    %3106 = vmatprep.subr.mxu0 0.0
    %3107 = vmatpush1.msra.mxu0 %v143
    %3108 = vmatprep.subr.mxu0 0.0
    %3109 = vmatpush1.msra.mxu0 0.0
    %3110 = vmatprep.subr.mxu0 0.0
    %3111 = vmatpush1.msra.mxu0 0.0
    %3112 = vmatprep.subr.mxu0 0.0
    %3113 = vmatpush1.msra.mxu0 0.0
    %3114 = vmatprep.subr.mxu0 0.0
    %3115 = vmatpush1.msra.mxu0 0.0
    %3116 = vmatprep.subr.mxu0 0.0
    %3117 = vmatpush1.msra.mxu0 0.0
    %3118 = vmatprep.subr.mxu0 0.0
    %3119 = vmatpush1.msra.mxu0 0.0
    %3120 = vmatprep.subr.mxu0 0.0
    %3121 = vmatpush1.msra.mxu0 0.0
    %3122 = vmatprep.subr.mxu0 0.0
    %3123 = vmatpush1.msra.mxu0 0.0
    %3124 = vmatprep.subr.mxu0 0.0
    %3125 = vmatpush1.msra.mxu0 0.0
    %3126 = vmatprep.subr.mxu0 0.0
    %3127 = vmatpush1.msra.mxu0 0.0
    %3128 = vmatprep.subr.mxu0 0.0
    %3129 = vmatpush1.msra.mxu0 0.0
    %3130 = vmatprep.subr.mxu0 0.0
    %3131 = vmatpush1.msra.mxu0 0.0
    %3132 = vmatprep.subr.mxu0 0.0
    %3133 = vmatpush1.msra.mxu0 0.0
    %3134 = vmatprep.subr.mxu0 0.0
    %3135 = vmatpush1.msra.mxu0 0.0
    %3136 = vmatprep.subr.mxu0 0.0
    %3137 = vmatpush1.msra.mxu0 0.0
    %3138 = vmatprep.subr.mxu0 0.0
    %3139 = vmatpush1.msra.mxu0 0.0
    %3140 = vmatprep.subr.mxu0 0.0
    %3141 = vmatpush1.msra.mxu0 0.0
    %3142 = vmatprep.subr.mxu0 0.0
    %3143 = vmatpush1.msra.mxu0 0.0
    %3144 = vmatprep.subr.mxu0 0.0
    %3145 = vmatpush1.msra.mxu0 0.0
    %3146 = vmatprep.subr.mxu0 0.0
    %3147 = vmatpush1.msra.mxu0 0.0
    %3148 = vmatprep.subr.mxu0 0.0
    %3149 = vmatpush1.msra.mxu0 0.0
    %3150 = vmatprep.subr.mxu0 0.0
    %3151 = vmatpush1.msra.mxu0 0.0
    %3152 = vmatprep.subr.mxu0 0.0
    %3153 = vmatpush1.msra.mxu0 0.0
    %3154 = vmatprep.subr.mxu0 0.0
    %3155 = vmatpush1.msra.mxu0 0.0
    %3156 = vmatprep.subr.mxu0 0.0
    %3157 = vmatpush1.msra.mxu0 0.0
    %3158 = vmatprep.subr.mxu0 0.0
    %3159 = vmatpush1.msra.mxu0 0.0
    %3160 = vmatprep.subr.mxu0 0.0
    %3161 = vmatpush1.msra.mxu0 0.0
    %3162 = vmatprep.subr.mxu0 0.0
    %3163 = vmatpush1.msra.mxu0 0.0
    %3164 = vmatprep.mubr.f32.mxu0 0.0
    %3165 = vmatmul.mubr.f32.gmra.mrb[0].mxu0 %v2888
    %v3166 = vpop.f32.mrb[0].mxu0
    %v3167 = vadd.f32 0.0, %v3166
    %v3168 = vpop.f32.mrb[0].mxu0
    %3169 = vdwg.mxu0
    %3170 = vmatprep.subr.mxu0 0.0
    %3171 = vmatpush1.msra.mxu0 %v144
    %3172 = vmatprep.subr.mxu0 0.0
    %3173 = vmatpush1.msra.mxu0 %v145
    %3174 = vmatprep.subr.mxu0 0.0
    %3175 = vmatpush1.msra.mxu0 %v146
    %3176 = vmatprep.subr.mxu0 0.0
    %3177 = vmatpush1.msra.mxu0 %v147
    %3178 = vmatprep.subr.mxu0 0.0
    %3179 = vmatpush1.msra.mxu0 0.0
    %3180 = vmatprep.subr.mxu0 0.0
    %3181 = vmatpush1.msra.mxu0 0.0
    %3182 = vmatprep.subr.mxu0 0.0
    %3183 = vmatpush1.msra.mxu0 0.0
    %3184 = vmatprep.subr.mxu0 0.0
    %3185 = vmatpush1.msra.mxu0 0.0
    %3186 = vmatprep.subr.mxu0 0.0
    %3187 = vmatpush1.msra.mxu0 0.0
    %3188 = vmatprep.subr.mxu0 0.0
    %3189 = vmatpush1.msra.mxu0 0.0
    %3190 = vmatprep.subr.mxu0 0.0
    %3191 = vmatpush1.msra.mxu0 0.0
    %3192 = vmatprep.subr.mxu0 0.0
    %3193 = vmatpush1.msra.mxu0 0.0
    %3194 = vmatprep.subr.mxu0 0.0
    %3195 = vmatpush1.msra.mxu0 0.0
    %3196 = vmatprep.subr.mxu0 0.0
    %3197 = vmatpush1.msra.mxu0 0.0
    %3198 = vmatprep.subr.mxu0 0.0
    %3199 = vmatpush1.msra.mxu0 0.0
    %3200 = vmatprep.subr.mxu0 0.0
    %3201 = vmatpush1.msra.mxu0 0.0
    %3202 = vmatprep.subr.mxu0 0.0
    %3203 = vmatpush1.msra.mxu0 0.0
    %3204 = vmatprep.subr.mxu0 0.0
    %3205 = vmatpush1.msra.mxu0 0.0
    %3206 = vmatprep.subr.mxu0 0.0
    %3207 = vmatpush1.msra.mxu0 0.0
    %3208 = vmatprep.subr.mxu0 0.0
    %3209 = vmatpush1.msra.mxu0 0.0
    %3210 = vmatprep.subr.mxu0 0.0
    %3211 = vmatpush1.msra.mxu0 0.0
    %3212 = vmatprep.subr.mxu0 0.0
    %3213 = vmatpush1.msra.mxu0 0.0
    %3214 = vmatprep.subr.mxu0 0.0
    %3215 = vmatpush1.msra.mxu0 0.0
    %3216 = vmatprep.subr.mxu0 0.0
    %3217 = vmatpush1.msra.mxu0 0.0
    %3218 = vmatprep.subr.mxu0 0.0
    %3219 = vmatpush1.msra.mxu0 0.0
    %3220 = vmatprep.subr.mxu0 0.0
    %3221 = vmatpush1.msra.mxu0 0.0
    %3222 = vmatprep.subr.mxu0 0.0
    %3223 = vmatpush1.msra.mxu0 0.0
    %3224 = vmatprep.subr.mxu0 0.0
    %3225 = vmatpush1.msra.mxu0 0.0
    %3226 = vmatprep.subr.mxu0 0.0
    %3227 = vmatpush1.msra.mxu0 0.0
    %3228 = vmatprep.subr.mxu0 0.0
    %3229 = vmatpush1.msra.mxu0 0.0
    %3230 = vmatprep.subr.mxu0 0.0
    %3231 = vmatpush1.msra.mxu0 0.0
    %3232 = vmatprep.subr.mxu0 0.0
    %3233 = vmatpush1.msra.mxu0 0.0
    %3234 = vmatprep.mubr.f32.mxu0 0.0
    %3235 = vmatmul.mubr.f32.gmra.mrb[0].mxu0 %v2888
    %v3236 = vpop.f32.mrb[0].mxu0
    %v3237 = vadd.f32 0.0, %v3236
    %v3238 = vpop.f32.mrb[0].mxu0
    %3239 = vdwg.mxu0
    %v3240 = vadd.f32 %v253, %v3167
    %v3241 = vsub.f32 0.0, %v3240
    %v3242 = vmul.f32 %v3241, 1.442695
    %v3243 = vpow.pop %v3242
    %v3244 = vadd.f32 %v3243, 1.0
    %v3245 = vrcp.pop %v3244
    %v3246 = vmul.f32 1.0, %v3245
    %v3247 = vadd.f32 %v332, %v3237
    %v3248 = vsub.f32 0.0, %v3247
    %v3249 = vmul.f32 %v3248, 1.442695
    %v3250 = vpow.pop %v3249
    %v3251 = vadd.f32 %v3250, 1.0
    %v3252 = vrcp.pop %v3251
    %v3253 = vmul.f32 1.0, %v3252
    %3254 = vmatprep.subr.mxu0 0.0
    %3255 = vmatpush1.msra.mxu0 %v148
    %3256 = vmatprep.subr.mxu0 0.0
    %3257 = vmatpush1.msra.mxu0 %v149
    %3258 = vmatprep.subr.mxu0 0.0
    %3259 = vmatpush1.msra.mxu0 %v150
    %3260 = vmatprep.subr.mxu0 0.0
    %3261 = vmatpush1.msra.mxu0 %v151
    %3262 = vmatprep.subr.mxu0 0.0
    %3263 = vmatpush1.msra.mxu0 0.0
    %3264 = vmatprep.subr.mxu0 0.0
    %3265 = vmatpush1.msra.mxu0 0.0
    %3266 = vmatprep.subr.mxu0 0.0
    %3267 = vmatpush1.msra.mxu0 0.0
    %3268 = vmatprep.subr.mxu0 0.0
    %3269 = vmatpush1.msra.mxu0 0.0
    %3270 = vmatprep.subr.mxu0 0.0
    %3271 = vmatpush1.msra.mxu0 0.0
    %3272 = vmatprep.subr.mxu0 0.0
    %3273 = vmatpush1.msra.mxu0 0.0
    %3274 = vmatprep.subr.mxu0 0.0
    %3275 = vmatpush1.msra.mxu0 0.0
    %3276 = vmatprep.subr.mxu0 0.0
    %3277 = vmatpush1.msra.mxu0 0.0
    %3278 = vmatprep.subr.mxu0 0.0
    %3279 = vmatpush1.msra.mxu0 0.0
    %3280 = vmatprep.subr.mxu0 0.0
    %3281 = vmatpush1.msra.mxu0 0.0
    %3282 = vmatprep.subr.mxu0 0.0
    %3283 = vmatpush1.msra.mxu0 0.0
    %3284 = vmatprep.subr.mxu0 0.0
    %3285 = vmatpush1.msra.mxu0 0.0
    %3286 = vmatprep.subr.mxu0 0.0
    %3287 = vmatpush1.msra.mxu0 0.0
    %3288 = vmatprep.subr.mxu0 0.0
    %3289 = vmatpush1.msra.mxu0 0.0
    %3290 = vmatprep.subr.mxu0 0.0
    %3291 = vmatpush1.msra.mxu0 0.0
    %3292 = vmatprep.subr.mxu0 0.0
    %3293 = vmatpush1.msra.mxu0 0.0
    %3294 = vmatprep.subr.mxu0 0.0
    %3295 = vmatpush1.msra.mxu0 0.0
    %3296 = vmatprep.subr.mxu0 0.0
    %3297 = vmatpush1.msra.mxu0 0.0
    %3298 = vmatprep.subr.mxu0 0.0
    %3299 = vmatpush1.msra.mxu0 0.0
    %3300 = vmatprep.subr.mxu0 0.0
    %3301 = vmatpush1.msra.mxu0 0.0
    %3302 = vmatprep.subr.mxu0 0.0
    %3303 = vmatpush1.msra.mxu0 0.0
    %3304 = vmatprep.subr.mxu0 0.0
    %3305 = vmatpush1.msra.mxu0 0.0
    %3306 = vmatprep.subr.mxu0 0.0
    %3307 = vmatpush1.msra.mxu0 0.0
    %3308 = vmatprep.subr.mxu0 0.0
    %3309 = vmatpush1.msra.mxu0 0.0
    %3310 = vmatprep.subr.mxu0 0.0
    %3311 = vmatpush1.msra.mxu0 0.0
    %3312 = vmatprep.subr.mxu0 0.0
    %3313 = vmatpush1.msra.mxu0 0.0
    %3314 = vmatprep.subr.mxu0 0.0
    %3315 = vmatpush1.msra.mxu0 0.0
    %3316 = vmatprep.subr.mxu0 0.0
    %3317 = vmatpush1.msra.mxu0 0.0
    %3318 = vmatprep.mubr.f32.mxu0 0.0
    %3319 = vmatmul.mubr.f32.gmra.mrb[0].mxu0 %v2888
    %v3320 = vpop.f32.mrb[0].mxu0
    %v3321 = vadd.f32 %v576, %v3320
    %v3322 = vpop.f32.mrb[0].mxu0
    %3323 = vdwg.mxu0
    %v3324 = vmul.f32 %v3246, %v3321
    %v3325 = vadd.f32 %v411, %v3324
    %v3326 = vtanh.pop %v3325
    %v3327 = vsub.f32 %v2886, %v3326
    %v3328 = vmul.f32 %v3253, %v3327
    %v3329 = vadd.f32 %v3326, %v3328
    %v3331 = vsel %vm414, %v3329, 0
    %3333 = vmatprep.subr.mxu0 0.0
    %3334 = vmatpush1.msra.mxu0 %v152
    %3335 = vmatprep.subr.mxu0 0.0
    %3336 = vmatpush1.msra.mxu0 %v153
    %3337 = vmatprep.subr.mxu0 0.0
    %3338 = vmatpush1.msra.mxu0 %v154
    %3339 = vmatprep.subr.mxu0 0.0
    %3340 = vmatpush1.msra.mxu0 %v155
    %3341 = vmatprep.subr.mxu0 0.0
    %3342 = vmatpush1.msra.mxu0 0.0
    %3343 = vmatprep.subr.mxu0 0.0
    %3344 = vmatpush1.msra.mxu0 0.0
    %3345 = vmatprep.subr.mxu0 0.0
    %3346 = vmatpush1.msra.mxu0 0.0
    %3347 = vmatprep.subr.mxu0 0.0
    %3348 = vmatpush1.msra.mxu0 0.0
    %3349 = vmatprep.subr.mxu0 0.0
    %3350 = vmatpush1.msra.mxu0 0.0
    %3351 = vmatprep.subr.mxu0 0.0
    %3352 = vmatpush1.msra.mxu0 0.0
    %3353 = vmatprep.subr.mxu0 0.0
    %3354 = vmatpush1.msra.mxu0 0.0
    %3355 = vmatprep.subr.mxu0 0.0
    %3356 = vmatpush1.msra.mxu0 0.0
    %3357 = vmatprep.subr.mxu0 0.0
    %3358 = vmatpush1.msra.mxu0 0.0
    %3359 = vmatprep.subr.mxu0 0.0
    %3360 = vmatpush1.msra.mxu0 0.0
    %3361 = vmatprep.subr.mxu0 0.0
    %3362 = vmatpush1.msra.mxu0 0.0
    %3363 = vmatprep.subr.mxu0 0.0
    %3364 = vmatpush1.msra.mxu0 0.0
    %3365 = vmatprep.subr.mxu0 0.0
    %3366 = vmatpush1.msra.mxu0 0.0
    %3367 = vmatprep.subr.mxu0 0.0
    %3368 = vmatpush1.msra.mxu0 0.0
    %3369 = vmatprep.subr.mxu0 0.0
    %3370 = vmatpush1.msra.mxu0 0.0
    %3371 = vmatprep.subr.mxu0 0.0
    %3372 = vmatpush1.msra.mxu0 0.0
    %3373 = vmatprep.subr.mxu0 0.0
    %3374 = vmatpush1.msra.mxu0 0.0
    %3375 = vmatprep.subr.mxu0 0.0
    %3376 = vmatpush1.msra.mxu0 0.0
    %3377 = vmatprep.subr.mxu0 0.0
    %3378 = vmatpush1.msra.mxu0 0.0
    %3379 = vmatprep.subr.mxu0 0.0
    %3380 = vmatpush1.msra.mxu0 0.0
    %3381 = vmatprep.subr.mxu0 0.0
    %3382 = vmatpush1.msra.mxu0 0.0
    %3383 = vmatprep.subr.mxu0 0.0
    %3384 = vmatpush1.msra.mxu0 0.0
    %3385 = vmatprep.subr.mxu0 0.0
    %3386 = vmatpush1.msra.mxu0 0.0
    %3387 = vmatprep.subr.mxu0 0.0
    %3388 = vmatpush1.msra.mxu0 0.0
    %3389 = vmatprep.subr.mxu0 0.0
    %3390 = vmatpush1.msra.mxu0 0.0
    %3391 = vmatprep.subr.mxu0 0.0
    %3392 = vmatpush1.msra.mxu0 0.0
    %3393 = vmatprep.subr.mxu0 0.0
    %3394 = vmatpush1.msra.mxu0 0.0
    %3395 = vmatprep.subr.mxu0 0.0
    %3396 = vmatpush1.msra.mxu0 0.0
    %3397 = vmatprep.mubr.f32.mxu0 0.0
    %3398 = vmatmul.mubr.f32.gmra.mrb[0].mxu0 %v3331
    %v3399 = vpop.f32.mrb[0].mxu0
    %v3400 = vadd.f32 %v658, %v3399
    %v3401 = vpop.f32.mrb[0].mxu0
    %3402 = vdwg.mxu0
    %3403 = vmatprep.subr.mxu0 0.0
    %3404 = vmatpush1.msra.mxu0 %v156
    %3405 = vmatprep.subr.mxu0 0.0
    %3406 = vmatpush1.msra.mxu0 %v157
    %3407 = vmatprep.subr.mxu0 0.0
    %3408 = vmatpush1.msra.mxu0 %v158
    %3409 = vmatprep.subr.mxu0 0.0
    %3410 = vmatpush1.msra.mxu0 %v159
    %3411 = vmatprep.subr.mxu0 0.0
    %3412 = vmatpush1.msra.mxu0 0.0
    %3413 = vmatprep.subr.mxu0 0.0
    %3414 = vmatpush1.msra.mxu0 0.0
    %3415 = vmatprep.subr.mxu0 0.0
    %3416 = vmatpush1.msra.mxu0 0.0
    %3417 = vmatprep.subr.mxu0 0.0
    %3418 = vmatpush1.msra.mxu0 0.0
    %3419 = vmatprep.subr.mxu0 0.0
    %3420 = vmatpush1.msra.mxu0 0.0
    %3421 = vmatprep.subr.mxu0 0.0
    %3422 = vmatpush1.msra.mxu0 0.0
    %3423 = vmatprep.subr.mxu0 0.0
    %3424 = vmatpush1.msra.mxu0 0.0
    %3425 = vmatprep.subr.mxu0 0.0
    %3426 = vmatpush1.msra.mxu0 0.0
    %3427 = vmatprep.subr.mxu0 0.0
    %3428 = vmatpush1.msra.mxu0 0.0
    %3429 = vmatprep.subr.mxu0 0.0
    %3430 = vmatpush1.msra.mxu0 0.0
    %3431 = vmatprep.subr.mxu0 0.0
    %3432 = vmatpush1.msra.mxu0 0.0
    %3433 = vmatprep.subr.mxu0 0.0
    %3434 = vmatpush1.msra.mxu0 0.0
    %3435 = vmatprep.subr.mxu0 0.0
    %3436 = vmatpush1.msra.mxu0 0.0
    %3437 = vmatprep.subr.mxu0 0.0
    %3438 = vmatpush1.msra.mxu0 0.0
    %3439 = vmatprep.subr.mxu0 0.0
    %3440 = vmatpush1.msra.mxu0 0.0
    %3441 = vmatprep.subr.mxu0 0.0
    %3442 = vmatpush1.msra.mxu0 0.0
    %3443 = vmatprep.subr.mxu0 0.0
    %3444 = vmatpush1.msra.mxu0 0.0
    %3445 = vmatprep.subr.mxu0 0.0
    %3446 = vmatpush1.msra.mxu0 0.0
    %3447 = vmatprep.subr.mxu0 0.0
    %3448 = vmatpush1.msra.mxu0 0.0
    %3449 = vmatprep.subr.mxu0 0.0
    %3450 = vmatpush1.msra.mxu0 0.0
    %3451 = vmatprep.subr.mxu0 0.0
    %3452 = vmatpush1.msra.mxu0 0.0
    %3453 = vmatprep.subr.mxu0 0.0
    %3454 = vmatpush1.msra.mxu0 0.0
    %3455 = vmatprep.subr.mxu0 0.0
    %3456 = vmatpush1.msra.mxu0 0.0
    %3457 = vmatprep.subr.mxu0 0.0
    %3458 = vmatpush1.msra.mxu0 0.0
    %3459 = vmatprep.subr.mxu0 0.0
    %3460 = vmatpush1.msra.mxu0 0.0
    %3461 = vmatprep.subr.mxu0 0.0
    %3462 = vmatpush1.msra.mxu0 0.0
    %3463 = vmatprep.subr.mxu0 0.0
    %3464 = vmatpush1.msra.mxu0 0.0
    %3465 = vmatprep.subr.mxu0 0.0
    %3466 = vmatpush1.msra.mxu0 0.0
    %3467 = vmatprep.mubr.f32.mxu0 0.0
    %3468 = vmatmul.mubr.f32.gmra.mrb[0].mxu0 %v3331
    %v3469 = vpop.f32.mrb[0].mxu0
    %v3470 = vadd.f32 %v737, %v3469
    %v3471 = vpop.f32.mrb[0].mxu0
    %3472 = vdwg.mxu0
    %3473 = vmatprep.subr.mxu0 0.0
    %3474 = vmatpush1.msra.mxu0 %v160
    %3475 = vmatprep.subr.mxu0 0.0
    %3476 = vmatpush1.msra.mxu0 %v161
    %3477 = vmatprep.subr.mxu0 0.0
    %3478 = vmatpush1.msra.mxu0 %v162
    %3479 = vmatprep.subr.mxu0 0.0
    %3480 = vmatpush1.msra.mxu0 %v163
    %3481 = vmatprep.subr.mxu0 0.0
    %3482 = vmatpush1.msra.mxu0 0.0
    %3483 = vmatprep.subr.mxu0 0.0
    %3484 = vmatpush1.msra.mxu0 0.0
    %3485 = vmatprep.subr.mxu0 0.0
    %3486 = vmatpush1.msra.mxu0 0.0
    %3487 = vmatprep.subr.mxu0 0.0
    %3488 = vmatpush1.msra.mxu0 0.0
    %3489 = vmatprep.subr.mxu0 0.0
    %3490 = vmatpush1.msra.mxu0 0.0
    %3491 = vmatprep.subr.mxu0 0.0
    %3492 = vmatpush1.msra.mxu0 0.0
    %3493 = vmatprep.subr.mxu0 0.0
    %3494 = vmatpush1.msra.mxu0 0.0
    %3495 = vmatprep.subr.mxu0 0.0
    %3496 = vmatpush1.msra.mxu0 0.0
    %3497 = vmatprep.subr.mxu0 0.0
    %3498 = vmatpush1.msra.mxu0 0.0
    %3499 = vmatprep.subr.mxu0 0.0
    %3500 = vmatpush1.msra.mxu0 0.0
    %3501 = vmatprep.subr.mxu0 0.0
    %3502 = vmatpush1.msra.mxu0 0.0
    %3503 = vmatprep.subr.mxu0 0.0
    %3504 = vmatpush1.msra.mxu0 0.0
    %3505 = vmatprep.subr.mxu0 0.0
    %3506 = vmatpush1.msra.mxu0 0.0
    %3507 = vmatprep.subr.mxu0 0.0
    %3508 = vmatpush1.msra.mxu0 0.0
    %3509 = vmatprep.subr.mxu0 0.0
    %3510 = vmatpush1.msra.mxu0 0.0
    %3511 = vmatprep.subr.mxu0 0.0
    %3512 = vmatpush1.msra.mxu0 0.0
    %3513 = vmatprep.subr.mxu0 0.0
    %3514 = vmatpush1.msra.mxu0 0.0
    %3515 = vmatprep.subr.mxu0 0.0
    %3516 = vmatpush1.msra.mxu0 0.0
    %3517 = vmatprep.subr.mxu0 0.0
    %3518 = vmatpush1.msra.mxu0 0.0
    %3519 = vmatprep.subr.mxu0 0.0
    %3520 = vmatpush1.msra.mxu0 0.0
    %3521 = vmatprep.subr.mxu0 0.0
    %3522 = vmatpush1.msra.mxu0 0.0
    %3523 = vmatprep.subr.mxu0 0.0
    %3524 = vmatpush1.msra.mxu0 0.0
    %3525 = vmatprep.subr.mxu0 0.0
    %3526 = vmatpush1.msra.mxu0 0.0
    %3527 = vmatprep.subr.mxu0 0.0
    %3528 = vmatpush1.msra.mxu0 0.0
    %3529 = vmatprep.subr.mxu0 0.0
    %3530 = vmatpush1.msra.mxu0 0.0
    %3531 = vmatprep.subr.mxu0 0.0
    %3532 = vmatpush1.msra.mxu0 0.0
    %3533 = vmatprep.subr.mxu0 0.0
    %3534 = vmatpush1.msra.mxu0 0.0
    %3535 = vmatprep.subr.mxu0 0.0
    %3536 = vmatpush1.msra.mxu0 0.0
    %3537 = vmatprep.mubr.f32.mxu0 0.0
    %3538 = vmatmul.mubr.f32.gmra.mrb[0].mxu0 %v3331
    %v3539 = vpop.f32.mrb[0].mxu0
    %v3540 = vadd.f32 %v813, %v3539
    %v3541 = vpop.f32.mrb[0].mxu0
    %3542 = vdwg.mxu0
    %3543 = vmatprep.subr.mxu0 0.0
    %3544 = vmatpush1.msra.mxu0 %v140
    %3545 = vmatprep.subr.mxu0 0.0
    %3546 = vmatpush1.msra.mxu0 %v141
    %3547 = vmatprep.subr.mxu0 0.0
    %3548 = vmatpush1.msra.mxu0 %v142
    %3549 = vmatprep.subr.mxu0 0.0
    %3550 = vmatpush1.msra.mxu0 %v143
    %3551 = vmatprep.subr.mxu0 0.0
    %3552 = vmatpush1.msra.mxu0 0.0
    %3553 = vmatprep.subr.mxu0 0.0
    %3554 = vmatpush1.msra.mxu0 0.0
    %3555 = vmatprep.subr.mxu0 0.0
    %3556 = vmatpush1.msra.mxu0 0.0
    %3557 = vmatprep.subr.mxu0 0.0
    %3558 = vmatpush1.msra.mxu0 0.0
    %3559 = vmatprep.subr.mxu0 0.0
    %3560 = vmatpush1.msra.mxu0 0.0
    %3561 = vmatprep.subr.mxu0 0.0
    %3562 = vmatpush1.msra.mxu0 0.0
    %3563 = vmatprep.subr.mxu0 0.0
    %3564 = vmatpush1.msra.mxu0 0.0
    %3565 = vmatprep.subr.mxu0 0.0
    %3566 = vmatpush1.msra.mxu0 0.0
    %3567 = vmatprep.subr.mxu0 0.0
    %3568 = vmatpush1.msra.mxu0 0.0
    %3569 = vmatprep.subr.mxu0 0.0
    %3570 = vmatpush1.msra.mxu0 0.0
    %3571 = vmatprep.subr.mxu0 0.0
    %3572 = vmatpush1.msra.mxu0 0.0
    %3573 = vmatprep.subr.mxu0 0.0
    %3574 = vmatpush1.msra.mxu0 0.0
    %3575 = vmatprep.subr.mxu0 0.0
    %3576 = vmatpush1.msra.mxu0 0.0
    %3577 = vmatprep.subr.mxu0 0.0
    %3578 = vmatpush1.msra.mxu0 0.0
    %3579 = vmatprep.subr.mxu0 0.0
    %3580 = vmatpush1.msra.mxu0 0.0
    %3581 = vmatprep.subr.mxu0 0.0
    %3582 = vmatpush1.msra.mxu0 0.0
    %3583 = vmatprep.subr.mxu0 0.0
    %3584 = vmatpush1.msra.mxu0 0.0
    %3585 = vmatprep.subr.mxu0 0.0
    %3586 = vmatpush1.msra.mxu0 0.0
    %3587 = vmatprep.subr.mxu0 0.0
    %3588 = vmatpush1.msra.mxu0 0.0
    %3589 = vmatprep.subr.mxu0 0.0
    %3590 = vmatpush1.msra.mxu0 0.0
    %3591 = vmatprep.subr.mxu0 0.0
    %3592 = vmatpush1.msra.mxu0 0.0
    %3593 = vmatprep.subr.mxu0 0.0
    %3594 = vmatpush1.msra.mxu0 0.0
    %3595 = vmatprep.subr.mxu0 0.0
    %3596 = vmatpush1.msra.mxu0 0.0
    %3597 = vmatprep.subr.mxu0 0.0
    %3598 = vmatpush1.msra.mxu0 0.0
    %3599 = vmatprep.subr.mxu0 0.0
    %3600 = vmatpush1.msra.mxu0 0.0
    %3601 = vmatprep.subr.mxu0 0.0
    %3602 = vmatpush1.msra.mxu0 0.0
    %3603 = vmatprep.subr.mxu0 0.0
    %3604 = vmatpush1.msra.mxu0 0.0
    %3605 = vmatprep.subr.mxu0 0.0
    %3606 = vmatpush1.msra.mxu0 0.0
    %3607 = vmatprep.mubr.f32.mxu0 0.0
    %3608 = vmatmul.mubr.f32.gmra.mrb[0].mxu0 %v3331
    %v3609 = vpop.f32.mrb[0].mxu0
    %v3610 = vadd.f32 0.0, %v3609
    %v3611 = vpop.f32.mrb[0].mxu0
    %3612 = vdwg.mxu0
    %3613 = vmatprep.subr.mxu0 0.0
    %3614 = vmatpush1.msra.mxu0 %v144
    %3615 = vmatprep.subr.mxu0 0.0
    %3616 = vmatpush1.msra.mxu0 %v145
    %3617 = vmatprep.subr.mxu0 0.0
    %3618 = vmatpush1.msra.mxu0 %v146
    %3619 = vmatprep.subr.mxu0 0.0
    %3620 = vmatpush1.msra.mxu0 %v147
    %3621 = vmatprep.subr.mxu0 0.0
    %3622 = vmatpush1.msra.mxu0 0.0
    %3623 = vmatprep.subr.mxu0 0.0
    %3624 = vmatpush1.msra.mxu0 0.0
    %3625 = vmatprep.subr.mxu0 0.0
    %3626 = vmatpush1.msra.mxu0 0.0
    %3627 = vmatprep.subr.mxu0 0.0
    %3628 = vmatpush1.msra.mxu0 0.0
    %3629 = vmatprep.subr.mxu0 0.0
    %3630 = vmatpush1.msra.mxu0 0.0
    %3631 = vmatprep.subr.mxu0 0.0
    %3632 = vmatpush1.msra.mxu0 0.0
    %3633 = vmatprep.subr.mxu0 0.0
    %3634 = vmatpush1.msra.mxu0 0.0
    %3635 = vmatprep.subr.mxu0 0.0
    %3636 = vmatpush1.msra.mxu0 0.0
    %3637 = vmatprep.subr.mxu0 0.0
    %3638 = vmatpush1.msra.mxu0 0.0
    %3639 = vmatprep.subr.mxu0 0.0
    %3640 = vmatpush1.msra.mxu0 0.0
    %3641 = vmatprep.subr.mxu0 0.0
    %3642 = vmatpush1.msra.mxu0 0.0
    %3643 = vmatprep.subr.mxu0 0.0
    %3644 = vmatpush1.msra.mxu0 0.0
    %3645 = vmatprep.subr.mxu0 0.0
    %3646 = vmatpush1.msra.mxu0 0.0
    %3647 = vmatprep.subr.mxu0 0.0
    %3648 = vmatpush1.msra.mxu0 0.0
    %3649 = vmatprep.subr.mxu0 0.0
    %3650 = vmatpush1.msra.mxu0 0.0
    %3651 = vmatprep.subr.mxu0 0.0
    %3652 = vmatpush1.msra.mxu0 0.0
    %3653 = vmatprep.subr.mxu0 0.0
    %3654 = vmatpush1.msra.mxu0 0.0
    %3655 = vmatprep.subr.mxu0 0.0
    %3656 = vmatpush1.msra.mxu0 0.0
    %3657 = vmatprep.subr.mxu0 0.0
    %3658 = vmatpush1.msra.mxu0 0.0
    %3659 = vmatprep.subr.mxu0 0.0
    %3660 = vmatpush1.msra.mxu0 0.0
    %3661 = vmatprep.subr.mxu0 0.0
    %3662 = vmatpush1.msra.mxu0 0.0
    %3663 = vmatprep.subr.mxu0 0.0
    %3664 = vmatpush1.msra.mxu0 0.0
    %3665 = vmatprep.subr.mxu0 0.0
    %3666 = vmatpush1.msra.mxu0 0.0
    %3667 = vmatprep.subr.mxu0 0.0
    %3668 = vmatpush1.msra.mxu0 0.0
    %3669 = vmatprep.subr.mxu0 0.0
    %3670 = vmatpush1.msra.mxu0 0.0
    %3671 = vmatprep.subr.mxu0 0.0
    %3672 = vmatpush1.msra.mxu0 0.0
    %3673 = vmatprep.subr.mxu0 0.0
    %3674 = vmatpush1.msra.mxu0 0.0
    %3675 = vmatprep.subr.mxu0 0.0
    %3676 = vmatpush1.msra.mxu0 0.0
    %3677 = vmatprep.mubr.f32.mxu0 0.0
    %3678 = vmatmul.mubr.f32.gmra.mrb[0].mxu0 %v3331
    %v3679 = vpop.f32.mrb[0].mxu0
    %v3680 = vadd.f32 0.0, %v3679
    %v3681 = vpop.f32.mrb[0].mxu0
    %3682 = vdwg.mxu0
    %v3683 = vadd.f32 %v253, %v3610
    %v3684 = vsub.f32 0.0, %v3683
    %v3685 = vmul.f32 %v3684, 1.442695
    %v3686 = vpow.pop %v3685
    %v3687 = vadd.f32 %v3686, 1.0
    %v3688 = vrcp.pop %v3687
    %v3689 = vmul.f32 1.0, %v3688
    %v3690 = vadd.f32 %v332, %v3680
    %v3691 = vsub.f32 0.0, %v3690
    %v3692 = vmul.f32 %v3691, 1.442695
    %v3693 = vpow.pop %v3692
    %v3694 = vadd.f32 %v3693, 1.0
    %v3695 = vrcp.pop %v3694
    %v3696 = vmul.f32 1.0, %v3695
    %3697 = vmatprep.subr.mxu0 0.0
    %3698 = vmatpush1.msra.mxu0 %v148
    %3699 = vmatprep.subr.mxu0 0.0
    %3700 = vmatpush1.msra.mxu0 %v149
    %3701 = vmatprep.subr.mxu0 0.0
    %3702 = vmatpush1.msra.mxu0 %v150
    %3703 = vmatprep.subr.mxu0 0.0
    %3704 = vmatpush1.msra.mxu0 %v151
    %3705 = vmatprep.subr.mxu0 0.0
    %3706 = vmatpush1.msra.mxu0 0.0
    %3707 = vmatprep.subr.mxu0 0.0
    %3708 = vmatpush1.msra.mxu0 0.0
    %3709 = vmatprep.subr.mxu0 0.0
    %3710 = vmatpush1.msra.mxu0 0.0
    %3711 = vmatprep.subr.mxu0 0.0
    %3712 = vmatpush1.msra.mxu0 0.0
    %3713 = vmatprep.subr.mxu0 0.0
    %3714 = vmatpush1.msra.mxu0 0.0
    %3715 = vmatprep.subr.mxu0 0.0
    %3716 = vmatpush1.msra.mxu0 0.0
    %3717 = vmatprep.subr.mxu0 0.0
    %3718 = vmatpush1.msra.mxu0 0.0
    %3719 = vmatprep.subr.mxu0 0.0
    %3720 = vmatpush1.msra.mxu0 0.0
    %3721 = vmatprep.subr.mxu0 0.0
    %3722 = vmatpush1.msra.mxu0 0.0
    %3723 = vmatprep.subr.mxu0 0.0
    %3724 = vmatpush1.msra.mxu0 0.0
    %3725 = vmatprep.subr.mxu0 0.0
    %3726 = vmatpush1.msra.mxu0 0.0
    %3727 = vmatprep.subr.mxu0 0.0
    %3728 = vmatpush1.msra.mxu0 0.0
    %3729 = vmatprep.subr.mxu0 0.0
    %3730 = vmatpush1.msra.mxu0 0.0
    %3731 = vmatprep.subr.mxu0 0.0
    %3732 = vmatpush1.msra.mxu0 0.0
    %3733 = vmatprep.subr.mxu0 0.0
    %3734 = vmatpush1.msra.mxu0 0.0
    %3735 = vmatprep.subr.mxu0 0.0
    %3736 = vmatpush1.msra.mxu0 0.0
    %3737 = vmatprep.subr.mxu0 0.0
    %3738 = vmatpush1.msra.mxu0 0.0
    %3739 = vmatprep.subr.mxu0 0.0
    %3740 = vmatpush1.msra.mxu0 0.0
    %3741 = vmatprep.subr.mxu0 0.0
    %3742 = vmatpush1.msra.mxu0 0.0
    %3743 = vmatprep.subr.mxu0 0.0
    %3744 = vmatpush1.msra.mxu0 0.0
    %3745 = vmatprep.subr.mxu0 0.0
    %3746 = vmatpush1.msra.mxu0 0.0
    %3747 = vmatprep.subr.mxu0 0.0
    %3748 = vmatpush1.msra.mxu0 0.0
    %3749 = vmatprep.subr.mxu0 0.0
    %3750 = vmatpush1.msra.mxu0 0.0
    %3751 = vmatprep.subr.mxu0 0.0
    %3752 = vmatpush1.msra.mxu0 0.0
    %3753 = vmatprep.subr.mxu0 0.0
    %3754 = vmatpush1.msra.mxu0 0.0
    %3755 = vmatprep.subr.mxu0 0.0
    %3756 = vmatpush1.msra.mxu0 0.0
    %3757 = vmatprep.subr.mxu0 0.0
    %3758 = vmatpush1.msra.mxu0 0.0
    %3759 = vmatprep.subr.mxu0 0.0
    %3760 = vmatpush1.msra.mxu0 0.0
    %3761 = vmatprep.mubr.f32.mxu0 0.0
    %3762 = vmatmul.mubr.f32.gmra.mrb[0].mxu0 %v3331
    %v3763 = vpop.f32.mrb[0].mxu0
    %v3764 = vadd.f32 %v576, %v3763
    %v3765 = vpop.f32.mrb[0].mxu0
    %3766 = vdwg.mxu0
    %v3767 = vmul.f32 %v3689, %v3764
    %v3768 = vadd.f32 %v411, %v3767
    %v3769 = vtanh.pop %v3768
    %v3770 = vsub.f32 %v3329, %v3769
    %v3771 = vmul.f32 %v3696, %v3770
    %v3772 = vadd.f32 %v3769, %v3771
    %v3774 = vsel %vm414, %v3772, 0
    %3776 = vmatprep.subr.mxu0 0.0
    %3777 = vmatpush1.msra.mxu0 %v152
    %3778 = vmatprep.subr.mxu0 0.0
    %3779 = vmatpush1.msra.mxu0 %v153
    %3780 = vmatprep.subr.mxu0 0.0
    %3781 = vmatpush1.msra.mxu0 %v154
    %3782 = vmatprep.subr.mxu0 0.0
    %3783 = vmatpush1.msra.mxu0 %v155
    %3784 = vmatprep.subr.mxu0 0.0
    %3785 = vmatpush1.msra.mxu0 0.0
    %3786 = vmatprep.subr.mxu0 0.0
    %3787 = vmatpush1.msra.mxu0 0.0
    %3788 = vmatprep.subr.mxu0 0.0
    %3789 = vmatpush1.msra.mxu0 0.0
    %3790 = vmatprep.subr.mxu0 0.0
    %3791 = vmatpush1.msra.mxu0 0.0
    %3792 = vmatprep.subr.mxu0 0.0
    %3793 = vmatpush1.msra.mxu0 0.0
    %3794 = vmatprep.subr.mxu0 0.0
    %3795 = vmatpush1.msra.mxu0 0.0
    %3796 = vmatprep.subr.mxu0 0.0
    %3797 = vmatpush1.msra.mxu0 0.0
    %3798 = vmatprep.subr.mxu0 0.0
    %3799 = vmatpush1.msra.mxu0 0.0
    %3800 = vmatprep.subr.mxu0 0.0
    %3801 = vmatpush1.msra.mxu0 0.0
    %3802 = vmatprep.subr.mxu0 0.0
    %3803 = vmatpush1.msra.mxu0 0.0
    %3804 = vmatprep.subr.mxu0 0.0
    %3805 = vmatpush1.msra.mxu0 0.0
    %3806 = vmatprep.subr.mxu0 0.0
    %3807 = vmatpush1.msra.mxu0 0.0
    %3808 = vmatprep.subr.mxu0 0.0
    %3809 = vmatpush1.msra.mxu0 0.0
    %3810 = vmatprep.subr.mxu0 0.0
    %3811 = vmatpush1.msra.mxu0 0.0
    %3812 = vmatprep.subr.mxu0 0.0
    %3813 = vmatpush1.msra.mxu0 0.0
    %3814 = vmatprep.subr.mxu0 0.0
    %3815 = vmatpush1.msra.mxu0 0.0
    %3816 = vmatprep.subr.mxu0 0.0
    %3817 = vmatpush1.msra.mxu0 0.0
    %3818 = vmatprep.subr.mxu0 0.0
    %3819 = vmatpush1.msra.mxu0 0.0
    %3820 = vmatprep.subr.mxu0 0.0
    %3821 = vmatpush1.msra.mxu0 0.0
    %3822 = vmatprep.subr.mxu0 0.0
    %3823 = vmatpush1.msra.mxu0 0.0
    %3824 = vmatprep.subr.mxu0 0.0
    %3825 = vmatpush1.msra.mxu0 0.0
    %3826 = vmatprep.subr.mxu0 0.0
    %3827 = vmatpush1.msra.mxu0 0.0
    %3828 = vmatprep.subr.mxu0 0.0
    %3829 = vmatpush1.msra.mxu0 0.0
    %3830 = vmatprep.subr.mxu0 0.0
    %3831 = vmatpush1.msra.mxu0 0.0
    %3832 = vmatprep.subr.mxu0 0.0
    %3833 = vmatpush1.msra.mxu0 0.0
    %3834 = vmatprep.subr.mxu0 0.0
    %3835 = vmatpush1.msra.mxu0 0.0
    %3836 = vmatprep.subr.mxu0 0.0
    %3837 = vmatpush1.msra.mxu0 0.0
    %3838 = vmatprep.subr.mxu0 0.0
    %3839 = vmatpush1.msra.mxu0 0.0
    %3840 = vmatprep.mubr.f32.mxu0 0.0
    %3841 = vmatmul.mubr.f32.gmra.mrb[0].mxu0 %v3774
    %v3842 = vpop.f32.mrb[0].mxu0
    %v3843 = vadd.f32 %v658, %v3842
    %v3844 = vpop.f32.mrb[0].mxu0
    %3845 = vdwg.mxu0
    %3846 = vmatprep.subr.mxu0 0.0
    %3847 = vmatpush1.msra.mxu0 %v156
    %3848 = vmatprep.subr.mxu0 0.0
    %3849 = vmatpush1.msra.mxu0 %v157
    %3850 = vmatprep.subr.mxu0 0.0
    %3851 = vmatpush1.msra.mxu0 %v158
    %3852 = vmatprep.subr.mxu0 0.0
    %3853 = vmatpush1.msra.mxu0 %v159
    %3854 = vmatprep.subr.mxu0 0.0
    %3855 = vmatpush1.msra.mxu0 0.0
    %3856 = vmatprep.subr.mxu0 0.0
    %3857 = vmatpush1.msra.mxu0 0.0
    %3858 = vmatprep.subr.mxu0 0.0
    %3859 = vmatpush1.msra.mxu0 0.0
    %3860 = vmatprep.subr.mxu0 0.0
    %3861 = vmatpush1.msra.mxu0 0.0
    %3862 = vmatprep.subr.mxu0 0.0
    %3863 = vmatpush1.msra.mxu0 0.0
    %3864 = vmatprep.subr.mxu0 0.0
    %3865 = vmatpush1.msra.mxu0 0.0
    %3866 = vmatprep.subr.mxu0 0.0
    %3867 = vmatpush1.msra.mxu0 0.0
    %3868 = vmatprep.subr.mxu0 0.0
    %3869 = vmatpush1.msra.mxu0 0.0
    %3870 = vmatprep.subr.mxu0 0.0
    %3871 = vmatpush1.msra.mxu0 0.0
    %3872 = vmatprep.subr.mxu0 0.0
    %3873 = vmatpush1.msra.mxu0 0.0
    %3874 = vmatprep.subr.mxu0 0.0
    %3875 = vmatpush1.msra.mxu0 0.0
    %3876 = vmatprep.subr.mxu0 0.0
    %3877 = vmatpush1.msra.mxu0 0.0
    %3878 = vmatprep.subr.mxu0 0.0
    %3879 = vmatpush1.msra.mxu0 0.0
    %3880 = vmatprep.subr.mxu0 0.0
    %3881 = vmatpush1.msra.mxu0 0.0
    %3882 = vmatprep.subr.mxu0 0.0
    %3883 = vmatpush1.msra.mxu0 0.0
    %3884 = vmatprep.subr.mxu0 0.0
    %3885 = vmatpush1.msra.mxu0 0.0
    %3886 = vmatprep.subr.mxu0 0.0
    %3887 = vmatpush1.msra.mxu0 0.0
    %3888 = vmatprep.subr.mxu0 0.0
    %3889 = vmatpush1.msra.mxu0 0.0
    %3890 = vmatprep.subr.mxu0 0.0
    %3891 = vmatpush1.msra.mxu0 0.0
    %3892 = vmatprep.subr.mxu0 0.0
    %3893 = vmatpush1.msra.mxu0 0.0
    %3894 = vmatprep.subr.mxu0 0.0
    %3895 = vmatpush1.msra.mxu0 0.0
    %3896 = vmatprep.subr.mxu0 0.0
    %3897 = vmatpush1.msra.mxu0 0.0
    %3898 = vmatprep.subr.mxu0 0.0
    %3899 = vmatpush1.msra.mxu0 0.0
    %3900 = vmatprep.subr.mxu0 0.0
    %3901 = vmatpush1.msra.mxu0 0.0
    %3902 = vmatprep.subr.mxu0 0.0
    %3903 = vmatpush1.msra.mxu0 0.0
    %3904 = vmatprep.subr.mxu0 0.0
    %3905 = vmatpush1.msra.mxu0 0.0
    %3906 = vmatprep.subr.mxu0 0.0
    %3907 = vmatpush1.msra.mxu0 0.0
    %3908 = vmatprep.subr.mxu0 0.0
    %3909 = vmatpush1.msra.mxu0 0.0
    %3910 = vmatprep.mubr.f32.mxu0 0.0
    %3911 = vmatmul.mubr.f32.gmra.mrb[0].mxu0 %v3774
    %v3912 = vpop.f32.mrb[0].mxu0
    %v3913 = vadd.f32 %v737, %v3912
    %v3914 = vpop.f32.mrb[0].mxu0
    %3915 = vdwg.mxu0
    %3916 = vmatprep.subr.mxu0 0.0
    %3917 = vmatpush1.msra.mxu0 %v160
    %3918 = vmatprep.subr.mxu0 0.0
    %3919 = vmatpush1.msra.mxu0 %v161
    %3920 = vmatprep.subr.mxu0 0.0
    %3921 = vmatpush1.msra.mxu0 %v162
    %3922 = vmatprep.subr.mxu0 0.0
    %3923 = vmatpush1.msra.mxu0 %v163
    %3924 = vmatprep.subr.mxu0 0.0
    %3925 = vmatpush1.msra.mxu0 0.0
    %3926 = vmatprep.subr.mxu0 0.0
    %3927 = vmatpush1.msra.mxu0 0.0
    %3928 = vmatprep.subr.mxu0 0.0
    %3929 = vmatpush1.msra.mxu0 0.0
    %3930 = vmatprep.subr.mxu0 0.0
    %3931 = vmatpush1.msra.mxu0 0.0
    %3932 = vmatprep.subr.mxu0 0.0
    %3933 = vmatpush1.msra.mxu0 0.0
    %3934 = vmatprep.subr.mxu0 0.0
    %3935 = vmatpush1.msra.mxu0 0.0
    %3936 = vmatprep.subr.mxu0 0.0
    %3937 = vmatpush1.msra.mxu0 0.0
    %3938 = vmatprep.subr.mxu0 0.0
    %3939 = vmatpush1.msra.mxu0 0.0
    %3940 = vmatprep.subr.mxu0 0.0
    %3941 = vmatpush1.msra.mxu0 0.0
    %3942 = vmatprep.subr.mxu0 0.0
    %3943 = vmatpush1.msra.mxu0 0.0
    %3944 = vmatprep.subr.mxu0 0.0
    %3945 = vmatpush1.msra.mxu0 0.0
    %3946 = vmatprep.subr.mxu0 0.0
    %3947 = vmatpush1.msra.mxu0 0.0
    %3948 = vmatprep.subr.mxu0 0.0
    %3949 = vmatpush1.msra.mxu0 0.0
    %3950 = vmatprep.subr.mxu0 0.0
    %3951 = vmatpush1.msra.mxu0 0.0
    %3952 = vmatprep.subr.mxu0 0.0
    %3953 = vmatpush1.msra.mxu0 0.0
    %3954 = vmatprep.subr.mxu0 0.0
    %3955 = vmatpush1.msra.mxu0 0.0
    %3956 = vmatprep.subr.mxu0 0.0
    %3957 = vmatpush1.msra.mxu0 0.0
    %3958 = vmatprep.subr.mxu0 0.0
    %3959 = vmatpush1.msra.mxu0 0.0
    %3960 = vmatprep.subr.mxu0 0.0
    %3961 = vmatpush1.msra.mxu0 0.0
    %3962 = vmatprep.subr.mxu0 0.0
    %3963 = vmatpush1.msra.mxu0 0.0
    %3964 = vmatprep.subr.mxu0 0.0
    %3965 = vmatpush1.msra.mxu0 0.0
    %3966 = vmatprep.subr.mxu0 0.0
    %3967 = vmatpush1.msra.mxu0 0.0
    %3968 = vmatprep.subr.mxu0 0.0
    %3969 = vmatpush1.msra.mxu0 0.0
    %3970 = vmatprep.subr.mxu0 0.0
    %3971 = vmatpush1.msra.mxu0 0.0
    %3972 = vmatprep.subr.mxu0 0.0
    %3973 = vmatpush1.msra.mxu0 0.0
    %3974 = vmatprep.subr.mxu0 0.0
    %3975 = vmatpush1.msra.mxu0 0.0
    %3976 = vmatprep.subr.mxu0 0.0
    %3977 = vmatpush1.msra.mxu0 0.0
    %3978 = vmatprep.subr.mxu0 0.0
    %3979 = vmatpush1.msra.mxu0 0.0
    %3980 = vmatprep.mubr.f32.mxu0 0.0
    %3981 = vmatmul.mubr.f32.gmra.mrb[0].mxu0 %v3774
    %v3982 = vpop.f32.mrb[0].mxu0
    %v3983 = vadd.f32 %v813, %v3982
    %v3984 = vpop.f32.mrb[0].mxu0
    %3985 = vdwg.mxu0
    %vm3986 = vcmask 64512
    %v3987 = vsel %vm3986, 0.0, 0
    %3989 = vmatprep.subr.mxu0 0.0
    %3990 = vmatpush1.msra.mxu0 %v164
    %3991 = vmatprep.subr.mxu0 0.0
    %3992 = vmatpush1.msra.mxu0 0.0
    %3993 = vmatprep.subr.mxu0 0.0
    %3994 = vmatpush1.msra.mxu0 0.0
    %3995 = vmatprep.subr.mxu0 0.0
    %3996 = vmatpush1.msra.mxu0 0.0
    %3997 = vmatprep.subr.mxu0 0.0
    %3998 = vmatpush1.msra.mxu0 0.0
    %3999 = vmatprep.subr.mxu0 0.0
    %4000 = vmatpush1.msra.mxu0 0.0
    %4001 = vmatprep.subr.mxu0 0.0
    %4002 = vmatpush1.msra.mxu0 0.0
    %4003 = vmatprep.subr.mxu0 0.0
    %4004 = vmatpush1.msra.mxu0 0.0
    %4005 = vmatprep.subr.mxu0 0.0
    %4006 = vmatpush1.msra.mxu0 0.0
    %4007 = vmatprep.subr.mxu0 0.0
    %4008 = vmatpush1.msra.mxu0 0.0
    %4009 = vmatprep.subr.mxu0 0.0
    %4010 = vmatpush1.msra.mxu0 0.0
    %4011 = vmatprep.subr.mxu0 0.0
    %4012 = vmatpush1.msra.mxu0 0.0
    %4013 = vmatprep.subr.mxu0 0.0
    %4014 = vmatpush1.msra.mxu0 0.0
    %4015 = vmatprep.subr.mxu0 0.0
    %4016 = vmatpush1.msra.mxu0 0.0
    %4017 = vmatprep.subr.mxu0 0.0
    %4018 = vmatpush1.msra.mxu0 0.0
    %4019 = vmatprep.subr.mxu0 0.0
    %4020 = vmatpush1.msra.mxu0 0.0
    %4021 = vmatprep.subr.mxu0 0.0
    %4022 = vmatpush1.msra.mxu0 0.0
    %4023 = vmatprep.subr.mxu0 0.0
    %4024 = vmatpush1.msra.mxu0 0.0
    %4025 = vmatprep.subr.mxu0 0.0
    %4026 = vmatpush1.msra.mxu0 0.0
    %4027 = vmatprep.subr.mxu0 0.0
    %4028 = vmatpush1.msra.mxu0 0.0
    %4029 = vmatprep.subr.mxu0 0.0
    %4030 = vmatpush1.msra.mxu0 0.0
    %4031 = vmatprep.subr.mxu0 0.0
    %4032 = vmatpush1.msra.mxu0 0.0
    %4033 = vmatprep.subr.mxu0 0.0
    %4034 = vmatpush1.msra.mxu0 0.0
    %4035 = vmatprep.subr.mxu0 0.0
    %4036 = vmatpush1.msra.mxu0 0.0
    %4037 = vmatprep.subr.mxu0 0.0
    %4038 = vmatpush1.msra.mxu0 0.0
    %4039 = vmatprep.subr.mxu0 0.0
    %4040 = vmatpush1.msra.mxu0 0.0
    %4041 = vmatprep.subr.mxu0 0.0
    %4042 = vmatpush1.msra.mxu0 0.0
    %4043 = vmatprep.subr.mxu0 0.0
    %4044 = vmatpush1.msra.mxu0 0.0
    %4045 = vmatprep.subr.mxu0 0.0
    %4046 = vmatpush1.msra.mxu0 0.0
    %4047 = vmatprep.subr.mxu0 0.0
    %4048 = vmatpush1.msra.mxu0 0.0
    %4049 = vmatprep.subr.mxu0 0.0
    %4050 = vmatpush1.msra.mxu0 0.0
    %4051 = vmatprep.subr.mxu0 0.0
    %4052 = vmatpush1.msra.mxu0 0.0
    %4053 = vmatprep.mubr.f32.mxu0 0.0
    %4054 = vmatmul.mubr.f32.gmra.mrb[0].mxu0 %v3987
    %v4055 = vpop.f32.mrb[0].mxu0
    %v4056 = vadd.f32 0.0, %v4055
    %v4057 = vpop.f32.mrb[0].mxu0
    %4058 = vdwg.mxu0
    %4059 = vmatprep.subr.mxu0 0.0
    %4060 = vmatpush1.msra.mxu0 %v165
    %4061 = vmatprep.subr.mxu0 0.0
    %4062 = vmatpush1.msra.mxu0 0.0
    %4063 = vmatprep.subr.mxu0 0.0
    %4064 = vmatpush1.msra.mxu0 0.0
    %4065 = vmatprep.subr.mxu0 0.0
    %4066 = vmatpush1.msra.mxu0 0.0
    %4067 = vmatprep.subr.mxu0 0.0
    %4068 = vmatpush1.msra.mxu0 0.0
    %4069 = vmatprep.subr.mxu0 0.0
    %4070 = vmatpush1.msra.mxu0 0.0
    %4071 = vmatprep.subr.mxu0 0.0
    %4072 = vmatpush1.msra.mxu0 0.0
    %4073 = vmatprep.subr.mxu0 0.0
    %4074 = vmatpush1.msra.mxu0 0.0
    %4075 = vmatprep.subr.mxu0 0.0
    %4076 = vmatpush1.msra.mxu0 0.0
    %4077 = vmatprep.subr.mxu0 0.0
    %4078 = vmatpush1.msra.mxu0 0.0
    %4079 = vmatprep.subr.mxu0 0.0
    %4080 = vmatpush1.msra.mxu0 0.0
    %4081 = vmatprep.subr.mxu0 0.0
    %4082 = vmatpush1.msra.mxu0 0.0
    %4083 = vmatprep.subr.mxu0 0.0
    %4084 = vmatpush1.msra.mxu0 0.0
    %4085 = vmatprep.subr.mxu0 0.0
    %4086 = vmatpush1.msra.mxu0 0.0
    %4087 = vmatprep.subr.mxu0 0.0
    %4088 = vmatpush1.msra.mxu0 0.0
    %4089 = vmatprep.subr.mxu0 0.0
    %4090 = vmatpush1.msra.mxu0 0.0
    %4091 = vmatprep.subr.mxu0 0.0
    %4092 = vmatpush1.msra.mxu0 0.0
    %4093 = vmatprep.subr.mxu0 0.0
    %4094 = vmatpush1.msra.mxu0 0.0
    %4095 = vmatprep.subr.mxu0 0.0
    %4096 = vmatpush1.msra.mxu0 0.0
    %4097 = vmatprep.subr.mxu0 0.0
    %4098 = vmatpush1.msra.mxu0 0.0
    %4099 = vmatprep.subr.mxu0 0.0
    %4100 = vmatpush1.msra.mxu0 0.0
    %4101 = vmatprep.subr.mxu0 0.0
    %4102 = vmatpush1.msra.mxu0 0.0
    %4103 = vmatprep.subr.mxu0 0.0
    %4104 = vmatpush1.msra.mxu0 0.0
    %4105 = vmatprep.subr.mxu0 0.0
    %4106 = vmatpush1.msra.mxu0 0.0
    %4107 = vmatprep.subr.mxu0 0.0
    %4108 = vmatpush1.msra.mxu0 0.0
    %4109 = vmatprep.subr.mxu0 0.0
    %4110 = vmatpush1.msra.mxu0 0.0
    %4111 = vmatprep.subr.mxu0 0.0
    %4112 = vmatpush1.msra.mxu0 0.0
    %4113 = vmatprep.subr.mxu0 0.0
    %4114 = vmatpush1.msra.mxu0 0.0
    %4115 = vmatprep.subr.mxu0 0.0
    %4116 = vmatpush1.msra.mxu0 0.0
    %4117 = vmatprep.subr.mxu0 0.0
    %4118 = vmatpush1.msra.mxu0 0.0
    %4119 = vmatprep.subr.mxu0 0.0
    %4120 = vmatpush1.msra.mxu0 0.0
    %4121 = vmatprep.subr.mxu0 0.0
    %4122 = vmatpush1.msra.mxu0 0.0
    %4123 = vmatprep.mubr.f32.mxu0 0.0
    %4124 = vmatmul.mubr.f32.gmra.mrb[0].mxu0 %v3987
    %v4125 = vpop.f32.mrb[0].mxu0
    %v4126 = vadd.f32 0.0, %v4125
    %v4127 = vpop.f32.mrb[0].mxu0
    %4128 = vdwg.mxu0
    %v4129 = vadd.f32 %v730, %v4056
    %v4130 = vsub.f32 0.0, %v4129
    %v4131 = vmul.f32 %v4130, 1.442695
    %v4132 = vpow.pop %v4131
    %v4133 = vadd.f32 %v4132, 1.0
    %v4134 = vrcp.pop %v4133
    %v4135 = vmul.f32 1.0, %v4134
    %v4136 = vadd.f32 %v806, %v4126
    %v4137 = vsub.f32 0.0, %v4136
    %v4138 = vmul.f32 %v4137, 1.442695
    %v4139 = vpow.pop %v4138
    %v4140 = vadd.f32 %v4139, 1.0
    %v4141 = vrcp.pop %v4140
    %v4142 = vmul.f32 1.0, %v4141
    %v4144 = vlaneseq
    %v4145 = vshrl.u32 %v4144, 7
    %v4146 = vsub.s32 0, %v4145
    %v4147 = vrot.slane %v168, %v4146
    %4149 = vmatprep.subr.mxu0 0.0
    %4150 = vmatpush1.msra.mxu0 %v166
    %4151 = vmatprep.subr.mxu0 0.0
    %4152 = vmatpush1.msra.mxu0 0.0
    %4153 = vmatprep.subr.mxu0 0.0
    %4154 = vmatpush1.msra.mxu0 0.0
    %4155 = vmatprep.subr.mxu0 0.0
    %4156 = vmatpush1.msra.mxu0 0.0
    %4157 = vmatprep.subr.mxu0 0.0
    %4158 = vmatpush1.msra.mxu0 0.0
    %4159 = vmatprep.subr.mxu0 0.0
    %4160 = vmatpush1.msra.mxu0 0.0
    %4161 = vmatprep.subr.mxu0 0.0
    %4162 = vmatpush1.msra.mxu0 0.0
    %4163 = vmatprep.subr.mxu0 0.0
    %4164 = vmatpush1.msra.mxu0 0.0
    %4165 = vmatprep.subr.mxu0 0.0
    %4166 = vmatpush1.msra.mxu0 0.0
    %4167 = vmatprep.subr.mxu0 0.0
    %4168 = vmatpush1.msra.mxu0 0.0
    %4169 = vmatprep.subr.mxu0 0.0
    %4170 = vmatpush1.msra.mxu0 0.0
    %4171 = vmatprep.subr.mxu0 0.0
    %4172 = vmatpush1.msra.mxu0 0.0
    %4173 = vmatprep.subr.mxu0 0.0
    %4174 = vmatpush1.msra.mxu0 0.0
    %4175 = vmatprep.subr.mxu0 0.0
    %4176 = vmatpush1.msra.mxu0 0.0
    %4177 = vmatprep.subr.mxu0 0.0
    %4178 = vmatpush1.msra.mxu0 0.0
    %4179 = vmatprep.subr.mxu0 0.0
    %4180 = vmatpush1.msra.mxu0 0.0
    %4181 = vmatprep.subr.mxu0 0.0
    %4182 = vmatpush1.msra.mxu0 0.0
    %4183 = vmatprep.subr.mxu0 0.0
    %4184 = vmatpush1.msra.mxu0 0.0
    %4185 = vmatprep.subr.mxu0 0.0
    %4186 = vmatpush1.msra.mxu0 0.0
    %4187 = vmatprep.subr.mxu0 0.0
    %4188 = vmatpush1.msra.mxu0 0.0
    %4189 = vmatprep.subr.mxu0 0.0
    %4190 = vmatpush1.msra.mxu0 0.0
    %4191 = vmatprep.subr.mxu0 0.0
    %4192 = vmatpush1.msra.mxu0 0.0
    %4193 = vmatprep.subr.mxu0 0.0
    %4194 = vmatpush1.msra.mxu0 0.0
    %4195 = vmatprep.subr.mxu0 0.0
    %4196 = vmatpush1.msra.mxu0 0.0
    %4197 = vmatprep.subr.mxu0 0.0
    %4198 = vmatpush1.msra.mxu0 0.0
    %4199 = vmatprep.subr.mxu0 0.0
    %4200 = vmatpush1.msra.mxu0 0.0
    %4201 = vmatprep.subr.mxu0 0.0
    %4202 = vmatpush1.msra.mxu0 0.0
    %4203 = vmatprep.subr.mxu0 0.0
    %4204 = vmatpush1.msra.mxu0 0.0
    %4205 = vmatprep.subr.mxu0 0.0
    %4206 = vmatpush1.msra.mxu0 0.0
    %4207 = vmatprep.subr.mxu0 0.0
    %4208 = vmatpush1.msra.mxu0 0.0
    %4209 = vmatprep.subr.mxu0 0.0
    %4210 = vmatpush1.msra.mxu0 0.0
    %4211 = vmatprep.subr.mxu0 0.0
    %4212 = vmatpush1.msra.mxu0 0.0
    %4213 = vmatprep.mubr.f32.mxu0 0.0
    %4214 = vmatmul.mubr.f32.gmra.mrb[0].mxu0 %v3987
    %v4215 = vpop.f32.mrb[0].mxu0
    %v4216 = vadd.f32 %v4147, %v4215
    %v4217 = vpop.f32.mrb[0].mxu0
    %4218 = vdwg.mxu0
    %v4219 = vmul.f32 %v4135, %v4216
    %v4220 = vadd.f32 %v882, %v4219
    %v4221 = vtanh.pop %v4220
    %v4222 = vsub.f32 0.0, %v4221
    %v4223 = vmul.f32 %v4142, %v4222
    %v4224 = vadd.f32 %v4221, %v4223
    %v4226 = vsel %vm3986, %v4224, 0
    %4228 = vmatprep.subr.mxu0 0.0
    %4229 = vmatpush1.msra.mxu0 %v164
    %4230 = vmatprep.subr.mxu0 0.0
    %4231 = vmatpush1.msra.mxu0 0.0
    %4232 = vmatprep.subr.mxu0 0.0
    %4233 = vmatpush1.msra.mxu0 0.0
    %4234 = vmatprep.subr.mxu0 0.0
    %4235 = vmatpush1.msra.mxu0 0.0
    %4236 = vmatprep.subr.mxu0 0.0
    %4237 = vmatpush1.msra.mxu0 0.0
    %4238 = vmatprep.subr.mxu0 0.0
    %4239 = vmatpush1.msra.mxu0 0.0
    %4240 = vmatprep.subr.mxu0 0.0
    %4241 = vmatpush1.msra.mxu0 0.0
    %4242 = vmatprep.subr.mxu0 0.0
    %4243 = vmatpush1.msra.mxu0 0.0
    %4244 = vmatprep.subr.mxu0 0.0
    %4245 = vmatpush1.msra.mxu0 0.0
    %4246 = vmatprep.subr.mxu0 0.0
    %4247 = vmatpush1.msra.mxu0 0.0
    %4248 = vmatprep.subr.mxu0 0.0
    %4249 = vmatpush1.msra.mxu0 0.0
    %4250 = vmatprep.subr.mxu0 0.0
    %4251 = vmatpush1.msra.mxu0 0.0
    %4252 = vmatprep.subr.mxu0 0.0
    %4253 = vmatpush1.msra.mxu0 0.0
    %4254 = vmatprep.subr.mxu0 0.0
    %4255 = vmatpush1.msra.mxu0 0.0
    %4256 = vmatprep.subr.mxu0 0.0
    %4257 = vmatpush1.msra.mxu0 0.0
    %4258 = vmatprep.subr.mxu0 0.0
    %4259 = vmatpush1.msra.mxu0 0.0
    %4260 = vmatprep.subr.mxu0 0.0
    %4261 = vmatpush1.msra.mxu0 0.0
    %4262 = vmatprep.subr.mxu0 0.0
    %4263 = vmatpush1.msra.mxu0 0.0
    %4264 = vmatprep.subr.mxu0 0.0
    %4265 = vmatpush1.msra.mxu0 0.0
    %4266 = vmatprep.subr.mxu0 0.0
    %4267 = vmatpush1.msra.mxu0 0.0
    %4268 = vmatprep.subr.mxu0 0.0
    %4269 = vmatpush1.msra.mxu0 0.0
    %4270 = vmatprep.subr.mxu0 0.0
    %4271 = vmatpush1.msra.mxu0 0.0
    %4272 = vmatprep.subr.mxu0 0.0
    %4273 = vmatpush1.msra.mxu0 0.0
    %4274 = vmatprep.subr.mxu0 0.0
    %4275 = vmatpush1.msra.mxu0 0.0
    %4276 = vmatprep.subr.mxu0 0.0
    %4277 = vmatpush1.msra.mxu0 0.0
    %4278 = vmatprep.subr.mxu0 0.0
    %4279 = vmatpush1.msra.mxu0 0.0
    %4280 = vmatprep.subr.mxu0 0.0
    %4281 = vmatpush1.msra.mxu0 0.0
    %4282 = vmatprep.subr.mxu0 0.0
    %4283 = vmatpush1.msra.mxu0 0.0
    %4284 = vmatprep.subr.mxu0 0.0
    %4285 = vmatpush1.msra.mxu0 0.0
    %4286 = vmatprep.subr.mxu0 0.0
    %4287 = vmatpush1.msra.mxu0 0.0
    %4288 = vmatprep.subr.mxu0 0.0
    %4289 = vmatpush1.msra.mxu0 0.0
    %4290 = vmatprep.subr.mxu0 0.0
    %4291 = vmatpush1.msra.mxu0 0.0
    %4292 = vmatprep.mubr.f32.mxu0 0.0
    %4293 = vmatmul.mubr.f32.gmra.mrb[0].mxu0 %v4226
    %v4294 = vpop.f32.mrb[0].mxu0
    %v4295 = vadd.f32 0.0, %v4294
    %v4296 = vpop.f32.mrb[0].mxu0
    %4297 = vdwg.mxu0
    %4298 = vmatprep.subr.mxu0 0.0
    %4299 = vmatpush1.msra.mxu0 %v165
    %4300 = vmatprep.subr.mxu0 0.0
    %4301 = vmatpush1.msra.mxu0 0.0
    %4302 = vmatprep.subr.mxu0 0.0
    %4303 = vmatpush1.msra.mxu0 0.0
    %4304 = vmatprep.subr.mxu0 0.0
    %4305 = vmatpush1.msra.mxu0 0.0
    %4306 = vmatprep.subr.mxu0 0.0
    %4307 = vmatpush1.msra.mxu0 0.0
    %4308 = vmatprep.subr.mxu0 0.0
    %4309 = vmatpush1.msra.mxu0 0.0
    %4310 = vmatprep.subr.mxu0 0.0
    %4311 = vmatpush1.msra.mxu0 0.0
    %4312 = vmatprep.subr.mxu0 0.0
    %4313 = vmatpush1.msra.mxu0 0.0
    %4314 = vmatprep.subr.mxu0 0.0
    %4315 = vmatpush1.msra.mxu0 0.0
    %4316 = vmatprep.subr.mxu0 0.0
    %4317 = vmatpush1.msra.mxu0 0.0
    %4318 = vmatprep.subr.mxu0 0.0
    %4319 = vmatpush1.msra.mxu0 0.0
    %4320 = vmatprep.subr.mxu0 0.0
    %4321 = vmatpush1.msra.mxu0 0.0
    %4322 = vmatprep.subr.mxu0 0.0
    %4323 = vmatpush1.msra.mxu0 0.0
    %4324 = vmatprep.subr.mxu0 0.0
    %4325 = vmatpush1.msra.mxu0 0.0
    %4326 = vmatprep.subr.mxu0 0.0
    %4327 = vmatpush1.msra.mxu0 0.0
    %4328 = vmatprep.subr.mxu0 0.0
    %4329 = vmatpush1.msra.mxu0 0.0
    %4330 = vmatprep.subr.mxu0 0.0
    %4331 = vmatpush1.msra.mxu0 0.0
    %4332 = vmatprep.subr.mxu0 0.0
    %4333 = vmatpush1.msra.mxu0 0.0
    %4334 = vmatprep.subr.mxu0 0.0
    %4335 = vmatpush1.msra.mxu0 0.0
    %4336 = vmatprep.subr.mxu0 0.0
    %4337 = vmatpush1.msra.mxu0 0.0
    %4338 = vmatprep.subr.mxu0 0.0
    %4339 = vmatpush1.msra.mxu0 0.0
    %4340 = vmatprep.subr.mxu0 0.0
    %4341 = vmatpush1.msra.mxu0 0.0
    %4342 = vmatprep.subr.mxu0 0.0
    %4343 = vmatpush1.msra.mxu0 0.0
    %4344 = vmatprep.subr.mxu0 0.0
    %4345 = vmatpush1.msra.mxu0 0.0
    %4346 = vmatprep.subr.mxu0 0.0
    %4347 = vmatpush1.msra.mxu0 0.0
    %4348 = vmatprep.subr.mxu0 0.0
    %4349 = vmatpush1.msra.mxu0 0.0
    %4350 = vmatprep.subr.mxu0 0.0
    %4351 = vmatpush1.msra.mxu0 0.0
    %4352 = vmatprep.subr.mxu0 0.0
    %4353 = vmatpush1.msra.mxu0 0.0
    %4354 = vmatprep.subr.mxu0 0.0
    %4355 = vmatpush1.msra.mxu0 0.0
    %4356 = vmatprep.subr.mxu0 0.0
    %4357 = vmatpush1.msra.mxu0 0.0
    %4358 = vmatprep.subr.mxu0 0.0
    %4359 = vmatpush1.msra.mxu0 0.0
    %4360 = vmatprep.subr.mxu0 0.0
    %4361 = vmatpush1.msra.mxu0 0.0
    %4362 = vmatprep.mubr.f32.mxu0 0.0
    %4363 = vmatmul.mubr.f32.gmra.mrb[0].mxu0 %v4226
    %v4364 = vpop.f32.mrb[0].mxu0
    %v4365 = vadd.f32 0.0, %v4364
    %v4366 = vpop.f32.mrb[0].mxu0
    %4367 = vdwg.mxu0
    %v4368 = vadd.f32 %v1185, %v4295
    %v4369 = vsub.f32 0.0, %v4368
    %v4370 = vmul.f32 %v4369, 1.442695
    %v4371 = vpow.pop %v4370
    %v4372 = vadd.f32 %v4371, 1.0
    %v4373 = vrcp.pop %v4372
    %v4374 = vmul.f32 1.0, %v4373
    %v4375 = vadd.f32 %v1255, %v4365
    %v4376 = vsub.f32 0.0, %v4375
    %v4377 = vmul.f32 %v4376, 1.442695
    %v4378 = vpow.pop %v4377
    %v4379 = vadd.f32 %v4378, 1.0
    %v4380 = vrcp.pop %v4379
    %v4381 = vmul.f32 1.0, %v4380
    %4382 = vmatprep.subr.mxu0 0.0
    %4383 = vmatpush1.msra.mxu0 %v166
    %4384 = vmatprep.subr.mxu0 0.0
    %4385 = vmatpush1.msra.mxu0 0.0
    %4386 = vmatprep.subr.mxu0 0.0
    %4387 = vmatpush1.msra.mxu0 0.0
    %4388 = vmatprep.subr.mxu0 0.0
    %4389 = vmatpush1.msra.mxu0 0.0
    %4390 = vmatprep.subr.mxu0 0.0
    %4391 = vmatpush1.msra.mxu0 0.0
    %4392 = vmatprep.subr.mxu0 0.0
    %4393 = vmatpush1.msra.mxu0 0.0
    %4394 = vmatprep.subr.mxu0 0.0
    %4395 = vmatpush1.msra.mxu0 0.0
    %4396 = vmatprep.subr.mxu0 0.0
    %4397 = vmatpush1.msra.mxu0 0.0
    %4398 = vmatprep.subr.mxu0 0.0
    %4399 = vmatpush1.msra.mxu0 0.0
    %4400 = vmatprep.subr.mxu0 0.0
    %4401 = vmatpush1.msra.mxu0 0.0
    %4402 = vmatprep.subr.mxu0 0.0
    %4403 = vmatpush1.msra.mxu0 0.0
    %4404 = vmatprep.subr.mxu0 0.0
    %4405 = vmatpush1.msra.mxu0 0.0
    %4406 = vmatprep.subr.mxu0 0.0
    %4407 = vmatpush1.msra.mxu0 0.0
    %4408 = vmatprep.subr.mxu0 0.0
    %4409 = vmatpush1.msra.mxu0 0.0
    %4410 = vmatprep.subr.mxu0 0.0
    %4411 = vmatpush1.msra.mxu0 0.0
    %4412 = vmatprep.subr.mxu0 0.0
    %4413 = vmatpush1.msra.mxu0 0.0
    %4414 = vmatprep.subr.mxu0 0.0
    %4415 = vmatpush1.msra.mxu0 0.0
    %4416 = vmatprep.subr.mxu0 0.0
    %4417 = vmatpush1.msra.mxu0 0.0
    %4418 = vmatprep.subr.mxu0 0.0
    %4419 = vmatpush1.msra.mxu0 0.0
    %4420 = vmatprep.subr.mxu0 0.0
    %4421 = vmatpush1.msra.mxu0 0.0
    %4422 = vmatprep.subr.mxu0 0.0
    %4423 = vmatpush1.msra.mxu0 0.0
    %4424 = vmatprep.subr.mxu0 0.0
    %4425 = vmatpush1.msra.mxu0 0.0
    %4426 = vmatprep.subr.mxu0 0.0
    %4427 = vmatpush1.msra.mxu0 0.0
    %4428 = vmatprep.subr.mxu0 0.0
    %4429 = vmatpush1.msra.mxu0 0.0
    %4430 = vmatprep.subr.mxu0 0.0
    %4431 = vmatpush1.msra.mxu0 0.0
    %4432 = vmatprep.subr.mxu0 0.0
    %4433 = vmatpush1.msra.mxu0 0.0
    %4434 = vmatprep.subr.mxu0 0.0
    %4435 = vmatpush1.msra.mxu0 0.0
    %4436 = vmatprep.subr.mxu0 0.0
    %4437 = vmatpush1.msra.mxu0 0.0
    %4438 = vmatprep.subr.mxu0 0.0
    %4439 = vmatpush1.msra.mxu0 0.0
    %4440 = vmatprep.subr.mxu0 0.0
    %4441 = vmatpush1.msra.mxu0 0.0
    %4442 = vmatprep.subr.mxu0 0.0
    %4443 = vmatpush1.msra.mxu0 0.0
    %4444 = vmatprep.subr.mxu0 0.0
    %4445 = vmatpush1.msra.mxu0 0.0
    %4446 = vmatprep.mubr.f32.mxu0 0.0
    %4447 = vmatmul.mubr.f32.gmra.mrb[0].mxu0 %v4226
    %v4448 = vpop.f32.mrb[0].mxu0
    %v4449 = vadd.f32 %v4147, %v4448
    %v4450 = vpop.f32.mrb[0].mxu0
    %4451 = vdwg.mxu0
    %v4452 = vmul.f32 %v4374, %v4449
    %v4453 = vadd.f32 %v1325, %v4452
    %v4454 = vtanh.pop %v4453
    %v4455 = vsub.f32 %v4224, %v4454
    %v4456 = vmul.f32 %v4381, %v4455
    %v4457 = vadd.f32 %v4454, %v4456
    %v4459 = vsel %vm3986, %v4457, 0
    %4461 = vmatprep.subr.mxu0 0.0
    %4462 = vmatpush1.msra.mxu0 %v164
    %4463 = vmatprep.subr.mxu0 0.0
    %4464 = vmatpush1.msra.mxu0 0.0
    %4465 = vmatprep.subr.mxu0 0.0
    %4466 = vmatpush1.msra.mxu0 0.0
    %4467 = vmatprep.subr.mxu0 0.0
    %4468 = vmatpush1.msra.mxu0 0.0
    %4469 = vmatprep.subr.mxu0 0.0
    %4470 = vmatpush1.msra.mxu0 0.0
    %4471 = vmatprep.subr.mxu0 0.0
    %4472 = vmatpush1.msra.mxu0 0.0
    %4473 = vmatprep.subr.mxu0 0.0
    %4474 = vmatpush1.msra.mxu0 0.0
    %4475 = vmatprep.subr.mxu0 0.0
    %4476 = vmatpush1.msra.mxu0 0.0
    %4477 = vmatprep.subr.mxu0 0.0
    %4478 = vmatpush1.msra.mxu0 0.0
    %4479 = vmatprep.subr.mxu0 0.0
    %4480 = vmatpush1.msra.mxu0 0.0
    %4481 = vmatprep.subr.mxu0 0.0
    %4482 = vmatpush1.msra.mxu0 0.0
    %4483 = vmatprep.subr.mxu0 0.0
    %4484 = vmatpush1.msra.mxu0 0.0
    %4485 = vmatprep.subr.mxu0 0.0
    %4486 = vmatpush1.msra.mxu0 0.0
    %4487 = vmatprep.subr.mxu0 0.0
    %4488 = vmatpush1.msra.mxu0 0.0
    %4489 = vmatprep.subr.mxu0 0.0
    %4490 = vmatpush1.msra.mxu0 0.0
    %4491 = vmatprep.subr.mxu0 0.0
    %4492 = vmatpush1.msra.mxu0 0.0
    %4493 = vmatprep.subr.mxu0 0.0
    %4494 = vmatpush1.msra.mxu0 0.0
    %4495 = vmatprep.subr.mxu0 0.0
    %4496 = vmatpush1.msra.mxu0 0.0
    %4497 = vmatprep.subr.mxu0 0.0
    %4498 = vmatpush1.msra.mxu0 0.0
    %4499 = vmatprep.subr.mxu0 0.0
    %4500 = vmatpush1.msra.mxu0 0.0
    %4501 = vmatprep.subr.mxu0 0.0
    %4502 = vmatpush1.msra.mxu0 0.0
    %4503 = vmatprep.subr.mxu0 0.0
    %4504 = vmatpush1.msra.mxu0 0.0
    %4505 = vmatprep.subr.mxu0 0.0
    %4506 = vmatpush1.msra.mxu0 0.0
    %4507 = vmatprep.subr.mxu0 0.0
    %4508 = vmatpush1.msra.mxu0 0.0
    %4509 = vmatprep.subr.mxu0 0.0
    %4510 = vmatpush1.msra.mxu0 0.0
    %4511 = vmatprep.subr.mxu0 0.0
    %4512 = vmatpush1.msra.mxu0 0.0
    %4513 = vmatprep.subr.mxu0 0.0
    %4514 = vmatpush1.msra.mxu0 0.0
    %4515 = vmatprep.subr.mxu0 0.0
    %4516 = vmatpush1.msra.mxu0 0.0
    %4517 = vmatprep.subr.mxu0 0.0
    %4518 = vmatpush1.msra.mxu0 0.0
    %4519 = vmatprep.subr.mxu0 0.0
    %4520 = vmatpush1.msra.mxu0 0.0
    %4521 = vmatprep.subr.mxu0 0.0
    %4522 = vmatpush1.msra.mxu0 0.0
    %4523 = vmatprep.subr.mxu0 0.0
    %4524 = vmatpush1.msra.mxu0 0.0
    %4525 = vmatprep.mubr.f32.mxu0 0.0
    %4526 = vmatmul.mubr.f32.gmra.mrb[0].mxu0 %v4459
    %v4527 = vpop.f32.mrb[0].mxu0
    %v4528 = vadd.f32 0.0, %v4527
    %v4529 = vpop.f32.mrb[0].mxu0
    %4530 = vdwg.mxu0
    %4531 = vmatprep.subr.mxu0 0.0
    %4532 = vmatpush1.msra.mxu0 %v165
    %4533 = vmatprep.subr.mxu0 0.0
    %4534 = vmatpush1.msra.mxu0 0.0
    %4535 = vmatprep.subr.mxu0 0.0
    %4536 = vmatpush1.msra.mxu0 0.0
    %4537 = vmatprep.subr.mxu0 0.0
    %4538 = vmatpush1.msra.mxu0 0.0
    %4539 = vmatprep.subr.mxu0 0.0
    %4540 = vmatpush1.msra.mxu0 0.0
    %4541 = vmatprep.subr.mxu0 0.0
    %4542 = vmatpush1.msra.mxu0 0.0
    %4543 = vmatprep.subr.mxu0 0.0
    %4544 = vmatpush1.msra.mxu0 0.0
    %4545 = vmatprep.subr.mxu0 0.0
    %4546 = vmatpush1.msra.mxu0 0.0
    %4547 = vmatprep.subr.mxu0 0.0
    %4548 = vmatpush1.msra.mxu0 0.0
    %4549 = vmatprep.subr.mxu0 0.0
    %4550 = vmatpush1.msra.mxu0 0.0
    %4551 = vmatprep.subr.mxu0 0.0
    %4552 = vmatpush1.msra.mxu0 0.0
    %4553 = vmatprep.subr.mxu0 0.0
    %4554 = vmatpush1.msra.mxu0 0.0
    %4555 = vmatprep.subr.mxu0 0.0
    %4556 = vmatpush1.msra.mxu0 0.0
    %4557 = vmatprep.subr.mxu0 0.0
    %4558 = vmatpush1.msra.mxu0 0.0
    %4559 = vmatprep.subr.mxu0 0.0
    %4560 = vmatpush1.msra.mxu0 0.0
    %4561 = vmatprep.subr.mxu0 0.0
    %4562 = vmatpush1.msra.mxu0 0.0
    %4563 = vmatprep.subr.mxu0 0.0
    %4564 = vmatpush1.msra.mxu0 0.0
    %4565 = vmatprep.subr.mxu0 0.0
    %4566 = vmatpush1.msra.mxu0 0.0
    %4567 = vmatprep.subr.mxu0 0.0
    %4568 = vmatpush1.msra.mxu0 0.0
    %4569 = vmatprep.subr.mxu0 0.0
    %4570 = vmatpush1.msra.mxu0 0.0
    %4571 = vmatprep.subr.mxu0 0.0
    %4572 = vmatpush1.msra.mxu0 0.0
    %4573 = vmatprep.subr.mxu0 0.0
    %4574 = vmatpush1.msra.mxu0 0.0
    %4575 = vmatprep.subr.mxu0 0.0
    %4576 = vmatpush1.msra.mxu0 0.0
    %4577 = vmatprep.subr.mxu0 0.0
    %4578 = vmatpush1.msra.mxu0 0.0
    %4579 = vmatprep.subr.mxu0 0.0
    %4580 = vmatpush1.msra.mxu0 0.0
    %4581 = vmatprep.subr.mxu0 0.0
    %4582 = vmatpush1.msra.mxu0 0.0
    %4583 = vmatprep.subr.mxu0 0.0
    %4584 = vmatpush1.msra.mxu0 0.0
    %4585 = vmatprep.subr.mxu0 0.0
    %4586 = vmatpush1.msra.mxu0 0.0
    %4587 = vmatprep.subr.mxu0 0.0
    %4588 = vmatpush1.msra.mxu0 0.0
    %4589 = vmatprep.subr.mxu0 0.0
    %4590 = vmatpush1.msra.mxu0 0.0
    %4591 = vmatprep.subr.mxu0 0.0
    %4592 = vmatpush1.msra.mxu0 0.0
    %4593 = vmatprep.subr.mxu0 0.0
    %4594 = vmatpush1.msra.mxu0 0.0
    %4595 = vmatprep.mubr.f32.mxu0 0.0
    %4596 = vmatmul.mubr.f32.gmra.mrb[0].mxu0 %v4459
    %v4597 = vpop.f32.mrb[0].mxu0
    %v4598 = vadd.f32 0.0, %v4597
    %v4599 = vpop.f32.mrb[0].mxu0
    %4600 = vdwg.mxu0
    %v4601 = vadd.f32 %v1628, %v4528
    %v4602 = vsub.f32 0.0, %v4601
    %v4603 = vmul.f32 %v4602, 1.442695
    %v4604 = vpow.pop %v4603
    %v4605 = vadd.f32 %v4604, 1.0
    %v4606 = vrcp.pop %v4605
    %v4607 = vmul.f32 1.0, %v4606
    %v4608 = vadd.f32 %v1698, %v4598
    %v4609 = vsub.f32 0.0, %v4608
    %v4610 = vmul.f32 %v4609, 1.442695
    %v4611 = vpow.pop %v4610
    %v4612 = vadd.f32 %v4611, 1.0
    %v4613 = vrcp.pop %v4612
    %v4614 = vmul.f32 1.0, %v4613
    %4615 = vmatprep.subr.mxu0 0.0
    %4616 = vmatpush1.msra.mxu0 %v166
    %4617 = vmatprep.subr.mxu0 0.0
    %4618 = vmatpush1.msra.mxu0 0.0
    %4619 = vmatprep.subr.mxu0 0.0
    %4620 = vmatpush1.msra.mxu0 0.0
    %4621 = vmatprep.subr.mxu0 0.0
    %4622 = vmatpush1.msra.mxu0 0.0
    %4623 = vmatprep.subr.mxu0 0.0
    %4624 = vmatpush1.msra.mxu0 0.0
    %4625 = vmatprep.subr.mxu0 0.0
    %4626 = vmatpush1.msra.mxu0 0.0
    %4627 = vmatprep.subr.mxu0 0.0
    %4628 = vmatpush1.msra.mxu0 0.0
    %4629 = vmatprep.subr.mxu0 0.0
    %4630 = vmatpush1.msra.mxu0 0.0
    %4631 = vmatprep.subr.mxu0 0.0
    %4632 = vmatpush1.msra.mxu0 0.0
    %4633 = vmatprep.subr.mxu0 0.0
    %4634 = vmatpush1.msra.mxu0 0.0
    %4635 = vmatprep.subr.mxu0 0.0
    %4636 = vmatpush1.msra.mxu0 0.0
    %4637 = vmatprep.subr.mxu0 0.0
    %4638 = vmatpush1.msra.mxu0 0.0
    %4639 = vmatprep.subr.mxu0 0.0
    %4640 = vmatpush1.msra.mxu0 0.0
    %4641 = vmatprep.subr.mxu0 0.0
    %4642 = vmatpush1.msra.mxu0 0.0
    %4643 = vmatprep.subr.mxu0 0.0
    %4644 = vmatpush1.msra.mxu0 0.0
    %4645 = vmatprep.subr.mxu0 0.0
    %4646 = vmatpush1.msra.mxu0 0.0
    %4647 = vmatprep.subr.mxu0 0.0
    %4648 = vmatpush1.msra.mxu0 0.0
    %4649 = vmatprep.subr.mxu0 0.0
    %4650 = vmatpush1.msra.mxu0 0.0
    %4651 = vmatprep.subr.mxu0 0.0
    %4652 = vmatpush1.msra.mxu0 0.0
    %4653 = vmatprep.subr.mxu0 0.0
    %4654 = vmatpush1.msra.mxu0 0.0
    %4655 = vmatprep.subr.mxu0 0.0
    %4656 = vmatpush1.msra.mxu0 0.0
    %4657 = vmatprep.subr.mxu0 0.0
    %4658 = vmatpush1.msra.mxu0 0.0
    %4659 = vmatprep.subr.mxu0 0.0
    %4660 = vmatpush1.msra.mxu0 0.0
    %4661 = vmatprep.subr.mxu0 0.0
    %4662 = vmatpush1.msra.mxu0 0.0
    %4663 = vmatprep.subr.mxu0 0.0
    %4664 = vmatpush1.msra.mxu0 0.0
    %4665 = vmatprep.subr.mxu0 0.0
    %4666 = vmatpush1.msra.mxu0 0.0
    %4667 = vmatprep.subr.mxu0 0.0
    %4668 = vmatpush1.msra.mxu0 0.0
    %4669 = vmatprep.subr.mxu0 0.0
    %4670 = vmatpush1.msra.mxu0 0.0
    %4671 = vmatprep.subr.mxu0 0.0
    %4672 = vmatpush1.msra.mxu0 0.0
    %4673 = vmatprep.subr.mxu0 0.0
    %4674 = vmatpush1.msra.mxu0 0.0
    %4675 = vmatprep.subr.mxu0 0.0
    %4676 = vmatpush1.msra.mxu0 0.0
    %4677 = vmatprep.subr.mxu0 0.0
    %4678 = vmatpush1.msra.mxu0 0.0
    %4679 = vmatprep.mubr.f32.mxu0 0.0
    %4680 = vmatmul.mubr.f32.gmra.mrb[0].mxu0 %v4459
    %v4681 = vpop.f32.mrb[0].mxu0
    %v4682 = vadd.f32 %v4147, %v4681
    %v4683 = vpop.f32.mrb[0].mxu0
    %4684 = vdwg.mxu0
    %v4685 = vmul.f32 %v4607, %v4682
    %v4686 = vadd.f32 %v1768, %v4685
    %v4687 = vtanh.pop %v4686
    %v4688 = vsub.f32 %v4457, %v4687
    %v4689 = vmul.f32 %v4614, %v4688
    %v4690 = vadd.f32 %v4687, %v4689
    %v4692 = vsel %vm3986, %v4690, 0
    %4694 = vmatprep.subr.mxu0 0.0
    %4695 = vmatpush1.msra.mxu0 %v164
    %4696 = vmatprep.subr.mxu0 0.0
    %4697 = vmatpush1.msra.mxu0 0.0
    %4698 = vmatprep.subr.mxu0 0.0
    %4699 = vmatpush1.msra.mxu0 0.0
    %4700 = vmatprep.subr.mxu0 0.0
    %4701 = vmatpush1.msra.mxu0 0.0
    %4702 = vmatprep.subr.mxu0 0.0
    %4703 = vmatpush1.msra.mxu0 0.0
    %4704 = vmatprep.subr.mxu0 0.0
    %4705 = vmatpush1.msra.mxu0 0.0
    %4706 = vmatprep.subr.mxu0 0.0
    %4707 = vmatpush1.msra.mxu0 0.0
    %4708 = vmatprep.subr.mxu0 0.0
    %4709 = vmatpush1.msra.mxu0 0.0
    %4710 = vmatprep.subr.mxu0 0.0
    %4711 = vmatpush1.msra.mxu0 0.0
    %4712 = vmatprep.subr.mxu0 0.0
    %4713 = vmatpush1.msra.mxu0 0.0
    %4714 = vmatprep.subr.mxu0 0.0
    %4715 = vmatpush1.msra.mxu0 0.0
    %4716 = vmatprep.subr.mxu0 0.0
    %4717 = vmatpush1.msra.mxu0 0.0
    %4718 = vmatprep.subr.mxu0 0.0
    %4719 = vmatpush1.msra.mxu0 0.0
    %4720 = vmatprep.subr.mxu0 0.0
    %4721 = vmatpush1.msra.mxu0 0.0
    %4722 = vmatprep.subr.mxu0 0.0
    %4723 = vmatpush1.msra.mxu0 0.0
    %4724 = vmatprep.subr.mxu0 0.0
    %4725 = vmatpush1.msra.mxu0 0.0
    %4726 = vmatprep.subr.mxu0 0.0
    %4727 = vmatpush1.msra.mxu0 0.0
    %4728 = vmatprep.subr.mxu0 0.0
    %4729 = vmatpush1.msra.mxu0 0.0
    %4730 = vmatprep.subr.mxu0 0.0
    %4731 = vmatpush1.msra.mxu0 0.0
    %4732 = vmatprep.subr.mxu0 0.0
    %4733 = vmatpush1.msra.mxu0 0.0
    %4734 = vmatprep.subr.mxu0 0.0
    %4735 = vmatpush1.msra.mxu0 0.0
    %4736 = vmatprep.subr.mxu0 0.0
    %4737 = vmatpush1.msra.mxu0 0.0
    %4738 = vmatprep.subr.mxu0 0.0
    %4739 = vmatpush1.msra.mxu0 0.0
    %4740 = vmatprep.subr.mxu0 0.0
    %4741 = vmatpush1.msra.mxu0 0.0
    %4742 = vmatprep.subr.mxu0 0.0
    %4743 = vmatpush1.msra.mxu0 0.0
    %4744 = vmatprep.subr.mxu0 0.0
    %4745 = vmatpush1.msra.mxu0 0.0
    %4746 = vmatprep.subr.mxu0 0.0
    %4747 = vmatpush1.msra.mxu0 0.0
    %4748 = vmatprep.subr.mxu0 0.0
    %4749 = vmatpush1.msra.mxu0 0.0
    %4750 = vmatprep.subr.mxu0 0.0
    %4751 = vmatpush1.msra.mxu0 0.0
    %4752 = vmatprep.subr.mxu0 0.0
    %4753 = vmatpush1.msra.mxu0 0.0
    %4754 = vmatprep.subr.mxu0 0.0
    %4755 = vmatpush1.msra.mxu0 0.0
    %4756 = vmatprep.subr.mxu0 0.0
    %4757 = vmatpush1.msra.mxu0 0.0
    %4758 = vmatprep.mubr.f32.mxu0 0.0
    %4759 = vmatmul.mubr.f32.gmra.mrb[0].mxu0 %v4692
    %v4760 = vpop.f32.mrb[0].mxu0
    %v4761 = vadd.f32 0.0, %v4760
    %v4762 = vpop.f32.mrb[0].mxu0
    %4763 = vdwg.mxu0
    %4764 = vmatprep.subr.mxu0 0.0
    %4765 = vmatpush1.msra.mxu0 %v165
    %4766 = vmatprep.subr.mxu0 0.0
    %4767 = vmatpush1.msra.mxu0 0.0
    %4768 = vmatprep.subr.mxu0 0.0
    %4769 = vmatpush1.msra.mxu0 0.0
    %4770 = vmatprep.subr.mxu0 0.0
    %4771 = vmatpush1.msra.mxu0 0.0
    %4772 = vmatprep.subr.mxu0 0.0
    %4773 = vmatpush1.msra.mxu0 0.0
    %4774 = vmatprep.subr.mxu0 0.0
    %4775 = vmatpush1.msra.mxu0 0.0
    %4776 = vmatprep.subr.mxu0 0.0
    %4777 = vmatpush1.msra.mxu0 0.0
    %4778 = vmatprep.subr.mxu0 0.0
    %4779 = vmatpush1.msra.mxu0 0.0
    %4780 = vmatprep.subr.mxu0 0.0
    %4781 = vmatpush1.msra.mxu0 0.0
    %4782 = vmatprep.subr.mxu0 0.0
    %4783 = vmatpush1.msra.mxu0 0.0
    %4784 = vmatprep.subr.mxu0 0.0
    %4785 = vmatpush1.msra.mxu0 0.0
    %4786 = vmatprep.subr.mxu0 0.0
    %4787 = vmatpush1.msra.mxu0 0.0
    %4788 = vmatprep.subr.mxu0 0.0
    %4789 = vmatpush1.msra.mxu0 0.0
    %4790 = vmatprep.subr.mxu0 0.0
    %4791 = vmatpush1.msra.mxu0 0.0
    %4792 = vmatprep.subr.mxu0 0.0
    %4793 = vmatpush1.msra.mxu0 0.0
    %4794 = vmatprep.subr.mxu0 0.0
    %4795 = vmatpush1.msra.mxu0 0.0
    %4796 = vmatprep.subr.mxu0 0.0
    %4797 = vmatpush1.msra.mxu0 0.0
    %4798 = vmatprep.subr.mxu0 0.0
    %4799 = vmatpush1.msra.mxu0 0.0
    %4800 = vmatprep.subr.mxu0 0.0
    %4801 = vmatpush1.msra.mxu0 0.0
    %4802 = vmatprep.subr.mxu0 0.0
    %4803 = vmatpush1.msra.mxu0 0.0
    %4804 = vmatprep.subr.mxu0 0.0
    %4805 = vmatpush1.msra.mxu0 0.0
    %4806 = vmatprep.subr.mxu0 0.0
    %4807 = vmatpush1.msra.mxu0 0.0
    %4808 = vmatprep.subr.mxu0 0.0
    %4809 = vmatpush1.msra.mxu0 0.0
    %4810 = vmatprep.subr.mxu0 0.0
    %4811 = vmatpush1.msra.mxu0 0.0
    %4812 = vmatprep.subr.mxu0 0.0
    %4813 = vmatpush1.msra.mxu0 0.0
    %4814 = vmatprep.subr.mxu0 0.0
    %4815 = vmatpush1.msra.mxu0 0.0
    %4816 = vmatprep.subr.mxu0 0.0
    %4817 = vmatpush1.msra.mxu0 0.0
    %4818 = vmatprep.subr.mxu0 0.0
    %4819 = vmatpush1.msra.mxu0 0.0
    %4820 = vmatprep.subr.mxu0 0.0
    %4821 = vmatpush1.msra.mxu0 0.0
    %4822 = vmatprep.subr.mxu0 0.0
    %4823 = vmatpush1.msra.mxu0 0.0
    %4824 = vmatprep.subr.mxu0 0.0
    %4825 = vmatpush1.msra.mxu0 0.0
    %4826 = vmatprep.subr.mxu0 0.0
    %4827 = vmatpush1.msra.mxu0 0.0
    %4828 = vmatprep.mubr.f32.mxu0 0.0
    %4829 = vmatmul.mubr.f32.gmra.mrb[0].mxu0 %v4692
    %v4830 = vpop.f32.mrb[0].mxu0
    %v4831 = vadd.f32 0.0, %v4830
    %v4832 = vpop.f32.mrb[0].mxu0
    %4833 = vdwg.mxu0
    %v4834 = vadd.f32 %v2071, %v4761
    %v4835 = vsub.f32 0.0, %v4834
    %v4836 = vmul.f32 %v4835, 1.442695
    %v4837 = vpow.pop %v4836
    %v4838 = vadd.f32 %v4837, 1.0
    %v4839 = vrcp.pop %v4838
    %v4840 = vmul.f32 1.0, %v4839
    %v4841 = vadd.f32 %v2141, %v4831
    %v4842 = vsub.f32 0.0, %v4841
    %v4843 = vmul.f32 %v4842, 1.442695
    %v4844 = vpow.pop %v4843
    %v4845 = vadd.f32 %v4844, 1.0
    %v4846 = vrcp.pop %v4845
    %v4847 = vmul.f32 1.0, %v4846
    %4848 = vmatprep.subr.mxu0 0.0
    %4849 = vmatpush1.msra.mxu0 %v166
    %4850 = vmatprep.subr.mxu0 0.0
    %4851 = vmatpush1.msra.mxu0 0.0
    %4852 = vmatprep.subr.mxu0 0.0
    %4853 = vmatpush1.msra.mxu0 0.0
    %4854 = vmatprep.subr.mxu0 0.0
    %4855 = vmatpush1.msra.mxu0 0.0
    %4856 = vmatprep.subr.mxu0 0.0
    %4857 = vmatpush1.msra.mxu0 0.0
    %4858 = vmatprep.subr.mxu0 0.0
    %4859 = vmatpush1.msra.mxu0 0.0
    %4860 = vmatprep.subr.mxu0 0.0
    %4861 = vmatpush1.msra.mxu0 0.0
    %4862 = vmatprep.subr.mxu0 0.0
    %4863 = vmatpush1.msra.mxu0 0.0
    %4864 = vmatprep.subr.mxu0 0.0
    %4865 = vmatpush1.msra.mxu0 0.0
    %4866 = vmatprep.subr.mxu0 0.0
    %4867 = vmatpush1.msra.mxu0 0.0
    %4868 = vmatprep.subr.mxu0 0.0
    %4869 = vmatpush1.msra.mxu0 0.0
    %4870 = vmatprep.subr.mxu0 0.0
    %4871 = vmatpush1.msra.mxu0 0.0
    %4872 = vmatprep.subr.mxu0 0.0
    %4873 = vmatpush1.msra.mxu0 0.0
    %4874 = vmatprep.subr.mxu0 0.0
    %4875 = vmatpush1.msra.mxu0 0.0
    %4876 = vmatprep.subr.mxu0 0.0
    %4877 = vmatpush1.msra.mxu0 0.0
    %4878 = vmatprep.subr.mxu0 0.0
    %4879 = vmatpush1.msra.mxu0 0.0
    %4880 = vmatprep.subr.mxu0 0.0
    %4881 = vmatpush1.msra.mxu0 0.0
    %4882 = vmatprep.subr.mxu0 0.0
    %4883 = vmatpush1.msra.mxu0 0.0
    %4884 = vmatprep.subr.mxu0 0.0
    %4885 = vmatpush1.msra.mxu0 0.0
    %4886 = vmatprep.subr.mxu0 0.0
    %4887 = vmatpush1.msra.mxu0 0.0
    %4888 = vmatprep.subr.mxu0 0.0
    %4889 = vmatpush1.msra.mxu0 0.0
    %4890 = vmatprep.subr.mxu0 0.0
    %4891 = vmatpush1.msra.mxu0 0.0
    %4892 = vmatprep.subr.mxu0 0.0
    %4893 = vmatpush1.msra.mxu0 0.0
    %4894 = vmatprep.subr.mxu0 0.0
    %4895 = vmatpush1.msra.mxu0 0.0
    %4896 = vmatprep.subr.mxu0 0.0
    %4897 = vmatpush1.msra.mxu0 0.0
    %4898 = vmatprep.subr.mxu0 0.0
    %4899 = vmatpush1.msra.mxu0 0.0
    %4900 = vmatprep.subr.mxu0 0.0
    %4901 = vmatpush1.msra.mxu0 0.0
    %4902 = vmatprep.subr.mxu0 0.0
    %4903 = vmatpush1.msra.mxu0 0.0
    %4904 = vmatprep.subr.mxu0 0.0
    %4905 = vmatpush1.msra.mxu0 0.0
    %4906 = vmatprep.subr.mxu0 0.0
    %4907 = vmatpush1.msra.mxu0 0.0
    %4908 = vmatprep.subr.mxu0 0.0
    %4909 = vmatpush1.msra.mxu0 0.0
    %4910 = vmatprep.subr.mxu0 0.0
    %4911 = vmatpush1.msra.mxu0 0.0
    %4912 = vmatprep.mubr.f32.mxu0 0.0
    %4913 = vmatmul.mubr.f32.gmra.mrb[0].mxu0 %v4692
    %v4914 = vpop.f32.mrb[0].mxu0
    %v4915 = vadd.f32 %v4147, %v4914
    %v4916 = vpop.f32.mrb[0].mxu0
    %4917 = vdwg.mxu0
    %v4918 = vmul.f32 %v4840, %v4915
    %v4919 = vadd.f32 %v2211, %v4918
    %v4920 = vtanh.pop %v4919
    %v4921 = vsub.f32 %v4690, %v4920
    %v4922 = vmul.f32 %v4847, %v4921
    %v4923 = vadd.f32 %v4920, %v4922
    %v4925 = vsel %vm3986, %v4923, 0
    %4927 = vmatprep.subr.mxu0 0.0
    %4928 = vmatpush1.msra.mxu0 %v164
    %4929 = vmatprep.subr.mxu0 0.0
    %4930 = vmatpush1.msra.mxu0 0.0
    %4931 = vmatprep.subr.mxu0 0.0
    %4932 = vmatpush1.msra.mxu0 0.0
    %4933 = vmatprep.subr.mxu0 0.0
    %4934 = vmatpush1.msra.mxu0 0.0
    %4935 = vmatprep.subr.mxu0 0.0
    %4936 = vmatpush1.msra.mxu0 0.0
    %4937 = vmatprep.subr.mxu0 0.0
    %4938 = vmatpush1.msra.mxu0 0.0
    %4939 = vmatprep.subr.mxu0 0.0
    %4940 = vmatpush1.msra.mxu0 0.0
    %4941 = vmatprep.subr.mxu0 0.0
    %4942 = vmatpush1.msra.mxu0 0.0
    %4943 = vmatprep.subr.mxu0 0.0
    %4944 = vmatpush1.msra.mxu0 0.0
    %4945 = vmatprep.subr.mxu0 0.0
    %4946 = vmatpush1.msra.mxu0 0.0
    %4947 = vmatprep.subr.mxu0 0.0
    %4948 = vmatpush1.msra.mxu0 0.0
    %4949 = vmatprep.subr.mxu0 0.0
    %4950 = vmatpush1.msra.mxu0 0.0
    %4951 = vmatprep.subr.mxu0 0.0
    %4952 = vmatpush1.msra.mxu0 0.0
    %4953 = vmatprep.subr.mxu0 0.0
    %4954 = vmatpush1.msra.mxu0 0.0
    %4955 = vmatprep.subr.mxu0 0.0
    %4956 = vmatpush1.msra.mxu0 0.0
    %4957 = vmatprep.subr.mxu0 0.0
    %4958 = vmatpush1.msra.mxu0 0.0
    %4959 = vmatprep.subr.mxu0 0.0
    %4960 = vmatpush1.msra.mxu0 0.0
    %4961 = vmatprep.subr.mxu0 0.0
    %4962 = vmatpush1.msra.mxu0 0.0
    %4963 = vmatprep.subr.mxu0 0.0
    %4964 = vmatpush1.msra.mxu0 0.0
    %4965 = vmatprep.subr.mxu0 0.0
    %4966 = vmatpush1.msra.mxu0 0.0
    %4967 = vmatprep.subr.mxu0 0.0
    %4968 = vmatpush1.msra.mxu0 0.0
    %4969 = vmatprep.subr.mxu0 0.0
    %4970 = vmatpush1.msra.mxu0 0.0
    %4971 = vmatprep.subr.mxu0 0.0
    %4972 = vmatpush1.msra.mxu0 0.0
    %4973 = vmatprep.subr.mxu0 0.0
    %4974 = vmatpush1.msra.mxu0 0.0
    %4975 = vmatprep.subr.mxu0 0.0
    %4976 = vmatpush1.msra.mxu0 0.0
    %4977 = vmatprep.subr.mxu0 0.0
    %4978 = vmatpush1.msra.mxu0 0.0
    %4979 = vmatprep.subr.mxu0 0.0
    %4980 = vmatpush1.msra.mxu0 0.0
    %4981 = vmatprep.subr.mxu0 0.0
    %4982 = vmatpush1.msra.mxu0 0.0
    %4983 = vmatprep.subr.mxu0 0.0
    %4984 = vmatpush1.msra.mxu0 0.0
    %4985 = vmatprep.subr.mxu0 0.0
    %4986 = vmatpush1.msra.mxu0 0.0
    %4987 = vmatprep.subr.mxu0 0.0
    %4988 = vmatpush1.msra.mxu0 0.0
    %4989 = vmatprep.subr.mxu0 0.0
    %4990 = vmatpush1.msra.mxu0 0.0
    %4991 = vmatprep.mubr.f32.mxu0 0.0
    %4992 = vmatmul.mubr.f32.gmra.mrb[0].mxu0 %v4925
    %v4993 = vpop.f32.mrb[0].mxu0
    %v4994 = vadd.f32 0.0, %v4993
    %v4995 = vpop.f32.mrb[0].mxu0
    %4996 = vdwg.mxu0
    %4997 = vmatprep.subr.mxu0 0.0
    %4998 = vmatpush1.msra.mxu0 %v165
    %4999 = vmatprep.subr.mxu0 0.0
    %5000 = vmatpush1.msra.mxu0 0.0
    %5001 = vmatprep.subr.mxu0 0.0
    %5002 = vmatpush1.msra.mxu0 0.0
    %5003 = vmatprep.subr.mxu0 0.0
    %5004 = vmatpush1.msra.mxu0 0.0
    %5005 = vmatprep.subr.mxu0 0.0
    %5006 = vmatpush1.msra.mxu0 0.0
    %5007 = vmatprep.subr.mxu0 0.0
    %5008 = vmatpush1.msra.mxu0 0.0
    %5009 = vmatprep.subr.mxu0 0.0
    %5010 = vmatpush1.msra.mxu0 0.0
    %5011 = vmatprep.subr.mxu0 0.0
    %5012 = vmatpush1.msra.mxu0 0.0
    %5013 = vmatprep.subr.mxu0 0.0
    %5014 = vmatpush1.msra.mxu0 0.0
    %5015 = vmatprep.subr.mxu0 0.0
    %5016 = vmatpush1.msra.mxu0 0.0
    %5017 = vmatprep.subr.mxu0 0.0
    %5018 = vmatpush1.msra.mxu0 0.0
    %5019 = vmatprep.subr.mxu0 0.0
    %5020 = vmatpush1.msra.mxu0 0.0
    %5021 = vmatprep.subr.mxu0 0.0
    %5022 = vmatpush1.msra.mxu0 0.0
    %5023 = vmatprep.subr.mxu0 0.0
    %5024 = vmatpush1.msra.mxu0 0.0
    %5025 = vmatprep.subr.mxu0 0.0
    %5026 = vmatpush1.msra.mxu0 0.0
    %5027 = vmatprep.subr.mxu0 0.0
    %5028 = vmatpush1.msra.mxu0 0.0
    %5029 = vmatprep.subr.mxu0 0.0
    %5030 = vmatpush1.msra.mxu0 0.0
    %5031 = vmatprep.subr.mxu0 0.0
    %5032 = vmatpush1.msra.mxu0 0.0
    %5033 = vmatprep.subr.mxu0 0.0
    %5034 = vmatpush1.msra.mxu0 0.0
    %5035 = vmatprep.subr.mxu0 0.0
    %5036 = vmatpush1.msra.mxu0 0.0
    %5037 = vmatprep.subr.mxu0 0.0
    %5038 = vmatpush1.msra.mxu0 0.0
    %5039 = vmatprep.subr.mxu0 0.0
    %5040 = vmatpush1.msra.mxu0 0.0
    %5041 = vmatprep.subr.mxu0 0.0
    %5042 = vmatpush1.msra.mxu0 0.0
    %5043 = vmatprep.subr.mxu0 0.0
    %5044 = vmatpush1.msra.mxu0 0.0
    %5045 = vmatprep.subr.mxu0 0.0
    %5046 = vmatpush1.msra.mxu0 0.0
    %5047 = vmatprep.subr.mxu0 0.0
    %5048 = vmatpush1.msra.mxu0 0.0
    %5049 = vmatprep.subr.mxu0 0.0
    %5050 = vmatpush1.msra.mxu0 0.0
    %5051 = vmatprep.subr.mxu0 0.0
    %5052 = vmatpush1.msra.mxu0 0.0
    %5053 = vmatprep.subr.mxu0 0.0
    %5054 = vmatpush1.msra.mxu0 0.0
    %5055 = vmatprep.subr.mxu0 0.0
    %5056 = vmatpush1.msra.mxu0 0.0
    %5057 = vmatprep.subr.mxu0 0.0
    %5058 = vmatpush1.msra.mxu0 0.0
    %5059 = vmatprep.subr.mxu0 0.0
    %5060 = vmatpush1.msra.mxu0 0.0
    %5061 = vmatprep.mubr.f32.mxu0 0.0
    %5062 = vmatmul.mubr.f32.gmra.mrb[0].mxu0 %v4925
    %v5063 = vpop.f32.mrb[0].mxu0
    %v5064 = vadd.f32 0.0, %v5063
    %v5065 = vpop.f32.mrb[0].mxu0
    %5066 = vdwg.mxu0
    %v5067 = vadd.f32 %v2514, %v4994
    %v5068 = vsub.f32 0.0, %v5067
    %v5069 = vmul.f32 %v5068, 1.442695
    %v5070 = vpow.pop %v5069
    %v5071 = vadd.f32 %v5070, 1.0
    %v5072 = vrcp.pop %v5071
    %v5073 = vmul.f32 1.0, %v5072
    %v5074 = vadd.f32 %v2584, %v5064
    %v5075 = vsub.f32 0.0, %v5074
    %v5076 = vmul.f32 %v5075, 1.442695
    %v5077 = vpow.pop %v5076
    %v5078 = vadd.f32 %v5077, 1.0
    %v5079 = vrcp.pop %v5078
    %v5080 = vmul.f32 1.0, %v5079
    %5081 = vmatprep.subr.mxu0 0.0
    %5082 = vmatpush1.msra.mxu0 %v166
    %5083 = vmatprep.subr.mxu0 0.0
    %5084 = vmatpush1.msra.mxu0 0.0
    %5085 = vmatprep.subr.mxu0 0.0
    %5086 = vmatpush1.msra.mxu0 0.0
    %5087 = vmatprep.subr.mxu0 0.0
    %5088 = vmatpush1.msra.mxu0 0.0
    %5089 = vmatprep.subr.mxu0 0.0
    %5090 = vmatpush1.msra.mxu0 0.0
    %5091 = vmatprep.subr.mxu0 0.0
    %5092 = vmatpush1.msra.mxu0 0.0
    %5093 = vmatprep.subr.mxu0 0.0
    %5094 = vmatpush1.msra.mxu0 0.0
    %5095 = vmatprep.subr.mxu0 0.0
    %5096 = vmatpush1.msra.mxu0 0.0
    %5097 = vmatprep.subr.mxu0 0.0
    %5098 = vmatpush1.msra.mxu0 0.0
    %5099 = vmatprep.subr.mxu0 0.0
    %5100 = vmatpush1.msra.mxu0 0.0
    %5101 = vmatprep.subr.mxu0 0.0
    %5102 = vmatpush1.msra.mxu0 0.0
    %5103 = vmatprep.subr.mxu0 0.0
    %5104 = vmatpush1.msra.mxu0 0.0
    %5105 = vmatprep.subr.mxu0 0.0
    %5106 = vmatpush1.msra.mxu0 0.0
    %5107 = vmatprep.subr.mxu0 0.0
    %5108 = vmatpush1.msra.mxu0 0.0
    %5109 = vmatprep.subr.mxu0 0.0
    %5110 = vmatpush1.msra.mxu0 0.0
    %5111 = vmatprep.subr.mxu0 0.0
    %5112 = vmatpush1.msra.mxu0 0.0
    %5113 = vmatprep.subr.mxu0 0.0
    %5114 = vmatpush1.msra.mxu0 0.0
    %5115 = vmatprep.subr.mxu0 0.0
    %5116 = vmatpush1.msra.mxu0 0.0
    %5117 = vmatprep.subr.mxu0 0.0
    %5118 = vmatpush1.msra.mxu0 0.0
    %5119 = vmatprep.subr.mxu0 0.0
    %5120 = vmatpush1.msra.mxu0 0.0
    %5121 = vmatprep.subr.mxu0 0.0
    %5122 = vmatpush1.msra.mxu0 0.0
    %5123 = vmatprep.subr.mxu0 0.0
    %5124 = vmatpush1.msra.mxu0 0.0
    %5125 = vmatprep.subr.mxu0 0.0
    %5126 = vmatpush1.msra.mxu0 0.0
    %5127 = vmatprep.subr.mxu0 0.0
    %5128 = vmatpush1.msra.mxu0 0.0
    %5129 = vmatprep.subr.mxu0 0.0
    %5130 = vmatpush1.msra.mxu0 0.0
    %5131 = vmatprep.subr.mxu0 0.0
    %5132 = vmatpush1.msra.mxu0 0.0
    %5133 = vmatprep.subr.mxu0 0.0
    %5134 = vmatpush1.msra.mxu0 0.0
    %5135 = vmatprep.subr.mxu0 0.0
    %5136 = vmatpush1.msra.mxu0 0.0
    %5137 = vmatprep.subr.mxu0 0.0
    %5138 = vmatpush1.msra.mxu0 0.0
    %5139 = vmatprep.subr.mxu0 0.0
    %5140 = vmatpush1.msra.mxu0 0.0
    %5141 = vmatprep.subr.mxu0 0.0
    %5142 = vmatpush1.msra.mxu0 0.0
    %5143 = vmatprep.subr.mxu0 0.0
    %5144 = vmatpush1.msra.mxu0 0.0
    %5145 = vmatprep.mubr.f32.mxu0 0.0
    %5146 = vmatmul.mubr.f32.gmra.mrb[0].mxu0 %v4925
    %v5147 = vpop.f32.mrb[0].mxu0
    %v5148 = vadd.f32 %v4147, %v5147
    %v5149 = vpop.f32.mrb[0].mxu0
    %5150 = vdwg.mxu0
    %v5151 = vmul.f32 %v5073, %v5148
    %v5152 = vadd.f32 %v2654, %v5151
    %v5153 = vtanh.pop %v5152
    %v5154 = vsub.f32 %v4923, %v5153
    %v5155 = vmul.f32 %v5080, %v5154
    %v5156 = vadd.f32 %v5153, %v5155
    %v5158 = vsel %vm3986, %v5156, 0
    %5160 = vmatprep.subr.mxu0 0.0
    %5161 = vmatpush1.msra.mxu0 %v164
    %5162 = vmatprep.subr.mxu0 0.0
    %5163 = vmatpush1.msra.mxu0 0.0
    %5164 = vmatprep.subr.mxu0 0.0
    %5165 = vmatpush1.msra.mxu0 0.0
    %5166 = vmatprep.subr.mxu0 0.0
    %5167 = vmatpush1.msra.mxu0 0.0
    %5168 = vmatprep.subr.mxu0 0.0
    %5169 = vmatpush1.msra.mxu0 0.0
    %5170 = vmatprep.subr.mxu0 0.0
    %5171 = vmatpush1.msra.mxu0 0.0
    %5172 = vmatprep.subr.mxu0 0.0
    %5173 = vmatpush1.msra.mxu0 0.0
    %5174 = vmatprep.subr.mxu0 0.0
    %5175 = vmatpush1.msra.mxu0 0.0
    %5176 = vmatprep.subr.mxu0 0.0
    %5177 = vmatpush1.msra.mxu0 0.0
    %5178 = vmatprep.subr.mxu0 0.0
    %5179 = vmatpush1.msra.mxu0 0.0
    %5180 = vmatprep.subr.mxu0 0.0
    %5181 = vmatpush1.msra.mxu0 0.0
    %5182 = vmatprep.subr.mxu0 0.0
    %5183 = vmatpush1.msra.mxu0 0.0
    %5184 = vmatprep.subr.mxu0 0.0
    %5185 = vmatpush1.msra.mxu0 0.0
    %5186 = vmatprep.subr.mxu0 0.0
    %5187 = vmatpush1.msra.mxu0 0.0
    %5188 = vmatprep.subr.mxu0 0.0
    %5189 = vmatpush1.msra.mxu0 0.0
    %5190 = vmatprep.subr.mxu0 0.0
    %5191 = vmatpush1.msra.mxu0 0.0
    %5192 = vmatprep.subr.mxu0 0.0
    %5193 = vmatpush1.msra.mxu0 0.0
    %5194 = vmatprep.subr.mxu0 0.0
    %5195 = vmatpush1.msra.mxu0 0.0
    %5196 = vmatprep.subr.mxu0 0.0
    %5197 = vmatpush1.msra.mxu0 0.0
    %5198 = vmatprep.subr.mxu0 0.0
    %5199 = vmatpush1.msra.mxu0 0.0
    %5200 = vmatprep.subr.mxu0 0.0
    %5201 = vmatpush1.msra.mxu0 0.0
    %5202 = vmatprep.subr.mxu0 0.0
    %5203 = vmatpush1.msra.mxu0 0.0
    %5204 = vmatprep.subr.mxu0 0.0
    %5205 = vmatpush1.msra.mxu0 0.0
    %5206 = vmatprep.subr.mxu0 0.0
    %5207 = vmatpush1.msra.mxu0 0.0
    %5208 = vmatprep.subr.mxu0 0.0
    %5209 = vmatpush1.msra.mxu0 0.0
    %5210 = vmatprep.subr.mxu0 0.0
    %5211 = vmatpush1.msra.mxu0 0.0
    %5212 = vmatprep.subr.mxu0 0.0
    %5213 = vmatpush1.msra.mxu0 0.0
    %5214 = vmatprep.subr.mxu0 0.0
    %5215 = vmatpush1.msra.mxu0 0.0
    %5216 = vmatprep.subr.mxu0 0.0
    %5217 = vmatpush1.msra.mxu0 0.0
    %5218 = vmatprep.subr.mxu0 0.0
    %5219 = vmatpush1.msra.mxu0 0.0
    %5220 = vmatprep.subr.mxu0 0.0
    %5221 = vmatpush1.msra.mxu0 0.0
    %5222 = vmatprep.subr.mxu0 0.0
    %5223 = vmatpush1.msra.mxu0 0.0
    %5224 = vmatprep.mubr.f32.mxu0 0.0
    %5225 = vmatmul.mubr.f32.gmra.mrb[0].mxu0 %v5158
    %v5226 = vpop.f32.mrb[0].mxu0
    %v5227 = vadd.f32 0.0, %v5226
    %v5228 = vpop.f32.mrb[0].mxu0
    %5229 = vdwg.mxu0
    %5230 = vmatprep.subr.mxu0 0.0
    %5231 = vmatpush1.msra.mxu0 %v165
    %5232 = vmatprep.subr.mxu0 0.0
    %5233 = vmatpush1.msra.mxu0 0.0
    %5234 = vmatprep.subr.mxu0 0.0
    %5235 = vmatpush1.msra.mxu0 0.0
    %5236 = vmatprep.subr.mxu0 0.0
    %5237 = vmatpush1.msra.mxu0 0.0
    %5238 = vmatprep.subr.mxu0 0.0
    %5239 = vmatpush1.msra.mxu0 0.0
    %5240 = vmatprep.subr.mxu0 0.0
    %5241 = vmatpush1.msra.mxu0 0.0
    %5242 = vmatprep.subr.mxu0 0.0
    %5243 = vmatpush1.msra.mxu0 0.0
    %5244 = vmatprep.subr.mxu0 0.0
    %5245 = vmatpush1.msra.mxu0 0.0
    %5246 = vmatprep.subr.mxu0 0.0
    %5247 = vmatpush1.msra.mxu0 0.0
    %5248 = vmatprep.subr.mxu0 0.0
    %5249 = vmatpush1.msra.mxu0 0.0
    %5250 = vmatprep.subr.mxu0 0.0
    %5251 = vmatpush1.msra.mxu0 0.0
    %5252 = vmatprep.subr.mxu0 0.0
    %5253 = vmatpush1.msra.mxu0 0.0
    %5254 = vmatprep.subr.mxu0 0.0
    %5255 = vmatpush1.msra.mxu0 0.0
    %5256 = vmatprep.subr.mxu0 0.0
    %5257 = vmatpush1.msra.mxu0 0.0
    %5258 = vmatprep.subr.mxu0 0.0
    %5259 = vmatpush1.msra.mxu0 0.0
    %5260 = vmatprep.subr.mxu0 0.0
    %5261 = vmatpush1.msra.mxu0 0.0
    %5262 = vmatprep.subr.mxu0 0.0
    %5263 = vmatpush1.msra.mxu0 0.0
    %5264 = vmatprep.subr.mxu0 0.0
    %5265 = vmatpush1.msra.mxu0 0.0
    %5266 = vmatprep.subr.mxu0 0.0
    %5267 = vmatpush1.msra.mxu0 0.0
    %5268 = vmatprep.subr.mxu0 0.0
    %5269 = vmatpush1.msra.mxu0 0.0
    %5270 = vmatprep.subr.mxu0 0.0
    %5271 = vmatpush1.msra.mxu0 0.0
    %5272 = vmatprep.subr.mxu0 0.0
    %5273 = vmatpush1.msra.mxu0 0.0
    %5274 = vmatprep.subr.mxu0 0.0
    %5275 = vmatpush1.msra.mxu0 0.0
    %5276 = vmatprep.subr.mxu0 0.0
    %5277 = vmatpush1.msra.mxu0 0.0
    %5278 = vmatprep.subr.mxu0 0.0
    %5279 = vmatpush1.msra.mxu0 0.0
    %5280 = vmatprep.subr.mxu0 0.0
    %5281 = vmatpush1.msra.mxu0 0.0
    %5282 = vmatprep.subr.mxu0 0.0
    %5283 = vmatpush1.msra.mxu0 0.0
    %5284 = vmatprep.subr.mxu0 0.0
    %5285 = vmatpush1.msra.mxu0 0.0
    %5286 = vmatprep.subr.mxu0 0.0
    %5287 = vmatpush1.msra.mxu0 0.0
    %5288 = vmatprep.subr.mxu0 0.0
    %5289 = vmatpush1.msra.mxu0 0.0
    %5290 = vmatprep.subr.mxu0 0.0
    %5291 = vmatpush1.msra.mxu0 0.0
    %5292 = vmatprep.subr.mxu0 0.0
    %5293 = vmatpush1.msra.mxu0 0.0
    %5294 = vmatprep.mubr.f32.mxu0 0.0
    %5295 = vmatmul.mubr.f32.gmra.mrb[0].mxu0 %v5158
    %v5296 = vpop.f32.mrb[0].mxu0
    %v5297 = vadd.f32 0.0, %v5296
    %v5298 = vpop.f32.mrb[0].mxu0
    %5299 = vdwg.mxu0
    %v5300 = vadd.f32 %v2957, %v5227
    %v5301 = vsub.f32 0.0, %v5300
    %v5302 = vmul.f32 %v5301, 1.442695
    %v5303 = vpow.pop %v5302
    %v5304 = vadd.f32 %v5303, 1.0
    %v5305 = vrcp.pop %v5304
    %v5306 = vmul.f32 1.0, %v5305
    %v5307 = vadd.f32 %v3027, %v5297
    %v5308 = vsub.f32 0.0, %v5307
    %v5309 = vmul.f32 %v5308, 1.442695
    %v5310 = vpow.pop %v5309
    %v5311 = vadd.f32 %v5310, 1.0
    %v5312 = vrcp.pop %v5311
    %v5313 = vmul.f32 1.0, %v5312
    %5314 = vmatprep.subr.mxu0 0.0
    %5315 = vmatpush1.msra.mxu0 %v166
    %5316 = vmatprep.subr.mxu0 0.0
    %5317 = vmatpush1.msra.mxu0 0.0
    %5318 = vmatprep.subr.mxu0 0.0
    %5319 = vmatpush1.msra.mxu0 0.0
    %5320 = vmatprep.subr.mxu0 0.0
    %5321 = vmatpush1.msra.mxu0 0.0
    %5322 = vmatprep.subr.mxu0 0.0
    %5323 = vmatpush1.msra.mxu0 0.0
    %5324 = vmatprep.subr.mxu0 0.0
    %5325 = vmatpush1.msra.mxu0 0.0
    %5326 = vmatprep.subr.mxu0 0.0
    %5327 = vmatpush1.msra.mxu0 0.0
    %5328 = vmatprep.subr.mxu0 0.0
    %5329 = vmatpush1.msra.mxu0 0.0
    %5330 = vmatprep.subr.mxu0 0.0
    %5331 = vmatpush1.msra.mxu0 0.0
    %5332 = vmatprep.subr.mxu0 0.0
    %5333 = vmatpush1.msra.mxu0 0.0
    %5334 = vmatprep.subr.mxu0 0.0
    %5335 = vmatpush1.msra.mxu0 0.0
    %5336 = vmatprep.subr.mxu0 0.0
    %5337 = vmatpush1.msra.mxu0 0.0
    %5338 = vmatprep.subr.mxu0 0.0
    %5339 = vmatpush1.msra.mxu0 0.0
    %5340 = vmatprep.subr.mxu0 0.0
    %5341 = vmatpush1.msra.mxu0 0.0
    %5342 = vmatprep.subr.mxu0 0.0
    %5343 = vmatpush1.msra.mxu0 0.0
    %5344 = vmatprep.subr.mxu0 0.0
    %5345 = vmatpush1.msra.mxu0 0.0
    %5346 = vmatprep.subr.mxu0 0.0
    %5347 = vmatpush1.msra.mxu0 0.0
    %5348 = vmatprep.subr.mxu0 0.0
    %5349 = vmatpush1.msra.mxu0 0.0
    %5350 = vmatprep.subr.mxu0 0.0
    %5351 = vmatpush1.msra.mxu0 0.0
    %5352 = vmatprep.subr.mxu0 0.0
    %5353 = vmatpush1.msra.mxu0 0.0
    %5354 = vmatprep.subr.mxu0 0.0
    %5355 = vmatpush1.msra.mxu0 0.0
    %5356 = vmatprep.subr.mxu0 0.0
    %5357 = vmatpush1.msra.mxu0 0.0
    %5358 = vmatprep.subr.mxu0 0.0
    %5359 = vmatpush1.msra.mxu0 0.0
    %5360 = vmatprep.subr.mxu0 0.0
    %5361 = vmatpush1.msra.mxu0 0.0
    %5362 = vmatprep.subr.mxu0 0.0
    %5363 = vmatpush1.msra.mxu0 0.0
    %5364 = vmatprep.subr.mxu0 0.0
    %5365 = vmatpush1.msra.mxu0 0.0
    %5366 = vmatprep.subr.mxu0 0.0
    %5367 = vmatpush1.msra.mxu0 0.0
    %5368 = vmatprep.subr.mxu0 0.0
    %5369 = vmatpush1.msra.mxu0 0.0
    %5370 = vmatprep.subr.mxu0 0.0
    %5371 = vmatpush1.msra.mxu0 0.0
    %5372 = vmatprep.subr.mxu0 0.0
    %5373 = vmatpush1.msra.mxu0 0.0
    %5374 = vmatprep.subr.mxu0 0.0
    %5375 = vmatpush1.msra.mxu0 0.0
    %5376 = vmatprep.subr.mxu0 0.0
    %5377 = vmatpush1.msra.mxu0 0.0
    %5378 = vmatprep.mubr.f32.mxu0 0.0
    %5379 = vmatmul.mubr.f32.gmra.mrb[0].mxu0 %v5158
    %v5380 = vpop.f32.mrb[0].mxu0
    %v5381 = vadd.f32 %v4147, %v5380
    %v5382 = vpop.f32.mrb[0].mxu0
    %5383 = vdwg.mxu0
    %v5384 = vmul.f32 %v5306, %v5381
    %v5385 = vadd.f32 %v3097, %v5384
    %v5386 = vtanh.pop %v5385
    %v5387 = vsub.f32 %v5156, %v5386
    %v5388 = vmul.f32 %v5313, %v5387
    %v5389 = vadd.f32 %v5386, %v5388
    %v5391 = vsel %vm3986, %v5389, 0
    %5393 = vmatprep.subr.mxu0 0.0
    %5394 = vmatpush1.msra.mxu0 %v164
    %5395 = vmatprep.subr.mxu0 0.0
    %5396 = vmatpush1.msra.mxu0 0.0
    %5397 = vmatprep.subr.mxu0 0.0
    %5398 = vmatpush1.msra.mxu0 0.0
    %5399 = vmatprep.subr.mxu0 0.0
    %5400 = vmatpush1.msra.mxu0 0.0
    %5401 = vmatprep.subr.mxu0 0.0
    %5402 = vmatpush1.msra.mxu0 0.0
    %5403 = vmatprep.subr.mxu0 0.0
    %5404 = vmatpush1.msra.mxu0 0.0
    %5405 = vmatprep.subr.mxu0 0.0
    %5406 = vmatpush1.msra.mxu0 0.0
    %5407 = vmatprep.subr.mxu0 0.0
    %5408 = vmatpush1.msra.mxu0 0.0
    %5409 = vmatprep.subr.mxu0 0.0
    %5410 = vmatpush1.msra.mxu0 0.0
    %5411 = vmatprep.subr.mxu0 0.0
    %5412 = vmatpush1.msra.mxu0 0.0
    %5413 = vmatprep.subr.mxu0 0.0
    %5414 = vmatpush1.msra.mxu0 0.0
    %5415 = vmatprep.subr.mxu0 0.0
    %5416 = vmatpush1.msra.mxu0 0.0
    %5417 = vmatprep.subr.mxu0 0.0
    %5418 = vmatpush1.msra.mxu0 0.0
    %5419 = vmatprep.subr.mxu0 0.0
    %5420 = vmatpush1.msra.mxu0 0.0
    %5421 = vmatprep.subr.mxu0 0.0
    %5422 = vmatpush1.msra.mxu0 0.0
    %5423 = vmatprep.subr.mxu0 0.0
    %5424 = vmatpush1.msra.mxu0 0.0
    %5425 = vmatprep.subr.mxu0 0.0
    %5426 = vmatpush1.msra.mxu0 0.0
    %5427 = vmatprep.subr.mxu0 0.0
    %5428 = vmatpush1.msra.mxu0 0.0
    %5429 = vmatprep.subr.mxu0 0.0
    %5430 = vmatpush1.msra.mxu0 0.0
    %5431 = vmatprep.subr.mxu0 0.0
    %5432 = vmatpush1.msra.mxu0 0.0
    %5433 = vmatprep.subr.mxu0 0.0
    %5434 = vmatpush1.msra.mxu0 0.0
    %5435 = vmatprep.subr.mxu0 0.0
    %5436 = vmatpush1.msra.mxu0 0.0
    %5437 = vmatprep.subr.mxu0 0.0
    %5438 = vmatpush1.msra.mxu0 0.0
    %5439 = vmatprep.subr.mxu0 0.0
    %5440 = vmatpush1.msra.mxu0 0.0
    %5441 = vmatprep.subr.mxu0 0.0
    %5442 = vmatpush1.msra.mxu0 0.0
    %5443 = vmatprep.subr.mxu0 0.0
    %5444 = vmatpush1.msra.mxu0 0.0
    %5445 = vmatprep.subr.mxu0 0.0
    %5446 = vmatpush1.msra.mxu0 0.0
    %5447 = vmatprep.subr.mxu0 0.0
    %5448 = vmatpush1.msra.mxu0 0.0
    %5449 = vmatprep.subr.mxu0 0.0
    %5450 = vmatpush1.msra.mxu0 0.0
    %5451 = vmatprep.subr.mxu0 0.0
    %5452 = vmatpush1.msra.mxu0 0.0
    %5453 = vmatprep.subr.mxu0 0.0
    %5454 = vmatpush1.msra.mxu0 0.0
    %5455 = vmatprep.subr.mxu0 0.0
    %5456 = vmatpush1.msra.mxu0 0.0
    %5457 = vmatprep.mubr.f32.mxu0 0.0
    %5458 = vmatmul.mubr.f32.gmra.mrb[0].mxu0 %v5391
    %v5459 = vpop.f32.mrb[0].mxu0
    %v5460 = vadd.f32 0.0, %v5459
    %v5461 = vpop.f32.mrb[0].mxu0
    %5462 = vdwg.mxu0
    %5463 = vmatprep.subr.mxu0 0.0
    %5464 = vmatpush1.msra.mxu0 %v165
    %5465 = vmatprep.subr.mxu0 0.0
    %5466 = vmatpush1.msra.mxu0 0.0
    %5467 = vmatprep.subr.mxu0 0.0
    %5468 = vmatpush1.msra.mxu0 0.0
    %5469 = vmatprep.subr.mxu0 0.0
    %5470 = vmatpush1.msra.mxu0 0.0
    %5471 = vmatprep.subr.mxu0 0.0
    %5472 = vmatpush1.msra.mxu0 0.0
    %5473 = vmatprep.subr.mxu0 0.0
    %5474 = vmatpush1.msra.mxu0 0.0
    %5475 = vmatprep.subr.mxu0 0.0
    %5476 = vmatpush1.msra.mxu0 0.0
    %5477 = vmatprep.subr.mxu0 0.0
    %5478 = vmatpush1.msra.mxu0 0.0
    %5479 = vmatprep.subr.mxu0 0.0
    %5480 = vmatpush1.msra.mxu0 0.0
    %5481 = vmatprep.subr.mxu0 0.0
    %5482 = vmatpush1.msra.mxu0 0.0
    %5483 = vmatprep.subr.mxu0 0.0
    %5484 = vmatpush1.msra.mxu0 0.0
    %5485 = vmatprep.subr.mxu0 0.0
    %5486 = vmatpush1.msra.mxu0 0.0
    %5487 = vmatprep.subr.mxu0 0.0
    %5488 = vmatpush1.msra.mxu0 0.0
    %5489 = vmatprep.subr.mxu0 0.0
    %5490 = vmatpush1.msra.mxu0 0.0
    %5491 = vmatprep.subr.mxu0 0.0
    %5492 = vmatpush1.msra.mxu0 0.0
    %5493 = vmatprep.subr.mxu0 0.0
    %5494 = vmatpush1.msra.mxu0 0.0
    %5495 = vmatprep.subr.mxu0 0.0
    %5496 = vmatpush1.msra.mxu0 0.0
    %5497 = vmatprep.subr.mxu0 0.0
    %5498 = vmatpush1.msra.mxu0 0.0
    %5499 = vmatprep.subr.mxu0 0.0
    %5500 = vmatpush1.msra.mxu0 0.0
    %5501 = vmatprep.subr.mxu0 0.0
    %5502 = vmatpush1.msra.mxu0 0.0
    %5503 = vmatprep.subr.mxu0 0.0
    %5504 = vmatpush1.msra.mxu0 0.0
    %5505 = vmatprep.subr.mxu0 0.0
    %5506 = vmatpush1.msra.mxu0 0.0
    %5507 = vmatprep.subr.mxu0 0.0
    %5508 = vmatpush1.msra.mxu0 0.0
    %5509 = vmatprep.subr.mxu0 0.0
    %5510 = vmatpush1.msra.mxu0 0.0
    %5511 = vmatprep.subr.mxu0 0.0
    %5512 = vmatpush1.msra.mxu0 0.0
    %5513 = vmatprep.subr.mxu0 0.0
    %5514 = vmatpush1.msra.mxu0 0.0
    %5515 = vmatprep.subr.mxu0 0.0
    %5516 = vmatpush1.msra.mxu0 0.0
    %5517 = vmatprep.subr.mxu0 0.0
    %5518 = vmatpush1.msra.mxu0 0.0
    %5519 = vmatprep.subr.mxu0 0.0
    %5520 = vmatpush1.msra.mxu0 0.0
    %5521 = vmatprep.subr.mxu0 0.0
    %5522 = vmatpush1.msra.mxu0 0.0
    %5523 = vmatprep.subr.mxu0 0.0
    %5524 = vmatpush1.msra.mxu0 0.0
    %5525 = vmatprep.subr.mxu0 0.0
    %5526 = vmatpush1.msra.mxu0 0.0
    %5527 = vmatprep.mubr.f32.mxu0 0.0
    %5528 = vmatmul.mubr.f32.gmra.mrb[0].mxu0 %v5391
    %v5529 = vpop.f32.mrb[0].mxu0
    %v5530 = vadd.f32 0.0, %v5529
    %v5531 = vpop.f32.mrb[0].mxu0
    %5532 = vdwg.mxu0
    %v5533 = vadd.f32 %v3400, %v5460
    %v5534 = vsub.f32 0.0, %v5533
    %v5535 = vmul.f32 %v5534, 1.442695
    %v5536 = vpow.pop %v5535
    %v5537 = vadd.f32 %v5536, 1.0
    %v5538 = vrcp.pop %v5537
    %v5539 = vmul.f32 1.0, %v5538
    %v5540 = vadd.f32 %v3470, %v5530
    %v5541 = vsub.f32 0.0, %v5540
    %v5542 = vmul.f32 %v5541, 1.442695
    %v5543 = vpow.pop %v5542
    %v5544 = vadd.f32 %v5543, 1.0
    %v5545 = vrcp.pop %v5544
    %v5546 = vmul.f32 1.0, %v5545
    %5547 = vmatprep.subr.mxu0 0.0
    %5548 = vmatpush1.msra.mxu0 %v166
    %5549 = vmatprep.subr.mxu0 0.0
    %5550 = vmatpush1.msra.mxu0 0.0
    %5551 = vmatprep.subr.mxu0 0.0
    %5552 = vmatpush1.msra.mxu0 0.0
    %5553 = vmatprep.subr.mxu0 0.0
    %5554 = vmatpush1.msra.mxu0 0.0
    %5555 = vmatprep.subr.mxu0 0.0
    %5556 = vmatpush1.msra.mxu0 0.0
    %5557 = vmatprep.subr.mxu0 0.0
    %5558 = vmatpush1.msra.mxu0 0.0
    %5559 = vmatprep.subr.mxu0 0.0
    %5560 = vmatpush1.msra.mxu0 0.0
    %5561 = vmatprep.subr.mxu0 0.0
    %5562 = vmatpush1.msra.mxu0 0.0
    %5563 = vmatprep.subr.mxu0 0.0
    %5564 = vmatpush1.msra.mxu0 0.0
    %5565 = vmatprep.subr.mxu0 0.0
    %5566 = vmatpush1.msra.mxu0 0.0
    %5567 = vmatprep.subr.mxu0 0.0
    %5568 = vmatpush1.msra.mxu0 0.0
    %5569 = vmatprep.subr.mxu0 0.0
    %5570 = vmatpush1.msra.mxu0 0.0
    %5571 = vmatprep.subr.mxu0 0.0
    %5572 = vmatpush1.msra.mxu0 0.0
    %5573 = vmatprep.subr.mxu0 0.0
    %5574 = vmatpush1.msra.mxu0 0.0
    %5575 = vmatprep.subr.mxu0 0.0
    %5576 = vmatpush1.msra.mxu0 0.0
    %5577 = vmatprep.subr.mxu0 0.0
    %5578 = vmatpush1.msra.mxu0 0.0
    %5579 = vmatprep.subr.mxu0 0.0
    %5580 = vmatpush1.msra.mxu0 0.0
    %5581 = vmatprep.subr.mxu0 0.0
    %5582 = vmatpush1.msra.mxu0 0.0
    %5583 = vmatprep.subr.mxu0 0.0
    %5584 = vmatpush1.msra.mxu0 0.0
    %5585 = vmatprep.subr.mxu0 0.0
    %5586 = vmatpush1.msra.mxu0 0.0
    %5587 = vmatprep.subr.mxu0 0.0
    %5588 = vmatpush1.msra.mxu0 0.0
    %5589 = vmatprep.subr.mxu0 0.0
    %5590 = vmatpush1.msra.mxu0 0.0
    %5591 = vmatprep.subr.mxu0 0.0
    %5592 = vmatpush1.msra.mxu0 0.0
    %5593 = vmatprep.subr.mxu0 0.0
    %5594 = vmatpush1.msra.mxu0 0.0
    %5595 = vmatprep.subr.mxu0 0.0
    %5596 = vmatpush1.msra.mxu0 0.0
    %5597 = vmatprep.subr.mxu0 0.0
    %5598 = vmatpush1.msra.mxu0 0.0
    %5599 = vmatprep.subr.mxu0 0.0
    %5600 = vmatpush1.msra.mxu0 0.0
    %5601 = vmatprep.subr.mxu0 0.0
    %5602 = vmatpush1.msra.mxu0 0.0
    %5603 = vmatprep.subr.mxu0 0.0
    %5604 = vmatpush1.msra.mxu0 0.0
    %5605 = vmatprep.subr.mxu0 0.0
    %5606 = vmatpush1.msra.mxu0 0.0
    %5607 = vmatprep.subr.mxu0 0.0
    %5608 = vmatpush1.msra.mxu0 0.0
    %5609 = vmatprep.subr.mxu0 0.0
    %5610 = vmatpush1.msra.mxu0 0.0
    %5611 = vmatprep.mubr.f32.mxu0 0.0
    %5612 = vmatmul.mubr.f32.gmra.mrb[0].mxu0 %v5391
    %v5613 = vpop.f32.mrb[0].mxu0
    %v5614 = vadd.f32 %v4147, %v5613
    %v5615 = vpop.f32.mrb[0].mxu0
    %5616 = vdwg.mxu0
    %v5617 = vmul.f32 %v5539, %v5614
    %v5618 = vadd.f32 %v3540, %v5617
    %v5619 = vtanh.pop %v5618
    %v5620 = vsub.f32 %v5389, %v5619
    %v5621 = vmul.f32 %v5546, %v5620
    %v5622 = vadd.f32 %v5619, %v5621
    %v5624 = vsel %vm3986, %v5622, 0
    %5626 = vmatprep.subr.mxu0 0.0
    %5627 = vmatpush1.msra.mxu0 %v164
    %5628 = vmatprep.subr.mxu0 0.0
    %5629 = vmatpush1.msra.mxu0 0.0
    %5630 = vmatprep.subr.mxu0 0.0
    %5631 = vmatpush1.msra.mxu0 0.0
    %5632 = vmatprep.subr.mxu0 0.0
    %5633 = vmatpush1.msra.mxu0 0.0
    %5634 = vmatprep.subr.mxu0 0.0
    %5635 = vmatpush1.msra.mxu0 0.0
    %5636 = vmatprep.subr.mxu0 0.0
    %5637 = vmatpush1.msra.mxu0 0.0
    %5638 = vmatprep.subr.mxu0 0.0
    %5639 = vmatpush1.msra.mxu0 0.0
    %5640 = vmatprep.subr.mxu0 0.0
    %5641 = vmatpush1.msra.mxu0 0.0
    %5642 = vmatprep.subr.mxu0 0.0
    %5643 = vmatpush1.msra.mxu0 0.0
    %5644 = vmatprep.subr.mxu0 0.0
    %5645 = vmatpush1.msra.mxu0 0.0
    %5646 = vmatprep.subr.mxu0 0.0
    %5647 = vmatpush1.msra.mxu0 0.0
    %5648 = vmatprep.subr.mxu0 0.0
    %5649 = vmatpush1.msra.mxu0 0.0
    %5650 = vmatprep.subr.mxu0 0.0
    %5651 = vmatpush1.msra.mxu0 0.0
    %5652 = vmatprep.subr.mxu0 0.0
    %5653 = vmatpush1.msra.mxu0 0.0
    %5654 = vmatprep.subr.mxu0 0.0
    %5655 = vmatpush1.msra.mxu0 0.0
    %5656 = vmatprep.subr.mxu0 0.0
    %5657 = vmatpush1.msra.mxu0 0.0
    %5658 = vmatprep.subr.mxu0 0.0
    %5659 = vmatpush1.msra.mxu0 0.0
    %5660 = vmatprep.subr.mxu0 0.0
    %5661 = vmatpush1.msra.mxu0 0.0
    %5662 = vmatprep.subr.mxu0 0.0
    %5663 = vmatpush1.msra.mxu0 0.0
    %5664 = vmatprep.subr.mxu0 0.0
    %5665 = vmatpush1.msra.mxu0 0.0
    %5666 = vmatprep.subr.mxu0 0.0
    %5667 = vmatpush1.msra.mxu0 0.0
    %5668 = vmatprep.subr.mxu0 0.0
    %5669 = vmatpush1.msra.mxu0 0.0
    %5670 = vmatprep.subr.mxu0 0.0
    %5671 = vmatpush1.msra.mxu0 0.0
    %5672 = vmatprep.subr.mxu0 0.0
    %5673 = vmatpush1.msra.mxu0 0.0
    %5674 = vmatprep.subr.mxu0 0.0
    %5675 = vmatpush1.msra.mxu0 0.0
    %5676 = vmatprep.subr.mxu0 0.0
    %5677 = vmatpush1.msra.mxu0 0.0
    %5678 = vmatprep.subr.mxu0 0.0
    %5679 = vmatpush1.msra.mxu0 0.0
    %5680 = vmatprep.subr.mxu0 0.0
    %5681 = vmatpush1.msra.mxu0 0.0
    %5682 = vmatprep.subr.mxu0 0.0
    %5683 = vmatpush1.msra.mxu0 0.0
    %5684 = vmatprep.subr.mxu0 0.0
    %5685 = vmatpush1.msra.mxu0 0.0
    %5686 = vmatprep.subr.mxu0 0.0
    %5687 = vmatpush1.msra.mxu0 0.0
    %5688 = vmatprep.subr.mxu0 0.0
    %5689 = vmatpush1.msra.mxu0 0.0
    %5690 = vmatprep.mubr.f32.mxu0 0.0
    %5691 = vmatmul.mubr.f32.gmra.mrb[0].mxu0 %v5624
    %v5692 = vpop.f32.mrb[0].mxu0
    %v5693 = vadd.f32 0.0, %v5692
    %v5694 = vpop.f32.mrb[0].mxu0
    %5695 = vdwg.mxu0
    %5696 = vmatprep.subr.mxu0 0.0
    %5697 = vmatpush1.msra.mxu0 %v165
    %5698 = vmatprep.subr.mxu0 0.0
    %5699 = vmatpush1.msra.mxu0 0.0
    %5700 = vmatprep.subr.mxu0 0.0
    %5701 = vmatpush1.msra.mxu0 0.0
    %5702 = vmatprep.subr.mxu0 0.0
    %5703 = vmatpush1.msra.mxu0 0.0
    %5704 = vmatprep.subr.mxu0 0.0
    %5705 = vmatpush1.msra.mxu0 0.0
    %5706 = vmatprep.subr.mxu0 0.0
    %5707 = vmatpush1.msra.mxu0 0.0
    %5708 = vmatprep.subr.mxu0 0.0
    %5709 = vmatpush1.msra.mxu0 0.0
    %5710 = vmatprep.subr.mxu0 0.0
    %5711 = vmatpush1.msra.mxu0 0.0
    %5712 = vmatprep.subr.mxu0 0.0
    %5713 = vmatpush1.msra.mxu0 0.0
    %5714 = vmatprep.subr.mxu0 0.0
    %5715 = vmatpush1.msra.mxu0 0.0
    %5716 = vmatprep.subr.mxu0 0.0
    %5717 = vmatpush1.msra.mxu0 0.0
    %5718 = vmatprep.subr.mxu0 0.0
    %5719 = vmatpush1.msra.mxu0 0.0
    %5720 = vmatprep.subr.mxu0 0.0
    %5721 = vmatpush1.msra.mxu0 0.0
    %5722 = vmatprep.subr.mxu0 0.0
    %5723 = vmatpush1.msra.mxu0 0.0
    %5724 = vmatprep.subr.mxu0 0.0
    %5725 = vmatpush1.msra.mxu0 0.0
    %5726 = vmatprep.subr.mxu0 0.0
    %5727 = vmatpush1.msra.mxu0 0.0
    %5728 = vmatprep.subr.mxu0 0.0
    %5729 = vmatpush1.msra.mxu0 0.0
    %5730 = vmatprep.subr.mxu0 0.0
    %5731 = vmatpush1.msra.mxu0 0.0
    %5732 = vmatprep.subr.mxu0 0.0
    %5733 = vmatpush1.msra.mxu0 0.0
    %5734 = vmatprep.subr.mxu0 0.0
    %5735 = vmatpush1.msra.mxu0 0.0
    %5736 = vmatprep.subr.mxu0 0.0
    %5737 = vmatpush1.msra.mxu0 0.0
    %5738 = vmatprep.subr.mxu0 0.0
    %5739 = vmatpush1.msra.mxu0 0.0
    %5740 = vmatprep.subr.mxu0 0.0
    %5741 = vmatpush1.msra.mxu0 0.0
    %5742 = vmatprep.subr.mxu0 0.0
    %5743 = vmatpush1.msra.mxu0 0.0
    %5744 = vmatprep.subr.mxu0 0.0
    %5745 = vmatpush1.msra.mxu0 0.0
    %5746 = vmatprep.subr.mxu0 0.0
    %5747 = vmatpush1.msra.mxu0 0.0
    %5748 = vmatprep.subr.mxu0 0.0
    %5749 = vmatpush1.msra.mxu0 0.0
    %5750 = vmatprep.subr.mxu0 0.0
    %5751 = vmatpush1.msra.mxu0 0.0
    %5752 = vmatprep.subr.mxu0 0.0
    %5753 = vmatpush1.msra.mxu0 0.0
    %5754 = vmatprep.subr.mxu0 0.0
    %5755 = vmatpush1.msra.mxu0 0.0
    %5756 = vmatprep.subr.mxu0 0.0
    %5757 = vmatpush1.msra.mxu0 0.0
    %5758 = vmatprep.subr.mxu0 0.0
    %5759 = vmatpush1.msra.mxu0 0.0
    %5760 = vmatprep.mubr.f32.mxu0 0.0
    %5761 = vmatmul.mubr.f32.gmra.mrb[0].mxu0 %v5624
    %v5762 = vpop.f32.mrb[0].mxu0
    %v5763 = vadd.f32 0.0, %v5762
    %v5764 = vpop.f32.mrb[0].mxu0
    %5765 = vdwg.mxu0
    %v5766 = vadd.f32 %v3843, %v5693
    %v5767 = vsub.f32 0.0, %v5766
    %v5768 = vmul.f32 %v5767, 1.442695
    %v5769 = vpow.pop %v5768
    %v5770 = vadd.f32 %v5769, 1.0
    %v5771 = vrcp.pop %v5770
    %v5772 = vmul.f32 1.0, %v5771
    %v5773 = vadd.f32 %v3913, %v5763
    %v5774 = vsub.f32 0.0, %v5773
    %v5775 = vmul.f32 %v5774, 1.442695
    %v5776 = vpow.pop %v5775
    %v5777 = vadd.f32 %v5776, 1.0
    %v5778 = vrcp.pop %v5777
    %v5779 = vmul.f32 1.0, %v5778
    %5780 = vmatprep.subr.mxu0 0.0
    %5781 = vmatpush1.msra.mxu0 %v166
    %5782 = vmatprep.subr.mxu0 0.0
    %5783 = vmatpush1.msra.mxu0 0.0
    %5784 = vmatprep.subr.mxu0 0.0
    %5785 = vmatpush1.msra.mxu0 0.0
    %5786 = vmatprep.subr.mxu0 0.0
    %5787 = vmatpush1.msra.mxu0 0.0
    %5788 = vmatprep.subr.mxu0 0.0
    %5789 = vmatpush1.msra.mxu0 0.0
    %5790 = vmatprep.subr.mxu0 0.0
    %5791 = vmatpush1.msra.mxu0 0.0
    %5792 = vmatprep.subr.mxu0 0.0
    %5793 = vmatpush1.msra.mxu0 0.0
    %5794 = vmatprep.subr.mxu0 0.0
    %5795 = vmatpush1.msra.mxu0 0.0
    %5796 = vmatprep.subr.mxu0 0.0
    %5797 = vmatpush1.msra.mxu0 0.0
    %5798 = vmatprep.subr.mxu0 0.0
    %5799 = vmatpush1.msra.mxu0 0.0
    %5800 = vmatprep.subr.mxu0 0.0
    %5801 = vmatpush1.msra.mxu0 0.0
    %5802 = vmatprep.subr.mxu0 0.0
    %5803 = vmatpush1.msra.mxu0 0.0
    %5804 = vmatprep.subr.mxu0 0.0
    %5805 = vmatpush1.msra.mxu0 0.0
    %5806 = vmatprep.subr.mxu0 0.0
    %5807 = vmatpush1.msra.mxu0 0.0
    %5808 = vmatprep.subr.mxu0 0.0
    %5809 = vmatpush1.msra.mxu0 0.0
    %5810 = vmatprep.subr.mxu0 0.0
    %5811 = vmatpush1.msra.mxu0 0.0
    %5812 = vmatprep.subr.mxu0 0.0
    %5813 = vmatpush1.msra.mxu0 0.0
    %5814 = vmatprep.subr.mxu0 0.0
    %5815 = vmatpush1.msra.mxu0 0.0
    %5816 = vmatprep.subr.mxu0 0.0
    %5817 = vmatpush1.msra.mxu0 0.0
    %5818 = vmatprep.subr.mxu0 0.0
    %5819 = vmatpush1.msra.mxu0 0.0
    %5820 = vmatprep.subr.mxu0 0.0
    %5821 = vmatpush1.msra.mxu0 0.0
    %5822 = vmatprep.subr.mxu0 0.0
    %5823 = vmatpush1.msra.mxu0 0.0
    %5824 = vmatprep.subr.mxu0 0.0
    %5825 = vmatpush1.msra.mxu0 0.0
    %5826 = vmatprep.subr.mxu0 0.0
    %5827 = vmatpush1.msra.mxu0 0.0
    %5828 = vmatprep.subr.mxu0 0.0
    %5829 = vmatpush1.msra.mxu0 0.0
    %5830 = vmatprep.subr.mxu0 0.0
    %5831 = vmatpush1.msra.mxu0 0.0
    %5832 = vmatprep.subr.mxu0 0.0
    %5833 = vmatpush1.msra.mxu0 0.0
    %5834 = vmatprep.subr.mxu0 0.0
    %5835 = vmatpush1.msra.mxu0 0.0
    %5836 = vmatprep.subr.mxu0 0.0
    %5837 = vmatpush1.msra.mxu0 0.0
    %5838 = vmatprep.subr.mxu0 0.0
    %5839 = vmatpush1.msra.mxu0 0.0
    %5840 = vmatprep.subr.mxu0 0.0
    %5841 = vmatpush1.msra.mxu0 0.0
    %5842 = vmatprep.subr.mxu0 0.0
    %5843 = vmatpush1.msra.mxu0 0.0
    %5844 = vmatprep.mubr.f32.mxu0 0.0
    %5845 = vmatmul.mubr.f32.gmra.mrb[0].mxu0 %v5624
    %v5846 = vpop.f32.mrb[0].mxu0
    %v5847 = vadd.f32 %v4147, %v5846
    %v5848 = vpop.f32.mrb[0].mxu0
    %5849 = vdwg.mxu0
    %v5850 = vmul.f32 %v5772, %v5847
    %v5851 = vadd.f32 %v3983, %v5850
    %v5852 = vtanh.pop %v5851
    %v5853 = vsub.f32 %v5622, %v5852
    %v5854 = vmul.f32 %v5779, %v5853
    %v5855 = vadd.f32 %v5852, %v5854
    %5856 = vrot.lane.b32.xlu0 %v4457, 8
    %v5857 = vpop.permute.xlu0 %5856
    %5859 = vrot.lane.b32.xlu0 %v4690, 16
    %v5860 = vpop.permute.xlu0 %5859
    %5862 = vrot.lane.b32.xlu0 %v4923, 24
    %v5863 = vpop.permute.xlu0 %5862
    %5865 = vrot.lane.b32.xlu0 %v5156, 32
    %v5866 = vpop.permute.xlu0 %5865
    %5868 = vrot.lane.b32.xlu0 %v5389, 40
    %v5869 = vpop.permute.xlu0 %5868
    %5871 = vrot.lane.b32.xlu0 %v5622, 48
    %v5872 = vpop.permute.xlu0 %5871
    %5875 = vrot.lane.b32.xlu0 %v5855, 56
    %v5876 = vpop.permute.xlu0 %5875
    %v5878 = vsel %vm3986, %v4224, %v5857
    %v5879 = vsel %vm182, %v5878, %v5860
    %vm5880 = vcmask 195584
    %v5881 = vsel %vm5880, %v5879, %v5863
    %v5882 = vsel %vm414, %v5881, %v5866
    %vm5883 = vcmask 326656
    %v5884 = vsel %vm5883, %v5882, %v5869
    %vm5885 = vcmask 392192
    %v5886 = vsel %vm5885, %v5884, %v5872
    %vm5887 = vcmask 457728
    %v5888 = vsel %vm5887, %v5886, %v5876
    %vm5889 = vcmask 523264
    %v5890 = vsel %vm5889, %v5888, 0.0
    %5891 = vst [vmem:[%s21] sm:$0x3] %v5890
    // Predicated region
    $region110: #{decoder_forward.1} parent=1 // pred_check
      _
    $region111: #{decoder_forward.1} parent=1 // pred_check_branch
      %5893 = sbr.rel (0) target = $region113
    $region112: #{decoder_forward.1} parent=1 // pred_region
      _
    $region113: #{decoder_forward.1} parent=1 // pred_fallthru
      _
    // Predicated region
    $region114: #{decoder_forward.1} parent=1 // pred_check
      _
    $region115: #{decoder_forward.1} parent=1 // pred_check_branch
      %5895 = sbr.rel (0) target = $region117
    $region116: #{decoder_forward.1} parent=1 // pred_region
      _
    $region117: #{decoder_forward.1} parent=1 // pred_fallthru
      _
    %5896 = vsyncpa [#allocation3], 1
    %5897 = vsyncpa [#allocation5], 1
    %5898 = vsyncpa [#allocation8], 1
    %5899 = vsyncpa [#allocation11], 1

</llo_original>
